<compile_context>
chip_gen: v5e
topology: v5e:2x2
jax: 0.10.0
libtpu: 0.0.40
codegen_flags: <defaults>
</compile_context>

<pallas_src>
import functools

import jax
import jax.numpy as jnp
from jax.experimental import pallas as pl
from jax.experimental.pallas import tpu as pltpu

BN_EPS = 1e-5


def _round_up(x, m):
    return ((x + m - 1) // m) * m


# ---------------------------------------------------------------------------
# Pallas kernels
# ---------------------------------------------------------------------------
def _make_mm_kernel(has_bias, has_relu):
    """Fused (patches @ W) [+ bias] [+ ReLU], cast to output dtype."""
    if has_bias:
        def kernel(p_ref, w_ref, b_ref, o_ref):
            y = jnp.dot(p_ref[...], w_ref[...], preferred_element_type=jnp.float32)
            y = y + b_ref[...]
            if has_relu:
                y = jnp.maximum(y, 0.0)
            o_ref[...] = y.astype(o_ref.dtype)
    else:
        def kernel(p_ref, w_ref, o_ref):
            y = jnp.dot(p_ref[...], w_ref[...], preferred_element_type=jnp.float32)
            if has_relu:
                y = jnp.maximum(y, 0.0)
            o_ref[...] = y.astype(o_ref.dtype)
    return kernel


def _mm_bn_relu_kernel(p_ref, w_ref, g_ref, b_ref, o_ref):
    """Conv (bias=False) + training-mode BatchNorm + ReLU, fully fused.

    The whole patch matrix is one block, so the in-kernel sums ARE the full-batch
    statistics (no padded rows -> cnt is exact)."""
    y = jnp.dot(p_ref[...], w_ref[...], preferred_element_type=jnp.float32)
    cnt = float(y.shape[0])
    mean = jnp.sum(y, axis=0, keepdims=True) / cnt
    var = jnp.sum(y * y, axis=0, keepdims=True) / cnt - mean * mean
    var = jnp.maximum(var, 0.0)                       # guard E[y^2]-E[y]^2 cancellation
    scale = g_ref[...] * jax.lax.rsqrt(var + BN_EPS)
    shift = b_ref[...] - mean * scale
    o_ref[...] = jnp.maximum(y * scale + shift, 0.0).astype(o_ref.dtype)


def _make_deconv_bn_relu_kernel(cpad):
    """ConvTranspose (sub-pixel form, 4 phases) + bias + BN + ReLU, fully fused.

    Columns are phase-major [4, cpad] with cpad a multiple of 128, so phase pooling
    and per-phase affine use lane-aligned static slices only."""
    def kernel(p_ref, w_ref, bias_ref, g_ref, b_ref, o_ref):
        y = jnp.dot(p_ref[...], w_ref[...], preferred_element_type=jnp.float32)
        y = y + bias_ref[...]
        s = jnp.sum(y, axis=0, keepdims=True)         # [1, 4*cpad]
        sq = jnp.sum(y * y, axis=0, keepdims=True)
        s_c = (s[:, 0:cpad] + s[:, cpad:2 * cpad]
               + s[:, 2 * cpad:3 * cpad] + s[:, 3 * cpad:4 * cpad])
        sq_c = (sq[:, 0:cpad] + sq[:, cpad:2 * cpad]
                + sq[:, 2 * cpad:3 * cpad] + sq[:, 3 * cpad:4 * cpad])
        cnt = float(y.shape[0] * 4)                   # pooled over the 4 phases
        mean = s_c / cnt
        var = jnp.maximum(sq_c / cnt - mean * mean, 0.0)
        scale = g_ref[...] * jax.lax.rsqrt(var + BN_EPS)   # [1, cpad]
        shift = b_ref[...] - mean * scale
        for g in range(4):                            # lane-aligned per-phase stores
            yg = y[:, g * cpad:(g + 1) * cpad]
            o_ref[:, g * cpad:(g + 1) * cpad] = (
                jnp.maximum(yg * scale + shift, 0.0).astype(o_ref.dtype))
    return kernel


# ---------------------------------------------------------------------------
# pallas_call wrappers
# ---------------------------------------------------------------------------
def _pick_row_tile(r):
    """Largest sublane-aligned divisor of r giving >=2 grid steps (v7x megacore)."""
    for cand in (512, 256, 128, 64, 32, 16, 8):
        if 2 * cand <= r and r % cand == 0:
            return cand
    return r  # fall back to a single full-extent block


def _matmul_act(patches, w_mat, bias, has_relu, out_dtype):
    R, K = patches.shape
    Cp = w_mat.shape[1]
    tr = _pick_row_tile(R)
    rt = R // tr
    has_bias = bias is not None
    in_specs = [pl.BlockSpec((tr, K), lambda i: (i, 0)),
                pl.BlockSpec((K, Cp), lambda i: (0, 0))]
    args = [patches, w_mat]
    if has_bias:
        in_specs.append(pl.BlockSpec((1, Cp), lambda i: (0, 0)))
        args.append(bias)
    return pl.pallas_call(
        _make_mm_kernel(has_bias, has_relu),
        out_shape=jax.ShapeDtypeStruct((R, Cp), out_dtype),
        grid=(rt,),
        in_specs=in_specs,
        out_specs=pl.BlockSpec((tr, Cp), lambda i: (i, 0)),
        compiler_params=pltpu.CompilerParams(dimension_semantics=("parallel",)),
    )(*args)


def _matmul_bn_relu(patches, w_mat, gamma, beta, out_dtype):
    R, K = patches.shape
    Cp = w_mat.shape[1]
    return pl.pallas_call(
        _mm_bn_relu_kernel,
        out_shape=jax.ShapeDtypeStruct((R, Cp), out_dtype),
        grid=(1,),
        in_specs=[pl.BlockSpec((R, K), lambda i: (0, 0)),
                  pl.BlockSpec((K, Cp), lambda i: (0, 0)),
                  pl.BlockSpec((1, Cp), lambda i: (0, 0)),
                  pl.BlockSpec((1, Cp), lambda i: (0, 0))],
        out_specs=pl.BlockSpec((R, Cp), lambda i: (0, 0)),
        compiler_params=pltpu.CompilerParams(dimension_semantics=("arbitrary",)),
    )(patches, w_mat, gamma, beta)


def _deconv_bn_relu(patches, w_big, bias, gamma, beta, cpad, out_dtype):
    R, K = patches.shape
    Cp = w_big.shape[1]                                # == 4 * cpad
    return pl.pallas_call(
        _make_deconv_bn_relu_kernel(cpad),
        out_shape=jax.ShapeDtypeStruct((R, Cp), out_dtype),
        grid=(1,),
        in_specs=[pl.BlockSpec((R, K), lambda i: (0, 0)),
                  pl.BlockSpec((K, Cp), lambda i: (0, 0)),
                  pl.BlockSpec((1, Cp), lambda i: (0, 0)),
                  pl.BlockSpec((1, cpad), lambda i: (0, 0)),
                  pl.BlockSpec((1, cpad), lambda i: (0, 0))],
        out_specs=pl.BlockSpec((R, Cp), lambda i: (0, 0)),
        compiler_params=pltpu.CompilerParams(dimension_semantics=("arbitrary",)),
    )(patches, w_big, bias, gamma, beta)


# ---------------------------------------------------------------------------
# Plain-JAX glue: NHWC im2col (K zero-padded to the weight's row count)
# ---------------------------------------------------------------------------
def _im2col_nhwc(x, k, stride, pad, kpad):
    """x: [N,H,W,C] -> patches [N*Ho*Wo, kpad] (window-offset major, channel minor)."""
    N, H, W, C = x.shape
    xp = jnp.pad(x, ((0, 0), (pad, pad), (pad, pad), (0, 0)))
    Ho = (H + 2 * pad - k) // stride + 1
    Wo = (W + 2 * pad - k) // stride + 1
    wins = [xp[:, i:i + stride * Ho:stride, j:j + stride * Wo:stride, :]
            for i in range(k) for j in range(k)]
    p = jnp.stack(wins, axis=3).reshape(N * Ho * Wo, k * k * C)
    if kpad > k * k * C:
        p = jnp.pad(p, ((0, 0), (0, kpad - k * k * C)))
    return p, Ho, Wo


def _conv_layer(x, w_mat, gamma, beta, *, cout, has_bn, has_relu):
    n = x.shape[0]
    kpad = w_mat.shape[0]
    patches, ho, wo = _im2col_nhwc(x, 4, 2, 1, kpad)
    if has_bn:
        y = _matmul_bn_relu(patches, w_mat, gamma, beta, jnp.bfloat16)
    else:
        y = _matmul_act(patches, w_mat, None, has_relu, jnp.bfloat16)
    return y.reshape(n, ho, wo, -1)[..., :cout]


def _deconv_layer(x, w_big, bias, gamma, beta, *, cout, cpad, has_bn, has_relu,
                  out_dtype=jnp.bfloat16):
    """ConvTranspose2d(k=4, s=2, p=1) via sub-pixel decomposition: a k=3/s=1 conv with
    the precombined weight [kpad, 4*cpad], then a pixel-shuffle of the 4 phases."""
    n, hh, ww, _ = x.shape
    kpad = w_big.shape[0]
    patches, _, _ = _im2col_nhwc(x, 3, 1, 1, kpad)     # [N*H*W, kpad]
    if has_bn:
        y = _deconv_bn_relu(patches, w_big, bias, gamma, beta, cpad, jnp.bfloat16)
    else:
        y = _matmul_act(patches, w_big, bias, has_relu, out_dtype)
    # pixel shuffle: [R, 4*cpad] -> [N, 2H, 2W, cout]
    y = y.reshape(n, hh, ww, 2, 2, cpad)[..., :cout]
    y = jnp.transpose(y, (0, 1, 3, 2, 4, 5)).reshape(n, 2 * hh, 2 * ww, cout)
    return y


# ---------------------------------------------------------------------------
# Parameter construction (deterministic, synthetic); weights pre-packed once
# ---------------------------------------------------------------------------
def _pack_conv_weight(w_pt, cpad, kpad):
    """PyTorch Conv2d weight [Cout,Cin,k,k] -> [kpad, cpad] bf16 (zero-padded)."""
    cout, cin, k, _ = w_pt.shape
    w = jnp.transpose(w_pt, (2, 3, 1, 0)).reshape(k * k * cin, cout)
    w = jnp.pad(w, ((0, kpad - k * k * cin), (0, cpad - cout)))
    return w.astype(jnp.bfloat16)


def _pack_deconv_weight(wt_pt, cpad, kpad):
    """PyTorch ConvTranspose2d weight [Cin,Cout,4,4] -> sub-pixel combined weight
    [kpad, 4*cpad] bf16 (columns phase-major, channel-minor)."""
    cin, cout = wt_pt.shape[0], wt_pt.shape[1]
    wb = jnp.zeros((3, 3, cin, 4, cpad), jnp.float32)
    for r in range(2):
        for s in range(2):
            g = r * 2 + s
            for ty in range(2):
                for tx in range(2):
                    ky = 3 - r - 2 * ty
                    kx = 3 - s - 2 * tx
                    wb = wb.at[r + ty, s + tx, :, g, :cout].set(wt_pt[:, :, ky, kx])
    w = wb.reshape(9 * cin, 4 * cpad)
    w = jnp.pad(w, ((0, kpad - 9 * cin), (0, 0)))
    return w.astype(jnp.bfloat16)


def _pack_deconv_bias(b, cpad):
    cout = b.shape[-1]
    bb = jnp.zeros((4, cpad), jnp.float32)
    bb = bb.at[:, :cout].set(jnp.broadcast_to(b.reshape(1, -1), (4, cout)))
    return bb.reshape(1, 4 * cpad)


def init_wae_params(key, n_channel=1, dim_h=16):
    h = dim_h

    def nrm(k, shape, scale=0.05):
        return jax.random.normal(k, shape, jnp.float32) * scale

    keys = jax.random.split(key, 32)
    ki = iter(keys)
    p = {}
    # Encoder: Conv2d(cin->cout, 4, 2, 1, bias=False) [+ BN] + ReLU
    enc = [(n_channel, h, False), (h, 2 * h, True), (2 * h, 4 * h, True), (4 * h, 8 * h, True)]
    for idx, (cin, cout, has_bn) in enumerate(enc, start=1):
        cpad = _round_up(cout, 128)
        kpad = _round_up(16 * cin, 128)
        p[f"e{idx}_w"] = _pack_conv_weight(nrm(next(ki), (cout, cin, 4, 4)), cpad, kpad)
        if has_bn:
            p[f"e{idx}_g"] = jnp.pad(1.0 + nrm(next(ki), (cout,), 0.02),
                                     (0, cpad - cout)).reshape(1, -1)
            p[f"e{idx}_b"] = jnp.pad(nrm(next(ki), (cout,), 0.02),
                                     (0, cpad - cout)).reshape(1, -1)
    # Decoder: ConvTranspose2d(cin->cout, 4, 2, 1) [+ BN] [+ ReLU]
    dec = [(8 * h, 4 * h, True), (4 * h, 2 * h, True), (2 * h, h, False), (h, n_channel, False)]
    for idx, (cin, cout, has_bn) in enumerate(dec, start=1):
        cpad = _round_up(cout, 128)   # lane-aligned phase slices in the fused BN kernel
        kpad = _round_up(9 * cin, 128)
        p[f"d{idx}_w"] = _pack_deconv_weight(nrm(next(ki), (cin, cout, 4, 4)), cpad, kpad)
        p[f"d{idx}_bias"] = _pack_deconv_bias(nrm(next(ki), (cout,), 0.02), cpad)
        if has_bn:
            p[f"d{idx}_g"] = jnp.pad(1.0 + nrm(next(ki), (cout,), 0.02),
                                     (0, cpad - cout)).reshape(1, -1)
            p[f"d{idx}_b"] = jnp.pad(nrm(next(ki), (cout,), 0.02),
                                     (0, cpad - cout)).reshape(1, -1)
    return p


# ---------------------------------------------------------------------------
# Full Wae forward
# ---------------------------------------------------------------------------
@functools.partial(jax.jit, static_argnames=("n_channel", "dim_h"))
def wae_forward(params, x, n_channel=1, dim_h=16):
    h = dim_h
    p = params
    # NCHW -> NHWC and f32 -> bf16 once at the boundary
    y = jnp.transpose(x, (0, 2, 3, 1)).astype(jnp.bfloat16)

    # ---- Encoder ----
    y = _conv_layer(y, p["e1_w"], None, None, cout=h, has_bn=False, has_relu=True)
    y = _conv_layer(y, p["e2_w"], p["e2_g"], p["e2_b"], cout=2 * h, has_bn=True, has_relu=True)
    y = _conv_layer(y, p["e3_w"], p["e3_g"], p["e3_b"], cout=4 * h, has_bn=True, has_relu=True)
    y = _conv_layer(y, p["e4_w"], p["e4_g"], p["e4_b"], cout=8 * h, has_bn=True, has_relu=True)

    # ---- Decoder ----
    y = _deconv_layer(y, p["d1_w"], p["d1_bias"], p["d1_g"], p["d1_b"],
                      cout=4 * h, cpad=_round_up(4 * h, 128), has_bn=True, has_relu=True)
    y = _deconv_layer(y, p["d2_w"], p["d2_bias"], p["d2_g"], p["d2_b"],
                      cout=2 * h, cpad=_round_up(2 * h, 128), has_bn=True, has_relu=True)
    y = _deconv_layer(y, p["d3_w"], p["d3_bias"], None, None,
                      cout=h, cpad=_round_up(h, 128), has_bn=False, has_relu=True)
    y = _deconv_layer(y, p["d4_w"], p["d4_bias"], None, None,
                      cout=n_channel, cpad=_round_up(n_channel, 128),
                      has_bn=False, has_relu=False, out_dtype=jnp.float32)

    return jnp.transpose(y, (0, 3, 1, 2)).astype(jnp.float32)   # NHWC -> NCHW


if __name__ == "__main__":
    n_channel, dim_h = 1, 16
    N, H, W = 2, 32, 32  # spatial must be divisible by 16 (4x stride-2 downsampling)

    key = jax.random.PRNGKey(0)
    k_param, k_x = jax.random.split(key)
    params = init_wae_params(k_param, n_channel=n_channel, dim_h=dim_h)
    x = jax.random.normal(k_x, (N, n_channel, H, W), jnp.float32)

    out = wae_forward(params, x, n_channel=n_channel, dim_h=dim_h)
    out = jax.block_until_ready(out)
    assert out.shape == (N, n_channel, H, W), out.shape
    assert out.dtype == jnp.float32
    assert bool(jnp.all(jnp.isfinite(out)))
    print("KERNEL_OK")
</pallas_src>

<mosaic_0001>
module attributes {stable_mosaic.version = 11 : i64} {
  func.func @kernel(%arg0: i32, %arg1: memref<256x128xbf16, #tpu.memory_space<vmem>>, %arg2: memref<128x128xbf16, #tpu.memory_space<vmem>>, %arg3: memref<256x128xbf16, #tpu.memory_space<vmem>>) attributes {dimension_semantics = [#tpu.dimension_semantics<parallel>], iteration_bounds = array<i64: 2>, scalar_prefetch = 0 : i64, scratch_operands = 0 : i64, tpu.core_type = #tpu.core_type<tc>, window_params = [{transform_indices = @transform_0, window_bounds = array<i64: 256, 128>}, {pipeline_mode = #tpu.pipeline_mode<synchronous>, transform_indices = @transform_1, window_bounds = array<i64: 128, 128>}, {transform_indices = @transform_2, window_bounds = array<i64: 256, 128>}]} {
    %c0 = arith.constant 0 : index
    %c0_0 = arith.constant 0 : index
    %0 = vector.load %arg1[%c0, %c0_0] : memref<256x128xbf16, #tpu.memory_space<vmem>>, vector<256x128xbf16>
    %c0_1 = arith.constant 0 : index
    %c0_2 = arith.constant 0 : index
    %1 = vector.load %arg2[%c0_1, %c0_2] : memref<128x128xbf16, #tpu.memory_space<vmem>>, vector<128x128xbf16>
    %cst = arith.constant dense<0.000000e+00> : vector<256x128xf32>
    %2 = tpu.matmul %0, %1, %cst {dimension_numbers = #tpu.dot_dimension_numbers<[1], [0], [0], [1], [0, 0, 1, 1], [], []>} : vector<256x128xbf16>, vector<128x128xbf16>, vector<256x128xf32> -> vector<256x128xf32>
    %cst_3 = arith.constant 0.000000e+00 : f32
    %3 = vector.broadcast %cst_3 : f32 to vector<256x128xf32>
    %4 = arith.maximumf %2, %3 : vector<256x128xf32>
    %5 = arith.truncf %4 : vector<256x128xf32> to vector<256x128xbf16>
    %c0_4 = arith.constant 0 : index
    %c0_5 = arith.constant 0 : index
    %6 = vector.load %arg3[%c0_4, %c0_5] : memref<256x128xbf16, #tpu.memory_space<vmem>>, vector<256x128xbf16>
    tpu.vector_store %arg3[%c0_4, %c0_5], %5 {strides = array<i32>} : memref<256x128xbf16, #tpu.memory_space<vmem>>, vector<256x128xbf16>,
    return
  }
  func.func @transform_0(%arg0: i32) -> (i32, i32) {
    %c0_i32 = arith.constant 0 : i32
    %c0_i32_0 = arith.constant 0 : i32
    return %arg0, %c0_i32 : i32, i32
  }
  func.func @transform_1(%arg0: i32) -> (i32, i32) {
    %c0_i32 = arith.constant 0 : i32
    %c0_i32_0 = arith.constant 0 : i32
    %c0_i32_1 = arith.constant 0 : i32
    return %c0_i32, %c0_i32_0 : i32, i32
  }
  func.func @transform_2(%arg0: i32) -> (i32, i32) {
    %c0_i32 = arith.constant 0 : i32
    %c0_i32_0 = arith.constant 0 : i32
    return %arg0, %c0_i32 : i32, i32
  }
}

module attributes {stable_mosaic.version = 11 : i64} {
  func.func @_mm_bn_relu_kernel(%arg0: i32, %arg1: memref<128x256xbf16, #tpu.memory_space<vmem>>, %arg2: memref<256x128xbf16, #tpu.memory_space<vmem>>, %arg3: memref<1x128xf32, #tpu.memory_space<vmem>>, %arg4: memref<1x128xf32, #tpu.memory_space<vmem>>, %arg5: memref<128x128xbf16, #tpu.memory_space<vmem>>) attributes {dimension_semantics = [#tpu.dimension_semantics<arbitrary>], iteration_bounds = array<i64: 1>, scalar_prefetch = 0 : i64, scratch_operands = 0 : i64, tpu.core_type = #tpu.core_type<tc>, window_params = [{pipeline_mode = #tpu.pipeline_mode<synchronous>, transform_indices = @transform_0, window_bounds = array<i64: 128, 256>}, {pipeline_mode = #tpu.pipeline_mode<synchronous>, transform_indices = @transform_1, window_bounds = array<i64: 256, 128>}, {pipeline_mode = #tpu.pipeline_mode<synchronous>, transform_indices = @transform_2, window_bounds = array<i64: 1, 128>}, {pipeline_mode = #tpu.pipeline_mode<synchronous>, transform_indices = @transform_3, window_bounds = array<i64: 1, 128>}, {pipeline_mode = #tpu.pipeline_mode<synchronous>, transform_indices = @transform_4, window_bounds = array<i64: 128, 128>}]} {
    %c0 = arith.constant 0 : index
    %c0_0 = arith.constant 0 : index
    %0 = vector.load %arg1[%c0, %c0_0] : memref<128x256xbf16, #tpu.memory_space<vmem>>, vector<128x256xbf16>
    %c0_1 = arith.constant 0 : index
    %c0_2 = arith.constant 0 : index
    %1 = vector.load %arg2[%c0_1, %c0_2] : memref<256x128xbf16, #tpu.memory_space<vmem>>, vector<256x128xbf16>
    %cst = arith.constant dense<0.000000e+00> : vector<128x128xf32>
    %2 = tpu.matmul %0, %1, %cst {dimension_numbers = #tpu.dot_dimension_numbers<[1], [0], [0], [1], [0, 0, 1, 1], [], []>} : vector<128x256xbf16>, vector<256x128xbf16>, vector<128x128xf32> -> vector<128x128xf32>
    %cst_3 = arith.constant dense<0.000000e+00> : vector<128xf32>
    %3 = vector.multi_reduction <add>, %2, %cst_3 [0] : vector<128x128xf32> to vector<128xf32>
    %4 = vector.shape_cast %3 : vector<128xf32> to vector<1x128xf32>
    %cst_4 = arith.constant 1.280000e+02 : f32
    %5 = vector.broadcast %cst_4 : f32 to vector<1x128xf32>
    %6 = arith.divf %4, %5 : vector<1x128xf32>
    %7 = arith.mulf %2, %2 : vector<128x128xf32>
    %cst_5 = arith.constant dense<0.000000e+00> : vector<128xf32>
    %8 = vector.multi_reduction <add>, %7, %cst_5 [0] : vector<128x128xf32> to vector<128xf32>
    %9 = vector.shape_cast %8 : vector<128xf32> to vector<1x128xf32>
    %cst_6 = arith.constant 1.280000e+02 : f32
    %10 = vector.broadcast %cst_6 : f32 to vector<1x128xf32>
    %11 = arith.divf %9, %10 : vector<1x128xf32>
    %12 = arith.mulf %6, %6 : vector<1x128xf32>
    %13 = arith.subf %11, %12 : vector<1x128xf32>
    %cst_7 = arith.constant 0.000000e+00 : f32
    %14 = vector.broadcast %cst_7 : f32 to vector<1x128xf32>
    %15 = arith.maximumf %13, %14 : vector<1x128xf32>
    %c0_8 = arith.constant 0 : index
    %c0_9 = arith.constant 0 : index
    %16 = vector.load %arg3[%c0_8, %c0_9] : memref<1x128xf32, #tpu.memory_space<vmem>>, vector<1x128xf32>
    %cst_10 = arith.constant 9.99999974E-6 : f32
    %17 = vector.broadcast %cst_10 : f32 to vector<1x128xf32>
    %18 = arith.addf %15, %17 : vector<1x128xf32>
    %19 = math.rsqrt %18 : vector<1x128xf32>
    %20 = arith.mulf %16, %19 : vector<1x128xf32>
    %c0_11 = arith.constant 0 : index
    %c0_12 = arith.constant 0 : index
    %21 = vector.load %arg4[%c0_11, %c0_12] : memref<1x128xf32, #tpu.memory_space<vmem>>, vector<1x128xf32>
    %22 = arith.mulf %6, %20 : vector<1x128xf32>
    %23 = arith.subf %21, %22 : vector<1x128xf32>
    %24 = vector.broadcast %20 : vector<1x128xf32> to vector<128x128xf32>
    %25 = arith.mulf %2, %24 : vector<128x128xf32>
    %26 = vector.broadcast %23 : vector<1x128xf32> to vector<128x128xf32>
    %27 = arith.addf %25, %26 : vector<128x128xf32>
    %cst_13 = arith.constant 0.000000e+00 : f32
    %28 = vector.broadcast %cst_13 : f32 to vector<128x128xf32>
    %29 = arith.maximumf %27, %28 : vector<128x128xf32>
    %30 = arith.truncf %29 : vector<128x128xf32> to vector<128x128xbf16>
    %c0_14 = arith.constant 0 : index
    %c0_15 = arith.constant 0 : index
    %31 = vector.load %arg5[%c0_14, %c0_15] : memref<128x128xbf16, #tpu.memory_space<vmem>>, vector<128x128xbf16>
    tpu.vector_store %arg5[%c0_14, %c0_15], %30 {strides = array<i32>} : memref<128x128xbf16, #tpu.memory_space<vmem>>, vector<128x128xbf16>,
    return
  }
  func.func @transform_0(%arg0: i32) -> (i32, i32) {
    %c0_i32 = arith.constant 0 : i32
    %c0_i32_0 = arith.constant 0 : i32
    %c0_i32_1 = arith.constant 0 : i32
    return %c0_i32, %c0_i32_0 : i32, i32
  }
  func.func @transform_1(%arg0: i32) -> (i32, i32) {
    %c0_i32 = arith.constant 0 : i32
    %c0_i32_0 = arith.constant 0 : i32
    %c0_i32_1 = arith.constant 0 : i32
    return %c0_i32, %c0_i32_0 : i32, i32
  }
  func.func @transform_2(%arg0: i32) -> (i32, i32) {
    %c0_i32 = arith.constant 0 : i32
    %c0_i32_0 = arith.constant 0 : i32
    %c0_i32_1 = arith.constant 0 : i32
    return %c0_i32, %c0_i32_0 : i32, i32
  }
  func.func @transform_3(%arg0: i32) -> (i32, i32) {
    %c0_i32 = arith.constant 0 : i32
    %c0_i32_0 = arith.constant 0 : i32
    %c0_i32_1 = arith.constant 0 : i32
    return %c0_i32, %c0_i32_0 : i32, i32
  }
  func.func @transform_4(%arg0: i32) -> (i32, i32) {
    %c0_i32 = arith.constant 0 : i32
    %c0_i32_0 = arith.constant 0 : i32
    %c0_i32_1 = arith.constant 0 : i32
    return %c0_i32, %c0_i32_0 : i32, i32
  }
}

module attributes {stable_mosaic.version = 11 : i64} {
  func.func @_mm_bn_relu_kernel(%arg0: i32, %arg1: memref<32x512xbf16, #tpu.memory_space<vmem>>, %arg2: memref<512x128xbf16, #tpu.memory_space<vmem>>, %arg3: memref<1x128xf32, #tpu.memory_space<vmem>>, %arg4: memref<1x128xf32, #tpu.memory_space<vmem>>, %arg5: memref<32x128xbf16, #tpu.memory_space<vmem>>) attributes {dimension_semantics = [#tpu.dimension_semantics<arbitrary>], iteration_bounds = array<i64: 1>, scalar_prefetch = 0 : i64, scratch_operands = 0 : i64, tpu.core_type = #tpu.core_type<tc>, window_params = [{pipeline_mode = #tpu.pipeline_mode<synchronous>, transform_indices = @transform_0, window_bounds = array<i64: 32, 512>}, {pipeline_mode = #tpu.pipeline_mode<synchronous>, transform_indices = @transform_1, window_bounds = array<i64: 512, 128>}, {pipeline_mode = #tpu.pipeline_mode<synchronous>, transform_indices = @transform_2, window_bounds = array<i64: 1, 128>}, {pipeline_mode = #tpu.pipeline_mode<synchronous>, transform_indices = @transform_3, window_bounds = array<i64: 1, 128>}, {pipeline_mode = #tpu.pipeline_mode<synchronous>, transform_indices = @transform_4, window_bounds = array<i64: 32, 128>}]} {
    %c0 = arith.constant 0 : index
    %c0_0 = arith.constant 0 : index
    %0 = vector.load %arg1[%c0, %c0_0] : memref<32x512xbf16, #tpu.memory_space<vmem>>, vector<32x512xbf16>
    %c0_1 = arith.constant 0 : index
    %c0_2 = arith.constant 0 : index
    %1 = vector.load %arg2[%c0_1, %c0_2] : memref<512x128xbf16, #tpu.memory_space<vmem>>, vector<512x128xbf16>
    %cst = arith.constant dense<0.000000e+00> : vector<32x128xf32>
    %2 = tpu.matmul %0, %1, %cst {dimension_numbers = #tpu.dot_dimension_numbers<[1], [0], [0], [1], [0, 0, 1, 1], [], []>} : vector<32x512xbf16>, vector<512x128xbf16>, vector<32x128xf32> -> vector<32x128xf32>
    %cst_3 = arith.constant dense<0.000000e+00> : vector<128xf32>
    %3 = vector.multi_reduction <add>, %2, %cst_3 [0] : vector<32x128xf32> to vector<128xf32>
    %4 = vector.shape_cast %3 : vector<128xf32> to vector<1x128xf32>
    %cst_4 = arith.constant 3.200000e+01 : f32
    %5 = vector.broadcast %cst_4 : f32 to vector<1x128xf32>
    %6 = arith.divf %4, %5 : vector<1x128xf32>
    %7 = arith.mulf %2, %2 : vector<32x128xf32>
    %cst_5 = arith.constant dense<0.000000e+00> : vector<128xf32>
    %8 = vector.multi_reduction <add>, %7, %cst_5 [0] : vector<32x128xf32> to vector<128xf32>
    %9 = vector.shape_cast %8 : vector<128xf32> to vector<1x128xf32>
    %cst_6 = arith.constant 3.200000e+01 : f32
    %10 = vector.broadcast %cst_6 : f32 to vector<1x128xf32>
    %11 = arith.divf %9, %10 : vector<1x128xf32>
    %12 = arith.mulf %6, %6 : vector<1x128xf32>
    %13 = arith.subf %11, %12 : vector<1x128xf32>
    %cst_7 = arith.constant 0.000000e+00 : f32
    %14 = vector.broadcast %cst_7 : f32 to vector<1x128xf32>
    %15 = arith.maximumf %13, %14 : vector<1x128xf32>
    %c0_8 = arith.constant 0 : index
    %c0_9 = arith.constant 0 : index
    %16 = vector.load %arg3[%c0_8, %c0_9] : memref<1x128xf32, #tpu.memory_space<vmem>>, vector<1x128xf32>
    %cst_10 = arith.constant 9.99999974E-6 : f32
    %17 = vector.broadcast %cst_10 : f32 to vector<1x128xf32>
    %18 = arith.addf %15, %17 : vector<1x128xf32>
    %19 = math.rsqrt %18 : vector<1x128xf32>
    %20 = arith.mulf %16, %19 : vector<1x128xf32>
    %c0_11 = arith.constant 0 : index
    %c0_12 = arith.constant 0 : index
    %21 = vector.load %arg4[%c0_11, %c0_12] : memref<1x128xf32, #tpu.memory_space<vmem>>, vector<1x128xf32>
    %22 = arith.mulf %6, %20 : vector<1x128xf32>
    %23 = arith.subf %21, %22 : vector<1x128xf32>
    %24 = vector.broadcast %20 : vector<1x128xf32> to vector<32x128xf32>
    %25 = arith.mulf %2, %24 : vector<32x128xf32>
    %26 = vector.broadcast %23 : vector<1x128xf32> to vector<32x128xf32>
    %27 = arith.addf %25, %26 : vector<32x128xf32>
    %cst_13 = arith.constant 0.000000e+00 : f32
    %28 = vector.broadcast %cst_13 : f32 to vector<32x128xf32>
    %29 = arith.maximumf %27, %28 : vector<32x128xf32>
    %30 = arith.truncf %29 : vector<32x128xf32> to vector<32x128xbf16>
    %c0_14 = arith.constant 0 : index
    %c0_15 = arith.constant 0 : index
    %31 = vector.load %arg5[%c0_14, %c0_15] : memref<32x128xbf16, #tpu.memory_space<vmem>>, vector<32x128xbf16>
    tpu.vector_store %arg5[%c0_14, %c0_15], %30 {strides = array<i32>} : memref<32x128xbf16, #tpu.memory_space<vmem>>, vector<32x128xbf16>,
    return
  }
  func.func @transform_0(%arg0: i32) -> (i32, i32) {
    %c0_i32 = arith.constant 0 : i32
    %c0_i32_0 = arith.constant 0 : i32
    %c0_i32_1 = arith.constant 0 : i32
    return %c0_i32, %c0_i32_0 : i32, i32
  }
  func.func @transform_1(%arg0: i32) -> (i32, i32) {
    %c0_i32 = arith.constant 0 : i32
    %c0_i32_0 = arith.constant 0 : i32
    %c0_i32_1 = arith.constant 0 : i32
    return %c0_i32, %c0_i32_0 : i32, i32
  }
  func.func @transform_2(%arg0: i32) -> (i32, i32) {
    %c0_i32 = arith.constant 0 : i32
    %c0_i32_0 = arith.constant 0 : i32
    %c0_i32_1 = arith.constant 0 : i32
    return %c0_i32, %c0_i32_0 : i32, i32
  }
  func.func @transform_3(%arg0: i32) -> (i32, i32) {
    %c0_i32 = arith.constant 0 : i32
    %c0_i32_0 = arith.constant 0 : i32
    %c0_i32_1 = arith.constant 0 : i32
    return %c0_i32, %c0_i32_0 : i32, i32
  }
  func.func @transform_4(%arg0: i32) -> (i32, i32) {
    %c0_i32 = arith.constant 0 : i32
    %c0_i32_0 = arith.constant 0 : i32
    %c0_i32_1 = arith.constant 0 : i32
    return %c0_i32, %c0_i32_0 : i32, i32
  }
}

module attributes {stable_mosaic.version = 11 : i64} {
  func.func @_mm_bn_relu_kernel(%arg0: i32, %arg1: memref<8x1024xbf16, #tpu.memory_space<vmem>>, %arg2: memref<1024x128xbf16, #tpu.memory_space<vmem>>, %arg3: memref<1x128xf32, #tpu.memory_space<vmem>>, %arg4: memref<1x128xf32, #tpu.memory_space<vmem>>, %arg5: memref<8x128xbf16, #tpu.memory_space<vmem>>) attributes {dimension_semantics = [#tpu.dimension_semantics<arbitrary>], iteration_bounds = array<i64: 1>, scalar_prefetch = 0 : i64, scratch_operands = 0 : i64, tpu.core_type = #tpu.core_type<tc>, window_params = [{pipeline_mode = #tpu.pipeline_mode<synchronous>, transform_indices = @transform_0, window_bounds = array<i64: 8, 1024>}, {pipeline_mode = #tpu.pipeline_mode<synchronous>, transform_indices = @transform_1, window_bounds = array<i64: 1024, 128>}, {pipeline_mode = #tpu.pipeline_mode<synchronous>, transform_indices = @transform_2, window_bounds = array<i64: 1, 128>}, {pipeline_mode = #tpu.pipeline_mode<synchronous>, transform_indices = @transform_3, window_bounds = array<i64: 1, 128>}, {pipeline_mode = #tpu.pipeline_mode<synchronous>, transform_indices = @transform_4, window_bounds = array<i64: 8, 128>}]} {
    %c0 = arith.constant 0 : index
    %c0_0 = arith.constant 0 : index
    %0 = vector.load %arg1[%c0, %c0_0] : memref<8x1024xbf16, #tpu.memory_space<vmem>>, vector<8x1024xbf16>
    %c0_1 = arith.constant 0 : index
    %c0_2 = arith.constant 0 : index
    %1 = vector.load %arg2[%c0_1, %c0_2] : memref<1024x128xbf16, #tpu.memory_space<vmem>>, vector<1024x128xbf16>
    %cst = arith.constant dense<0.000000e+00> : vector<8x128xf32>
    %2 = tpu.matmul %0, %1, %cst {dimension_numbers = #tpu.dot_dimension_numbers<[1], [0], [0], [1], [0, 0, 1, 1], [], []>} : vector<8x1024xbf16>, vector<1024x128xbf16>, vector<8x128xf32> -> vector<8x128xf32>
    %cst_3 = arith.constant dense<0.000000e+00> : vector<128xf32>
    %3 = vector.multi_reduction <add>, %2, %cst_3 [0] : vector<8x128xf32> to vector<128xf32>
    %4 = vector.shape_cast %3 : vector<128xf32> to vector<1x128xf32>
    %cst_4 = arith.constant 8.000000e+00 : f32
    %5 = vector.broadcast %cst_4 : f32 to vector<1x128xf32>
    %6 = arith.divf %4, %5 : vector<1x128xf32>
    %7 = arith.mulf %2, %2 : vector<8x128xf32>
    %cst_5 = arith.constant dense<0.000000e+00> : vector<128xf32>
    %8 = vector.multi_reduction <add>, %7, %cst_5 [0] : vector<8x128xf32> to vector<128xf32>
    %9 = vector.shape_cast %8 : vector<128xf32> to vector<1x128xf32>
    %cst_6 = arith.constant 8.000000e+00 : f32
    %10 = vector.broadcast %cst_6 : f32 to vector<1x128xf32>
    %11 = arith.divf %9, %10 : vector<1x128xf32>
    %12 = arith.mulf %6, %6 : vector<1x128xf32>
    %13 = arith.subf %11, %12 : vector<1x128xf32>
    %cst_7 = arith.constant 0.000000e+00 : f32
    %14 = vector.broadcast %cst_7 : f32 to vector<1x128xf32>
    %15 = arith.maximumf %13, %14 : vector<1x128xf32>
    %c0_8 = arith.constant 0 : index
    %c0_9 = arith.constant 0 : index
    %16 = vector.load %arg3[%c0_8, %c0_9] : memref<1x128xf32, #tpu.memory_space<vmem>>, vector<1x128xf32>
    %cst_10 = arith.constant 9.99999974E-6 : f32
    %17 = vector.broadcast %cst_10 : f32 to vector<1x128xf32>
    %18 = arith.addf %15, %17 : vector<1x128xf32>
    %19 = math.rsqrt %18 : vector<1x128xf32>
    %20 = arith.mulf %16, %19 : vector<1x128xf32>
    %c0_11 = arith.constant 0 : index
    %c0_12 = arith.constant 0 : index
    %21 = vector.load %arg4[%c0_11, %c0_12] : memref<1x128xf32, #tpu.memory_space<vmem>>, vector<1x128xf32>
    %22 = arith.mulf %6, %20 : vector<1x128xf32>
    %23 = arith.subf %21, %22 : vector<1x128xf32>
    %24 = vector.broadcast %20 : vector<1x128xf32> to vector<8x128xf32>
    %25 = arith.mulf %2, %24 : vector<8x128xf32>
    %26 = vector.broadcast %23 : vector<1x128xf32> to vector<8x128xf32>
    %27 = arith.addf %25, %26 : vector<8x128xf32>
    %cst_13 = arith.constant 0.000000e+00 : f32
    %28 = vector.broadcast %cst_13 : f32 to vector<8x128xf32>
    %29 = arith.maximumf %27, %28 : vector<8x128xf32>
    %30 = arith.truncf %29 : vector<8x128xf32> to vector<8x128xbf16>
    %c0_14 = arith.constant 0 : index
    %c0_15 = arith.constant 0 : index
    %31 = vector.load %arg5[%c0_14, %c0_15] : memref<8x128xbf16, #tpu.memory_space<vmem>>, vector<8x128xbf16>
    tpu.vector_store %arg5[%c0_14, %c0_15], %30 {strides = array<i32>} : memref<8x128xbf16, #tpu.memory_space<vmem>>, vector<8x128xbf16>,
    return
  }
  func.func @transform_0(%arg0: i32) -> (i32, i32) {
    %c0_i32 = arith.constant 0 : i32
    %c0_i32_0 = arith.constant 0 : i32
    %c0_i32_1 = arith.constant 0 : i32
    return %c0_i32, %c0_i32_0 : i32, i32
  }
  func.func @transform_1(%arg0: i32) -> (i32, i32) {
    %c0_i32 = arith.constant 0 : i32
    %c0_i32_0 = arith.constant 0 : i32
    %c0_i32_1 = arith.constant 0 : i32
    return %c0_i32, %c0_i32_0 : i32, i32
  }
  func.func @transform_2(%arg0: i32) -> (i32, i32) {
    %c0_i32 = arith.constant 0 : i32
    %c0_i32_0 = arith.constant 0 : i32
    %c0_i32_1 = arith.constant 0 : i32
    return %c0_i32, %c0_i32_0 : i32, i32
  }
  func.func @transform_3(%arg0: i32) -> (i32, i32) {
    %c0_i32 = arith.constant 0 : i32
    %c0_i32_0 = arith.constant 0 : i32
    %c0_i32_1 = arith.constant 0 : i32
    return %c0_i32, %c0_i32_0 : i32, i32
  }
  func.func @transform_4(%arg0: i32) -> (i32, i32) {
    %c0_i32 = arith.constant 0 : i32
    %c0_i32_0 = arith.constant 0 : i32
    %c0_i32_1 = arith.constant 0 : i32
    return %c0_i32, %c0_i32_0 : i32, i32
  }
}

module attributes {stable_mosaic.version = 11 : i64} {
  func.func @kernel(%arg0: i32, %arg1: memref<8x1152xbf16, #tpu.memory_space<vmem>>, %arg2: memref<1152x512xbf16, #tpu.memory_space<vmem>>, %arg3: memref<1x512xf32, #tpu.memory_space<vmem>>, %arg4: memref<1x128xf32, #tpu.memory_space<vmem>>, %arg5: memref<1x128xf32, #tpu.memory_space<vmem>>, %arg6: memref<8x512xbf16, #tpu.memory_space<vmem>>) attributes {dimension_semantics = [#tpu.dimension_semantics<arbitrary>], iteration_bounds = array<i64: 1>, scalar_prefetch = 0 : i64, scratch_operands = 0 : i64, tpu.core_type = #tpu.core_type<tc>, window_params = [{pipeline_mode = #tpu.pipeline_mode<synchronous>, transform_indices = @transform_0, window_bounds = array<i64: 8, 1152>}, {pipeline_mode = #tpu.pipeline_mode<synchronous>, transform_indices = @transform_1, window_bounds = array<i64: 1152, 512>}, {pipeline_mode = #tpu.pipeline_mode<synchronous>, transform_indices = @transform_2, window_bounds = array<i64: 1, 512>}, {pipeline_mode = #tpu.pipeline_mode<synchronous>, transform_indices = @transform_3, window_bounds = array<i64: 1, 128>}, {pipeline_mode = #tpu.pipeline_mode<synchronous>, transform_indices = @transform_4, window_bounds = array<i64: 1, 128>}, {pipeline_mode = #tpu.pipeline_mode<synchronous>, transform_indices = @transform_5, window_bounds = array<i64: 8, 512>}]} {
    %c0 = arith.constant 0 : index
    %c0_0 = arith.constant 0 : index
    %0 = vector.load %arg1[%c0, %c0_0] : memref<8x1152xbf16, #tpu.memory_space<vmem>>, vector<8x1152xbf16>
    %c0_1 = arith.constant 0 : index
    %c0_2 = arith.constant 0 : index
    %1 = vector.load %arg2[%c0_1, %c0_2] : memref<1152x512xbf16, #tpu.memory_space<vmem>>, vector<1152x512xbf16>
    %cst = arith.constant dense<0.000000e+00> : vector<8x512xf32>
    %2 = tpu.matmul %0, %1, %cst {dimension_numbers = #tpu.dot_dimension_numbers<[1], [0], [0], [1], [0, 0, 1, 1], [], []>} : vector<8x1152xbf16>, vector<1152x512xbf16>, vector<8x512xf32> -> vector<8x512xf32>
    %c0_3 = arith.constant 0 : index
    %c0_4 = arith.constant 0 : index
    %3 = vector.load %arg3[%c0_3, %c0_4] : memref<1x512xf32, #tpu.memory_space<vmem>>, vector<1x512xf32>
    %4 = vector.broadcast %3 : vector<1x512xf32> to vector<8x512xf32>
    %5 = arith.addf %2, %4 : vector<8x512xf32>
    %cst_5 = arith.constant dense<0.000000e+00> : vector<512xf32>
    %6 = vector.multi_reduction <add>, %5, %cst_5 [0] : vector<8x512xf32> to vector<512xf32>
    %7 = vector.shape_cast %6 : vector<512xf32> to vector<1x512xf32>
    %8 = arith.mulf %5, %5 : vector<8x512xf32>
    %cst_6 = arith.constant dense<0.000000e+00> : vector<512xf32>
    %9 = vector.multi_reduction <add>, %8, %cst_6 [0] : vector<8x512xf32> to vector<512xf32>
    %10 = vector.shape_cast %9 : vector<512xf32> to vector<1x512xf32>
    %11 = vector.extract_strided_slice %7 {offsets = [0, 0], sizes = [1, 128], strides = [1, 1]} : vector<1x512xf32> to vector<1x128xf32>
    %12 = vector.extract_strided_slice %7 {offsets = [0, 128], sizes = [1, 128], strides = [1, 1]} : vector<1x512xf32> to vector<1x128xf32>
    %13 = arith.addf %11, %12 : vector<1x128xf32>
    %14 = vector.extract_strided_slice %7 {offsets = [0, 256], sizes = [1, 128], strides = [1, 1]} : vector<1x512xf32> to vector<1x128xf32>
    %15 = arith.addf %13, %14 : vector<1x128xf32>
    %16 = vector.extract_strided_slice %7 {offsets = [0, 384], sizes = [1, 128], strides = [1, 1]} : vector<1x512xf32> to vector<1x128xf32>
    %17 = arith.addf %15, %16 : vector<1x128xf32>
    %18 = vector.extract_strided_slice %10 {offsets = [0, 0], sizes = [1, 128], strides = [1, 1]} : vector<1x512xf32> to vector<1x128xf32>
    %19 = vector.extract_strided_slice %10 {offsets = [0, 128], sizes = [1, 128], strides = [1, 1]} : vector<1x512xf32> to vector<1x128xf32>
    %20 = arith.addf %18, %19 : vector<1x128xf32>
    %21 = vector.extract_strided_slice %10 {offsets = [0, 256], sizes = [1, 128], strides = [1, 1]} : vector<1x512xf32> to vector<1x128xf32>
    %22 = arith.addf %20, %21 : vector<1x128xf32>
    %23 = vector.extract_strided_slice %10 {offsets = [0, 384], sizes = [1, 128], strides = [1, 1]} : vector<1x512xf32> to vector<1x128xf32>
    %24 = arith.addf %22, %23 : vector<1x128xf32>
    %cst_7 = arith.constant 3.200000e+01 : f32
    %25 = vector.broadcast %cst_7 : f32 to vector<1x128xf32>
    %26 = arith.divf %17, %25 : vector<1x128xf32>
    %cst_8 = arith.constant 3.200000e+01 : f32
    %27 = vector.broadcast %cst_8 : f32 to vector<1x128xf32>
    %28 = arith.divf %24, %27 : vector<1x128xf32>
    %29 = arith.mulf %26, %26 : vector<1x128xf32>
    %30 = arith.subf %28, %29 : vector<1x128xf32>
    %cst_9 = arith.constant 0.000000e+00 : f32
    %31 = vector.broadcast %cst_9 : f32 to vector<1x128xf32>
    %32 = arith.maximumf %30, %31 : vector<1x128xf32>
    %c0_10 = arith.constant 0 : index
    %c0_11 = arith.constant 0 : index
    %33 = vector.load %arg4[%c0_10, %c0_11] : memref<1x128xf32, #tpu.memory_space<vmem>>, vector<1x128xf32>
    %cst_12 = arith.constant 9.99999974E-6 : f32
    %34 = vector.broadcast %cst_12 : f32 to vector<1x128xf32>
    %35 = arith.addf %32, %34 : vector<1x128xf32>
    %36 = math.rsqrt %35 : vector<1x128xf32>
    %37 = arith.mulf %33, %36 : vector<1x128xf32>
    %c0_13 = arith.constant 0 : index
    %c0_14 = arith.constant 0 : index
    %38 = vector.load %arg5[%c0_13, %c0_14] : memref<1x128xf32, #tpu.memory_space<vmem>>, vector<1x128xf32>
    %39 = arith.mulf %26, %37 : vector<1x128xf32>
    %40 = arith.subf %38, %39 : vector<1x128xf32>
    %41 = vector.extract_strided_slice %5 {offsets = [0, 0], sizes = [8, 128], strides = [1, 1]} : vector<8x512xf32> to vector<8x128xf32>
    %42 = vector.broadcast %37 : vector<1x128xf32> to vector<8x128xf32>
    %43 = arith.mulf %41, %42 : vector<8x128xf32>
    %44 = vector.broadcast %40 : vector<1x128xf32> to vector<8x128xf32>
    %45 = arith.addf %43, %44 : vector<8x128xf32>
    %cst_15 = arith.constant 0.000000e+00 : f32
    %46 = vector.broadcast %cst_15 : f32 to vector<8x128xf32>
    %47 = arith.maximumf %45, %46 : vector<8x128xf32>
    %48 = arith.truncf %47 : vector<8x128xf32> to vector<8x128xbf16>
    %c0_16 = arith.constant 0 : index
    %c0_17 = arith.constant 0 : index
    %49 = vector.load %arg6[%c0_16, %c0_17] : memref<8x512xbf16, #tpu.memory_space<vmem>>, vector<8x128xbf16>
    tpu.vector_store %arg6[%c0_16, %c0_17], %48 {strides = array<i32>} : memref<8x512xbf16, #tpu.memory_space<vmem>>, vector<8x128xbf16>,
    %50 = vector.extract_strided_slice %5 {offsets = [0, 128], sizes = [8, 128], strides = [1, 1]} : vector<8x512xf32> to vector<8x128xf32>
    %51 = vector.broadcast %37 : vector<1x128xf32> to vector<8x128xf32>
    %52 = arith.mulf %50, %51 : vector<8x128xf32>
    %53 = vector.broadcast %40 : vector<1x128xf32> to vector<8x128xf32>
    %54 = arith.addf %52, %53 : vector<8x128xf32>
    %cst_18 = arith.constant 0.000000e+00 : f32
    %55 = vector.broadcast %cst_18 : f32 to vector<8x128xf32>
    %56 = arith.maximumf %54, %55 : vector<8x128xf32>
    %57 = arith.truncf %56 : vector<8x128xf32> to vector<8x128xbf16>
    %c0_19 = arith.constant 0 : index
    %c128 = arith.constant 128 : index
    %58 = vector.load %arg6[%c0_19, %c128] : memref<8x512xbf16, #tpu.memory_space<vmem>>, vector<8x128xbf16>
    tpu.vector_store %arg6[%c0_19, %c128], %57 {strides = array<i32>} : memref<8x512xbf16, #tpu.memory_space<vmem>>, vector<8x128xbf16>,
    %59 = vector.extract_strided_slice %5 {offsets = [0, 256], sizes = [8, 128], strides = [1, 1]} : vector<8x512xf32> to vector<8x128xf32>
    %60 = vector.broadcast %37 : vector<1x128xf32> to vector<8x128xf32>
    %61 = arith.mulf %59, %60 : vector<8x128xf32>
    %62 = vector.broadcast %40 : vector<1x128xf32> to vector<8x128xf32>
    %63 = arith.addf %61, %62 : vector<8x128xf32>
    %cst_20 = arith.constant 0.000000e+00 : f32
    %64 = vector.broadcast %cst_20 : f32 to vector<8x128xf32>
    %65 = arith.maximumf %63, %64 : vector<8x128xf32>
    %66 = arith.truncf %65 : vector<8x128xf32> to vector<8x128xbf16>
    %c0_21 = arith.constant 0 : index
    %c256 = arith.constant 256 : index
    %67 = vector.load %arg6[%c0_21, %c256] : memref<8x512xbf16, #tpu.memory_space<vmem>>, vector<8x128xbf16>
    tpu.vector_store %arg6[%c0_21, %c256], %66 {strides = array<i32>} : memref<8x512xbf16, #tpu.memory_space<vmem>>, vector<8x128xbf16>,
    %68 = vector.extract_strided_slice %5 {offsets = [0, 384], sizes = [8, 128], strides = [1, 1]} : vector<8x512xf32> to vector<8x128xf32>
    %69 = vector.broadcast %37 : vector<1x128xf32> to vector<8x128xf32>
    %70 = arith.mulf %68, %69 : vector<8x128xf32>
    %71 = vector.broadcast %40 : vector<1x128xf32> to vector<8x128xf32>
    %72 = arith.addf %70, %71 : vector<8x128xf32>
    %cst_22 = arith.constant 0.000000e+00 : f32
    %73 = vector.broadcast %cst_22 : f32 to vector<8x128xf32>
    %74 = arith.maximumf %72, %73 : vector<8x128xf32>
    %75 = arith.truncf %74 : vector<8x128xf32> to vector<8x128xbf16>
    %c0_23 = arith.constant 0 : index
    %c384 = arith.constant 384 : index
    %76 = vector.load %arg6[%c0_23, %c384] : memref<8x512xbf16, #tpu.memory_space<vmem>>, vector<8x128xbf16>
    tpu.vector_store %arg6[%c0_23, %c384], %75 {strides = array<i32>} : memref<8x512xbf16, #tpu.memory_space<vmem>>, vector<8x128xbf16>,
    return
  }
  func.func @transform_0(%arg0: i32) -> (i32, i32) {
    %c0_i32 = arith.constant 0 : i32
    %c0_i32_0 = arith.constant 0 : i32
    %c0_i32_1 = arith.constant 0 : i32
    return %c0_i32, %c0_i32_0 : i32, i32
  }
  func.func @transform_1(%arg0: i32) -> (i32, i32) {
    %c0_i32 = arith.constant 0 : i32
    %c0_i32_0 = arith.constant 0 : i32
    %c0_i32_1 = arith.constant 0 : i32
    return %c0_i32, %c0_i32_0 : i32, i32
  }
  func.func @transform_2(%arg0: i32) -> (i32, i32) {
    %c0_i32 = arith.constant 0 : i32
    %c0_i32_0 = arith.constant 0 : i32
    %c0_i32_1 = arith.constant 0 : i32
    return %c0_i32, %c0_i32_0 : i32, i32
  }
  func.func @transform_3(%arg0: i32) -> (i32, i32) {
    %c0_i32 = arith.constant 0 : i32
    %c0_i32_0 = arith.constant 0 : i32
    %c0_i32_1 = arith.constant 0 : i32
    return %c0_i32, %c0_i32_0 : i32, i32
  }
  func.func @transform_4(%arg0: i32) -> (i32, i32) {
    %c0_i32 = arith.constant 0 : i32
    %c0_i32_0 = arith.constant 0 : i32
    %c0_i32_1 = arith.constant 0 : i32
    return %c0_i32, %c0_i32_0 : i32, i32
  }
  func.func @transform_5(%arg0: i32) -> (i32, i32) {
    %c0_i32 = arith.constant 0 : i32
    %c0_i32_0 = arith.constant 0 : i32
    %c0_i32_1 = arith.constant 0 : i32
    return %c0_i32, %c0_i32_0 : i32, i32
  }
}

module attributes {stable_mosaic.version = 11 : i64} {
  func.func @kernel(%arg0: i32, %arg1: memref<32x640xbf16, #tpu.memory_space<vmem>>, %arg2: memref<640x512xbf16, #tpu.memory_space<vmem>>, %arg3: memref<1x512xf32, #tpu.memory_space<vmem>>, %arg4: memref<1x128xf32, #tpu.memory_space<vmem>>, %arg5: memref<1x128xf32, #tpu.memory_space<vmem>>, %arg6: memref<32x512xbf16, #tpu.memory_space<vmem>>) attributes {dimension_semantics = [#tpu.dimension_semantics<arbitrary>], iteration_bounds = array<i64: 1>, scalar_prefetch = 0 : i64, scratch_operands = 0 : i64, tpu.core_type = #tpu.core_type<tc>, window_params = [{pipeline_mode = #tpu.pipeline_mode<synchronous>, transform_indices = @transform_0, window_bounds = array<i64: 32, 640>}, {pipeline_mode = #tpu.pipeline_mode<synchronous>, transform_indices = @transform_1, window_bounds = array<i64: 640, 512>}, {pipeline_mode = #tpu.pipeline_mode<synchronous>, transform_indices = @transform_2, window_bounds = array<i64: 1, 512>}, {pipeline_mode = #tpu.pipeline_mode<synchronous>, transform_indices = @transform_3, window_bounds = array<i64: 1, 128>}, {pipeline_mode = #tpu.pipeline_mode<synchronous>, transform_indices = @transform_4, window_bounds = array<i64: 1, 128>}, {pipeline_mode = #tpu.pipeline_mode<synchronous>, transform_indices = @transform_5, window_bounds = array<i64: 32, 512>}]} {
    %c0 = arith.constant 0 : index
    %c0_0 = arith.constant 0 : index
    %0 = vector.load %arg1[%c0, %c0_0] : memref<32x640xbf16, #tpu.memory_space<vmem>>, vector<32x640xbf16>
    %c0_1 = arith.constant 0 : index
    %c0_2 = arith.constant 0 : index
    %1 = vector.load %arg2[%c0_1, %c0_2] : memref<640x512xbf16, #tpu.memory_space<vmem>>, vector<640x512xbf16>
    %cst = arith.constant dense<0.000000e+00> : vector<32x512xf32>
    %2 = tpu.matmul %0, %1, %cst {dimension_numbers = #tpu.dot_dimension_numbers<[1], [0], [0], [1], [0, 0, 1, 1], [], []>} : vector<32x640xbf16>, vector<640x512xbf16>, vector<32x512xf32> -> vector<32x512xf32>
    %c0_3 = arith.constant 0 : index
    %c0_4 = arith.constant 0 : index
    %3 = vector.load %arg3[%c0_3, %c0_4] : memref<1x512xf32, #tpu.memory_space<vmem>>, vector<1x512xf32>
    %4 = vector.broadcast %3 : vector<1x512xf32> to vector<32x512xf32>
    %5 = arith.addf %2, %4 : vector<32x512xf32>
    %cst_5 = arith.constant dense<0.000000e+00> : vector<512xf32>
    %6 = vector.multi_reduction <add>, %5, %cst_5 [0] : vector<32x512xf32> to vector<512xf32>
    %7 = vector.shape_cast %6 : vector<512xf32> to vector<1x512xf32>
    %8 = arith.mulf %5, %5 : vector<32x512xf32>
    %cst_6 = arith.constant dense<0.000000e+00> : vector<512xf32>
    %9 = vector.multi_reduction <add>, %8, %cst_6 [0] : vector<32x512xf32> to vector<512xf32>
    %10 = vector.shape_cast %9 : vector<512xf32> to vector<1x512xf32>
    %11 = vector.extract_strided_slice %7 {offsets = [0, 0], sizes = [1, 128], strides = [1, 1]} : vector<1x512xf32> to vector<1x128xf32>
    %12 = vector.extract_strided_slice %7 {offsets = [0, 128], sizes = [1, 128], strides = [1, 1]} : vector<1x512xf32> to vector<1x128xf32>
    %13 = arith.addf %11, %12 : vector<1x128xf32>
    %14 = vector.extract_strided_slice %7 {offsets = [0, 256], sizes = [1, 128], strides = [1, 1]} : vector<1x512xf32> to vector<1x128xf32>
    %15 = arith.addf %13, %14 : vector<1x128xf32>
    %16 = vector.extract_strided_slice %7 {offsets = [0, 384], sizes = [1, 128], strides = [1, 1]} : vector<1x512xf32> to vector<1x128xf32>
    %17 = arith.addf %15, %16 : vector<1x128xf32>
    %18 = vector.extract_strided_slice %10 {offsets = [0, 0], sizes = [1, 128], strides = [1, 1]} : vector<1x512xf32> to vector<1x128xf32>
    %19 = vector.extract_strided_slice %10 {offsets = [0, 128], sizes = [1, 128], strides = [1, 1]} : vector<1x512xf32> to vector<1x128xf32>
    %20 = arith.addf %18, %19 : vector<1x128xf32>
    %21 = vector.extract_strided_slice %10 {offsets = [0, 256], sizes = [1, 128], strides = [1, 1]} : vector<1x512xf32> to vector<1x128xf32>
    %22 = arith.addf %20, %21 : vector<1x128xf32>
    %23 = vector.extract_strided_slice %10 {offsets = [0, 384], sizes = [1, 128], strides = [1, 1]} : vector<1x512xf32> to vector<1x128xf32>
    %24 = arith.addf %22, %23 : vector<1x128xf32>
    %cst_7 = arith.constant 1.280000e+02 : f32
    %25 = vector.broadcast %cst_7 : f32 to vector<1x128xf32>
    %26 = arith.divf %17, %25 : vector<1x128xf32>
    %cst_8 = arith.constant 1.280000e+02 : f32
    %27 = vector.broadcast %cst_8 : f32 to vector<1x128xf32>
    %28 = arith.divf %24, %27 : vector<1x128xf32>
    %29 = arith.mulf %26, %26 : vector<1x128xf32>
    %30 = arith.subf %28, %29 : vector<1x128xf32>
    %cst_9 = arith.constant 0.000000e+00 : f32
    %31 = vector.broadcast %cst_9 : f32 to vector<1x128xf32>
    %32 = arith.maximumf %30, %31 : vector<1x128xf32>
    %c0_10 = arith.constant 0 : index
    %c0_11 = arith.constant 0 : index
    %33 = vector.load %arg4[%c0_10, %c0_11] : memref<1x128xf32, #tpu.memory_space<vmem>>, vector<1x128xf32>
    %cst_12 = arith.constant 9.99999974E-6 : f32
    %34 = vector.broadcast %cst_12 : f32 to vector<1x128xf32>
    %35 = arith.addf %32, %34 : vector<1x128xf32>
    %36 = math.rsqrt %35 : vector<1x128xf32>
    %37 = arith.mulf %33, %36 : vector<1x128xf32>
    %c0_13 = arith.constant 0 : index
    %c0_14 = arith.constant 0 : index
    %38 = vector.load %arg5[%c0_13, %c0_14] : memref<1x128xf32, #tpu.memory_space<vmem>>, vector<1x128xf32>
    %39 = arith.mulf %26, %37 : vector<1x128xf32>
    %40 = arith.subf %38, %39 : vector<1x128xf32>
    %41 = vector.extract_strided_slice %5 {offsets = [0, 0], sizes = [32, 128], strides = [1, 1]} : vector<32x512xf32> to vector<32x128xf32>
    %42 = vector.broadcast %37 : vector<1x128xf32> to vector<32x128xf32>
    %43 = arith.mulf %41, %42 : vector<32x128xf32>
    %44 = vector.broadcast %40 : vector<1x128xf32> to vector<32x128xf32>
    %45 = arith.addf %43, %44 : vector<32x128xf32>
    %cst_15 = arith.constant 0.000000e+00 : f32
    %46 = vector.broadcast %cst_15 : f32 to vector<32x128xf32>
    %47 = arith.maximumf %45, %46 : vector<32x128xf32>
    %48 = arith.truncf %47 : vector<32x128xf32> to vector<32x128xbf16>
    %c0_16 = arith.constant 0 : index
    %c0_17 = arith.constant 0 : index
    %49 = vector.load %arg6[%c0_16, %c0_17] : memref<32x512xbf16, #tpu.memory_space<vmem>>, vector<32x128xbf16>
    tpu.vector_store %arg6[%c0_16, %c0_17], %48 {strides = array<i32>} : memref<32x512xbf16, #tpu.memory_space<vmem>>, vector<32x128xbf16>,
    %50 = vector.extract_strided_slice %5 {offsets = [0, 128], sizes = [32, 128], strides = [1, 1]} : vector<32x512xf32> to vector<32x128xf32>
    %51 = vector.broadcast %37 : vector<1x128xf32> to vector<32x128xf32>
    %52 = arith.mulf %50, %51 : vector<32x128xf32>
    %53 = vector.broadcast %40 : vector<1x128xf32> to vector<32x128xf32>
    %54 = arith.addf %52, %53 : vector<32x128xf32>
    %cst_18 = arith.constant 0.000000e+00 : f32
    %55 = vector.broadcast %cst_18 : f32 to vector<32x128xf32>
    %56 = arith.maximumf %54, %55 : vector<32x128xf32>
    %57 = arith.truncf %56 : vector<32x128xf32> to vector<32x128xbf16>
    %c0_19 = arith.constant 0 : index
    %c128 = arith.constant 128 : index
    %58 = vector.load %arg6[%c0_19, %c128] : memref<32x512xbf16, #tpu.memory_space<vmem>>, vector<32x128xbf16>
    tpu.vector_store %arg6[%c0_19, %c128], %57 {strides = array<i32>} : memref<32x512xbf16, #tpu.memory_space<vmem>>, vector<32x128xbf16>,
    %59 = vector.extract_strided_slice %5 {offsets = [0, 256], sizes = [32, 128], strides = [1, 1]} : vector<32x512xf32> to vector<32x128xf32>
    %60 = vector.broadcast %37 : vector<1x128xf32> to vector<32x128xf32>
    %61 = arith.mulf %59, %60 : vector<32x128xf32>
    %62 = vector.broadcast %40 : vector<1x128xf32> to vector<32x128xf32>
    %63 = arith.addf %61, %62 : vector<32x128xf32>
    %cst_20 = arith.constant 0.000000e+00 : f32
    %64 = vector.broadcast %cst_20 : f32 to vector<32x128xf32>
    %65 = arith.maximumf %63, %64 : vector<32x128xf32>
    %66 = arith.truncf %65 : vector<32x128xf32> to vector<32x128xbf16>
    %c0_21 = arith.constant 0 : index
    %c256 = arith.constant 256 : index
    %67 = vector.load %arg6[%c0_21, %c256] : memref<32x512xbf16, #tpu.memory_space<vmem>>, vector<32x128xbf16>
    tpu.vector_store %arg6[%c0_21, %c256], %66 {strides = array<i32>} : memref<32x512xbf16, #tpu.memory_space<vmem>>, vector<32x128xbf16>,
    %68 = vector.extract_strided_slice %5 {offsets = [0, 384], sizes = [32, 128], strides = [1, 1]} : vector<32x512xf32> to vector<32x128xf32>
    %69 = vector.broadcast %37 : vector<1x128xf32> to vector<32x128xf32>
    %70 = arith.mulf %68, %69 : vector<32x128xf32>
    %71 = vector.broadcast %40 : vector<1x128xf32> to vector<32x128xf32>
    %72 = arith.addf %70, %71 : vector<32x128xf32>
    %cst_22 = arith.constant 0.000000e+00 : f32
    %73 = vector.broadcast %cst_22 : f32 to vector<32x128xf32>
    %74 = arith.maximumf %72, %73 : vector<32x128xf32>
    %75 = arith.truncf %74 : vector<32x128xf32> to vector<32x128xbf16>
    %c0_23 = arith.constant 0 : index
    %c384 = arith.constant 384 : index
    %76 = vector.load %arg6[%c0_23, %c384] : memref<32x512xbf16, #tpu.memory_space<vmem>>, vector<32x128xbf16>
    tpu.vector_store %arg6[%c0_23, %c384], %75 {strides = array<i32>} : memref<32x512xbf16, #tpu.memory_space<vmem>>, vector<32x128xbf16>,
    return
  }
  func.func @transform_0(%arg0: i32) -> (i32, i32) {
    %c0_i32 = arith.constant 0 : i32
    %c0_i32_0 = arith.constant 0 : i32
    %c0_i32_1 = arith.constant 0 : i32
    return %c0_i32, %c0_i32_0 : i32, i32
  }
  func.func @transform_1(%arg0: i32) -> (i32, i32) {
    %c0_i32 = arith.constant 0 : i32
    %c0_i32_0 = arith.constant 0 : i32
    %c0_i32_1 = arith.constant 0 : i32
    return %c0_i32, %c0_i32_0 : i32, i32
  }
  func.func @transform_2(%arg0: i32) -> (i32, i32) {
    %c0_i32 = arith.constant 0 : i32
    %c0_i32_0 = arith.constant 0 : i32
    %c0_i32_1 = arith.constant 0 : i32
    return %c0_i32, %c0_i32_0 : i32, i32
  }
  func.func @transform_3(%arg0: i32) -> (i32, i32) {
    %c0_i32 = arith.constant 0 : i32
    %c0_i32_0 = arith.constant 0 : i32
    %c0_i32_1 = arith.constant 0 : i32
    return %c0_i32, %c0_i32_0 : i32, i32
  }
  func.func @transform_4(%arg0: i32) -> (i32, i32) {
    %c0_i32 = arith.constant 0 : i32
    %c0_i32_0 = arith.constant 0 : i32
    %c0_i32_1 = arith.constant 0 : i32
    return %c0_i32, %c0_i32_0 : i32, i32
  }
  func.func @transform_5(%arg0: i32) -> (i32, i32) {
    %c0_i32 = arith.constant 0 : i32
    %c0_i32_0 = arith.constant 0 : i32
    %c0_i32_1 = arith.constant 0 : i32
    return %c0_i32, %c0_i32_0 : i32, i32
  }
}

module attributes {stable_mosaic.version = 11 : i64} {
  func.func @kernel(%arg0: i32, %arg1: memref<64x384xbf16, #tpu.memory_space<vmem>>, %arg2: memref<384x512xbf16, #tpu.memory_space<vmem>>, %arg3: memref<1x512xf32, #tpu.memory_space<vmem>>, %arg4: memref<64x512xbf16, #tpu.memory_space<vmem>>) attributes {dimension_semantics = [#tpu.dimension_semantics<parallel>], iteration_bounds = array<i64: 2>, scalar_prefetch = 0 : i64, scratch_operands = 0 : i64, tpu.core_type = #tpu.core_type<tc>, window_params = [{transform_indices = @transform_0, window_bounds = array<i64: 64, 384>}, {pipeline_mode = #tpu.pipeline_mode<synchronous>, transform_indices = @transform_1, window_bounds = array<i64: 384, 512>}, {pipeline_mode = #tpu.pipeline_mode<synchronous>, transform_indices = @transform_2, window_bounds = array<i64: 1, 512>}, {transform_indices = @transform_3, window_bounds = array<i64: 64, 512>}]} {
    %c0 = arith.constant 0 : index
    %c0_0 = arith.constant 0 : index
    %0 = vector.load %arg1[%c0, %c0_0] : memref<64x384xbf16, #tpu.memory_space<vmem>>, vector<64x384xbf16>
    %c0_1 = arith.constant 0 : index
    %c0_2 = arith.constant 0 : index
    %1 = vector.load %arg2[%c0_1, %c0_2] : memref<384x512xbf16, #tpu.memory_space<vmem>>, vector<384x512xbf16>
    %cst = arith.constant dense<0.000000e+00> : vector<64x512xf32>
    %2 = tpu.matmul %0, %1, %cst {dimension_numbers = #tpu.dot_dimension_numbers<[1], [0], [0], [1], [0, 0, 1, 1], [], []>} : vector<64x384xbf16>, vector<384x512xbf16>, vector<64x512xf32> -> vector<64x512xf32>
    %c0_3 = arith.constant 0 : index
    %c0_4 = arith.constant 0 : index
    %3 = vector.load %arg3[%c0_3, %c0_4] : memref<1x512xf32, #tpu.memory_space<vmem>>, vector<1x512xf32>
    %4 = vector.broadcast %3 : vector<1x512xf32> to vector<64x512xf32>
    %5 = arith.addf %2, %4 : vector<64x512xf32>
    %cst_5 = arith.constant 0.000000e+00 : f32
    %6 = vector.broadcast %cst_5 : f32 to vector<64x512xf32>
    %7 = arith.maximumf %5, %6 : vector<64x512xf32>
    %8 = arith.truncf %7 : vector<64x512xf32> to vector<64x512xbf16>
    %c0_6 = arith.constant 0 : index
    %c0_7 = arith.constant 0 : index
    %9 = vector.load %arg4[%c0_6, %c0_7] : memref<64x512xbf16, #tpu.memory_space<vmem>>, vector<64x512xbf16>
    tpu.vector_store %arg4[%c0_6, %c0_7], %8 {strides = array<i32>} : memref<64x512xbf16, #tpu.memory_space<vmem>>, vector<64x512xbf16>,
    return
  }
  func.func @transform_0(%arg0: i32) -> (i32, i32) {
    %c0_i32 = arith.constant 0 : i32
    %c0_i32_0 = arith.constant 0 : i32
    return %arg0, %c0_i32 : i32, i32
  }
  func.func @transform_1(%arg0: i32) -> (i32, i32) {
    %c0_i32 = arith.constant 0 : i32
    %c0_i32_0 = arith.constant 0 : i32
    %c0_i32_1 = arith.constant 0 : i32
    return %c0_i32, %c0_i32_0 : i32, i32
  }
  func.func @transform_2(%arg0: i32) -> (i32, i32) {
    %c0_i32 = arith.constant 0 : i32
    %c0_i32_0 = arith.constant 0 : i32
    %c0_i32_1 = arith.constant 0 : i32
    return %c0_i32, %c0_i32_0 : i32, i32
  }
  func.func @transform_3(%arg0: i32) -> (i32, i32) {
    %c0_i32 = arith.constant 0 : i32
    %c0_i32_0 = arith.constant 0 : i32
    return %arg0, %c0_i32 : i32, i32
  }
}

module attributes {stable_mosaic.version = 11 : i64} {
  func.func @kernel(%arg0: i32, %arg1: memref<256x256xbf16, #tpu.memory_space<vmem>>, %arg2: memref<256x512xbf16, #tpu.memory_space<vmem>>, %arg3: memref<1x512xf32, #tpu.memory_space<vmem>>, %arg4: memref<256x512xf32, #tpu.memory_space<vmem>>) attributes {dimension_semantics = [#tpu.dimension_semantics<parallel>], iteration_bounds = array<i64: 2>, scalar_prefetch = 0 : i64, scratch_operands = 0 : i64, tpu.core_type = #tpu.core_type<tc>, window_params = [{transform_indices = @transform_0, window_bounds = array<i64: 256, 256>}, {pipeline_mode = #tpu.pipeline_mode<synchronous>, transform_indices = @transform_1, window_bounds = array<i64: 256, 512>}, {pipeline_mode = #tpu.pipeline_mode<synchronous>, transform_indices = @transform_2, window_bounds = array<i64: 1, 512>}, {transform_indices = @transform_3, window_bounds = array<i64: 256, 512>}]} {
    %c0 = arith.constant 0 : index
    %c0_0 = arith.constant 0 : index
    %0 = vector.load %arg1[%c0, %c0_0] : memref<256x256xbf16, #tpu.memory_space<vmem>>, vector<256x256xbf16>
    %c0_1 = arith.constant 0 : index
    %c0_2 = arith.constant 0 : index
    %1 = vector.load %arg2[%c0_1, %c0_2] : memref<256x512xbf16, #tpu.memory_space<vmem>>, vector<256x512xbf16>
    %cst = arith.constant dense<0.000000e+00> : vector<256x512xf32>
    %2 = tpu.matmul %0, %1, %cst {dimension_numbers = #tpu.dot_dimension_numbers<[1], [0], [0], [1], [0, 0, 1, 1], [], []>} : vector<256x256xbf16>, vector<256x512xbf16>, vector<256x512xf32> -> vector<256x512xf32>
    %c0_3 = arith.constant 0 : index
    %c0_4 = arith.constant 0 : index
    %3 = vector.load %arg3[%c0_3, %c0_4] : memref<1x512xf32, #tpu.memory_space<vmem>>, vector<1x512xf32>
    %4 = vector.broadcast %3 : vector<1x512xf32> to vector<256x512xf32>
    %5 = arith.addf %2, %4 : vector<256x512xf32>
    %c0_5 = arith.constant 0 : index
    %c0_6 = arith.constant 0 : index
    %6 = vector.load %arg4[%c0_5, %c0_6] : memref<256x512xf32, #tpu.memory_space<vmem>>, vector<256x512xf32>
    tpu.vector_store %arg4[%c0_5, %c0_6], %5 {strides = array<i32>} : memref<256x512xf32, #tpu.memory_space<vmem>>, vector<256x512xf32>,
    return
  }
  func.func @transform_0(%arg0: i32) -> (i32, i32) {
    %c0_i32 = arith.constant 0 : i32
    %c0_i32_0 = arith.constant 0 : i32
    return %arg0, %c0_i32 : i32, i32
  }
  func.func @transform_1(%arg0: i32) -> (i32, i32) {
    %c0_i32 = arith.constant 0 : i32
    %c0_i32_0 = arith.constant 0 : i32
    %c0_i32_1 = arith.constant 0 : i32
    return %c0_i32, %c0_i32_0 : i32, i32
  }
  func.func @transform_2(%arg0: i32) -> (i32, i32) {
    %c0_i32 = arith.constant 0 : i32
    %c0_i32_0 = arith.constant 0 : i32
    %c0_i32_1 = arith.constant 0 : i32
    return %c0_i32, %c0_i32_0 : i32, i32
  }
  func.func @transform_3(%arg0: i32) -> (i32, i32) {
    %c0_i32 = arith.constant 0 : i32
    %c0_i32_0 = arith.constant 0 : i32
    return %arg0, %c0_i32 : i32, i32
  }
}

</mosaic_0001>

<llo_original>
// kernel: wae_forward.8
$region0: #{wae_forward.8}
  #allocation0 [shape = 'u32[]', space=smem, size = 0x4, offset = 0x4, fixed_abs, tag = 'smem constant byte address 0x4 - core index']
  #allocation1 [shape = 'u32[72,128]{1,0:T(1,128)}', space=vmem, size = 0x9000, scoped, tag = 'internal scratch']
  %s0 = inlined_call_operand.vmem [shape: bf16[512,128], index: 0, kind: input, shape index: {}]
  %s1 = inlined_call_operand.hbm [shape: bf16[128,128], index: 1, kind: input, shape index: {}]
  %s2 = inlined_call_operand.vmem [shape: bf16[512,128], index: 2, kind: output, shape index: {}]
  %s3 = sld [smem:[#allocation0]]
  $region45: #{wae_forward.8} parent=0
    _
  %s5 = ssub.s32 1, %s3
  %s6 = scalar_select 0, %s5, %s3
  $region1: #{wae_forward.8} parent=0
    #allocation2 [shape = 'u8[32768]{0}', space=vmem, size = 0x8000, scoped, tag = 'input window, operand 1, single buffered']
    #allocation3 [shape = 's32[2]{0}', space=sflag, size = 0x8, scoped, tag = 'scoped memory for wae_forward.8']
    %7 = vsyncpa [#allocation3], 0
    loop: start=0, step=1, limit=4
    $region2: #{wae_forward.8} parent=1 // loop_pre_header
      _
    $region3: #{wae_forward.8} parent=1 // loop_header
      %s9 = sphi 0, %s13
      %p10 = scmp.ge.s32.totalorder %s9, 4
      %s19 = sphi 0, %s21
      %s22 = sphi 0, %s19
      %s23 = sphi 0, %s22
      %s39 = sphi 0, %s23
      %s43 = sphi 0, %s43
      %s45 = sphi 0, %s43
      %s46 = sphi 0, %s45
      %s60 = sphi 0, %s46
      %s66 = sphi 0, %s68
      %s69 = sphi 0, %s66
      %s70 = sphi 0, %s69
      %s86 = sphi 0, %s70
    $region4: #{wae_forward.8} parent=1 // loop_header_branch
      %12 = sbr.rel (%p10) target = $region8
    $region5: #{wae_forward.8} parent=1 // loop_body
      %s14 = ssub.s32 %s9, 1
      %s15 = ssub.s32 %s9, 2
      %s16 = sadd.s32 %s9, 1
      %s17 = ssub.s32 %s9, %s16
      %p18 = scmp.eq.s32.totalorder %s17, 0
      %s20 = sadd.s32 %s19, 1
      %s21 = scalar_select %p18, %s19, %s20
      %p24 = pneg %p18
      %p25 = scmp.eq.s32.totalorder %s9, 1
      %p26 = por %p24, %p25
      %p27 = scmp.ne.s32.totalorder %s19, %s22
      %p28 = scmp.eq.s32.totalorder %s9, 0
      %p29 = por %p27, %p28
      %p30 = scmp.ne.s32.totalorder %s19, %s22
      %p31 = scmp.eq.s32.totalorder %s14, 1
      %p32 = por %p30, %p31
      %p33 = scmp.ne.s32.totalorder %s22, %s23
      %p34 = scmp.eq.s32.totalorder %s14, 0
      %p35 = por %p33, %p34
      %p36 = scmp.ne.s32.totalorder %s22, %s23
      %p37 = scmp.eq.s32.totalorder %s15, 1
      %p38 = por %p36, %p37
      %p40 = scmp.ne.s32.totalorder %s23, %s39
      %p41 = scmp.eq.s32.totalorder %s15, 0
      %p42 = por %p40, %p41
      %s44 = sadd.s32 %s43, 1
      %p47 = scmp.eq.s32.totalorder %s9, 1
      %p48 = scmp.ne.s32.totalorder %s43, %s45
      %p49 = scmp.eq.s32.totalorder %s9, 0
      %p50 = por %p48, %p49
      %p51 = scmp.ne.s32.totalorder %s43, %s45
      %p52 = scmp.eq.s32.totalorder %s14, 1
      %p53 = por %p51, %p52
      %p54 = scmp.ne.s32.totalorder %s45, %s46
      %p55 = scmp.eq.s32.totalorder %s14, 0
      %p56 = por %p54, %p55
      %p57 = scmp.ne.s32.totalorder %s45, %s46
      %p58 = scmp.eq.s32.totalorder %s15, 1
      %p59 = por %p57, %p58
      %p61 = scmp.ne.s32.totalorder %s46, %s60
      %p62 = scmp.eq.s32.totalorder %s15, 0
      %p63 = por %p61, %p62
      %s64 = ssub.s32 %s9, %s16
      %p65 = scmp.eq.s32.totalorder %s64, 0
      %s67 = sadd.s32 %s66, 1
      %s68 = scalar_select %p65, %s66, %s67
      %p71 = pneg %p65
      %p72 = scmp.eq.s32.totalorder %s9, 1
      %p73 = por %p71, %p72
      %p74 = scmp.ne.s32.totalorder %s66, %s69
      %p75 = scmp.eq.s32.totalorder %s9, 0
      %p76 = por %p74, %p75
      %p77 = scmp.ne.s32.totalorder %s66, %s69
      %p78 = scmp.eq.s32.totalorder %s14, 1
      %p79 = por %p77, %p78
      %p80 = scmp.ne.s32.totalorder %s69, %s70
      %p81 = scmp.eq.s32.totalorder %s14, 0
      %p82 = por %p80, %p81
      %p83 = scmp.ne.s32.totalorder %s69, %s70
      %p84 = scmp.eq.s32.totalorder %s15, 1
      %p85 = por %p83, %p84
      %p87 = scmp.ne.s32.totalorder %s70, %s86
      %p88 = scmp.eq.s32.totalorder %s15, 0
      %p89 = por %p87, %p88
      %p90 = scmp.le.s32.totalorder 1, %s9
      %p91 = scmp.lt.s32.totalorder %s9, 3
      %p92 = pnand %p90, %p91
      %p93 = pneg %p92
      // Predicated region
      $region9: #{wae_forward.8} parent=5 // pred_check
        _
      $region10: #{wae_forward.8} parent=5 // pred_check_branch
        %95 = sbr.rel (%p92) target = $region12
      $region11: #{wae_forward.8} parent=5 // pred_region
        %s96 = ssub.s32 %s9, 1
        // Predicated region
        $region13: #{wae_forward.8} parent=11 // pred_check
          %p97 = pneg %p56
        $region14: #{wae_forward.8} parent=11 // pred_check_branch
          %99 = sbr.rel (%p97) target = $region16
        $region15: #{wae_forward.8} parent=11 // pred_region
          %101 = vsyncadd [#allocation3], 0
          %s102 = sshll.u32 %s1, 4
          %s103 = int_to_ptr.hbm [resolvable:$true] %s102
          %s104 = sshll.u32 [#allocation2], 4
          %s105 = int_to_ptr.vmem [resolvable:$true] %s104
          %110 = dma.hbm_to_vmem [thread:$0]  %s103, 1024, %s105, [#allocation3], 64, 64, 4
        $region16: #{wae_forward.8} parent=11 // pred_fallthru
          _
      $region12: #{wae_forward.8} parent=5 // pred_fallthru
        _
      %p111 = scmp.lt.s32.totalorder %s9, 2
      // Predicated region
      $region17: #{wae_forward.8} parent=5 // pred_check
        %p112 = pneg %p111
      $region18: #{wae_forward.8} parent=5 // pred_check_branch
        %114 = sbr.rel (%p112) target = $region20
      $region19: #{wae_forward.8} parent=5 // pred_region
        // Predicated region
        $region21: #{wae_forward.8} parent=19 // pred_check
          %p115 = pneg %p29
        $region22: #{wae_forward.8} parent=19 // pred_check_branch
          %117 = sbr.rel (%p115) target = $region24
        $region23: #{wae_forward.8} parent=19 // pred_region
          %s118 = smul.u32 32, %s9
          %p119 = scmp.lt.s32.totalorder %s118, 63
          %s120 = scalar_select %p119, %s118, 63
          %s121 = smul.addr %s120, 4
          %s122 = scalar_lea.vmem %s0, %s121
          %s123 = smul.u32 32, %s9
        $region24: #{wae_forward.8} parent=19 // pred_fallthru
          _
      $region20: #{wae_forward.8} parent=5 // pred_fallthru
        _
      %p124 = scmp.le.s32.totalorder 1, %s9
      %p125 = scmp.lt.s32.totalorder %s9, 3
      %p126 = pnand %p124, %p125
      %p127 = pneg %p126
      // Predicated region
      $region25: #{wae_forward.8} parent=5 // pred_check
        _
      $region26: #{wae_forward.8} parent=5 // pred_check_branch
        %129 = sbr.rel (%p126) target = $region28
      $region27: #{wae_forward.8} parent=5 // pred_region
        %s130 = ssub.s32 %s9, 1
        // Predicated region
        $region29: #{wae_forward.8} parent=27 // pred_check
          %p131 = pneg %p56
        $region30: #{wae_forward.8} parent=27 // pred_check_branch
          %133 = sbr.rel (%p131) target = $region32
        $region31: #{wae_forward.8} parent=27 // pred_region
          %135 = dma.done [#allocation3], 1024
        $region32: #{wae_forward.8} parent=27 // pred_fallthru
          _
        %s136 = smul.u32 32, %s14
        %p137 = scmp.lt.s32.totalorder %s136, 63
        %s138 = scalar_select %p137, %s136, 63
        %s139 = smul.addr %s138, 4
        %s140 = scalar_lea.vmem %s0, %s139
        %p141 = pneg %p35
        %p142 = pneg %p32
        %p143 = pneg %p56
        %p144 = pneg %p53
        %p145 = pneg %p82
        %p146 = pneg %p79
        %s147 = smul.u32 32, %s14
        %p148 = scmp.lt.s32.totalorder %s147, 63
        %s149 = scalar_select %p148, %s147, 63
        %s150 = smul.addr %s149, 4
        %s151 = scalar_lea.vmem %s2, %s150
        %s152 = smul.u32 32, %s14
        %p153 = scmp.lt.s32.totalorder %s152, 63
        %s154 = scalar_select %p153, %s152, 63
        %s155 = smul.addr %s154, 4
        %s156 = scalar_lea.vmem %s0, %s155
        %s157 = smul.u32 32, %s14
        %s158 = smul.u32 32, %s14
        %p159 = scmp.lt.s32.totalorder %s158, 63
        %s160 = scalar_select %p159, %s158, 63
        %s161 = smul.addr %s160, 4
        %s162 = scalar_lea.vmem %s2, %s161
        %s163 = smul.u32 32, %s14
        %v164 = vld [vmem:[%s156] sm:$0xf]
        %v165 = vld [vmem:[%s156 + $0x4] sm:$0xf]
        %v166 = vld [vmem:[%s156 + $0x8] sm:$0xf]
        %v167 = vld [vmem:[%s156 + $0xc] sm:$0xf]
        %v168 = vld [vmem:[%s156 + $0x10] sm:$0xf]
        %v169 = vld [vmem:[%s156 + $0x14] sm:$0xf]
        %v170 = vld [vmem:[%s156 + $0x18] sm:$0xf]
        %v171 = vld [vmem:[%s156 + $0x1c] sm:$0xf]
        %v172 = vld [vmem:[%s156 + $0x20] sm:$0xf]
        %v173 = vld [vmem:[%s156 + $0x24] sm:$0xf]
        %v174 = vld [vmem:[%s156 + $0x28] sm:$0xf]
        %v175 = vld [vmem:[%s156 + $0x2c] sm:$0xf]
        %v176 = vld [vmem:[%s156 + $0x30] sm:$0xf]
        %v177 = vld [vmem:[%s156 + $0x34] sm:$0xf]
        %v178 = vld [vmem:[%s156 + $0x38] sm:$0xf]
        %v179 = vld [vmem:[%s156 + $0x3c] sm:$0xf]
        %v180 = vld [vmem:[%s156 + $0x40] sm:$0xf]
        %v181 = vld [vmem:[%s156 + $0x44] sm:$0xf]
        %v182 = vld [vmem:[%s156 + $0x48] sm:$0xf]
        %v183 = vld [vmem:[%s156 + $0x4c] sm:$0xf]
        %v184 = vld [vmem:[%s156 + $0x50] sm:$0xf]
        %v185 = vld [vmem:[%s156 + $0x54] sm:$0xf]
        %v186 = vld [vmem:[%s156 + $0x58] sm:$0xf]
        %v187 = vld [vmem:[%s156 + $0x5c] sm:$0xf]
        %v188 = vld [vmem:[%s156 + $0x60] sm:$0xf]
        %v189 = vld [vmem:[%s156 + $0x64] sm:$0xf]
        %v190 = vld [vmem:[%s156 + $0x68] sm:$0xf]
        %v191 = vld [vmem:[%s156 + $0x6c] sm:$0xf]
        %v192 = vld [vmem:[%s156 + $0x70] sm:$0xf]
        %v193 = vld [vmem:[%s156 + $0x74] sm:$0xf]
        %v194 = vld [vmem:[%s156 + $0x78] sm:$0xf]
        %v195 = vld [vmem:[%s156 + $0x7c] sm:$0xf]
        %v196 = vld [vmem:[#allocation2] sm:$0xf]
        %v197 = vld [vmem:[#allocation2 + $0x4] sm:$0xf]
        %v198 = vld [vmem:[#allocation2 + $0x8] sm:$0xf]
        %v199 = vld [vmem:[#allocation2 + $0xc] sm:$0xf]
        %v200 = vld [vmem:[#allocation2 + $0x10] sm:$0xf]
        %v201 = vld [vmem:[#allocation2 + $0x14] sm:$0xf]
        %v202 = vld [vmem:[#allocation2 + $0x18] sm:$0xf]
        %v203 = vld [vmem:[#allocation2 + $0x1c] sm:$0xf]
        %v204 = vld [vmem:[#allocation2 + $0x20] sm:$0xf]
        %v205 = vld [vmem:[#allocation2 + $0x24] sm:$0xf]
        %v206 = vld [vmem:[#allocation2 + $0x28] sm:$0xf]
        %v207 = vld [vmem:[#allocation2 + $0x2c] sm:$0xf]
        %v208 = vld [vmem:[#allocation2 + $0x30] sm:$0xf]
        %v209 = vld [vmem:[#allocation2 + $0x34] sm:$0xf]
        %v210 = vld [vmem:[#allocation2 + $0x38] sm:$0xf]
        %v211 = vld [vmem:[#allocation2 + $0x3c] sm:$0xf]
        %v244 = vunpack.c.l.b16 %v164
        %v245 = vunpack.c.l.b16 %v165
        %v246 = vunpack.c.l.b16 %v166
        %v247 = vunpack.c.l.b16 %v167
        %v248 = vunpack.c.l.b16 %v168
        %v249 = vunpack.c.l.b16 %v169
        %v250 = vunpack.c.l.b16 %v170
        %v251 = vunpack.c.l.b16 %v171
        %v252 = vunpack.c.l.b16 %v172
        %v253 = vunpack.c.l.b16 %v173
        %v254 = vunpack.c.l.b16 %v174
        %v255 = vunpack.c.l.b16 %v175
        %v256 = vunpack.c.l.b16 %v176
        %v257 = vunpack.c.l.b16 %v177
        %v258 = vunpack.c.l.b16 %v178
        %v259 = vunpack.c.l.b16 %v179
        %v260 = vunpack.c.l.b16 %v180
        %v261 = vunpack.c.l.b16 %v181
        %v262 = vunpack.c.l.b16 %v182
        %v263 = vunpack.c.l.b16 %v183
        %v264 = vunpack.c.l.b16 %v184
        %v265 = vunpack.c.l.b16 %v185
        %v266 = vunpack.c.l.b16 %v186
        %v267 = vunpack.c.l.b16 %v187
        %v268 = vunpack.c.l.b16 %v188
        %v269 = vunpack.c.l.b16 %v189
        %v270 = vunpack.c.l.b16 %v190
        %v271 = vunpack.c.l.b16 %v191
        %v272 = vunpack.c.l.b16 %v192
        %v273 = vunpack.c.l.b16 %v193
        %v274 = vunpack.c.l.b16 %v194
        %v275 = vunpack.c.l.b16 %v195
        %v276 = vpack.c.b16 %v245, %v244
        %v277 = vpack.c.b16 %v247, %v246
        %v278 = vpack.c.b16 %v249, %v248
        %v279 = vpack.c.b16 %v251, %v250
        %v280 = vpack.c.b16 %v253, %v252
        %v281 = vpack.c.b16 %v255, %v254
        %v282 = vpack.c.b16 %v257, %v256
        %v283 = vpack.c.b16 %v259, %v258
        %v284 = vpack.c.b16 %v261, %v260
        %v285 = vpack.c.b16 %v263, %v262
        %v286 = vpack.c.b16 %v265, %v264
        %v287 = vpack.c.b16 %v267, %v266
        %v288 = vpack.c.b16 %v269, %v268
        %v289 = vpack.c.b16 %v271, %v270
        %v290 = vpack.c.b16 %v273, %v272
        %v291 = vpack.c.b16 %v275, %v274
        %v324 = vunpack.c.l.b16 %v196
        %v325 = vunpack.c.l.b16 %v197
        %v326 = vunpack.c.l.b16 %v198
        %v327 = vunpack.c.l.b16 %v199
        %v328 = vunpack.c.l.b16 %v200
        %v329 = vunpack.c.l.b16 %v201
        %v330 = vunpack.c.l.b16 %v202
        %v331 = vunpack.c.l.b16 %v203
        %v332 = vunpack.c.l.b16 %v204
        %v333 = vunpack.c.l.b16 %v205
        %v334 = vunpack.c.l.b16 %v206
        %v335 = vunpack.c.l.b16 %v207
        %v336 = vunpack.c.l.b16 %v208
        %v337 = vunpack.c.l.b16 %v209
        %v338 = vunpack.c.l.b16 %v210
        %v339 = vunpack.c.l.b16 %v211
        %v340 = vpack.c.b16 %v325, %v324
        %v341 = vpack.c.b16 %v327, %v326
        %v342 = vpack.c.b16 %v329, %v328
        %v343 = vpack.c.b16 %v331, %v330
        %v344 = vpack.c.b16 %v333, %v332
        %v345 = vpack.c.b16 %v335, %v334
        %v346 = vpack.c.b16 %v337, %v336
        %v347 = vpack.c.b16 %v339, %v338
        %356 = vmatpush.bf16.msra.mxu0 %v347
        %357 = vmatpush.bf16.msra.mxu0 %v346
        %358 = vmatpush.bf16.msra.mxu0 %v345
        %359 = vmatpush.bf16.msra.mxu0 %v344
        %360 = vmatpush.bf16.msra.mxu0 %v343
        %361 = vmatpush.bf16.msra.mxu0 %v342
        %362 = vmatpush.bf16.msra.mxu0 %v341
        %363 = vmatpush.bf16.msra.mxu0 %v340
        %364 = vmatmul.bf16.gmra.mxu0 %v276
        %v365 = vpop.f32.mrf.mxu0
        %v366 = vadd.f32 0.0, %v365
        %v367 = vpop.f32.mrf.mxu0
        %v368 = vadd.f32 0.0, %v367
        %369 = vmatmul.bf16.gmra.mxu0 %v277
        %v370 = vpop.f32.mrf.mxu0
        %v371 = vadd.f32 0.0, %v370
        %v372 = vpop.f32.mrf.mxu0
        %v373 = vadd.f32 0.0, %v372
        %374 = vmatmul.bf16.gmra.mxu0 %v278
        %v375 = vpop.f32.mrf.mxu0
        %v376 = vadd.f32 0.0, %v375
        %v377 = vpop.f32.mrf.mxu0
        %v378 = vadd.f32 0.0, %v377
        %379 = vmatmul.bf16.gmra.mxu0 %v279
        %v380 = vpop.f32.mrf.mxu0
        %v381 = vadd.f32 0.0, %v380
        %v382 = vpop.f32.mrf.mxu0
        %v383 = vadd.f32 0.0, %v382
        %384 = vmatmul.bf16.gmra.mxu0 %v280
        %v385 = vpop.f32.mrf.mxu0
        %v386 = vadd.f32 0.0, %v385
        %v387 = vpop.f32.mrf.mxu0
        %v388 = vadd.f32 0.0, %v387
        %389 = vmatmul.bf16.gmra.mxu0 %v281
        %v390 = vpop.f32.mrf.mxu0
        %v391 = vadd.f32 0.0, %v390
        %v392 = vpop.f32.mrf.mxu0
        %v393 = vadd.f32 0.0, %v392
        %394 = vmatmul.bf16.gmra.mxu0 %v282
        %v395 = vpop.f32.mrf.mxu0
        %v396 = vadd.f32 0.0, %v395
        %v397 = vpop.f32.mrf.mxu0
        %v398 = vadd.f32 0.0, %v397
        %399 = vmatmul.bf16.gmra.mxu0 %v283
        %v400 = vpop.f32.mrf.mxu0
        %v401 = vadd.f32 0.0, %v400
        %v402 = vpop.f32.mrf.mxu0
        %v403 = vadd.f32 0.0, %v402
        %404 = vmatmul.bf16.gmra.mxu0 %v284
        %v405 = vpop.f32.mrf.mxu0
        %v406 = vadd.f32 0.0, %v405
        %v407 = vpop.f32.mrf.mxu0
        %v408 = vadd.f32 0.0, %v407
        %409 = vmatmul.bf16.gmra.mxu0 %v285
        %v410 = vpop.f32.mrf.mxu0
        %v411 = vadd.f32 0.0, %v410
        %v412 = vpop.f32.mrf.mxu0
        %v413 = vadd.f32 0.0, %v412
        %414 = vmatmul.bf16.gmra.mxu0 %v286
        %v415 = vpop.f32.mrf.mxu0
        %v416 = vadd.f32 0.0, %v415
        %v417 = vpop.f32.mrf.mxu0
        %v418 = vadd.f32 0.0, %v417
        %419 = vmatmul.bf16.gmra.mxu0 %v287
        %v420 = vpop.f32.mrf.mxu0
        %v421 = vadd.f32 0.0, %v420
        %v422 = vpop.f32.mrf.mxu0
        %v423 = vadd.f32 0.0, %v422
        %424 = vmatmul.bf16.gmra.mxu0 %v288
        %v425 = vpop.f32.mrf.mxu0
        %v426 = vadd.f32 0.0, %v425
        %v427 = vpop.f32.mrf.mxu0
        %v428 = vadd.f32 0.0, %v427
        %429 = vmatmul.bf16.gmra.mxu0 %v289
        %v430 = vpop.f32.mrf.mxu0
        %v431 = vadd.f32 0.0, %v430
        %v432 = vpop.f32.mrf.mxu0
        %v433 = vadd.f32 0.0, %v432
        %434 = vmatmul.bf16.gmra.mxu0 %v290
        %v435 = vpop.f32.mrf.mxu0
        %v436 = vadd.f32 0.0, %v435
        %v437 = vpop.f32.mrf.mxu0
        %v438 = vadd.f32 0.0, %v437
        %439 = vmatmul.bf16.gmra.mxu0 %v291
        %v440 = vpop.f32.mrf.mxu0
        %v441 = vadd.f32 0.0, %v440
        %v442 = vpop.f32.mrf.mxu0
        %v443 = vadd.f32 0.0, %v442
        %444 = vdwg.mxu0
        %v445 = vmax.f32 %v366, 0.0
        %v446 = vmax.f32 %v368, 0.0
        %v447 = vmax.f32 %v371, 0.0
        %v448 = vmax.f32 %v373, 0.0
        %v449 = vmax.f32 %v376, 0.0
        %v450 = vmax.f32 %v378, 0.0
        %v451 = vmax.f32 %v381, 0.0
        %v452 = vmax.f32 %v383, 0.0
        %v453 = vmax.f32 %v386, 0.0
        %v454 = vmax.f32 %v388, 0.0
        %v455 = vmax.f32 %v391, 0.0
        %v456 = vmax.f32 %v393, 0.0
        %v457 = vmax.f32 %v396, 0.0
        %v458 = vmax.f32 %v398, 0.0
        %v459 = vmax.f32 %v401, 0.0
        %v460 = vmax.f32 %v403, 0.0
        %v461 = vmax.f32 %v406, 0.0
        %v462 = vmax.f32 %v408, 0.0
        %v463 = vmax.f32 %v411, 0.0
        %v464 = vmax.f32 %v413, 0.0
        %v465 = vmax.f32 %v416, 0.0
        %v466 = vmax.f32 %v418, 0.0
        %v467 = vmax.f32 %v421, 0.0
        %v468 = vmax.f32 %v423, 0.0
        %v469 = vmax.f32 %v426, 0.0
        %v470 = vmax.f32 %v428, 0.0
        %v471 = vmax.f32 %v431, 0.0
        %v472 = vmax.f32 %v433, 0.0
        %v473 = vmax.f32 %v436, 0.0
        %v474 = vmax.f32 %v438, 0.0
        %v475 = vmax.f32 %v441, 0.0
        %v476 = vmax.f32 %v443, 0.0
        %v477 = vpack.c.bf16 %v445, %v445
        %v478 = vpack.c.bf16 %v446, %v446
        %v479 = vpack.c.bf16 %v447, %v447
        %v480 = vpack.c.bf16 %v448, %v448
        %v481 = vpack.c.bf16 %v449, %v449
        %v482 = vpack.c.bf16 %v450, %v450
        %v483 = vpack.c.bf16 %v451, %v451
        %v484 = vpack.c.bf16 %v452, %v452
        %v485 = vpack.c.bf16 %v453, %v453
        %v486 = vpack.c.bf16 %v454, %v454
        %v487 = vpack.c.bf16 %v455, %v455
        %v488 = vpack.c.bf16 %v456, %v456
        %v489 = vpack.c.bf16 %v457, %v457
        %v490 = vpack.c.bf16 %v458, %v458
        %v491 = vpack.c.bf16 %v459, %v459
        %v492 = vpack.c.bf16 %v460, %v460
        %v493 = vpack.c.bf16 %v461, %v461
        %v494 = vpack.c.bf16 %v462, %v462
        %v495 = vpack.c.bf16 %v463, %v463
        %v496 = vpack.c.bf16 %v464, %v464
        %v497 = vpack.c.bf16 %v465, %v465
        %v498 = vpack.c.bf16 %v466, %v466
        %v499 = vpack.c.bf16 %v467, %v467
        %v500 = vpack.c.bf16 %v468, %v468
        %v501 = vpack.c.bf16 %v469, %v469
        %v502 = vpack.c.bf16 %v470, %v470
        %v503 = vpack.c.bf16 %v471, %v471
        %v504 = vpack.c.bf16 %v472, %v472
        %v505 = vpack.c.bf16 %v473, %v473
        %v506 = vpack.c.bf16 %v474, %v474
        %v507 = vpack.c.bf16 %v475, %v475
        %v508 = vpack.c.bf16 %v476, %v476
        %509 = vst [vmem:[%s162] sm:$0xf] %v477
        %510 = vst [vmem:[%s162 + $0x4] sm:$0xf] %v478
        %511 = vst [vmem:[%s162 + $0x8] sm:$0xf] %v479
        %512 = vst [vmem:[%s162 + $0xc] sm:$0xf] %v480
        %513 = vst [vmem:[%s162 + $0x10] sm:$0xf] %v481
        %514 = vst [vmem:[%s162 + $0x14] sm:$0xf] %v482
        %515 = vst [vmem:[%s162 + $0x18] sm:$0xf] %v483
        %516 = vst [vmem:[%s162 + $0x1c] sm:$0xf] %v484
        %517 = vst [vmem:[%s162 + $0x20] sm:$0xf] %v485
        %518 = vst [vmem:[%s162 + $0x24] sm:$0xf] %v486
        %519 = vst [vmem:[%s162 + $0x28] sm:$0xf] %v487
        %520 = vst [vmem:[%s162 + $0x2c] sm:$0xf] %v488
        %521 = vst [vmem:[%s162 + $0x30] sm:$0xf] %v489
        %522 = vst [vmem:[%s162 + $0x34] sm:$0xf] %v490
        %523 = vst [vmem:[%s162 + $0x38] sm:$0xf] %v491
        %524 = vst [vmem:[%s162 + $0x3c] sm:$0xf] %v492
        %525 = vst [vmem:[%s162 + $0x40] sm:$0xf] %v493
        %526 = vst [vmem:[%s162 + $0x44] sm:$0xf] %v494
        %527 = vst [vmem:[%s162 + $0x48] sm:$0xf] %v495
        %528 = vst [vmem:[%s162 + $0x4c] sm:$0xf] %v496
        %529 = vst [vmem:[%s162 + $0x50] sm:$0xf] %v497
        %530 = vst [vmem:[%s162 + $0x54] sm:$0xf] %v498
        %531 = vst [vmem:[%s162 + $0x58] sm:$0xf] %v499
        %532 = vst [vmem:[%s162 + $0x5c] sm:$0xf] %v500
        %533 = vst [vmem:[%s162 + $0x60] sm:$0xf] %v501
        %534 = vst [vmem:[%s162 + $0x64] sm:$0xf] %v502
        %535 = vst [vmem:[%s162 + $0x68] sm:$0xf] %v503
        %536 = vst [vmem:[%s162 + $0x6c] sm:$0xf] %v504
        %537 = vst [vmem:[%s162 + $0x70] sm:$0xf] %v505
        %538 = vst [vmem:[%s162 + $0x74] sm:$0xf] %v506
        %539 = vst [vmem:[%s162 + $0x78] sm:$0xf] %v507
        %540 = vst [vmem:[%s162 + $0x7c] sm:$0xf] %v508
        %s541 = smul.u32 32, %s14
        %p542 = scmp.lt.s32.totalorder %s541, 63
        %s543 = scalar_select %p542, %s541, 63
        %s544 = smul.addr %s543, 4
        %s545 = scalar_lea.vmem %s2, %s544
        // Predicated region
        $region33: #{wae_forward.8} parent=27 // pred_check
          %p546 = pneg %p79
        $region34: #{wae_forward.8} parent=27 // pred_check_branch
          %548 = sbr.rel (%p546) target = $region36
        $region35: #{wae_forward.8} parent=27 // pred_region
          %s549 = smul.u32 32, %s14
        $region36: #{wae_forward.8} parent=27 // pred_fallthru
          _
      $region28: #{wae_forward.8} parent=5 // pred_fallthru
        _
      %p550 = scmp.le.s32.totalorder 2, %s9
      // Predicated region
      $region37: #{wae_forward.8} parent=5 // pred_check
        %p551 = pneg %p550
      $region38: #{wae_forward.8} parent=5 // pred_check_branch
        %553 = sbr.rel (%p551) target = $region40
      $region39: #{wae_forward.8} parent=5 // pred_region
        %s554 = ssub.s32 %s9, 2
        // Predicated region
        $region41: #{wae_forward.8} parent=39 // pred_check
          %p555 = pneg %p85
        $region42: #{wae_forward.8} parent=39 // pred_check_branch
          %557 = sbr.rel (%p555) target = $region44
        $region43: #{wae_forward.8} parent=39 // pred_region
          %s558 = smul.u32 32, %s15
          %p559 = scmp.lt.s32.totalorder %s558, 63
          %s560 = scalar_select %p559, %s558, 63
          %s561 = smul.addr %s560, 4
          %s562 = scalar_lea.vmem %s2, %s561
        $region44: #{wae_forward.8} parent=39 // pred_fallthru
          _
      $region40: #{wae_forward.8} parent=5 // pred_fallthru
        _
    $region6: #{wae_forward.8} parent=1 // loop_footer
      %s13 = sadd.s32 1, %s9
    $region7: #{wae_forward.8} parent=1 // loop_footer_branch
      %8 = sbr.rel target = $region3
    $region8: #{wae_forward.8} parent=1 // loop_exit
      _
    %563 = vsyncpa [#allocation3], 1
    %s564 = scalar_lea.sflag [#allocation3], 1
    %565 = vsyncpa %s564, 1

// kernel: wae_forward.9
$region0: #{wae_forward.9}
  #allocation0 [shape = 'u32[]', space=smem, size = 0x4, offset = 0x4, fixed_abs, tag = 'smem constant byte address 0x4 - core index']
  #allocation1 [shape = 'u32[72,128]{1,0:T(1,128)}', space=vmem, size = 0x9000, scoped, tag = 'internal scratch']
  %s0 = inlined_call_operand.vmem [shape: bf16[128,256], index: 0, kind: input, shape index: {}]
  %s1 = inlined_call_operand.vmem [shape: bf16[256,128], index: 1, kind: input, shape index: {}]
  %s2 = inlined_call_operand.vmem [shape: f32[1,128], index: 2, kind: input, shape index: {}]
  %s3 = inlined_call_operand.vmem [shape: f32[1,128], index: 3, kind: input, shape index: {}]
  %s4 = inlined_call_operand.vmem [shape: bf16[128,128], index: 4, kind: output, shape index: {}]
  %s5 = sld [smem:[#allocation0]]
  $region26: #{wae_forward.9} parent=0
    _
  %s7 = ssub.s32 1, %s5
  %s8 = scalar_select 0, %s7, %s5
  // Predicated region
  $region2: #{wae_forward.9} parent=0 // pred_check
    _
  $region3: #{wae_forward.9} parent=0 // pred_check_branch
    %10 = sbr.rel (0) target = $region5
  $region4: #{wae_forward.9} parent=0 // pred_region
    _
  $region5: #{wae_forward.9} parent=0 // pred_fallthru
    _
  // Predicated region
  $region6: #{wae_forward.9} parent=0 // pred_check
    _
  $region7: #{wae_forward.9} parent=0 // pred_check_branch
    %12 = sbr.rel (0) target = $region9
  $region8: #{wae_forward.9} parent=0 // pred_region
    _
  $region9: #{wae_forward.9} parent=0 // pred_fallthru
    _
  // Predicated region
  $region10: #{wae_forward.9} parent=0 // pred_check
    _
  $region11: #{wae_forward.9} parent=0 // pred_check_branch
    %14 = sbr.rel (0) target = $region13
  $region12: #{wae_forward.9} parent=0 // pred_region
    _
  $region13: #{wae_forward.9} parent=0 // pred_fallthru
    _
  // Predicated region
  $region14: #{wae_forward.9} parent=0 // pred_check
    _
  $region15: #{wae_forward.9} parent=0 // pred_check_branch
    %16 = sbr.rel (0) target = $region17
  $region16: #{wae_forward.9} parent=0 // pred_region
    _
  $region17: #{wae_forward.9} parent=0 // pred_fallthru
    _
  %v17 = vld [vmem:[%s0] sm:$0xff]
  %v18 = vld [vmem:[%s0 + $0x8] sm:$0xff]
  %v19 = vld [vmem:[%s0 + $0x10] sm:$0xff]
  %v20 = vld [vmem:[%s0 + $0x18] sm:$0xff]
  %v21 = vld [vmem:[%s0 + $0x20] sm:$0xff]
  %v22 = vld [vmem:[%s0 + $0x28] sm:$0xff]
  %v23 = vld [vmem:[%s0 + $0x30] sm:$0xff]
  %v24 = vld [vmem:[%s0 + $0x38] sm:$0xff]
  %v25 = vld [vmem:[%s0 + $0x40] sm:$0xff]
  %v26 = vld [vmem:[%s0 + $0x48] sm:$0xff]
  %v27 = vld [vmem:[%s0 + $0x50] sm:$0xff]
  %v28 = vld [vmem:[%s0 + $0x58] sm:$0xff]
  %v29 = vld [vmem:[%s0 + $0x60] sm:$0xff]
  %v30 = vld [vmem:[%s0 + $0x68] sm:$0xff]
  %v31 = vld [vmem:[%s0 + $0x70] sm:$0xff]
  %v32 = vld [vmem:[%s0 + $0x78] sm:$0xff]
  %v33 = vld [vmem:[%s1] sm:$0xf]
  %v34 = vld [vmem:[%s1 + $0x4] sm:$0xf]
  %v35 = vld [vmem:[%s1 + $0x8] sm:$0xf]
  %v36 = vld [vmem:[%s1 + $0xc] sm:$0xf]
  %v37 = vld [vmem:[%s1 + $0x10] sm:$0xf]
  %v38 = vld [vmem:[%s1 + $0x14] sm:$0xf]
  %v39 = vld [vmem:[%s1 + $0x18] sm:$0xf]
  %v40 = vld [vmem:[%s1 + $0x1c] sm:$0xf]
  %v41 = vld [vmem:[%s1 + $0x20] sm:$0xf]
  %v42 = vld [vmem:[%s1 + $0x24] sm:$0xf]
  %v43 = vld [vmem:[%s1 + $0x28] sm:$0xf]
  %v44 = vld [vmem:[%s1 + $0x2c] sm:$0xf]
  %v45 = vld [vmem:[%s1 + $0x30] sm:$0xf]
  %v46 = vld [vmem:[%s1 + $0x34] sm:$0xf]
  %v47 = vld [vmem:[%s1 + $0x38] sm:$0xf]
  %v48 = vld [vmem:[%s1 + $0x3c] sm:$0xf]
  %v49 = vld [vmem:[%s1 + $0x40] sm:$0xf]
  %v50 = vld [vmem:[%s1 + $0x44] sm:$0xf]
  %v51 = vld [vmem:[%s1 + $0x48] sm:$0xf]
  %v52 = vld [vmem:[%s1 + $0x4c] sm:$0xf]
  %v53 = vld [vmem:[%s1 + $0x50] sm:$0xf]
  %v54 = vld [vmem:[%s1 + $0x54] sm:$0xf]
  %v55 = vld [vmem:[%s1 + $0x58] sm:$0xf]
  %v56 = vld [vmem:[%s1 + $0x5c] sm:$0xf]
  %v57 = vld [vmem:[%s1 + $0x60] sm:$0xf]
  %v58 = vld [vmem:[%s1 + $0x64] sm:$0xf]
  %v59 = vld [vmem:[%s1 + $0x68] sm:$0xf]
  %v60 = vld [vmem:[%s1 + $0x6c] sm:$0xf]
  %v61 = vld [vmem:[%s1 + $0x70] sm:$0xf]
  %v62 = vld [vmem:[%s1 + $0x74] sm:$0xf]
  %v63 = vld [vmem:[%s1 + $0x78] sm:$0xf]
  %v64 = vld [vmem:[%s1 + $0x7c] sm:$0xf]
  %v81 = vunpack.c.l.b16 %v17
  %v82 = vunpack.c.h.b16 %v17
  %v83 = vunpack.c.l.b16 %v18
  %v84 = vunpack.c.h.b16 %v18
  %v85 = vunpack.c.l.b16 %v19
  %v86 = vunpack.c.h.b16 %v19
  %v87 = vunpack.c.l.b16 %v20
  %v88 = vunpack.c.h.b16 %v20
  %v89 = vunpack.c.l.b16 %v21
  %v90 = vunpack.c.h.b16 %v21
  %v91 = vunpack.c.l.b16 %v22
  %v92 = vunpack.c.h.b16 %v22
  %v93 = vunpack.c.l.b16 %v23
  %v94 = vunpack.c.h.b16 %v23
  %v95 = vunpack.c.l.b16 %v24
  %v96 = vunpack.c.h.b16 %v24
  %v97 = vunpack.c.l.b16 %v25
  %v98 = vunpack.c.h.b16 %v25
  %v99 = vunpack.c.l.b16 %v26
  %v100 = vunpack.c.h.b16 %v26
  %v101 = vunpack.c.l.b16 %v27
  %v102 = vunpack.c.h.b16 %v27
  %v103 = vunpack.c.l.b16 %v28
  %v104 = vunpack.c.h.b16 %v28
  %v105 = vunpack.c.l.b16 %v29
  %v106 = vunpack.c.h.b16 %v29
  %v107 = vunpack.c.l.b16 %v30
  %v108 = vunpack.c.h.b16 %v30
  %v109 = vunpack.c.l.b16 %v31
  %v110 = vunpack.c.h.b16 %v31
  %v111 = vunpack.c.l.b16 %v32
  %v112 = vunpack.c.h.b16 %v32
  %v113 = vpack.c.b16 %v83, %v81
  %v114 = vpack.c.b16 %v84, %v82
  %v115 = vpack.c.b16 %v87, %v85
  %v116 = vpack.c.b16 %v88, %v86
  %v117 = vpack.c.b16 %v91, %v89
  %v118 = vpack.c.b16 %v92, %v90
  %v119 = vpack.c.b16 %v95, %v93
  %v120 = vpack.c.b16 %v96, %v94
  %v121 = vpack.c.b16 %v99, %v97
  %v122 = vpack.c.b16 %v100, %v98
  %v123 = vpack.c.b16 %v103, %v101
  %v124 = vpack.c.b16 %v104, %v102
  %v125 = vpack.c.b16 %v107, %v105
  %v126 = vpack.c.b16 %v108, %v106
  %v127 = vpack.c.b16 %v111, %v109
  %v128 = vpack.c.b16 %v112, %v110
  %v177 = vunpack.c.l.b16 %v33
  %v178 = vunpack.c.l.b16 %v34
  %v179 = vunpack.c.l.b16 %v35
  %v180 = vunpack.c.l.b16 %v36
  %v181 = vunpack.c.l.b16 %v37
  %v182 = vunpack.c.l.b16 %v38
  %v183 = vunpack.c.l.b16 %v39
  %v184 = vunpack.c.l.b16 %v40
  %v185 = vunpack.c.l.b16 %v41
  %v186 = vunpack.c.l.b16 %v42
  %v187 = vunpack.c.l.b16 %v43
  %v188 = vunpack.c.l.b16 %v44
  %v189 = vunpack.c.l.b16 %v45
  %v190 = vunpack.c.l.b16 %v46
  %v191 = vunpack.c.l.b16 %v47
  %v192 = vunpack.c.l.b16 %v48
  %v193 = vunpack.c.l.b16 %v49
  %v194 = vunpack.c.l.b16 %v50
  %v195 = vunpack.c.l.b16 %v51
  %v196 = vunpack.c.l.b16 %v52
  %v197 = vunpack.c.l.b16 %v53
  %v198 = vunpack.c.l.b16 %v54
  %v199 = vunpack.c.l.b16 %v55
  %v200 = vunpack.c.l.b16 %v56
  %v201 = vunpack.c.l.b16 %v57
  %v202 = vunpack.c.l.b16 %v58
  %v203 = vunpack.c.l.b16 %v59
  %v204 = vunpack.c.l.b16 %v60
  %v205 = vunpack.c.l.b16 %v61
  %v206 = vunpack.c.l.b16 %v62
  %v207 = vunpack.c.l.b16 %v63
  %v208 = vunpack.c.l.b16 %v64
  %v209 = vpack.c.b16 %v178, %v177
  %v210 = vpack.c.b16 %v180, %v179
  %v211 = vpack.c.b16 %v182, %v181
  %v212 = vpack.c.b16 %v184, %v183
  %v213 = vpack.c.b16 %v186, %v185
  %v214 = vpack.c.b16 %v188, %v187
  %v215 = vpack.c.b16 %v190, %v189
  %v216 = vpack.c.b16 %v192, %v191
  %v217 = vpack.c.b16 %v194, %v193
  %v218 = vpack.c.b16 %v196, %v195
  %v219 = vpack.c.b16 %v198, %v197
  %v220 = vpack.c.b16 %v200, %v199
  %v221 = vpack.c.b16 %v202, %v201
  %v222 = vpack.c.b16 %v204, %v203
  %v223 = vpack.c.b16 %v206, %v205
  %v224 = vpack.c.b16 %v208, %v207
  %241 = vmatpush.bf16.msra.mxu0 %v216
  %242 = vmatpush.bf16.msra.mxu0 %v215
  %243 = vmatpush.bf16.msra.mxu0 %v214
  %244 = vmatpush.bf16.msra.mxu0 %v213
  %245 = vmatpush.bf16.msra.mxu0 %v212
  %246 = vmatpush.bf16.msra.mxu0 %v211
  %247 = vmatpush.bf16.msra.mxu0 %v210
  %248 = vmatpush.bf16.msra.mxu0 %v209
  %249 = vmatmul.bf16.gmra.mxu0 %v113
  %v250 = vpop.f32.mrf.mxu0
  %v251 = vadd.f32 0.0, %v250
  %v252 = vpop.f32.mrf.mxu0
  %v253 = vadd.f32 0.0, %v252
  %254 = vmatmul.bf16.gmra.mxu0 %v115
  %v255 = vpop.f32.mrf.mxu0
  %v256 = vadd.f32 0.0, %v255
  %v257 = vpop.f32.mrf.mxu0
  %v258 = vadd.f32 0.0, %v257
  %259 = vmatmul.bf16.gmra.mxu0 %v117
  %v260 = vpop.f32.mrf.mxu0
  %v261 = vadd.f32 0.0, %v260
  %v262 = vpop.f32.mrf.mxu0
  %v263 = vadd.f32 0.0, %v262
  %264 = vmatmul.bf16.gmra.mxu0 %v119
  %v265 = vpop.f32.mrf.mxu0
  %v266 = vadd.f32 0.0, %v265
  %v267 = vpop.f32.mrf.mxu0
  %v268 = vadd.f32 0.0, %v267
  %269 = vmatmul.bf16.gmra.mxu0 %v121
  %v270 = vpop.f32.mrf.mxu0
  %v271 = vadd.f32 0.0, %v270
  %v272 = vpop.f32.mrf.mxu0
  %v273 = vadd.f32 0.0, %v272
  %274 = vmatmul.bf16.gmra.mxu0 %v123
  %v275 = vpop.f32.mrf.mxu0
  %v276 = vadd.f32 0.0, %v275
  %v277 = vpop.f32.mrf.mxu0
  %v278 = vadd.f32 0.0, %v277
  %279 = vmatmul.bf16.gmra.mxu0 %v125
  %v280 = vpop.f32.mrf.mxu0
  %v281 = vadd.f32 0.0, %v280
  %v282 = vpop.f32.mrf.mxu0
  %v283 = vadd.f32 0.0, %v282
  %284 = vmatmul.bf16.gmra.mxu0 %v127
  %v285 = vpop.f32.mrf.mxu0
  %v286 = vadd.f32 0.0, %v285
  %v287 = vpop.f32.mrf.mxu0
  %v288 = vadd.f32 0.0, %v287
  %289 = vdwg.mxu0
  %290 = vmatpush.bf16.msra.mxu0 %v224
  %291 = vmatpush.bf16.msra.mxu0 %v223
  %292 = vmatpush.bf16.msra.mxu0 %v222
  %293 = vmatpush.bf16.msra.mxu0 %v221
  %294 = vmatpush.bf16.msra.mxu0 %v220
  %295 = vmatpush.bf16.msra.mxu0 %v219
  %296 = vmatpush.bf16.msra.mxu0 %v218
  %297 = vmatpush.bf16.msra.mxu0 %v217
  %298 = vmatmul.bf16.gmra.mxu0 %v114
  %v299 = vpop.f32.mrf.mxu0
  %v300 = vadd.f32 %v251, %v299
  %v301 = vpop.f32.mrf.mxu0
  %v302 = vadd.f32 %v253, %v301
  %303 = vmatmul.bf16.gmra.mxu0 %v116
  %v304 = vpop.f32.mrf.mxu0
  %v305 = vadd.f32 %v256, %v304
  %v306 = vpop.f32.mrf.mxu0
  %v307 = vadd.f32 %v258, %v306
  %308 = vmatmul.bf16.gmra.mxu0 %v118
  %v309 = vpop.f32.mrf.mxu0
  %v310 = vadd.f32 %v261, %v309
  %v311 = vpop.f32.mrf.mxu0
  %v312 = vadd.f32 %v263, %v311
  %313 = vmatmul.bf16.gmra.mxu0 %v120
  %v314 = vpop.f32.mrf.mxu0
  %v315 = vadd.f32 %v266, %v314
  %v316 = vpop.f32.mrf.mxu0
  %v317 = vadd.f32 %v268, %v316
  %318 = vmatmul.bf16.gmra.mxu0 %v122
  %v319 = vpop.f32.mrf.mxu0
  %v320 = vadd.f32 %v271, %v319
  %v321 = vpop.f32.mrf.mxu0
  %v322 = vadd.f32 %v273, %v321
  %323 = vmatmul.bf16.gmra.mxu0 %v124
  %v324 = vpop.f32.mrf.mxu0
  %v325 = vadd.f32 %v276, %v324
  %v326 = vpop.f32.mrf.mxu0
  %v327 = vadd.f32 %v278, %v326
  %328 = vmatmul.bf16.gmra.mxu0 %v126
  %v329 = vpop.f32.mrf.mxu0
  %v330 = vadd.f32 %v281, %v329
  %v331 = vpop.f32.mrf.mxu0
  %v332 = vadd.f32 %v283, %v331
  %333 = vmatmul.bf16.gmra.mxu0 %v128
  %v334 = vpop.f32.mrf.mxu0
  %v335 = vadd.f32 %v286, %v334
  %v336 = vpop.f32.mrf.mxu0
  %v337 = vadd.f32 %v288, %v336
  %338 = vdwg.mxu0
  %v339 = vadd.f32 %v300, %v302
  %v340 = vadd.f32 %v339, %v305
  %v341 = vadd.f32 %v340, %v307
  %v342 = vadd.f32 %v341, %v310
  %v343 = vadd.f32 %v342, %v312
  %v344 = vadd.f32 %v343, %v315
  %v345 = vadd.f32 %v344, %v317
  %v346 = vadd.f32 %v345, %v320
  %v347 = vadd.f32 %v346, %v322
  %v348 = vadd.f32 %v347, %v325
  %v349 = vadd.f32 %v348, %v327
  %v350 = vadd.f32 %v349, %v330
  %v351 = vadd.f32 %v350, %v332
  %v352 = vadd.f32 %v351, %v335
  %v353 = vadd.f32 %v352, %v337
  %v354 = vrot.slane %v353, 4
  %v355 = vadd.f32 %v353, %v354
  %v356 = vrot.slane %v355, 2
  %v357 = vadd.f32 %v355, %v356
  %v358 = vrot.slane %v357, 1
  %v359 = vadd.f32 %v357, %v358
  %v360 = vrcp.pop 128.0
  %v361 = vmul.f32 128.0, %v360
  %v362 = vsub.f32 1.0, %v361
  %v363 = vmul.f32 %v360, %v362
  %v364 = vadd.f32 %v360, %v363
  %vm365 = vweird.f32 %v360
  %v366 = vsel %vm365, %v360, %v364
  %v367 = vmul.f32 %v359, %v366
  %v368 = vmul.f32 %v300, %v300
  %v369 = vmul.f32 %v302, %v302
  %v370 = vmul.f32 %v305, %v305
  %v371 = vmul.f32 %v307, %v307
  %v372 = vmul.f32 %v310, %v310
  %v373 = vmul.f32 %v312, %v312
  %v374 = vmul.f32 %v315, %v315
  %v375 = vmul.f32 %v317, %v317
  %v376 = vmul.f32 %v320, %v320
  %v377 = vmul.f32 %v322, %v322
  %v378 = vmul.f32 %v325, %v325
  %v379 = vmul.f32 %v327, %v327
  %v380 = vmul.f32 %v330, %v330
  %v381 = vmul.f32 %v332, %v332
  %v382 = vmul.f32 %v335, %v335
  %v383 = vmul.f32 %v337, %v337
  %v384 = vadd.f32 %v368, %v369
  %v385 = vadd.f32 %v384, %v370
  %v386 = vadd.f32 %v385, %v371
  %v387 = vadd.f32 %v386, %v372
  %v388 = vadd.f32 %v387, %v373
  %v389 = vadd.f32 %v388, %v374
  %v390 = vadd.f32 %v389, %v375
  %v391 = vadd.f32 %v390, %v376
  %v392 = vadd.f32 %v391, %v377
  %v393 = vadd.f32 %v392, %v378
  %v394 = vadd.f32 %v393, %v379
  %v395 = vadd.f32 %v394, %v380
  %v396 = vadd.f32 %v395, %v381
  %v397 = vadd.f32 %v396, %v382
  %v398 = vadd.f32 %v397, %v383
  %v399 = vrot.slane %v398, 4
  %v400 = vadd.f32 %v398, %v399
  %v401 = vrot.slane %v400, 2
  %v402 = vadd.f32 %v400, %v401
  %v403 = vrot.slane %v402, 1
  %v404 = vadd.f32 %v402, %v403
  %v405 = vmul.f32 %v404, %v366
  %v406 = vmul.f32 %v367, %v367
  %v407 = vsub.f32 %v405, %v406
  %v408 = vmax.f32 %v407, 0.0
  %v409 = vld [vmem:[%s2] sm:$0x1]
  %v410 = vadd.f32 %v408, 1e-05
  %v411 = vrsqrt.pop %v410
  %v412 = vmul.f32 %v411, %v410
  %v413 = vmul.f32 %v412, %v411
  %v414 = vmul.f32 0.5, %v413
  %v415 = vsub.f32 1.5, %v414
  %v416 = vmul.f32 %v411, %v415
  %vm417 = vweird.f32 %v410
  %vm418 = vweird.f32 %v411
  %vm419 = vmor %vm417, %vm418
  %v420 = vsel %vm419, %v411, %v416
  %v421 = vmul.f32 %v409, %v420
  %v422 = vld [vmem:[%s3] sm:$0x1]
  %v423 = vmul.f32 %v367, %v421
  %v424 = vsub.f32 %v422, %v423
  %v426 = vperm.slane %v421, 0
  %v428 = vmul.f32 %v300, %v426
  %v429 = vmul.f32 %v302, %v426
  %v430 = vmul.f32 %v305, %v426
  %v431 = vmul.f32 %v307, %v426
  %v432 = vmul.f32 %v310, %v426
  %v433 = vmul.f32 %v312, %v426
  %v434 = vmul.f32 %v315, %v426
  %v435 = vmul.f32 %v317, %v426
  %v436 = vmul.f32 %v320, %v426
  %v437 = vmul.f32 %v322, %v426
  %v438 = vmul.f32 %v325, %v426
  %v439 = vmul.f32 %v327, %v426
  %v440 = vmul.f32 %v330, %v426
  %v441 = vmul.f32 %v332, %v426
  %v442 = vmul.f32 %v335, %v426
  %v443 = vmul.f32 %v337, %v426
  %v445 = vperm.slane %v424, 0
  %v447 = vadd.f32 %v428, %v445
  %v448 = vadd.f32 %v429, %v445
  %v449 = vadd.f32 %v430, %v445
  %v450 = vadd.f32 %v431, %v445
  %v451 = vadd.f32 %v432, %v445
  %v452 = vadd.f32 %v433, %v445
  %v453 = vadd.f32 %v434, %v445
  %v454 = vadd.f32 %v435, %v445
  %v455 = vadd.f32 %v436, %v445
  %v456 = vadd.f32 %v437, %v445
  %v457 = vadd.f32 %v438, %v445
  %v458 = vadd.f32 %v439, %v445
  %v459 = vadd.f32 %v440, %v445
  %v460 = vadd.f32 %v441, %v445
  %v461 = vadd.f32 %v442, %v445
  %v462 = vadd.f32 %v443, %v445
  %v463 = vmax.f32 %v447, 0.0
  %v464 = vmax.f32 %v448, 0.0
  %v465 = vmax.f32 %v449, 0.0
  %v466 = vmax.f32 %v450, 0.0
  %v467 = vmax.f32 %v451, 0.0
  %v468 = vmax.f32 %v452, 0.0
  %v469 = vmax.f32 %v453, 0.0
  %v470 = vmax.f32 %v454, 0.0
  %v471 = vmax.f32 %v455, 0.0
  %v472 = vmax.f32 %v456, 0.0
  %v473 = vmax.f32 %v457, 0.0
  %v474 = vmax.f32 %v458, 0.0
  %v475 = vmax.f32 %v459, 0.0
  %v476 = vmax.f32 %v460, 0.0
  %v477 = vmax.f32 %v461, 0.0
  %v478 = vmax.f32 %v462, 0.0
  %v479 = vpack.c.bf16 %v463, %v463
  %v480 = vpack.c.bf16 %v464, %v464
  %v481 = vpack.c.bf16 %v465, %v465
  %v482 = vpack.c.bf16 %v466, %v466
  %v483 = vpack.c.bf16 %v467, %v467
  %v484 = vpack.c.bf16 %v468, %v468
  %v485 = vpack.c.bf16 %v469, %v469
  %v486 = vpack.c.bf16 %v470, %v470
  %v487 = vpack.c.bf16 %v471, %v471
  %v488 = vpack.c.bf16 %v472, %v472
  %v489 = vpack.c.bf16 %v473, %v473
  %v490 = vpack.c.bf16 %v474, %v474
  %v491 = vpack.c.bf16 %v475, %v475
  %v492 = vpack.c.bf16 %v476, %v476
  %v493 = vpack.c.bf16 %v477, %v477
  %v494 = vpack.c.bf16 %v478, %v478
  %495 = vst [vmem:[%s4] sm:$0xf] %v479
  %496 = vst [vmem:[%s4 + $0x4] sm:$0xf] %v480
  %497 = vst [vmem:[%s4 + $0x8] sm:$0xf] %v481
  %498 = vst [vmem:[%s4 + $0xc] sm:$0xf] %v482
  %499 = vst [vmem:[%s4 + $0x10] sm:$0xf] %v483
  %500 = vst [vmem:[%s4 + $0x14] sm:$0xf] %v484
  %501 = vst [vmem:[%s4 + $0x18] sm:$0xf] %v485
  %502 = vst [vmem:[%s4 + $0x1c] sm:$0xf] %v486
  %503 = vst [vmem:[%s4 + $0x20] sm:$0xf] %v487
  %504 = vst [vmem:[%s4 + $0x24] sm:$0xf] %v488
  %505 = vst [vmem:[%s4 + $0x28] sm:$0xf] %v489
  %506 = vst [vmem:[%s4 + $0x2c] sm:$0xf] %v490
  %507 = vst [vmem:[%s4 + $0x30] sm:$0xf] %v491
  %508 = vst [vmem:[%s4 + $0x34] sm:$0xf] %v492
  %509 = vst [vmem:[%s4 + $0x38] sm:$0xf] %v493
  %510 = vst [vmem:[%s4 + $0x3c] sm:$0xf] %v494
  // Predicated region
  $region18: #{wae_forward.9} parent=0 // pred_check
    _
  $region19: #{wae_forward.9} parent=0 // pred_check_branch
    %512 = sbr.rel (0) target = $region21
  $region20: #{wae_forward.9} parent=0 // pred_region
    _
  $region21: #{wae_forward.9} parent=0 // pred_fallthru
    _
  // Predicated region
  $region22: #{wae_forward.9} parent=0 // pred_check
    _
  $region23: #{wae_forward.9} parent=0 // pred_check_branch
    %514 = sbr.rel (0) target = $region25
  $region24: #{wae_forward.9} parent=0 // pred_region
    _
  $region25: #{wae_forward.9} parent=0 // pred_fallthru
    _

// kernel: wae_forward.10
$region0: #{wae_forward.10}
  #allocation0 [shape = 'u32[]', space=smem, size = 0x4, offset = 0x4, fixed_abs, tag = 'smem constant byte address 0x4 - core index']
  #allocation1 [shape = 'u32[72,128]{1,0:T(1,128)}', space=vmem, size = 0x9000, scoped, tag = 'internal scratch']
  %s0 = inlined_call_operand.vmem [shape: bf16[32,512], index: 0, kind: input, shape index: {}]
  %s1 = inlined_call_operand.vmem [shape: bf16[512,128], index: 1, kind: input, shape index: {}]
  %s2 = inlined_call_operand.vmem [shape: f32[1,128], index: 2, kind: input, shape index: {}]
  %s3 = inlined_call_operand.vmem [shape: f32[1,128], index: 3, kind: input, shape index: {}]
  %s4 = inlined_call_operand.vmem [shape: bf16[32,128], index: 4, kind: output, shape index: {}]
  %s5 = sld [smem:[#allocation0]]
  $region26: #{wae_forward.10} parent=0
    _
  %s7 = ssub.s32 1, %s5
  %s8 = scalar_select 0, %s7, %s5
  // Predicated region
  $region2: #{wae_forward.10} parent=0 // pred_check
    _
  $region3: #{wae_forward.10} parent=0 // pred_check_branch
    %10 = sbr.rel (0) target = $region5
  $region4: #{wae_forward.10} parent=0 // pred_region
    _
  $region5: #{wae_forward.10} parent=0 // pred_fallthru
    _
  // Predicated region
  $region6: #{wae_forward.10} parent=0 // pred_check
    _
  $region7: #{wae_forward.10} parent=0 // pred_check_branch
    %12 = sbr.rel (0) target = $region9
  $region8: #{wae_forward.10} parent=0 // pred_region
    _
  $region9: #{wae_forward.10} parent=0 // pred_fallthru
    _
  // Predicated region
  $region10: #{wae_forward.10} parent=0 // pred_check
    _
  $region11: #{wae_forward.10} parent=0 // pred_check_branch
    %14 = sbr.rel (0) target = $region13
  $region12: #{wae_forward.10} parent=0 // pred_region
    _
  $region13: #{wae_forward.10} parent=0 // pred_fallthru
    _
  // Predicated region
  $region14: #{wae_forward.10} parent=0 // pred_check
    _
  $region15: #{wae_forward.10} parent=0 // pred_check_branch
    %16 = sbr.rel (0) target = $region17
  $region16: #{wae_forward.10} parent=0 // pred_region
    _
  $region17: #{wae_forward.10} parent=0 // pred_fallthru
    _
  %v17 = vld [vmem:[%s0] sm:$0xff]
  %v18 = vld [vmem:[%s0 + $0x8] sm:$0xff]
  %v19 = vld [vmem:[%s0 + $0x10] sm:$0xff]
  %v20 = vld [vmem:[%s0 + $0x18] sm:$0xff]
  %v21 = vld [vmem:[%s0 + $0x20] sm:$0xff]
  %v22 = vld [vmem:[%s0 + $0x28] sm:$0xff]
  %v23 = vld [vmem:[%s0 + $0x30] sm:$0xff]
  %v24 = vld [vmem:[%s0 + $0x38] sm:$0xff]
  %v25 = vld [vmem:[%s1] sm:$0xf]
  %v26 = vld [vmem:[%s1 + $0x4] sm:$0xf]
  %v27 = vld [vmem:[%s1 + $0x8] sm:$0xf]
  %v28 = vld [vmem:[%s1 + $0xc] sm:$0xf]
  %v29 = vld [vmem:[%s1 + $0x10] sm:$0xf]
  %v30 = vld [vmem:[%s1 + $0x14] sm:$0xf]
  %v31 = vld [vmem:[%s1 + $0x18] sm:$0xf]
  %v32 = vld [vmem:[%s1 + $0x1c] sm:$0xf]
  %v33 = vld [vmem:[%s1 + $0x20] sm:$0xf]
  %v34 = vld [vmem:[%s1 + $0x24] sm:$0xf]
  %v35 = vld [vmem:[%s1 + $0x28] sm:$0xf]
  %v36 = vld [vmem:[%s1 + $0x2c] sm:$0xf]
  %v37 = vld [vmem:[%s1 + $0x30] sm:$0xf]
  %v38 = vld [vmem:[%s1 + $0x34] sm:$0xf]
  %v39 = vld [vmem:[%s1 + $0x38] sm:$0xf]
  %v40 = vld [vmem:[%s1 + $0x3c] sm:$0xf]
  %v41 = vld [vmem:[%s1 + $0x40] sm:$0xf]
  %v42 = vld [vmem:[%s1 + $0x44] sm:$0xf]
  %v43 = vld [vmem:[%s1 + $0x48] sm:$0xf]
  %v44 = vld [vmem:[%s1 + $0x4c] sm:$0xf]
  %v45 = vld [vmem:[%s1 + $0x50] sm:$0xf]
  %v46 = vld [vmem:[%s1 + $0x54] sm:$0xf]
  %v47 = vld [vmem:[%s1 + $0x58] sm:$0xf]
  %v48 = vld [vmem:[%s1 + $0x5c] sm:$0xf]
  %v49 = vld [vmem:[%s1 + $0x60] sm:$0xf]
  %v50 = vld [vmem:[%s1 + $0x64] sm:$0xf]
  %v51 = vld [vmem:[%s1 + $0x68] sm:$0xf]
  %v52 = vld [vmem:[%s1 + $0x6c] sm:$0xf]
  %v53 = vld [vmem:[%s1 + $0x70] sm:$0xf]
  %v54 = vld [vmem:[%s1 + $0x74] sm:$0xf]
  %v55 = vld [vmem:[%s1 + $0x78] sm:$0xf]
  %v56 = vld [vmem:[%s1 + $0x7c] sm:$0xf]
  %v57 = vld [vmem:[%s1 + $0x80] sm:$0xf]
  %v58 = vld [vmem:[%s1 + $0x84] sm:$0xf]
  %v59 = vld [vmem:[%s1 + $0x88] sm:$0xf]
  %v60 = vld [vmem:[%s1 + $0x8c] sm:$0xf]
  %v61 = vld [vmem:[%s1 + $0x90] sm:$0xf]
  %v62 = vld [vmem:[%s1 + $0x94] sm:$0xf]
  %v63 = vld [vmem:[%s1 + $0x98] sm:$0xf]
  %v64 = vld [vmem:[%s1 + $0x9c] sm:$0xf]
  %v65 = vld [vmem:[%s1 + $0xa0] sm:$0xf]
  %v66 = vld [vmem:[%s1 + $0xa4] sm:$0xf]
  %v67 = vld [vmem:[%s1 + $0xa8] sm:$0xf]
  %v68 = vld [vmem:[%s1 + $0xac] sm:$0xf]
  %v69 = vld [vmem:[%s1 + $0xb0] sm:$0xf]
  %v70 = vld [vmem:[%s1 + $0xb4] sm:$0xf]
  %v71 = vld [vmem:[%s1 + $0xb8] sm:$0xf]
  %v72 = vld [vmem:[%s1 + $0xbc] sm:$0xf]
  %v73 = vld [vmem:[%s1 + $0xc0] sm:$0xf]
  %v74 = vld [vmem:[%s1 + $0xc4] sm:$0xf]
  %v75 = vld [vmem:[%s1 + $0xc8] sm:$0xf]
  %v76 = vld [vmem:[%s1 + $0xcc] sm:$0xf]
  %v77 = vld [vmem:[%s1 + $0xd0] sm:$0xf]
  %v78 = vld [vmem:[%s1 + $0xd4] sm:$0xf]
  %v79 = vld [vmem:[%s1 + $0xd8] sm:$0xf]
  %v80 = vld [vmem:[%s1 + $0xdc] sm:$0xf]
  %v81 = vld [vmem:[%s1 + $0xe0] sm:$0xf]
  %v82 = vld [vmem:[%s1 + $0xe4] sm:$0xf]
  %v83 = vld [vmem:[%s1 + $0xe8] sm:$0xf]
  %v84 = vld [vmem:[%s1 + $0xec] sm:$0xf]
  %v85 = vld [vmem:[%s1 + $0xf0] sm:$0xf]
  %v86 = vld [vmem:[%s1 + $0xf4] sm:$0xf]
  %v87 = vld [vmem:[%s1 + $0xf8] sm:$0xf]
  %v88 = vld [vmem:[%s1 + $0xfc] sm:$0xf]
  %v97 = vunpack.c.l.b16 %v17
  %v98 = vunpack.c.h.b16 %v17
  %v99 = vunpack.c.l.b16 %v18
  %v100 = vunpack.c.h.b16 %v18
  %v101 = vunpack.c.l.b16 %v19
  %v102 = vunpack.c.h.b16 %v19
  %v103 = vunpack.c.l.b16 %v20
  %v104 = vunpack.c.h.b16 %v20
  %v105 = vunpack.c.l.b16 %v21
  %v106 = vunpack.c.h.b16 %v21
  %v107 = vunpack.c.l.b16 %v22
  %v108 = vunpack.c.h.b16 %v22
  %v109 = vunpack.c.l.b16 %v23
  %v110 = vunpack.c.h.b16 %v23
  %v111 = vunpack.c.l.b16 %v24
  %v112 = vunpack.c.h.b16 %v24
  %v113 = vpack.c.b16 %v101, %v97
  %v114 = vpack.c.b16 %v102, %v98
  %v115 = vpack.c.b16 %v103, %v99
  %v116 = vpack.c.b16 %v104, %v100
  %v117 = vpack.c.b16 %v109, %v105
  %v118 = vpack.c.b16 %v110, %v106
  %v119 = vpack.c.b16 %v111, %v107
  %v120 = vpack.c.b16 %v112, %v108
  %v193 = vunpack.c.l.b16 %v25
  %v194 = vunpack.c.l.b16 %v26
  %v195 = vunpack.c.l.b16 %v27
  %v196 = vunpack.c.l.b16 %v28
  %v197 = vunpack.c.l.b16 %v29
  %v198 = vunpack.c.l.b16 %v30
  %v199 = vunpack.c.l.b16 %v31
  %v200 = vunpack.c.l.b16 %v32
  %v201 = vunpack.c.l.b16 %v33
  %v202 = vunpack.c.l.b16 %v34
  %v203 = vunpack.c.l.b16 %v35
  %v204 = vunpack.c.l.b16 %v36
  %v205 = vunpack.c.l.b16 %v37
  %v206 = vunpack.c.l.b16 %v38
  %v207 = vunpack.c.l.b16 %v39
  %v208 = vunpack.c.l.b16 %v40
  %v209 = vunpack.c.l.b16 %v41
  %v210 = vunpack.c.l.b16 %v42
  %v211 = vunpack.c.l.b16 %v43
  %v212 = vunpack.c.l.b16 %v44
  %v213 = vunpack.c.l.b16 %v45
  %v214 = vunpack.c.l.b16 %v46
  %v215 = vunpack.c.l.b16 %v47
  %v216 = vunpack.c.l.b16 %v48
  %v217 = vunpack.c.l.b16 %v49
  %v218 = vunpack.c.l.b16 %v50
  %v219 = vunpack.c.l.b16 %v51
  %v220 = vunpack.c.l.b16 %v52
  %v221 = vunpack.c.l.b16 %v53
  %v222 = vunpack.c.l.b16 %v54
  %v223 = vunpack.c.l.b16 %v55
  %v224 = vunpack.c.l.b16 %v56
  %v225 = vunpack.c.l.b16 %v57
  %v226 = vunpack.c.l.b16 %v58
  %v227 = vunpack.c.l.b16 %v59
  %v228 = vunpack.c.l.b16 %v60
  %v229 = vunpack.c.l.b16 %v61
  %v230 = vunpack.c.l.b16 %v62
  %v231 = vunpack.c.l.b16 %v63
  %v232 = vunpack.c.l.b16 %v64
  %v233 = vunpack.c.l.b16 %v65
  %v234 = vunpack.c.l.b16 %v66
  %v235 = vunpack.c.l.b16 %v67
  %v236 = vunpack.c.l.b16 %v68
  %v237 = vunpack.c.l.b16 %v69
  %v238 = vunpack.c.l.b16 %v70
  %v239 = vunpack.c.l.b16 %v71
  %v240 = vunpack.c.l.b16 %v72
  %v241 = vunpack.c.l.b16 %v73
  %v242 = vunpack.c.l.b16 %v74
  %v243 = vunpack.c.l.b16 %v75
  %v244 = vunpack.c.l.b16 %v76
  %v245 = vunpack.c.l.b16 %v77
  %v246 = vunpack.c.l.b16 %v78
  %v247 = vunpack.c.l.b16 %v79
  %v248 = vunpack.c.l.b16 %v80
  %v249 = vunpack.c.l.b16 %v81
  %v250 = vunpack.c.l.b16 %v82
  %v251 = vunpack.c.l.b16 %v83
  %v252 = vunpack.c.l.b16 %v84
  %v253 = vunpack.c.l.b16 %v85
  %v254 = vunpack.c.l.b16 %v86
  %v255 = vunpack.c.l.b16 %v87
  %v256 = vunpack.c.l.b16 %v88
  %v257 = vpack.c.b16 %v194, %v193
  %v258 = vpack.c.b16 %v196, %v195
  %v259 = vpack.c.b16 %v198, %v197
  %v260 = vpack.c.b16 %v200, %v199
  %v261 = vpack.c.b16 %v202, %v201
  %v262 = vpack.c.b16 %v204, %v203
  %v263 = vpack.c.b16 %v206, %v205
  %v264 = vpack.c.b16 %v208, %v207
  %v265 = vpack.c.b16 %v210, %v209
  %v266 = vpack.c.b16 %v212, %v211
  %v267 = vpack.c.b16 %v214, %v213
  %v268 = vpack.c.b16 %v216, %v215
  %v269 = vpack.c.b16 %v218, %v217
  %v270 = vpack.c.b16 %v220, %v219
  %v271 = vpack.c.b16 %v222, %v221
  %v272 = vpack.c.b16 %v224, %v223
  %v273 = vpack.c.b16 %v226, %v225
  %v274 = vpack.c.b16 %v228, %v227
  %v275 = vpack.c.b16 %v230, %v229
  %v276 = vpack.c.b16 %v232, %v231
  %v277 = vpack.c.b16 %v234, %v233
  %v278 = vpack.c.b16 %v236, %v235
  %v279 = vpack.c.b16 %v238, %v237
  %v280 = vpack.c.b16 %v240, %v239
  %v281 = vpack.c.b16 %v242, %v241
  %v282 = vpack.c.b16 %v244, %v243
  %v283 = vpack.c.b16 %v246, %v245
  %v284 = vpack.c.b16 %v248, %v247
  %v285 = vpack.c.b16 %v250, %v249
  %v286 = vpack.c.b16 %v252, %v251
  %v287 = vpack.c.b16 %v254, %v253
  %v288 = vpack.c.b16 %v256, %v255
  %321 = vmatpush.bf16.msra.mxu0 %v264
  %322 = vmatpush.bf16.msra.mxu0 %v263
  %323 = vmatpush.bf16.msra.mxu0 %v262
  %324 = vmatpush.bf16.msra.mxu0 %v261
  %325 = vmatpush.bf16.msra.mxu0 %v260
  %326 = vmatpush.bf16.msra.mxu0 %v259
  %327 = vmatpush.bf16.msra.mxu0 %v258
  %328 = vmatpush.bf16.msra.mxu0 %v257
  %329 = vmatmul.bf16.gmra.mxu0 %v113
  %v330 = vpop.f32.mrf.mxu0
  %v331 = vadd.f32 0.0, %v330
  %v332 = vpop.f32.mrf.mxu0
  %v333 = vadd.f32 0.0, %v332
  %334 = vmatmul.bf16.gmra.mxu0 %v117
  %v335 = vpop.f32.mrf.mxu0
  %v336 = vadd.f32 0.0, %v335
  %v337 = vpop.f32.mrf.mxu0
  %v338 = vadd.f32 0.0, %v337
  %339 = vdwg.mxu0
  %340 = vmatpush.bf16.msra.mxu0 %v272
  %341 = vmatpush.bf16.msra.mxu0 %v271
  %342 = vmatpush.bf16.msra.mxu0 %v270
  %343 = vmatpush.bf16.msra.mxu0 %v269
  %344 = vmatpush.bf16.msra.mxu0 %v268
  %345 = vmatpush.bf16.msra.mxu0 %v267
  %346 = vmatpush.bf16.msra.mxu0 %v266
  %347 = vmatpush.bf16.msra.mxu0 %v265
  %348 = vmatmul.bf16.gmra.mxu0 %v114
  %v349 = vpop.f32.mrf.mxu0
  %v350 = vadd.f32 %v331, %v349
  %v351 = vpop.f32.mrf.mxu0
  %v352 = vadd.f32 %v333, %v351
  %353 = vmatmul.bf16.gmra.mxu0 %v118
  %v354 = vpop.f32.mrf.mxu0
  %v355 = vadd.f32 %v336, %v354
  %v356 = vpop.f32.mrf.mxu0
  %v357 = vadd.f32 %v338, %v356
  %358 = vdwg.mxu0
  %359 = vmatpush.bf16.msra.mxu0 %v280
  %360 = vmatpush.bf16.msra.mxu0 %v279
  %361 = vmatpush.bf16.msra.mxu0 %v278
  %362 = vmatpush.bf16.msra.mxu0 %v277
  %363 = vmatpush.bf16.msra.mxu0 %v276
  %364 = vmatpush.bf16.msra.mxu0 %v275
  %365 = vmatpush.bf16.msra.mxu0 %v274
  %366 = vmatpush.bf16.msra.mxu0 %v273
  %367 = vmatmul.bf16.gmra.mxu0 %v115
  %v368 = vpop.f32.mrf.mxu0
  %v369 = vadd.f32 %v350, %v368
  %v370 = vpop.f32.mrf.mxu0
  %v371 = vadd.f32 %v352, %v370
  %372 = vmatmul.bf16.gmra.mxu0 %v119
  %v373 = vpop.f32.mrf.mxu0
  %v374 = vadd.f32 %v355, %v373
  %v375 = vpop.f32.mrf.mxu0
  %v376 = vadd.f32 %v357, %v375
  %377 = vdwg.mxu0
  %378 = vmatpush.bf16.msra.mxu0 %v288
  %379 = vmatpush.bf16.msra.mxu0 %v287
  %380 = vmatpush.bf16.msra.mxu0 %v286
  %381 = vmatpush.bf16.msra.mxu0 %v285
  %382 = vmatpush.bf16.msra.mxu0 %v284
  %383 = vmatpush.bf16.msra.mxu0 %v283
  %384 = vmatpush.bf16.msra.mxu0 %v282
  %385 = vmatpush.bf16.msra.mxu0 %v281
  %386 = vmatmul.bf16.gmra.mxu0 %v116
  %v387 = vpop.f32.mrf.mxu0
  %v388 = vadd.f32 %v369, %v387
  %v389 = vpop.f32.mrf.mxu0
  %v390 = vadd.f32 %v371, %v389
  %391 = vmatmul.bf16.gmra.mxu0 %v120
  %v392 = vpop.f32.mrf.mxu0
  %v393 = vadd.f32 %v374, %v392
  %v394 = vpop.f32.mrf.mxu0
  %v395 = vadd.f32 %v376, %v394
  %396 = vdwg.mxu0
  %v397 = vadd.f32 %v388, %v390
  %v398 = vadd.f32 %v397, %v393
  %v399 = vadd.f32 %v398, %v395
  %v400 = vrot.slane %v399, 4
  %v401 = vadd.f32 %v399, %v400
  %v402 = vrot.slane %v401, 2
  %v403 = vadd.f32 %v401, %v402
  %v404 = vrot.slane %v403, 1
  %v405 = vadd.f32 %v403, %v404
  %v406 = vrcp.pop 32.0
  %v407 = vmul.f32 32.0, %v406
  %v408 = vsub.f32 1.0, %v407
  %v409 = vmul.f32 %v406, %v408
  %v410 = vadd.f32 %v406, %v409
  %vm411 = vweird.f32 %v406
  %v412 = vsel %vm411, %v406, %v410
  %v413 = vmul.f32 %v405, %v412
  %v414 = vmul.f32 %v388, %v388
  %v415 = vmul.f32 %v390, %v390
  %v416 = vmul.f32 %v393, %v393
  %v417 = vmul.f32 %v395, %v395
  %v418 = vadd.f32 %v414, %v415
  %v419 = vadd.f32 %v418, %v416
  %v420 = vadd.f32 %v419, %v417
  %v421 = vrot.slane %v420, 4
  %v422 = vadd.f32 %v420, %v421
  %v423 = vrot.slane %v422, 2
  %v424 = vadd.f32 %v422, %v423
  %v425 = vrot.slane %v424, 1
  %v426 = vadd.f32 %v424, %v425
  %v427 = vmul.f32 %v426, %v412
  %v428 = vmul.f32 %v413, %v413
  %v429 = vsub.f32 %v427, %v428
  %v430 = vmax.f32 %v429, 0.0
  %v431 = vld [vmem:[%s2] sm:$0x1]
  %v432 = vadd.f32 %v430, 1e-05
  %v433 = vrsqrt.pop %v432
  %v434 = vmul.f32 %v433, %v432
  %v435 = vmul.f32 %v434, %v433
  %v436 = vmul.f32 0.5, %v435
  %v437 = vsub.f32 1.5, %v436
  %v438 = vmul.f32 %v433, %v437
  %vm439 = vweird.f32 %v432
  %vm440 = vweird.f32 %v433
  %vm441 = vmor %vm439, %vm440
  %v442 = vsel %vm441, %v433, %v438
  %v443 = vmul.f32 %v431, %v442
  %v444 = vld [vmem:[%s3] sm:$0x1]
  %v445 = vmul.f32 %v413, %v443
  %v446 = vsub.f32 %v444, %v445
  %v448 = vperm.slane %v443, 0
  %v450 = vmul.f32 %v388, %v448
  %v451 = vmul.f32 %v390, %v448
  %v452 = vmul.f32 %v393, %v448
  %v453 = vmul.f32 %v395, %v448
  %v455 = vperm.slane %v446, 0
  %v457 = vadd.f32 %v450, %v455
  %v458 = vadd.f32 %v451, %v455
  %v459 = vadd.f32 %v452, %v455
  %v460 = vadd.f32 %v453, %v455
  %v461 = vmax.f32 %v457, 0.0
  %v462 = vmax.f32 %v458, 0.0
  %v463 = vmax.f32 %v459, 0.0
  %v464 = vmax.f32 %v460, 0.0
  %v465 = vpack.c.bf16 %v461, %v461
  %v466 = vpack.c.bf16 %v462, %v462
  %v467 = vpack.c.bf16 %v463, %v463
  %v468 = vpack.c.bf16 %v464, %v464
  %469 = vst [vmem:[%s4] sm:$0xf] %v465
  %470 = vst [vmem:[%s4 + $0x4] sm:$0xf] %v466
  %471 = vst [vmem:[%s4 + $0x8] sm:$0xf] %v467
  %472 = vst [vmem:[%s4 + $0xc] sm:$0xf] %v468
  // Predicated region
  $region18: #{wae_forward.10} parent=0 // pred_check
    _
  $region19: #{wae_forward.10} parent=0 // pred_check_branch
    %474 = sbr.rel (0) target = $region21
  $region20: #{wae_forward.10} parent=0 // pred_region
    _
  $region21: #{wae_forward.10} parent=0 // pred_fallthru
    _
  // Predicated region
  $region22: #{wae_forward.10} parent=0 // pred_check
    _
  $region23: #{wae_forward.10} parent=0 // pred_check_branch
    %476 = sbr.rel (0) target = $region25
  $region24: #{wae_forward.10} parent=0 // pred_region
    _
  $region25: #{wae_forward.10} parent=0 // pred_fallthru
    _

// kernel: wae_forward.11
$region0: #{wae_forward.11}
  #allocation0 [shape = 'u32[]', space=smem, size = 0x4, offset = 0x4, fixed_abs, tag = 'smem constant byte address 0x4 - core index']
  #allocation1 [shape = 'u32[72,128]{1,0:T(1,128)}', space=vmem, size = 0x9000, scoped, tag = 'internal scratch']
  %s0 = inlined_call_operand.vmem [shape: bf16[8,1024], index: 0, kind: input, shape index: {}]
  %s1 = inlined_call_operand.vmem [shape: bf16[1024,128], index: 1, kind: input, shape index: {}]
  %s2 = inlined_call_operand.vmem [shape: f32[1,128], index: 2, kind: input, shape index: {}]
  %s3 = inlined_call_operand.vmem [shape: f32[1,128], index: 3, kind: input, shape index: {}]
  %s4 = inlined_call_operand.vmem [shape: bf16[8,128], index: 4, kind: output, shape index: {}]
  %s5 = sld [smem:[#allocation0]]
  $region26: #{wae_forward.11} parent=0
    _
  %s7 = ssub.s32 1, %s5
  %s8 = scalar_select 0, %s7, %s5
  // Predicated region
  $region2: #{wae_forward.11} parent=0 // pred_check
    _
  $region3: #{wae_forward.11} parent=0 // pred_check_branch
    %10 = sbr.rel (0) target = $region5
  $region4: #{wae_forward.11} parent=0 // pred_region
    _
  $region5: #{wae_forward.11} parent=0 // pred_fallthru
    _
  // Predicated region
  $region6: #{wae_forward.11} parent=0 // pred_check
    _
  $region7: #{wae_forward.11} parent=0 // pred_check_branch
    %12 = sbr.rel (0) target = $region9
  $region8: #{wae_forward.11} parent=0 // pred_region
    _
  $region9: #{wae_forward.11} parent=0 // pred_fallthru
    _
  // Predicated region
  $region10: #{wae_forward.11} parent=0 // pred_check
    _
  $region11: #{wae_forward.11} parent=0 // pred_check_branch
    %14 = sbr.rel (0) target = $region13
  $region12: #{wae_forward.11} parent=0 // pred_region
    _
  $region13: #{wae_forward.11} parent=0 // pred_fallthru
    _
  // Predicated region
  $region14: #{wae_forward.11} parent=0 // pred_check
    _
  $region15: #{wae_forward.11} parent=0 // pred_check_branch
    %16 = sbr.rel (0) target = $region17
  $region16: #{wae_forward.11} parent=0 // pred_region
    _
  $region17: #{wae_forward.11} parent=0 // pred_fallthru
    _
  %v17 = vld [vmem:[%s0] sm:$0xff]
  %v18 = vld [vmem:[%s0 + $0x8] sm:$0xff]
  %v19 = vld [vmem:[%s0 + $0x10] sm:$0xff]
  %v20 = vld [vmem:[%s0 + $0x18] sm:$0xff]
  %v21 = vld [vmem:[%s1] sm:$0xf]
  %v22 = vld [vmem:[%s1 + $0x4] sm:$0xf]
  %v23 = vld [vmem:[%s1 + $0x8] sm:$0xf]
  %v24 = vld [vmem:[%s1 + $0xc] sm:$0xf]
  %v25 = vld [vmem:[%s1 + $0x10] sm:$0xf]
  %v26 = vld [vmem:[%s1 + $0x14] sm:$0xf]
  %v27 = vld [vmem:[%s1 + $0x18] sm:$0xf]
  %v28 = vld [vmem:[%s1 + $0x1c] sm:$0xf]
  %v29 = vld [vmem:[%s1 + $0x20] sm:$0xf]
  %v30 = vld [vmem:[%s1 + $0x24] sm:$0xf]
  %v31 = vld [vmem:[%s1 + $0x28] sm:$0xf]
  %v32 = vld [vmem:[%s1 + $0x2c] sm:$0xf]
  %v33 = vld [vmem:[%s1 + $0x30] sm:$0xf]
  %v34 = vld [vmem:[%s1 + $0x34] sm:$0xf]
  %v35 = vld [vmem:[%s1 + $0x38] sm:$0xf]
  %v36 = vld [vmem:[%s1 + $0x3c] sm:$0xf]
  %v37 = vld [vmem:[%s1 + $0x40] sm:$0xf]
  %v38 = vld [vmem:[%s1 + $0x44] sm:$0xf]
  %v39 = vld [vmem:[%s1 + $0x48] sm:$0xf]
  %v40 = vld [vmem:[%s1 + $0x4c] sm:$0xf]
  %v41 = vld [vmem:[%s1 + $0x50] sm:$0xf]
  %v42 = vld [vmem:[%s1 + $0x54] sm:$0xf]
  %v43 = vld [vmem:[%s1 + $0x58] sm:$0xf]
  %v44 = vld [vmem:[%s1 + $0x5c] sm:$0xf]
  %v45 = vld [vmem:[%s1 + $0x60] sm:$0xf]
  %v46 = vld [vmem:[%s1 + $0x64] sm:$0xf]
  %v47 = vld [vmem:[%s1 + $0x68] sm:$0xf]
  %v48 = vld [vmem:[%s1 + $0x6c] sm:$0xf]
  %v49 = vld [vmem:[%s1 + $0x70] sm:$0xf]
  %v50 = vld [vmem:[%s1 + $0x74] sm:$0xf]
  %v51 = vld [vmem:[%s1 + $0x78] sm:$0xf]
  %v52 = vld [vmem:[%s1 + $0x7c] sm:$0xf]
  %v53 = vld [vmem:[%s1 + $0x80] sm:$0xf]
  %v54 = vld [vmem:[%s1 + $0x84] sm:$0xf]
  %v55 = vld [vmem:[%s1 + $0x88] sm:$0xf]
  %v56 = vld [vmem:[%s1 + $0x8c] sm:$0xf]
  %v57 = vld [vmem:[%s1 + $0x90] sm:$0xf]
  %v58 = vld [vmem:[%s1 + $0x94] sm:$0xf]
  %v59 = vld [vmem:[%s1 + $0x98] sm:$0xf]
  %v60 = vld [vmem:[%s1 + $0x9c] sm:$0xf]
  %v61 = vld [vmem:[%s1 + $0xa0] sm:$0xf]
  %v62 = vld [vmem:[%s1 + $0xa4] sm:$0xf]
  %v63 = vld [vmem:[%s1 + $0xa8] sm:$0xf]
  %v64 = vld [vmem:[%s1 + $0xac] sm:$0xf]
  %v65 = vld [vmem:[%s1 + $0xb0] sm:$0xf]
  %v66 = vld [vmem:[%s1 + $0xb4] sm:$0xf]
  %v67 = vld [vmem:[%s1 + $0xb8] sm:$0xf]
  %v68 = vld [vmem:[%s1 + $0xbc] sm:$0xf]
  %v69 = vld [vmem:[%s1 + $0xc0] sm:$0xf]
  %v70 = vld [vmem:[%s1 + $0xc4] sm:$0xf]
  %v71 = vld [vmem:[%s1 + $0xc8] sm:$0xf]
  %v72 = vld [vmem:[%s1 + $0xcc] sm:$0xf]
  %v73 = vld [vmem:[%s1 + $0xd0] sm:$0xf]
  %v74 = vld [vmem:[%s1 + $0xd4] sm:$0xf]
  %v75 = vld [vmem:[%s1 + $0xd8] sm:$0xf]
  %v76 = vld [vmem:[%s1 + $0xdc] sm:$0xf]
  %v77 = vld [vmem:[%s1 + $0xe0] sm:$0xf]
  %v78 = vld [vmem:[%s1 + $0xe4] sm:$0xf]
  %v79 = vld [vmem:[%s1 + $0xe8] sm:$0xf]
  %v80 = vld [vmem:[%s1 + $0xec] sm:$0xf]
  %v81 = vld [vmem:[%s1 + $0xf0] sm:$0xf]
  %v82 = vld [vmem:[%s1 + $0xf4] sm:$0xf]
  %v83 = vld [vmem:[%s1 + $0xf8] sm:$0xf]
  %v84 = vld [vmem:[%s1 + $0xfc] sm:$0xf]
  %v85 = vld [vmem:[%s1 + $0x100] sm:$0xf]
  %v86 = vld [vmem:[%s1 + $0x104] sm:$0xf]
  %v87 = vld [vmem:[%s1 + $0x108] sm:$0xf]
  %v88 = vld [vmem:[%s1 + $0x10c] sm:$0xf]
  %v89 = vld [vmem:[%s1 + $0x110] sm:$0xf]
  %v90 = vld [vmem:[%s1 + $0x114] sm:$0xf]
  %v91 = vld [vmem:[%s1 + $0x118] sm:$0xf]
  %v92 = vld [vmem:[%s1 + $0x11c] sm:$0xf]
  %v93 = vld [vmem:[%s1 + $0x120] sm:$0xf]
  %v94 = vld [vmem:[%s1 + $0x124] sm:$0xf]
  %v95 = vld [vmem:[%s1 + $0x128] sm:$0xf]
  %v96 = vld [vmem:[%s1 + $0x12c] sm:$0xf]
  %v97 = vld [vmem:[%s1 + $0x130] sm:$0xf]
  %v98 = vld [vmem:[%s1 + $0x134] sm:$0xf]
  %v99 = vld [vmem:[%s1 + $0x138] sm:$0xf]
  %v100 = vld [vmem:[%s1 + $0x13c] sm:$0xf]
  %v101 = vld [vmem:[%s1 + $0x140] sm:$0xf]
  %v102 = vld [vmem:[%s1 + $0x144] sm:$0xf]
  %v103 = vld [vmem:[%s1 + $0x148] sm:$0xf]
  %v104 = vld [vmem:[%s1 + $0x14c] sm:$0xf]
  %v105 = vld [vmem:[%s1 + $0x150] sm:$0xf]
  %v106 = vld [vmem:[%s1 + $0x154] sm:$0xf]
  %v107 = vld [vmem:[%s1 + $0x158] sm:$0xf]
  %v108 = vld [vmem:[%s1 + $0x15c] sm:$0xf]
  %v109 = vld [vmem:[%s1 + $0x160] sm:$0xf]
  %v110 = vld [vmem:[%s1 + $0x164] sm:$0xf]
  %v111 = vld [vmem:[%s1 + $0x168] sm:$0xf]
  %v112 = vld [vmem:[%s1 + $0x16c] sm:$0xf]
  %v113 = vld [vmem:[%s1 + $0x170] sm:$0xf]
  %v114 = vld [vmem:[%s1 + $0x174] sm:$0xf]
  %v115 = vld [vmem:[%s1 + $0x178] sm:$0xf]
  %v116 = vld [vmem:[%s1 + $0x17c] sm:$0xf]
  %v117 = vld [vmem:[%s1 + $0x180] sm:$0xf]
  %v118 = vld [vmem:[%s1 + $0x184] sm:$0xf]
  %v119 = vld [vmem:[%s1 + $0x188] sm:$0xf]
  %v120 = vld [vmem:[%s1 + $0x18c] sm:$0xf]
  %v121 = vld [vmem:[%s1 + $0x190] sm:$0xf]
  %v122 = vld [vmem:[%s1 + $0x194] sm:$0xf]
  %v123 = vld [vmem:[%s1 + $0x198] sm:$0xf]
  %v124 = vld [vmem:[%s1 + $0x19c] sm:$0xf]
  %v125 = vld [vmem:[%s1 + $0x1a0] sm:$0xf]
  %v126 = vld [vmem:[%s1 + $0x1a4] sm:$0xf]
  %v127 = vld [vmem:[%s1 + $0x1a8] sm:$0xf]
  %v128 = vld [vmem:[%s1 + $0x1ac] sm:$0xf]
  %v129 = vld [vmem:[%s1 + $0x1b0] sm:$0xf]
  %v130 = vld [vmem:[%s1 + $0x1b4] sm:$0xf]
  %v131 = vld [vmem:[%s1 + $0x1b8] sm:$0xf]
  %v132 = vld [vmem:[%s1 + $0x1bc] sm:$0xf]
  %v133 = vld [vmem:[%s1 + $0x1c0] sm:$0xf]
  %v134 = vld [vmem:[%s1 + $0x1c4] sm:$0xf]
  %v135 = vld [vmem:[%s1 + $0x1c8] sm:$0xf]
  %v136 = vld [vmem:[%s1 + $0x1cc] sm:$0xf]
  %v137 = vld [vmem:[%s1 + $0x1d0] sm:$0xf]
  %v138 = vld [vmem:[%s1 + $0x1d4] sm:$0xf]
  %v139 = vld [vmem:[%s1 + $0x1d8] sm:$0xf]
  %v140 = vld [vmem:[%s1 + $0x1dc] sm:$0xf]
  %v141 = vld [vmem:[%s1 + $0x1e0] sm:$0xf]
  %v142 = vld [vmem:[%s1 + $0x1e4] sm:$0xf]
  %v143 = vld [vmem:[%s1 + $0x1e8] sm:$0xf]
  %v144 = vld [vmem:[%s1 + $0x1ec] sm:$0xf]
  %v145 = vld [vmem:[%s1 + $0x1f0] sm:$0xf]
  %v146 = vld [vmem:[%s1 + $0x1f4] sm:$0xf]
  %v147 = vld [vmem:[%s1 + $0x1f8] sm:$0xf]
  %v148 = vld [vmem:[%s1 + $0x1fc] sm:$0xf]
  %v153 = vunpack.c.l.b16 %v17
  %v154 = vunpack.c.h.b16 %v17
  %v155 = vunpack.c.l.b16 %v18
  %v156 = vunpack.c.h.b16 %v18
  %v157 = vunpack.c.l.b16 %v19
  %v158 = vunpack.c.h.b16 %v19
  %v159 = vunpack.c.l.b16 %v20
  %v160 = vunpack.c.h.b16 %v20
  %v161 = vpack.c.b16 %v153, %v153
  %v162 = vpack.c.b16 %v154, %v154
  %v163 = vpack.c.b16 %v155, %v155
  %v164 = vpack.c.b16 %v156, %v156
  %v165 = vpack.c.b16 %v157, %v157
  %v166 = vpack.c.b16 %v158, %v158
  %v167 = vpack.c.b16 %v159, %v159
  %v168 = vpack.c.b16 %v160, %v160
  %v305 = vunpack.c.l.b16 %v21
  %v306 = vunpack.c.l.b16 %v22
  %v307 = vunpack.c.l.b16 %v23
  %v308 = vunpack.c.l.b16 %v24
  %v309 = vunpack.c.l.b16 %v25
  %v310 = vunpack.c.l.b16 %v26
  %v311 = vunpack.c.l.b16 %v27
  %v312 = vunpack.c.l.b16 %v28
  %v313 = vunpack.c.l.b16 %v29
  %v314 = vunpack.c.l.b16 %v30
  %v315 = vunpack.c.l.b16 %v31
  %v316 = vunpack.c.l.b16 %v32
  %v317 = vunpack.c.l.b16 %v33
  %v318 = vunpack.c.l.b16 %v34
  %v319 = vunpack.c.l.b16 %v35
  %v320 = vunpack.c.l.b16 %v36
  %v321 = vunpack.c.l.b16 %v37
  %v322 = vunpack.c.l.b16 %v38
  %v323 = vunpack.c.l.b16 %v39
  %v324 = vunpack.c.l.b16 %v40
  %v325 = vunpack.c.l.b16 %v41
  %v326 = vunpack.c.l.b16 %v42
  %v327 = vunpack.c.l.b16 %v43
  %v328 = vunpack.c.l.b16 %v44
  %v329 = vunpack.c.l.b16 %v45
  %v330 = vunpack.c.l.b16 %v46
  %v331 = vunpack.c.l.b16 %v47
  %v332 = vunpack.c.l.b16 %v48
  %v333 = vunpack.c.l.b16 %v49
  %v334 = vunpack.c.l.b16 %v50
  %v335 = vunpack.c.l.b16 %v51
  %v336 = vunpack.c.l.b16 %v52
  %v337 = vunpack.c.l.b16 %v53
  %v338 = vunpack.c.l.b16 %v54
  %v339 = vunpack.c.l.b16 %v55
  %v340 = vunpack.c.l.b16 %v56
  %v341 = vunpack.c.l.b16 %v57
  %v342 = vunpack.c.l.b16 %v58
  %v343 = vunpack.c.l.b16 %v59
  %v344 = vunpack.c.l.b16 %v60
  %v345 = vunpack.c.l.b16 %v61
  %v346 = vunpack.c.l.b16 %v62
  %v347 = vunpack.c.l.b16 %v63
  %v348 = vunpack.c.l.b16 %v64
  %v349 = vunpack.c.l.b16 %v65
  %v350 = vunpack.c.l.b16 %v66
  %v351 = vunpack.c.l.b16 %v67
  %v352 = vunpack.c.l.b16 %v68
  %v353 = vunpack.c.l.b16 %v69
  %v354 = vunpack.c.l.b16 %v70
  %v355 = vunpack.c.l.b16 %v71
  %v356 = vunpack.c.l.b16 %v72
  %v357 = vunpack.c.l.b16 %v73
  %v358 = vunpack.c.l.b16 %v74
  %v359 = vunpack.c.l.b16 %v75
  %v360 = vunpack.c.l.b16 %v76
  %v361 = vunpack.c.l.b16 %v77
  %v362 = vunpack.c.l.b16 %v78
  %v363 = vunpack.c.l.b16 %v79
  %v364 = vunpack.c.l.b16 %v80
  %v365 = vunpack.c.l.b16 %v81
  %v366 = vunpack.c.l.b16 %v82
  %v367 = vunpack.c.l.b16 %v83
  %v368 = vunpack.c.l.b16 %v84
  %v369 = vunpack.c.l.b16 %v85
  %v370 = vunpack.c.l.b16 %v86
  %v371 = vunpack.c.l.b16 %v87
  %v372 = vunpack.c.l.b16 %v88
  %v373 = vunpack.c.l.b16 %v89
  %v374 = vunpack.c.l.b16 %v90
  %v375 = vunpack.c.l.b16 %v91
  %v376 = vunpack.c.l.b16 %v92
  %v377 = vunpack.c.l.b16 %v93
  %v378 = vunpack.c.l.b16 %v94
  %v379 = vunpack.c.l.b16 %v95
  %v380 = vunpack.c.l.b16 %v96
  %v381 = vunpack.c.l.b16 %v97
  %v382 = vunpack.c.l.b16 %v98
  %v383 = vunpack.c.l.b16 %v99
  %v384 = vunpack.c.l.b16 %v100
  %v385 = vunpack.c.l.b16 %v101
  %v386 = vunpack.c.l.b16 %v102
  %v387 = vunpack.c.l.b16 %v103
  %v388 = vunpack.c.l.b16 %v104
  %v389 = vunpack.c.l.b16 %v105
  %v390 = vunpack.c.l.b16 %v106
  %v391 = vunpack.c.l.b16 %v107
  %v392 = vunpack.c.l.b16 %v108
  %v393 = vunpack.c.l.b16 %v109
  %v394 = vunpack.c.l.b16 %v110
  %v395 = vunpack.c.l.b16 %v111
  %v396 = vunpack.c.l.b16 %v112
  %v397 = vunpack.c.l.b16 %v113
  %v398 = vunpack.c.l.b16 %v114
  %v399 = vunpack.c.l.b16 %v115
  %v400 = vunpack.c.l.b16 %v116
  %v401 = vunpack.c.l.b16 %v117
  %v402 = vunpack.c.l.b16 %v118
  %v403 = vunpack.c.l.b16 %v119
  %v404 = vunpack.c.l.b16 %v120
  %v405 = vunpack.c.l.b16 %v121
  %v406 = vunpack.c.l.b16 %v122
  %v407 = vunpack.c.l.b16 %v123
  %v408 = vunpack.c.l.b16 %v124
  %v409 = vunpack.c.l.b16 %v125
  %v410 = vunpack.c.l.b16 %v126
  %v411 = vunpack.c.l.b16 %v127
  %v412 = vunpack.c.l.b16 %v128
  %v413 = vunpack.c.l.b16 %v129
  %v414 = vunpack.c.l.b16 %v130
  %v415 = vunpack.c.l.b16 %v131
  %v416 = vunpack.c.l.b16 %v132
  %v417 = vunpack.c.l.b16 %v133
  %v418 = vunpack.c.l.b16 %v134
  %v419 = vunpack.c.l.b16 %v135
  %v420 = vunpack.c.l.b16 %v136
  %v421 = vunpack.c.l.b16 %v137
  %v422 = vunpack.c.l.b16 %v138
  %v423 = vunpack.c.l.b16 %v139
  %v424 = vunpack.c.l.b16 %v140
  %v425 = vunpack.c.l.b16 %v141
  %v426 = vunpack.c.l.b16 %v142
  %v427 = vunpack.c.l.b16 %v143
  %v428 = vunpack.c.l.b16 %v144
  %v429 = vunpack.c.l.b16 %v145
  %v430 = vunpack.c.l.b16 %v146
  %v431 = vunpack.c.l.b16 %v147
  %v432 = vunpack.c.l.b16 %v148
  %v433 = vpack.c.b16 %v306, %v305
  %v434 = vpack.c.b16 %v308, %v307
  %v435 = vpack.c.b16 %v310, %v309
  %v436 = vpack.c.b16 %v312, %v311
  %v437 = vpack.c.b16 %v314, %v313
  %v438 = vpack.c.b16 %v316, %v315
  %v439 = vpack.c.b16 %v318, %v317
  %v440 = vpack.c.b16 %v320, %v319
  %v441 = vpack.c.b16 %v322, %v321
  %v442 = vpack.c.b16 %v324, %v323
  %v443 = vpack.c.b16 %v326, %v325
  %v444 = vpack.c.b16 %v328, %v327
  %v445 = vpack.c.b16 %v330, %v329
  %v446 = vpack.c.b16 %v332, %v331
  %v447 = vpack.c.b16 %v334, %v333
  %v448 = vpack.c.b16 %v336, %v335
  %v449 = vpack.c.b16 %v338, %v337
  %v450 = vpack.c.b16 %v340, %v339
  %v451 = vpack.c.b16 %v342, %v341
  %v452 = vpack.c.b16 %v344, %v343
  %v453 = vpack.c.b16 %v346, %v345
  %v454 = vpack.c.b16 %v348, %v347
  %v455 = vpack.c.b16 %v350, %v349
  %v456 = vpack.c.b16 %v352, %v351
  %v457 = vpack.c.b16 %v354, %v353
  %v458 = vpack.c.b16 %v356, %v355
  %v459 = vpack.c.b16 %v358, %v357
  %v460 = vpack.c.b16 %v360, %v359
  %v461 = vpack.c.b16 %v362, %v361
  %v462 = vpack.c.b16 %v364, %v363
  %v463 = vpack.c.b16 %v366, %v365
  %v464 = vpack.c.b16 %v368, %v367
  %v465 = vpack.c.b16 %v370, %v369
  %v466 = vpack.c.b16 %v372, %v371
  %v467 = vpack.c.b16 %v374, %v373
  %v468 = vpack.c.b16 %v376, %v375
  %v469 = vpack.c.b16 %v378, %v377
  %v470 = vpack.c.b16 %v380, %v379
  %v471 = vpack.c.b16 %v382, %v381
  %v472 = vpack.c.b16 %v384, %v383
  %v473 = vpack.c.b16 %v386, %v385
  %v474 = vpack.c.b16 %v388, %v387
  %v475 = vpack.c.b16 %v390, %v389
  %v476 = vpack.c.b16 %v392, %v391
  %v477 = vpack.c.b16 %v394, %v393
  %v478 = vpack.c.b16 %v396, %v395
  %v479 = vpack.c.b16 %v398, %v397
  %v480 = vpack.c.b16 %v400, %v399
  %v481 = vpack.c.b16 %v402, %v401
  %v482 = vpack.c.b16 %v404, %v403
  %v483 = vpack.c.b16 %v406, %v405
  %v484 = vpack.c.b16 %v408, %v407
  %v485 = vpack.c.b16 %v410, %v409
  %v486 = vpack.c.b16 %v412, %v411
  %v487 = vpack.c.b16 %v414, %v413
  %v488 = vpack.c.b16 %v416, %v415
  %v489 = vpack.c.b16 %v418, %v417
  %v490 = vpack.c.b16 %v420, %v419
  %v491 = vpack.c.b16 %v422, %v421
  %v492 = vpack.c.b16 %v424, %v423
  %v493 = vpack.c.b16 %v426, %v425
  %v494 = vpack.c.b16 %v428, %v427
  %v495 = vpack.c.b16 %v430, %v429
  %v496 = vpack.c.b16 %v432, %v431
  %561 = vmatpush.bf16.msra.mxu0 %v440
  %562 = vmatpush.bf16.msra.mxu0 %v439
  %563 = vmatpush.bf16.msra.mxu0 %v438
  %564 = vmatpush.bf16.msra.mxu0 %v437
  %565 = vmatpush.bf16.msra.mxu0 %v436
  %566 = vmatpush.bf16.msra.mxu0 %v435
  %567 = vmatpush.bf16.msra.mxu0 %v434
  %568 = vmatpush.bf16.msra.mxu0 %v433
  %569 = vmatmul.bf16.gmra.mxu0 %v161
  %v570 = vpop.f32.mrf.mxu0
  %v571 = vadd.f32 0.0, %v570
  %v572 = vpop.f32.mrf.mxu0
  %573 = vdwg.mxu0
  %574 = vmatpush.bf16.msra.mxu0 %v448
  %575 = vmatpush.bf16.msra.mxu0 %v447
  %576 = vmatpush.bf16.msra.mxu0 %v446
  %577 = vmatpush.bf16.msra.mxu0 %v445
  %578 = vmatpush.bf16.msra.mxu0 %v444
  %579 = vmatpush.bf16.msra.mxu0 %v443
  %580 = vmatpush.bf16.msra.mxu0 %v442
  %581 = vmatpush.bf16.msra.mxu0 %v441
  %582 = vmatmul.bf16.gmra.mxu0 %v162
  %v583 = vpop.f32.mrf.mxu0
  %v584 = vadd.f32 %v571, %v583
  %v585 = vpop.f32.mrf.mxu0
  %586 = vdwg.mxu0
  %587 = vmatpush.bf16.msra.mxu0 %v456
  %588 = vmatpush.bf16.msra.mxu0 %v455
  %589 = vmatpush.bf16.msra.mxu0 %v454
  %590 = vmatpush.bf16.msra.mxu0 %v453
  %591 = vmatpush.bf16.msra.mxu0 %v452
  %592 = vmatpush.bf16.msra.mxu0 %v451
  %593 = vmatpush.bf16.msra.mxu0 %v450
  %594 = vmatpush.bf16.msra.mxu0 %v449
  %595 = vmatmul.bf16.gmra.mxu0 %v163
  %v596 = vpop.f32.mrf.mxu0
  %v597 = vadd.f32 %v584, %v596
  %v598 = vpop.f32.mrf.mxu0
  %599 = vdwg.mxu0
  %600 = vmatpush.bf16.msra.mxu0 %v464
  %601 = vmatpush.bf16.msra.mxu0 %v463
  %602 = vmatpush.bf16.msra.mxu0 %v462
  %603 = vmatpush.bf16.msra.mxu0 %v461
  %604 = vmatpush.bf16.msra.mxu0 %v460
  %605 = vmatpush.bf16.msra.mxu0 %v459
  %606 = vmatpush.bf16.msra.mxu0 %v458
  %607 = vmatpush.bf16.msra.mxu0 %v457
  %608 = vmatmul.bf16.gmra.mxu0 %v164
  %v609 = vpop.f32.mrf.mxu0
  %v610 = vadd.f32 %v597, %v609
  %v611 = vpop.f32.mrf.mxu0
  %612 = vdwg.mxu0
  %613 = vmatpush.bf16.msra.mxu0 %v472
  %614 = vmatpush.bf16.msra.mxu0 %v471
  %615 = vmatpush.bf16.msra.mxu0 %v470
  %616 = vmatpush.bf16.msra.mxu0 %v469
  %617 = vmatpush.bf16.msra.mxu0 %v468
  %618 = vmatpush.bf16.msra.mxu0 %v467
  %619 = vmatpush.bf16.msra.mxu0 %v466
  %620 = vmatpush.bf16.msra.mxu0 %v465
  %621 = vmatmul.bf16.gmra.mxu0 %v165
  %v622 = vpop.f32.mrf.mxu0
  %v623 = vadd.f32 %v610, %v622
  %v624 = vpop.f32.mrf.mxu0
  %625 = vdwg.mxu0
  %626 = vmatpush.bf16.msra.mxu0 %v480
  %627 = vmatpush.bf16.msra.mxu0 %v479
  %628 = vmatpush.bf16.msra.mxu0 %v478
  %629 = vmatpush.bf16.msra.mxu0 %v477
  %630 = vmatpush.bf16.msra.mxu0 %v476
  %631 = vmatpush.bf16.msra.mxu0 %v475
  %632 = vmatpush.bf16.msra.mxu0 %v474
  %633 = vmatpush.bf16.msra.mxu0 %v473
  %634 = vmatmul.bf16.gmra.mxu0 %v166
  %v635 = vpop.f32.mrf.mxu0
  %v636 = vadd.f32 %v623, %v635
  %v637 = vpop.f32.mrf.mxu0
  %638 = vdwg.mxu0
  %639 = vmatpush.bf16.msra.mxu0 %v488
  %640 = vmatpush.bf16.msra.mxu0 %v487
  %641 = vmatpush.bf16.msra.mxu0 %v486
  %642 = vmatpush.bf16.msra.mxu0 %v485
  %643 = vmatpush.bf16.msra.mxu0 %v484
  %644 = vmatpush.bf16.msra.mxu0 %v483
  %645 = vmatpush.bf16.msra.mxu0 %v482
  %646 = vmatpush.bf16.msra.mxu0 %v481
  %647 = vmatmul.bf16.gmra.mxu0 %v167
  %v648 = vpop.f32.mrf.mxu0
  %v649 = vadd.f32 %v636, %v648
  %v650 = vpop.f32.mrf.mxu0
  %651 = vdwg.mxu0
  %652 = vmatpush.bf16.msra.mxu0 %v496
  %653 = vmatpush.bf16.msra.mxu0 %v495
  %654 = vmatpush.bf16.msra.mxu0 %v494
  %655 = vmatpush.bf16.msra.mxu0 %v493
  %656 = vmatpush.bf16.msra.mxu0 %v492
  %657 = vmatpush.bf16.msra.mxu0 %v491
  %658 = vmatpush.bf16.msra.mxu0 %v490
  %659 = vmatpush.bf16.msra.mxu0 %v489
  %660 = vmatmul.bf16.gmra.mxu0 %v168
  %v661 = vpop.f32.mrf.mxu0
  %v662 = vadd.f32 %v649, %v661
  %v663 = vpop.f32.mrf.mxu0
  %664 = vdwg.mxu0
  %v665 = vrot.slane %v662, 4
  %v666 = vadd.f32 %v662, %v665
  %v667 = vrot.slane %v666, 2
  %v668 = vadd.f32 %v666, %v667
  %v669 = vrot.slane %v668, 1
  %v670 = vadd.f32 %v668, %v669
  %v671 = vrcp.pop 8.0
  %v672 = vmul.f32 8.0, %v671
  %v673 = vsub.f32 1.0, %v672
  %v674 = vmul.f32 %v671, %v673
  %v675 = vadd.f32 %v671, %v674
  %vm676 = vweird.f32 %v671
  %v677 = vsel %vm676, %v671, %v675
  %v678 = vmul.f32 %v670, %v677
  %v679 = vmul.f32 %v662, %v662
  %v680 = vrot.slane %v679, 4
  %v681 = vadd.f32 %v679, %v680
  %v682 = vrot.slane %v681, 2
  %v683 = vadd.f32 %v681, %v682
  %v684 = vrot.slane %v683, 1
  %v685 = vadd.f32 %v683, %v684
  %v686 = vmul.f32 %v685, %v677
  %v687 = vmul.f32 %v678, %v678
  %v688 = vsub.f32 %v686, %v687
  %v689 = vmax.f32 %v688, 0.0
  %v690 = vld [vmem:[%s2] sm:$0x1]
  %v691 = vadd.f32 %v689, 1e-05
  %v692 = vrsqrt.pop %v691
  %v693 = vmul.f32 %v692, %v691
  %v694 = vmul.f32 %v693, %v692
  %v695 = vmul.f32 0.5, %v694
  %v696 = vsub.f32 1.5, %v695
  %v697 = vmul.f32 %v692, %v696
  %vm698 = vweird.f32 %v691
  %vm699 = vweird.f32 %v692
  %vm700 = vmor %vm698, %vm699
  %v701 = vsel %vm700, %v692, %v697
  %v702 = vmul.f32 %v690, %v701
  %v703 = vld [vmem:[%s3] sm:$0x1]
  %v704 = vmul.f32 %v678, %v702
  %v705 = vsub.f32 %v703, %v704
  %v707 = vperm.slane %v702, 0
  %v709 = vmul.f32 %v662, %v707
  %v711 = vperm.slane %v705, 0
  %v713 = vadd.f32 %v709, %v711
  %v714 = vmax.f32 %v713, 0.0
  %v715 = vpack.c.bf16 %v714, %v714
  %716 = vst [vmem:[%s4] sm:$0xf] %v715
  // Predicated region
  $region18: #{wae_forward.11} parent=0 // pred_check
    _
  $region19: #{wae_forward.11} parent=0 // pred_check_branch
    %718 = sbr.rel (0) target = $region21
  $region20: #{wae_forward.11} parent=0 // pred_region
    _
  $region21: #{wae_forward.11} parent=0 // pred_fallthru
    _
  // Predicated region
  $region22: #{wae_forward.11} parent=0 // pred_check
    _
  $region23: #{wae_forward.11} parent=0 // pred_check_branch
    %720 = sbr.rel (0) target = $region25
  $region24: #{wae_forward.11} parent=0 // pred_region
    _
  $region25: #{wae_forward.11} parent=0 // pred_fallthru
    _

// kernel: wae_forward.12
$region0: #{wae_forward.12}
  #allocation0 [shape = 'u32[]', space=smem, size = 0x4, offset = 0x4, fixed_abs, tag = 'smem constant byte address 0x4 - core index']
  #allocation1 [shape = 'u32[72,128]{1,0:T(1,128)}', space=vmem, size = 0x9000, scoped, tag = 'internal scratch']
  %s0 = inlined_call_operand.vmem [shape: bf16[8,1152], index: 0, kind: input, shape index: {}]
  %s1 = inlined_call_operand.vmem [shape: bf16[1152,512], index: 1, kind: input, shape index: {}]
  %s2 = inlined_call_operand.vmem [shape: f32[1,512], index: 2, kind: input, shape index: {}]
  %s3 = inlined_call_operand.vmem [shape: f32[1,128], index: 3, kind: input, shape index: {}]
  %s4 = inlined_call_operand.vmem [shape: f32[1,128], index: 4, kind: input, shape index: {}]
  %s5 = inlined_call_operand.vmem [shape: bf16[8,512], index: 5, kind: output, shape index: {}]
  %s6 = sld [smem:[#allocation0]]
  $region30: #{wae_forward.12} parent=0
    _
  %s8 = ssub.s32 1, %s6
  %s9 = scalar_select 0, %s8, %s6
  // Predicated region
  $region2: #{wae_forward.12} parent=0 // pred_check
    _
  $region3: #{wae_forward.12} parent=0 // pred_check_branch
    %11 = sbr.rel (0) target = $region5
  $region4: #{wae_forward.12} parent=0 // pred_region
    _
  $region5: #{wae_forward.12} parent=0 // pred_fallthru
    _
  // Predicated region
  $region6: #{wae_forward.12} parent=0 // pred_check
    _
  $region7: #{wae_forward.12} parent=0 // pred_check_branch
    %13 = sbr.rel (0) target = $region9
  $region8: #{wae_forward.12} parent=0 // pred_region
    _
  $region9: #{wae_forward.12} parent=0 // pred_fallthru
    _
  // Predicated region
  $region10: #{wae_forward.12} parent=0 // pred_check
    _
  $region11: #{wae_forward.12} parent=0 // pred_check_branch
    %15 = sbr.rel (0) target = $region13
  $region12: #{wae_forward.12} parent=0 // pred_region
    _
  $region13: #{wae_forward.12} parent=0 // pred_fallthru
    _
  // Predicated region
  $region14: #{wae_forward.12} parent=0 // pred_check
    _
  $region15: #{wae_forward.12} parent=0 // pred_check_branch
    %17 = sbr.rel (0) target = $region17
  $region16: #{wae_forward.12} parent=0 // pred_region
    _
  $region17: #{wae_forward.12} parent=0 // pred_fallthru
    _
  // Predicated region
  $region18: #{wae_forward.12} parent=0 // pred_check
    _
  $region19: #{wae_forward.12} parent=0 // pred_check_branch
    %19 = sbr.rel (0) target = $region21
  $region20: #{wae_forward.12} parent=0 // pred_region
    _
  $region21: #{wae_forward.12} parent=0 // pred_fallthru
    _
  %v20 = vld [vmem:[%s0] sm:$0xff]
  %v21 = vld [vmem:[%s0 + $0x8] sm:$0xff]
  %v22 = vld [vmem:[%s0 + $0x10] sm:$0xff]
  %v23 = vld [vmem:[%s0 + $0x18] sm:$0xff]
  %v24 = vld [vmem:[%s0 + $0x20] sm:$0xf]
  %v25 = vld [vmem:[%s1] sm:$0xff]
  %v26 = vld [vmem:[%s1 + $0x8] sm:$0xff]
  %v27 = vld [vmem:[%s1 + $0x10] sm:$0xff]
  %v28 = vld [vmem:[%s1 + $0x18] sm:$0xff]
  %v29 = vld [vmem:[%s1 + $0x20] sm:$0xff]
  %v30 = vld [vmem:[%s1 + $0x28] sm:$0xff]
  %v31 = vld [vmem:[%s1 + $0x30] sm:$0xff]
  %v32 = vld [vmem:[%s1 + $0x38] sm:$0xff]
  %v33 = vld [vmem:[%s1 + $0x40] sm:$0xff]
  %v34 = vld [vmem:[%s1 + $0x48] sm:$0xff]
  %v35 = vld [vmem:[%s1 + $0x50] sm:$0xff]
  %v36 = vld [vmem:[%s1 + $0x58] sm:$0xff]
  %v37 = vld [vmem:[%s1 + $0x60] sm:$0xff]
  %v38 = vld [vmem:[%s1 + $0x68] sm:$0xff]
  %v39 = vld [vmem:[%s1 + $0x70] sm:$0xff]
  %v40 = vld [vmem:[%s1 + $0x78] sm:$0xff]
  %v41 = vld [vmem:[%s1 + $0x80] sm:$0xff]
  %v42 = vld [vmem:[%s1 + $0x88] sm:$0xff]
  %v43 = vld [vmem:[%s1 + $0x90] sm:$0xff]
  %v44 = vld [vmem:[%s1 + $0x98] sm:$0xff]
  %v45 = vld [vmem:[%s1 + $0xa0] sm:$0xff]
  %v46 = vld [vmem:[%s1 + $0xa8] sm:$0xff]
  %v47 = vld [vmem:[%s1 + $0xb0] sm:$0xff]
  %v48 = vld [vmem:[%s1 + $0xb8] sm:$0xff]
  %v49 = vld [vmem:[%s1 + $0xc0] sm:$0xff]
  %v50 = vld [vmem:[%s1 + $0xc8] sm:$0xff]
  %v51 = vld [vmem:[%s1 + $0xd0] sm:$0xff]
  %v52 = vld [vmem:[%s1 + $0xd8] sm:$0xff]
  %v53 = vld [vmem:[%s1 + $0xe0] sm:$0xff]
  %v54 = vld [vmem:[%s1 + $0xe8] sm:$0xff]
  %v55 = vld [vmem:[%s1 + $0xf0] sm:$0xff]
  %v56 = vld [vmem:[%s1 + $0xf8] sm:$0xff]
  %v57 = vld [vmem:[%s1 + $0x100] sm:$0xff]
  %v58 = vld [vmem:[%s1 + $0x108] sm:$0xff]
  %v59 = vld [vmem:[%s1 + $0x110] sm:$0xff]
  %v60 = vld [vmem:[%s1 + $0x118] sm:$0xff]
  %v61 = vld [vmem:[%s1 + $0x120] sm:$0xff]
  %v62 = vld [vmem:[%s1 + $0x128] sm:$0xff]
  %v63 = vld [vmem:[%s1 + $0x130] sm:$0xff]
  %v64 = vld [vmem:[%s1 + $0x138] sm:$0xff]
  %v65 = vld [vmem:[%s1 + $0x140] sm:$0xff]
  %v66 = vld [vmem:[%s1 + $0x148] sm:$0xff]
  %v67 = vld [vmem:[%s1 + $0x150] sm:$0xff]
  %v68 = vld [vmem:[%s1 + $0x158] sm:$0xff]
  %v69 = vld [vmem:[%s1 + $0x160] sm:$0xff]
  %v70 = vld [vmem:[%s1 + $0x168] sm:$0xff]
  %v71 = vld [vmem:[%s1 + $0x170] sm:$0xff]
  %v72 = vld [vmem:[%s1 + $0x178] sm:$0xff]
  %v73 = vld [vmem:[%s1 + $0x180] sm:$0xff]
  %v74 = vld [vmem:[%s1 + $0x188] sm:$0xff]
  %v75 = vld [vmem:[%s1 + $0x190] sm:$0xff]
  %v76 = vld [vmem:[%s1 + $0x198] sm:$0xff]
  %v77 = vld [vmem:[%s1 + $0x1a0] sm:$0xff]
  %v78 = vld [vmem:[%s1 + $0x1a8] sm:$0xff]
  %v79 = vld [vmem:[%s1 + $0x1b0] sm:$0xff]
  %v80 = vld [vmem:[%s1 + $0x1b8] sm:$0xff]
  %v81 = vld [vmem:[%s1 + $0x1c0] sm:$0xff]
  %v82 = vld [vmem:[%s1 + $0x1c8] sm:$0xff]
  %v83 = vld [vmem:[%s1 + $0x1d0] sm:$0xff]
  %v84 = vld [vmem:[%s1 + $0x1d8] sm:$0xff]
  %v85 = vld [vmem:[%s1 + $0x1e0] sm:$0xff]
  %v86 = vld [vmem:[%s1 + $0x1e8] sm:$0xff]
  %v87 = vld [vmem:[%s1 + $0x1f0] sm:$0xff]
  %v88 = vld [vmem:[%s1 + $0x1f8] sm:$0xff]
  %v89 = vld [vmem:[%s1 + $0x200] sm:$0xff]
  %v90 = vld [vmem:[%s1 + $0x208] sm:$0xff]
  %v91 = vld [vmem:[%s1 + $0x210] sm:$0xff]
  %v92 = vld [vmem:[%s1 + $0x218] sm:$0xff]
  %v93 = vld [vmem:[%s1 + $0x220] sm:$0xff]
  %v94 = vld [vmem:[%s1 + $0x228] sm:$0xff]
  %v95 = vld [vmem:[%s1 + $0x230] sm:$0xff]
  %v96 = vld [vmem:[%s1 + $0x238] sm:$0xff]
  %v97 = vld [vmem:[%s1 + $0x240] sm:$0xff]
  %v98 = vld [vmem:[%s1 + $0x248] sm:$0xff]
  %v99 = vld [vmem:[%s1 + $0x250] sm:$0xff]
  %v100 = vld [vmem:[%s1 + $0x258] sm:$0xff]
  %v101 = vld [vmem:[%s1 + $0x260] sm:$0xff]
  %v102 = vld [vmem:[%s1 + $0x268] sm:$0xff]
  %v103 = vld [vmem:[%s1 + $0x270] sm:$0xff]
  %v104 = vld [vmem:[%s1 + $0x278] sm:$0xff]
  %v105 = vld [vmem:[%s1 + $0x280] sm:$0xff]
  %v106 = vld [vmem:[%s1 + $0x288] sm:$0xff]
  %v107 = vld [vmem:[%s1 + $0x290] sm:$0xff]
  %v108 = vld [vmem:[%s1 + $0x298] sm:$0xff]
  %v109 = vld [vmem:[%s1 + $0x2a0] sm:$0xff]
  %v110 = vld [vmem:[%s1 + $0x2a8] sm:$0xff]
  %v111 = vld [vmem:[%s1 + $0x2b0] sm:$0xff]
  %v112 = vld [vmem:[%s1 + $0x2b8] sm:$0xff]
  %v113 = vld [vmem:[%s1 + $0x2c0] sm:$0xff]
  %v114 = vld [vmem:[%s1 + $0x2c8] sm:$0xff]
  %v115 = vld [vmem:[%s1 + $0x2d0] sm:$0xff]
  %v116 = vld [vmem:[%s1 + $0x2d8] sm:$0xff]
  %v117 = vld [vmem:[%s1 + $0x2e0] sm:$0xff]
  %v118 = vld [vmem:[%s1 + $0x2e8] sm:$0xff]
  %v119 = vld [vmem:[%s1 + $0x2f0] sm:$0xff]
  %v120 = vld [vmem:[%s1 + $0x2f8] sm:$0xff]
  %v121 = vld [vmem:[%s1 + $0x300] sm:$0xff]
  %v122 = vld [vmem:[%s1 + $0x308] sm:$0xff]
  %v123 = vld [vmem:[%s1 + $0x310] sm:$0xff]
  %v124 = vld [vmem:[%s1 + $0x318] sm:$0xff]
  %v125 = vld [vmem:[%s1 + $0x320] sm:$0xff]
  %v126 = vld [vmem:[%s1 + $0x328] sm:$0xff]
  %v127 = vld [vmem:[%s1 + $0x330] sm:$0xff]
  %v128 = vld [vmem:[%s1 + $0x338] sm:$0xff]
  %v129 = vld [vmem:[%s1 + $0x340] sm:$0xff]
  %v130 = vld [vmem:[%s1 + $0x348] sm:$0xff]
  %v131 = vld [vmem:[%s1 + $0x350] sm:$0xff]
  %v132 = vld [vmem:[%s1 + $0x358] sm:$0xff]
  %v133 = vld [vmem:[%s1 + $0x360] sm:$0xff]
  %v134 = vld [vmem:[%s1 + $0x368] sm:$0xff]
  %v135 = vld [vmem:[%s1 + $0x370] sm:$0xff]
  %v136 = vld [vmem:[%s1 + $0x378] sm:$0xff]
  %v137 = vld [vmem:[%s1 + $0x380] sm:$0xff]
  %v138 = vld [vmem:[%s1 + $0x388] sm:$0xff]
  %v139 = vld [vmem:[%s1 + $0x390] sm:$0xff]
  %v140 = vld [vmem:[%s1 + $0x398] sm:$0xff]
  %v141 = vld [vmem:[%s1 + $0x3a0] sm:$0xff]
  %v142 = vld [vmem:[%s1 + $0x3a8] sm:$0xff]
  %v143 = vld [vmem:[%s1 + $0x3b0] sm:$0xff]
  %v144 = vld [vmem:[%s1 + $0x3b8] sm:$0xff]
  %v145 = vld [vmem:[%s1 + $0x3c0] sm:$0xff]
  %v146 = vld [vmem:[%s1 + $0x3c8] sm:$0xff]
  %v147 = vld [vmem:[%s1 + $0x3d0] sm:$0xff]
  %v148 = vld [vmem:[%s1 + $0x3d8] sm:$0xff]
  %v149 = vld [vmem:[%s1 + $0x3e0] sm:$0xff]
  %v150 = vld [vmem:[%s1 + $0x3e8] sm:$0xff]
  %v151 = vld [vmem:[%s1 + $0x3f0] sm:$0xff]
  %v152 = vld [vmem:[%s1 + $0x3f8] sm:$0xff]
  %v153 = vld [vmem:[%s1 + $0x400] sm:$0xff]
  %v154 = vld [vmem:[%s1 + $0x408] sm:$0xff]
  %v155 = vld [vmem:[%s1 + $0x410] sm:$0xff]
  %v156 = vld [vmem:[%s1 + $0x418] sm:$0xff]
  %v157 = vld [vmem:[%s1 + $0x420] sm:$0xff]
  %v158 = vld [vmem:[%s1 + $0x428] sm:$0xff]
  %v159 = vld [vmem:[%s1 + $0x430] sm:$0xff]
  %v160 = vld [vmem:[%s1 + $0x438] sm:$0xff]
  %v161 = vld [vmem:[%s1 + $0x440] sm:$0xff]
  %v162 = vld [vmem:[%s1 + $0x448] sm:$0xff]
  %v163 = vld [vmem:[%s1 + $0x450] sm:$0xff]
  %v164 = vld [vmem:[%s1 + $0x458] sm:$0xff]
  %v165 = vld [vmem:[%s1 + $0x460] sm:$0xff]
  %v166 = vld [vmem:[%s1 + $0x468] sm:$0xff]
  %v167 = vld [vmem:[%s1 + $0x470] sm:$0xff]
  %v168 = vld [vmem:[%s1 + $0x478] sm:$0xff]
  %v169 = vld [vmem:[%s1 + $0x480] sm:$0xff]
  %v170 = vld [vmem:[%s1 + $0x488] sm:$0xff]
  %v171 = vld [vmem:[%s1 + $0x490] sm:$0xff]
  %v172 = vld [vmem:[%s1 + $0x498] sm:$0xff]
  %v173 = vld [vmem:[%s1 + $0x4a0] sm:$0xff]
  %v174 = vld [vmem:[%s1 + $0x4a8] sm:$0xff]
  %v175 = vld [vmem:[%s1 + $0x4b0] sm:$0xff]
  %v176 = vld [vmem:[%s1 + $0x4b8] sm:$0xff]
  %v177 = vld [vmem:[%s1 + $0x4c0] sm:$0xff]
  %v178 = vld [vmem:[%s1 + $0x4c8] sm:$0xff]
  %v179 = vld [vmem:[%s1 + $0x4d0] sm:$0xff]
  %v180 = vld [vmem:[%s1 + $0x4d8] sm:$0xff]
  %v181 = vld [vmem:[%s1 + $0x4e0] sm:$0xff]
  %v182 = vld [vmem:[%s1 + $0x4e8] sm:$0xff]
  %v183 = vld [vmem:[%s1 + $0x4f0] sm:$0xff]
  %v184 = vld [vmem:[%s1 + $0x4f8] sm:$0xff]
  %v185 = vld [vmem:[%s1 + $0x500] sm:$0xff]
  %v186 = vld [vmem:[%s1 + $0x508] sm:$0xff]
  %v187 = vld [vmem:[%s1 + $0x510] sm:$0xff]
  %v188 = vld [vmem:[%s1 + $0x518] sm:$0xff]
  %v189 = vld [vmem:[%s1 + $0x520] sm:$0xff]
  %v190 = vld [vmem:[%s1 + $0x528] sm:$0xff]
  %v191 = vld [vmem:[%s1 + $0x530] sm:$0xff]
  %v192 = vld [vmem:[%s1 + $0x538] sm:$0xff]
  %v193 = vld [vmem:[%s1 + $0x540] sm:$0xff]
  %v194 = vld [vmem:[%s1 + $0x548] sm:$0xff]
  %v195 = vld [vmem:[%s1 + $0x550] sm:$0xff]
  %v196 = vld [vmem:[%s1 + $0x558] sm:$0xff]
  %v197 = vld [vmem:[%s1 + $0x560] sm:$0xff]
  %v198 = vld [vmem:[%s1 + $0x568] sm:$0xff]
  %v199 = vld [vmem:[%s1 + $0x570] sm:$0xff]
  %v200 = vld [vmem:[%s1 + $0x578] sm:$0xff]
  %v201 = vld [vmem:[%s1 + $0x580] sm:$0xff]
  %v202 = vld [vmem:[%s1 + $0x588] sm:$0xff]
  %v203 = vld [vmem:[%s1 + $0x590] sm:$0xff]
  %v204 = vld [vmem:[%s1 + $0x598] sm:$0xff]
  %v205 = vld [vmem:[%s1 + $0x5a0] sm:$0xff]
  %v206 = vld [vmem:[%s1 + $0x5a8] sm:$0xff]
  %v207 = vld [vmem:[%s1 + $0x5b0] sm:$0xff]
  %v208 = vld [vmem:[%s1 + $0x5b8] sm:$0xff]
  %v209 = vld [vmem:[%s1 + $0x5c0] sm:$0xff]
  %v210 = vld [vmem:[%s1 + $0x5c8] sm:$0xff]
  %v211 = vld [vmem:[%s1 + $0x5d0] sm:$0xff]
  %v212 = vld [vmem:[%s1 + $0x5d8] sm:$0xff]
  %v213 = vld [vmem:[%s1 + $0x5e0] sm:$0xff]
  %v214 = vld [vmem:[%s1 + $0x5e8] sm:$0xff]
  %v215 = vld [vmem:[%s1 + $0x5f0] sm:$0xff]
  %v216 = vld [vmem:[%s1 + $0x5f8] sm:$0xff]
  %v217 = vld [vmem:[%s1 + $0x600] sm:$0xff]
  %v218 = vld [vmem:[%s1 + $0x608] sm:$0xff]
  %v219 = vld [vmem:[%s1 + $0x610] sm:$0xff]
  %v220 = vld [vmem:[%s1 + $0x618] sm:$0xff]
  %v221 = vld [vmem:[%s1 + $0x620] sm:$0xff]
  %v222 = vld [vmem:[%s1 + $0x628] sm:$0xff]
  %v223 = vld [vmem:[%s1 + $0x630] sm:$0xff]
  %v224 = vld [vmem:[%s1 + $0x638] sm:$0xff]
  %v225 = vld [vmem:[%s1 + $0x640] sm:$0xff]
  %v226 = vld [vmem:[%s1 + $0x648] sm:$0xff]
  %v227 = vld [vmem:[%s1 + $0x650] sm:$0xff]
  %v228 = vld [vmem:[%s1 + $0x658] sm:$0xff]
  %v229 = vld [vmem:[%s1 + $0x660] sm:$0xff]
  %v230 = vld [vmem:[%s1 + $0x668] sm:$0xff]
  %v231 = vld [vmem:[%s1 + $0x670] sm:$0xff]
  %v232 = vld [vmem:[%s1 + $0x678] sm:$0xff]
  %v233 = vld [vmem:[%s1 + $0x680] sm:$0xff]
  %v234 = vld [vmem:[%s1 + $0x688] sm:$0xff]
  %v235 = vld [vmem:[%s1 + $0x690] sm:$0xff]
  %v236 = vld [vmem:[%s1 + $0x698] sm:$0xff]
  %v237 = vld [vmem:[%s1 + $0x6a0] sm:$0xff]
  %v238 = vld [vmem:[%s1 + $0x6a8] sm:$0xff]
  %v239 = vld [vmem:[%s1 + $0x6b0] sm:$0xff]
  %v240 = vld [vmem:[%s1 + $0x6b8] sm:$0xff]
  %v241 = vld [vmem:[%s1 + $0x6c0] sm:$0xff]
  %v242 = vld [vmem:[%s1 + $0x6c8] sm:$0xff]
  %v243 = vld [vmem:[%s1 + $0x6d0] sm:$0xff]
  %v244 = vld [vmem:[%s1 + $0x6d8] sm:$0xff]
  %v245 = vld [vmem:[%s1 + $0x6e0] sm:$0xff]
  %v246 = vld [vmem:[%s1 + $0x6e8] sm:$0xff]
  %v247 = vld [vmem:[%s1 + $0x6f0] sm:$0xff]
  %v248 = vld [vmem:[%s1 + $0x6f8] sm:$0xff]
  %v249 = vld [vmem:[%s1 + $0x700] sm:$0xff]
  %v250 = vld [vmem:[%s1 + $0x708] sm:$0xff]
  %v251 = vld [vmem:[%s1 + $0x710] sm:$0xff]
  %v252 = vld [vmem:[%s1 + $0x718] sm:$0xff]
  %v253 = vld [vmem:[%s1 + $0x720] sm:$0xff]
  %v254 = vld [vmem:[%s1 + $0x728] sm:$0xff]
  %v255 = vld [vmem:[%s1 + $0x730] sm:$0xff]
  %v256 = vld [vmem:[%s1 + $0x738] sm:$0xff]
  %v257 = vld [vmem:[%s1 + $0x740] sm:$0xff]
  %v258 = vld [vmem:[%s1 + $0x748] sm:$0xff]
  %v259 = vld [vmem:[%s1 + $0x750] sm:$0xff]
  %v260 = vld [vmem:[%s1 + $0x758] sm:$0xff]
  %v261 = vld [vmem:[%s1 + $0x760] sm:$0xff]
  %v262 = vld [vmem:[%s1 + $0x768] sm:$0xff]
  %v263 = vld [vmem:[%s1 + $0x770] sm:$0xff]
  %v264 = vld [vmem:[%s1 + $0x778] sm:$0xff]
  %v265 = vld [vmem:[%s1 + $0x780] sm:$0xff]
  %v266 = vld [vmem:[%s1 + $0x788] sm:$0xff]
  %v267 = vld [vmem:[%s1 + $0x790] sm:$0xff]
  %v268 = vld [vmem:[%s1 + $0x798] sm:$0xff]
  %v269 = vld [vmem:[%s1 + $0x7a0] sm:$0xff]
  %v270 = vld [vmem:[%s1 + $0x7a8] sm:$0xff]
  %v271 = vld [vmem:[%s1 + $0x7b0] sm:$0xff]
  %v272 = vld [vmem:[%s1 + $0x7b8] sm:$0xff]
  %v273 = vld [vmem:[%s1 + $0x7c0] sm:$0xff]
  %v274 = vld [vmem:[%s1 + $0x7c8] sm:$0xff]
  %v275 = vld [vmem:[%s1 + $0x7d0] sm:$0xff]
  %v276 = vld [vmem:[%s1 + $0x7d8] sm:$0xff]
  %v277 = vld [vmem:[%s1 + $0x7e0] sm:$0xff]
  %v278 = vld [vmem:[%s1 + $0x7e8] sm:$0xff]
  %v279 = vld [vmem:[%s1 + $0x7f0] sm:$0xff]
  %v280 = vld [vmem:[%s1 + $0x7f8] sm:$0xff]
  %v281 = vld [vmem:[%s1 + $0x800] sm:$0xff]
  %v282 = vld [vmem:[%s1 + $0x808] sm:$0xff]
  %v283 = vld [vmem:[%s1 + $0x810] sm:$0xff]
  %v284 = vld [vmem:[%s1 + $0x818] sm:$0xff]
  %v285 = vld [vmem:[%s1 + $0x820] sm:$0xff]
  %v286 = vld [vmem:[%s1 + $0x828] sm:$0xff]
  %v287 = vld [vmem:[%s1 + $0x830] sm:$0xff]
  %v288 = vld [vmem:[%s1 + $0x838] sm:$0xff]
  %v289 = vld [vmem:[%s1 + $0x840] sm:$0xff]
  %v290 = vld [vmem:[%s1 + $0x848] sm:$0xff]
  %v291 = vld [vmem:[%s1 + $0x850] sm:$0xff]
  %v292 = vld [vmem:[%s1 + $0x858] sm:$0xff]
  %v293 = vld [vmem:[%s1 + $0x860] sm:$0xff]
  %v294 = vld [vmem:[%s1 + $0x868] sm:$0xff]
  %v295 = vld [vmem:[%s1 + $0x870] sm:$0xff]
  %v296 = vld [vmem:[%s1 + $0x878] sm:$0xff]
  %v297 = vld [vmem:[%s1 + $0x880] sm:$0xff]
  %v298 = vld [vmem:[%s1 + $0x888] sm:$0xff]
  %v299 = vld [vmem:[%s1 + $0x890] sm:$0xff]
  %v300 = vld [vmem:[%s1 + $0x898] sm:$0xff]
  %v301 = vld [vmem:[%s1 + $0x8a0] sm:$0xff]
  %v302 = vld [vmem:[%s1 + $0x8a8] sm:$0xff]
  %v303 = vld [vmem:[%s1 + $0x8b0] sm:$0xff]
  %v304 = vld [vmem:[%s1 + $0x8b8] sm:$0xff]
  %v305 = vld [vmem:[%s1 + $0x8c0] sm:$0xff]
  %v306 = vld [vmem:[%s1 + $0x8c8] sm:$0xff]
  %v307 = vld [vmem:[%s1 + $0x8d0] sm:$0xff]
  %v308 = vld [vmem:[%s1 + $0x8d8] sm:$0xff]
  %v309 = vld [vmem:[%s1 + $0x8e0] sm:$0xff]
  %v310 = vld [vmem:[%s1 + $0x8e8] sm:$0xff]
  %v311 = vld [vmem:[%s1 + $0x8f0] sm:$0xff]
  %v312 = vld [vmem:[%s1 + $0x8f8] sm:$0xff]
  %v313 = vld [vmem:[%s2] sm:$0xf]
  %v315 = vperm.slane %v313, 0
  %v316 = vperm.slane %v313, 1
  %v317 = vperm.slane %v313, 2
  %v318 = vperm.slane %v313, 3
  %v328 = vunpack.c.l.b16 %v20
  %v329 = vunpack.c.h.b16 %v20
  %v330 = vunpack.c.l.b16 %v21
  %v331 = vunpack.c.h.b16 %v21
  %v332 = vunpack.c.l.b16 %v22
  %v333 = vunpack.c.h.b16 %v22
  %v334 = vunpack.c.l.b16 %v23
  %v335 = vunpack.c.h.b16 %v23
  %v336 = vunpack.c.l.b16 %v24
  %v337 = vpack.c.b16 %v328, %v328
  %v338 = vpack.c.b16 %v329, %v329
  %v339 = vpack.c.b16 %v330, %v330
  %v340 = vpack.c.b16 %v331, %v331
  %v341 = vpack.c.b16 %v332, %v332
  %v342 = vpack.c.b16 %v333, %v333
  %v343 = vpack.c.b16 %v334, %v334
  %v344 = vpack.c.b16 %v335, %v335
  %v345 = vpack.c.b16 %v336, %v336
  %v643 = vunpack.c.l.b16 %v25
  %v644 = vunpack.c.h.b16 %v25
  %v645 = vunpack.c.l.b16 %v26
  %v646 = vunpack.c.h.b16 %v26
  %v647 = vunpack.c.l.b16 %v27
  %v648 = vunpack.c.h.b16 %v27
  %v649 = vunpack.c.l.b16 %v28
  %v650 = vunpack.c.h.b16 %v28
  %v651 = vunpack.c.l.b16 %v29
  %v652 = vunpack.c.h.b16 %v29
  %v653 = vunpack.c.l.b16 %v30
  %v654 = vunpack.c.h.b16 %v30
  %v655 = vunpack.c.l.b16 %v31
  %v656 = vunpack.c.h.b16 %v31
  %v657 = vunpack.c.l.b16 %v32
  %v658 = vunpack.c.h.b16 %v32
  %v659 = vunpack.c.l.b16 %v33
  %v660 = vunpack.c.h.b16 %v33
  %v661 = vunpack.c.l.b16 %v34
  %v662 = vunpack.c.h.b16 %v34
  %v663 = vunpack.c.l.b16 %v35
  %v664 = vunpack.c.h.b16 %v35
  %v665 = vunpack.c.l.b16 %v36
  %v666 = vunpack.c.h.b16 %v36
  %v667 = vunpack.c.l.b16 %v37
  %v668 = vunpack.c.h.b16 %v37
  %v669 = vunpack.c.l.b16 %v38
  %v670 = vunpack.c.h.b16 %v38
  %v671 = vunpack.c.l.b16 %v39
  %v672 = vunpack.c.h.b16 %v39
  %v673 = vunpack.c.l.b16 %v40
  %v674 = vunpack.c.h.b16 %v40
  %v675 = vunpack.c.l.b16 %v41
  %v676 = vunpack.c.h.b16 %v41
  %v677 = vunpack.c.l.b16 %v42
  %v678 = vunpack.c.h.b16 %v42
  %v679 = vunpack.c.l.b16 %v43
  %v680 = vunpack.c.h.b16 %v43
  %v681 = vunpack.c.l.b16 %v44
  %v682 = vunpack.c.h.b16 %v44
  %v683 = vunpack.c.l.b16 %v45
  %v684 = vunpack.c.h.b16 %v45
  %v685 = vunpack.c.l.b16 %v46
  %v686 = vunpack.c.h.b16 %v46
  %v687 = vunpack.c.l.b16 %v47
  %v688 = vunpack.c.h.b16 %v47
  %v689 = vunpack.c.l.b16 %v48
  %v690 = vunpack.c.h.b16 %v48
  %v691 = vunpack.c.l.b16 %v49
  %v692 = vunpack.c.h.b16 %v49
  %v693 = vunpack.c.l.b16 %v50
  %v694 = vunpack.c.h.b16 %v50
  %v695 = vunpack.c.l.b16 %v51
  %v696 = vunpack.c.h.b16 %v51
  %v697 = vunpack.c.l.b16 %v52
  %v698 = vunpack.c.h.b16 %v52
  %v699 = vunpack.c.l.b16 %v53
  %v700 = vunpack.c.h.b16 %v53
  %v701 = vunpack.c.l.b16 %v54
  %v702 = vunpack.c.h.b16 %v54
  %v703 = vunpack.c.l.b16 %v55
  %v704 = vunpack.c.h.b16 %v55
  %v705 = vunpack.c.l.b16 %v56
  %v706 = vunpack.c.h.b16 %v56
  %v707 = vunpack.c.l.b16 %v57
  %v708 = vunpack.c.h.b16 %v57
  %v709 = vunpack.c.l.b16 %v58
  %v710 = vunpack.c.h.b16 %v58
  %v711 = vunpack.c.l.b16 %v59
  %v712 = vunpack.c.h.b16 %v59
  %v713 = vunpack.c.l.b16 %v60
  %v714 = vunpack.c.h.b16 %v60
  %v715 = vunpack.c.l.b16 %v61
  %v716 = vunpack.c.h.b16 %v61
  %v717 = vunpack.c.l.b16 %v62
  %v718 = vunpack.c.h.b16 %v62
  %v719 = vunpack.c.l.b16 %v63
  %v720 = vunpack.c.h.b16 %v63
  %v721 = vunpack.c.l.b16 %v64
  %v722 = vunpack.c.h.b16 %v64
  %v723 = vunpack.c.l.b16 %v65
  %v724 = vunpack.c.h.b16 %v65
  %v725 = vunpack.c.l.b16 %v66
  %v726 = vunpack.c.h.b16 %v66
  %v727 = vunpack.c.l.b16 %v67
  %v728 = vunpack.c.h.b16 %v67
  %v729 = vunpack.c.l.b16 %v68
  %v730 = vunpack.c.h.b16 %v68
  %v731 = vunpack.c.l.b16 %v69
  %v732 = vunpack.c.h.b16 %v69
  %v733 = vunpack.c.l.b16 %v70
  %v734 = vunpack.c.h.b16 %v70
  %v735 = vunpack.c.l.b16 %v71
  %v736 = vunpack.c.h.b16 %v71
  %v737 = vunpack.c.l.b16 %v72
  %v738 = vunpack.c.h.b16 %v72
  %v739 = vunpack.c.l.b16 %v73
  %v740 = vunpack.c.h.b16 %v73
  %v741 = vunpack.c.l.b16 %v74
  %v742 = vunpack.c.h.b16 %v74
  %v743 = vunpack.c.l.b16 %v75
  %v744 = vunpack.c.h.b16 %v75
  %v745 = vunpack.c.l.b16 %v76
  %v746 = vunpack.c.h.b16 %v76
  %v747 = vunpack.c.l.b16 %v77
  %v748 = vunpack.c.h.b16 %v77
  %v749 = vunpack.c.l.b16 %v78
  %v750 = vunpack.c.h.b16 %v78
  %v751 = vunpack.c.l.b16 %v79
  %v752 = vunpack.c.h.b16 %v79
  %v753 = vunpack.c.l.b16 %v80
  %v754 = vunpack.c.h.b16 %v80
  %v755 = vunpack.c.l.b16 %v81
  %v756 = vunpack.c.h.b16 %v81
  %v757 = vunpack.c.l.b16 %v82
  %v758 = vunpack.c.h.b16 %v82
  %v759 = vunpack.c.l.b16 %v83
  %v760 = vunpack.c.h.b16 %v83
  %v761 = vunpack.c.l.b16 %v84
  %v762 = vunpack.c.h.b16 %v84
  %v763 = vunpack.c.l.b16 %v85
  %v764 = vunpack.c.h.b16 %v85
  %v765 = vunpack.c.l.b16 %v86
  %v766 = vunpack.c.h.b16 %v86
  %v767 = vunpack.c.l.b16 %v87
  %v768 = vunpack.c.h.b16 %v87
  %v769 = vunpack.c.l.b16 %v88
  %v770 = vunpack.c.h.b16 %v88
  %v771 = vunpack.c.l.b16 %v89
  %v772 = vunpack.c.h.b16 %v89
  %v773 = vunpack.c.l.b16 %v90
  %v774 = vunpack.c.h.b16 %v90
  %v775 = vunpack.c.l.b16 %v91
  %v776 = vunpack.c.h.b16 %v91
  %v777 = vunpack.c.l.b16 %v92
  %v778 = vunpack.c.h.b16 %v92
  %v779 = vunpack.c.l.b16 %v93
  %v780 = vunpack.c.h.b16 %v93
  %v781 = vunpack.c.l.b16 %v94
  %v782 = vunpack.c.h.b16 %v94
  %v783 = vunpack.c.l.b16 %v95
  %v784 = vunpack.c.h.b16 %v95
  %v785 = vunpack.c.l.b16 %v96
  %v786 = vunpack.c.h.b16 %v96
  %v787 = vunpack.c.l.b16 %v97
  %v788 = vunpack.c.h.b16 %v97
  %v789 = vunpack.c.l.b16 %v98
  %v790 = vunpack.c.h.b16 %v98
  %v791 = vunpack.c.l.b16 %v99
  %v792 = vunpack.c.h.b16 %v99
  %v793 = vunpack.c.l.b16 %v100
  %v794 = vunpack.c.h.b16 %v100
  %v795 = vunpack.c.l.b16 %v101
  %v796 = vunpack.c.h.b16 %v101
  %v797 = vunpack.c.l.b16 %v102
  %v798 = vunpack.c.h.b16 %v102
  %v799 = vunpack.c.l.b16 %v103
  %v800 = vunpack.c.h.b16 %v103
  %v801 = vunpack.c.l.b16 %v104
  %v802 = vunpack.c.h.b16 %v104
  %v803 = vunpack.c.l.b16 %v105
  %v804 = vunpack.c.h.b16 %v105
  %v805 = vunpack.c.l.b16 %v106
  %v806 = vunpack.c.h.b16 %v106
  %v807 = vunpack.c.l.b16 %v107
  %v808 = vunpack.c.h.b16 %v107
  %v809 = vunpack.c.l.b16 %v108
  %v810 = vunpack.c.h.b16 %v108
  %v811 = vunpack.c.l.b16 %v109
  %v812 = vunpack.c.h.b16 %v109
  %v813 = vunpack.c.l.b16 %v110
  %v814 = vunpack.c.h.b16 %v110
  %v815 = vunpack.c.l.b16 %v111
  %v816 = vunpack.c.h.b16 %v111
  %v817 = vunpack.c.l.b16 %v112
  %v818 = vunpack.c.h.b16 %v112
  %v819 = vunpack.c.l.b16 %v113
  %v820 = vunpack.c.h.b16 %v113
  %v821 = vunpack.c.l.b16 %v114
  %v822 = vunpack.c.h.b16 %v114
  %v823 = vunpack.c.l.b16 %v115
  %v824 = vunpack.c.h.b16 %v115
  %v825 = vunpack.c.l.b16 %v116
  %v826 = vunpack.c.h.b16 %v116
  %v827 = vunpack.c.l.b16 %v117
  %v828 = vunpack.c.h.b16 %v117
  %v829 = vunpack.c.l.b16 %v118
  %v830 = vunpack.c.h.b16 %v118
  %v831 = vunpack.c.l.b16 %v119
  %v832 = vunpack.c.h.b16 %v119
  %v833 = vunpack.c.l.b16 %v120
  %v834 = vunpack.c.h.b16 %v120
  %v835 = vunpack.c.l.b16 %v121
  %v836 = vunpack.c.h.b16 %v121
  %v837 = vunpack.c.l.b16 %v122
  %v838 = vunpack.c.h.b16 %v122
  %v839 = vunpack.c.l.b16 %v123
  %v840 = vunpack.c.h.b16 %v123
  %v841 = vunpack.c.l.b16 %v124
  %v842 = vunpack.c.h.b16 %v124
  %v843 = vunpack.c.l.b16 %v125
  %v844 = vunpack.c.h.b16 %v125
  %v845 = vunpack.c.l.b16 %v126
  %v846 = vunpack.c.h.b16 %v126
  %v847 = vunpack.c.l.b16 %v127
  %v848 = vunpack.c.h.b16 %v127
  %v849 = vunpack.c.l.b16 %v128
  %v850 = vunpack.c.h.b16 %v128
  %v851 = vunpack.c.l.b16 %v129
  %v852 = vunpack.c.h.b16 %v129
  %v853 = vunpack.c.l.b16 %v130
  %v854 = vunpack.c.h.b16 %v130
  %v855 = vunpack.c.l.b16 %v131
  %v856 = vunpack.c.h.b16 %v131
  %v857 = vunpack.c.l.b16 %v132
  %v858 = vunpack.c.h.b16 %v132
  %v859 = vunpack.c.l.b16 %v133
  %v860 = vunpack.c.h.b16 %v133
  %v861 = vunpack.c.l.b16 %v134
  %v862 = vunpack.c.h.b16 %v134
  %v863 = vunpack.c.l.b16 %v135
  %v864 = vunpack.c.h.b16 %v135
  %v865 = vunpack.c.l.b16 %v136
  %v866 = vunpack.c.h.b16 %v136
  %v867 = vunpack.c.l.b16 %v137
  %v868 = vunpack.c.h.b16 %v137
  %v869 = vunpack.c.l.b16 %v138
  %v870 = vunpack.c.h.b16 %v138
  %v871 = vunpack.c.l.b16 %v139
  %v872 = vunpack.c.h.b16 %v139
  %v873 = vunpack.c.l.b16 %v140
  %v874 = vunpack.c.h.b16 %v140
  %v875 = vunpack.c.l.b16 %v141
  %v876 = vunpack.c.h.b16 %v141
  %v877 = vunpack.c.l.b16 %v142
  %v878 = vunpack.c.h.b16 %v142
  %v879 = vunpack.c.l.b16 %v143
  %v880 = vunpack.c.h.b16 %v143
  %v881 = vunpack.c.l.b16 %v144
  %v882 = vunpack.c.h.b16 %v144
  %v883 = vunpack.c.l.b16 %v145
  %v884 = vunpack.c.h.b16 %v145
  %v885 = vunpack.c.l.b16 %v146
  %v886 = vunpack.c.h.b16 %v146
  %v887 = vunpack.c.l.b16 %v147
  %v888 = vunpack.c.h.b16 %v147
  %v889 = vunpack.c.l.b16 %v148
  %v890 = vunpack.c.h.b16 %v148
  %v891 = vunpack.c.l.b16 %v149
  %v892 = vunpack.c.h.b16 %v149
  %v893 = vunpack.c.l.b16 %v150
  %v894 = vunpack.c.h.b16 %v150
  %v895 = vunpack.c.l.b16 %v151
  %v896 = vunpack.c.h.b16 %v151
  %v897 = vunpack.c.l.b16 %v152
  %v898 = vunpack.c.h.b16 %v152
  %v899 = vunpack.c.l.b16 %v153
  %v900 = vunpack.c.h.b16 %v153
  %v901 = vunpack.c.l.b16 %v154
  %v902 = vunpack.c.h.b16 %v154
  %v903 = vunpack.c.l.b16 %v155
  %v904 = vunpack.c.h.b16 %v155
  %v905 = vunpack.c.l.b16 %v156
  %v906 = vunpack.c.h.b16 %v156
  %v907 = vunpack.c.l.b16 %v157
  %v908 = vunpack.c.h.b16 %v157
  %v909 = vunpack.c.l.b16 %v158
  %v910 = vunpack.c.h.b16 %v158
  %v911 = vunpack.c.l.b16 %v159
  %v912 = vunpack.c.h.b16 %v159
  %v913 = vunpack.c.l.b16 %v160
  %v914 = vunpack.c.h.b16 %v160
  %v915 = vunpack.c.l.b16 %v161
  %v916 = vunpack.c.h.b16 %v161
  %v917 = vunpack.c.l.b16 %v162
  %v918 = vunpack.c.h.b16 %v162
  %v919 = vunpack.c.l.b16 %v163
  %v920 = vunpack.c.h.b16 %v163
  %v921 = vunpack.c.l.b16 %v164
  %v922 = vunpack.c.h.b16 %v164
  %v923 = vunpack.c.l.b16 %v165
  %v924 = vunpack.c.h.b16 %v165
  %v925 = vunpack.c.l.b16 %v166
  %v926 = vunpack.c.h.b16 %v166
  %v927 = vunpack.c.l.b16 %v167
  %v928 = vunpack.c.h.b16 %v167
  %v929 = vunpack.c.l.b16 %v168
  %v930 = vunpack.c.h.b16 %v168
  %v931 = vunpack.c.l.b16 %v169
  %v932 = vunpack.c.h.b16 %v169
  %v933 = vunpack.c.l.b16 %v170
  %v934 = vunpack.c.h.b16 %v170
  %v935 = vunpack.c.l.b16 %v171
  %v936 = vunpack.c.h.b16 %v171
  %v937 = vunpack.c.l.b16 %v172
  %v938 = vunpack.c.h.b16 %v172
  %v939 = vunpack.c.l.b16 %v173
  %v940 = vunpack.c.h.b16 %v173
  %v941 = vunpack.c.l.b16 %v174
  %v942 = vunpack.c.h.b16 %v174
  %v943 = vunpack.c.l.b16 %v175
  %v944 = vunpack.c.h.b16 %v175
  %v945 = vunpack.c.l.b16 %v176
  %v946 = vunpack.c.h.b16 %v176
  %v947 = vunpack.c.l.b16 %v177
  %v948 = vunpack.c.h.b16 %v177
  %v949 = vunpack.c.l.b16 %v178
  %v950 = vunpack.c.h.b16 %v178
  %v951 = vunpack.c.l.b16 %v179
  %v952 = vunpack.c.h.b16 %v179
  %v953 = vunpack.c.l.b16 %v180
  %v954 = vunpack.c.h.b16 %v180
  %v955 = vunpack.c.l.b16 %v181
  %v956 = vunpack.c.h.b16 %v181
  %v957 = vunpack.c.l.b16 %v182
  %v958 = vunpack.c.h.b16 %v182
  %v959 = vunpack.c.l.b16 %v183
  %v960 = vunpack.c.h.b16 %v183
  %v961 = vunpack.c.l.b16 %v184
  %v962 = vunpack.c.h.b16 %v184
  %v963 = vunpack.c.l.b16 %v185
  %v964 = vunpack.c.h.b16 %v185
  %v965 = vunpack.c.l.b16 %v186
  %v966 = vunpack.c.h.b16 %v186
  %v967 = vunpack.c.l.b16 %v187
  %v968 = vunpack.c.h.b16 %v187
  %v969 = vunpack.c.l.b16 %v188
  %v970 = vunpack.c.h.b16 %v188
  %v971 = vunpack.c.l.b16 %v189
  %v972 = vunpack.c.h.b16 %v189
  %v973 = vunpack.c.l.b16 %v190
  %v974 = vunpack.c.h.b16 %v190
  %v975 = vunpack.c.l.b16 %v191
  %v976 = vunpack.c.h.b16 %v191
  %v977 = vunpack.c.l.b16 %v192
  %v978 = vunpack.c.h.b16 %v192
  %v979 = vunpack.c.l.b16 %v193
  %v980 = vunpack.c.h.b16 %v193
  %v981 = vunpack.c.l.b16 %v194
  %v982 = vunpack.c.h.b16 %v194
  %v983 = vunpack.c.l.b16 %v195
  %v984 = vunpack.c.h.b16 %v195
  %v985 = vunpack.c.l.b16 %v196
  %v986 = vunpack.c.h.b16 %v196
  %v987 = vunpack.c.l.b16 %v197
  %v988 = vunpack.c.h.b16 %v197
  %v989 = vunpack.c.l.b16 %v198
  %v990 = vunpack.c.h.b16 %v198
  %v991 = vunpack.c.l.b16 %v199
  %v992 = vunpack.c.h.b16 %v199
  %v993 = vunpack.c.l.b16 %v200
  %v994 = vunpack.c.h.b16 %v200
  %v995 = vunpack.c.l.b16 %v201
  %v996 = vunpack.c.h.b16 %v201
  %v997 = vunpack.c.l.b16 %v202
  %v998 = vunpack.c.h.b16 %v202
  %v999 = vunpack.c.l.b16 %v203
  %v1000 = vunpack.c.h.b16 %v203
  %v1001 = vunpack.c.l.b16 %v204
  %v1002 = vunpack.c.h.b16 %v204
  %v1003 = vunpack.c.l.b16 %v205
  %v1004 = vunpack.c.h.b16 %v205
  %v1005 = vunpack.c.l.b16 %v206
  %v1006 = vunpack.c.h.b16 %v206
  %v1007 = vunpack.c.l.b16 %v207
  %v1008 = vunpack.c.h.b16 %v207
  %v1009 = vunpack.c.l.b16 %v208
  %v1010 = vunpack.c.h.b16 %v208
  %v1011 = vunpack.c.l.b16 %v209
  %v1012 = vunpack.c.h.b16 %v209
  %v1013 = vunpack.c.l.b16 %v210
  %v1014 = vunpack.c.h.b16 %v210
  %v1015 = vunpack.c.l.b16 %v211
  %v1016 = vunpack.c.h.b16 %v211
  %v1017 = vunpack.c.l.b16 %v212
  %v1018 = vunpack.c.h.b16 %v212
  %v1019 = vunpack.c.l.b16 %v213
  %v1020 = vunpack.c.h.b16 %v213
  %v1021 = vunpack.c.l.b16 %v214
  %v1022 = vunpack.c.h.b16 %v214
  %v1023 = vunpack.c.l.b16 %v215
  %v1024 = vunpack.c.h.b16 %v215
  %v1025 = vunpack.c.l.b16 %v216
  %v1026 = vunpack.c.h.b16 %v216
  %v1027 = vunpack.c.l.b16 %v217
  %v1028 = vunpack.c.h.b16 %v217
  %v1029 = vunpack.c.l.b16 %v218
  %v1030 = vunpack.c.h.b16 %v218
  %v1031 = vunpack.c.l.b16 %v219
  %v1032 = vunpack.c.h.b16 %v219
  %v1033 = vunpack.c.l.b16 %v220
  %v1034 = vunpack.c.h.b16 %v220
  %v1035 = vunpack.c.l.b16 %v221
  %v1036 = vunpack.c.h.b16 %v221
  %v1037 = vunpack.c.l.b16 %v222
  %v1038 = vunpack.c.h.b16 %v222
  %v1039 = vunpack.c.l.b16 %v223
  %v1040 = vunpack.c.h.b16 %v223
  %v1041 = vunpack.c.l.b16 %v224
  %v1042 = vunpack.c.h.b16 %v224
  %v1043 = vunpack.c.l.b16 %v225
  %v1044 = vunpack.c.h.b16 %v225
  %v1045 = vunpack.c.l.b16 %v226
  %v1046 = vunpack.c.h.b16 %v226
  %v1047 = vunpack.c.l.b16 %v227
  %v1048 = vunpack.c.h.b16 %v227
  %v1049 = vunpack.c.l.b16 %v228
  %v1050 = vunpack.c.h.b16 %v228
  %v1051 = vunpack.c.l.b16 %v229
  %v1052 = vunpack.c.h.b16 %v229
  %v1053 = vunpack.c.l.b16 %v230
  %v1054 = vunpack.c.h.b16 %v230
  %v1055 = vunpack.c.l.b16 %v231
  %v1056 = vunpack.c.h.b16 %v231
  %v1057 = vunpack.c.l.b16 %v232
  %v1058 = vunpack.c.h.b16 %v232
  %v1059 = vunpack.c.l.b16 %v233
  %v1060 = vunpack.c.h.b16 %v233
  %v1061 = vunpack.c.l.b16 %v234
  %v1062 = vunpack.c.h.b16 %v234
  %v1063 = vunpack.c.l.b16 %v235
  %v1064 = vunpack.c.h.b16 %v235
  %v1065 = vunpack.c.l.b16 %v236
  %v1066 = vunpack.c.h.b16 %v236
  %v1067 = vunpack.c.l.b16 %v237
  %v1068 = vunpack.c.h.b16 %v237
  %v1069 = vunpack.c.l.b16 %v238
  %v1070 = vunpack.c.h.b16 %v238
  %v1071 = vunpack.c.l.b16 %v239
  %v1072 = vunpack.c.h.b16 %v239
  %v1073 = vunpack.c.l.b16 %v240
  %v1074 = vunpack.c.h.b16 %v240
  %v1075 = vunpack.c.l.b16 %v241
  %v1076 = vunpack.c.h.b16 %v241
  %v1077 = vunpack.c.l.b16 %v242
  %v1078 = vunpack.c.h.b16 %v242
  %v1079 = vunpack.c.l.b16 %v243
  %v1080 = vunpack.c.h.b16 %v243
  %v1081 = vunpack.c.l.b16 %v244
  %v1082 = vunpack.c.h.b16 %v244
  %v1083 = vunpack.c.l.b16 %v245
  %v1084 = vunpack.c.h.b16 %v245
  %v1085 = vunpack.c.l.b16 %v246
  %v1086 = vunpack.c.h.b16 %v246
  %v1087 = vunpack.c.l.b16 %v247
  %v1088 = vunpack.c.h.b16 %v247
  %v1089 = vunpack.c.l.b16 %v248
  %v1090 = vunpack.c.h.b16 %v248
  %v1091 = vunpack.c.l.b16 %v249
  %v1092 = vunpack.c.h.b16 %v249
  %v1093 = vunpack.c.l.b16 %v250
  %v1094 = vunpack.c.h.b16 %v250
  %v1095 = vunpack.c.l.b16 %v251
  %v1096 = vunpack.c.h.b16 %v251
  %v1097 = vunpack.c.l.b16 %v252
  %v1098 = vunpack.c.h.b16 %v252
  %v1099 = vunpack.c.l.b16 %v253
  %v1100 = vunpack.c.h.b16 %v253
  %v1101 = vunpack.c.l.b16 %v254
  %v1102 = vunpack.c.h.b16 %v254
  %v1103 = vunpack.c.l.b16 %v255
  %v1104 = vunpack.c.h.b16 %v255
  %v1105 = vunpack.c.l.b16 %v256
  %v1106 = vunpack.c.h.b16 %v256
  %v1107 = vunpack.c.l.b16 %v257
  %v1108 = vunpack.c.h.b16 %v257
  %v1109 = vunpack.c.l.b16 %v258
  %v1110 = vunpack.c.h.b16 %v258
  %v1111 = vunpack.c.l.b16 %v259
  %v1112 = vunpack.c.h.b16 %v259
  %v1113 = vunpack.c.l.b16 %v260
  %v1114 = vunpack.c.h.b16 %v260
  %v1115 = vunpack.c.l.b16 %v261
  %v1116 = vunpack.c.h.b16 %v261
  %v1117 = vunpack.c.l.b16 %v262
  %v1118 = vunpack.c.h.b16 %v262
  %v1119 = vunpack.c.l.b16 %v263
  %v1120 = vunpack.c.h.b16 %v263
  %v1121 = vunpack.c.l.b16 %v264
  %v1122 = vunpack.c.h.b16 %v264
  %v1123 = vunpack.c.l.b16 %v265
  %v1124 = vunpack.c.h.b16 %v265
  %v1125 = vunpack.c.l.b16 %v266
  %v1126 = vunpack.c.h.b16 %v266
  %v1127 = vunpack.c.l.b16 %v267
  %v1128 = vunpack.c.h.b16 %v267
  %v1129 = vunpack.c.l.b16 %v268
  %v1130 = vunpack.c.h.b16 %v268
  %v1131 = vunpack.c.l.b16 %v269
  %v1132 = vunpack.c.h.b16 %v269
  %v1133 = vunpack.c.l.b16 %v270
  %v1134 = vunpack.c.h.b16 %v270
  %v1135 = vunpack.c.l.b16 %v271
  %v1136 = vunpack.c.h.b16 %v271
  %v1137 = vunpack.c.l.b16 %v272
  %v1138 = vunpack.c.h.b16 %v272
  %v1139 = vunpack.c.l.b16 %v273
  %v1140 = vunpack.c.h.b16 %v273
  %v1141 = vunpack.c.l.b16 %v274
  %v1142 = vunpack.c.h.b16 %v274
  %v1143 = vunpack.c.l.b16 %v275
  %v1144 = vunpack.c.h.b16 %v275
  %v1145 = vunpack.c.l.b16 %v276
  %v1146 = vunpack.c.h.b16 %v276
  %v1147 = vunpack.c.l.b16 %v277
  %v1148 = vunpack.c.h.b16 %v277
  %v1149 = vunpack.c.l.b16 %v278
  %v1150 = vunpack.c.h.b16 %v278
  %v1151 = vunpack.c.l.b16 %v279
  %v1152 = vunpack.c.h.b16 %v279
  %v1153 = vunpack.c.l.b16 %v280
  %v1154 = vunpack.c.h.b16 %v280
  %v1155 = vunpack.c.l.b16 %v281
  %v1156 = vunpack.c.h.b16 %v281
  %v1157 = vunpack.c.l.b16 %v282
  %v1158 = vunpack.c.h.b16 %v282
  %v1159 = vunpack.c.l.b16 %v283
  %v1160 = vunpack.c.h.b16 %v283
  %v1161 = vunpack.c.l.b16 %v284
  %v1162 = vunpack.c.h.b16 %v284
  %v1163 = vunpack.c.l.b16 %v285
  %v1164 = vunpack.c.h.b16 %v285
  %v1165 = vunpack.c.l.b16 %v286
  %v1166 = vunpack.c.h.b16 %v286
  %v1167 = vunpack.c.l.b16 %v287
  %v1168 = vunpack.c.h.b16 %v287
  %v1169 = vunpack.c.l.b16 %v288
  %v1170 = vunpack.c.h.b16 %v288
  %v1171 = vunpack.c.l.b16 %v289
  %v1172 = vunpack.c.h.b16 %v289
  %v1173 = vunpack.c.l.b16 %v290
  %v1174 = vunpack.c.h.b16 %v290
  %v1175 = vunpack.c.l.b16 %v291
  %v1176 = vunpack.c.h.b16 %v291
  %v1177 = vunpack.c.l.b16 %v292
  %v1178 = vunpack.c.h.b16 %v292
  %v1179 = vunpack.c.l.b16 %v293
  %v1180 = vunpack.c.h.b16 %v293
  %v1181 = vunpack.c.l.b16 %v294
  %v1182 = vunpack.c.h.b16 %v294
  %v1183 = vunpack.c.l.b16 %v295
  %v1184 = vunpack.c.h.b16 %v295
  %v1185 = vunpack.c.l.b16 %v296
  %v1186 = vunpack.c.h.b16 %v296
  %v1187 = vunpack.c.l.b16 %v297
  %v1188 = vunpack.c.h.b16 %v297
  %v1189 = vunpack.c.l.b16 %v298
  %v1190 = vunpack.c.h.b16 %v298
  %v1191 = vunpack.c.l.b16 %v299
  %v1192 = vunpack.c.h.b16 %v299
  %v1193 = vunpack.c.l.b16 %v300
  %v1194 = vunpack.c.h.b16 %v300
  %v1195 = vunpack.c.l.b16 %v301
  %v1196 = vunpack.c.h.b16 %v301
  %v1197 = vunpack.c.l.b16 %v302
  %v1198 = vunpack.c.h.b16 %v302
  %v1199 = vunpack.c.l.b16 %v303
  %v1200 = vunpack.c.h.b16 %v303
  %v1201 = vunpack.c.l.b16 %v304
  %v1202 = vunpack.c.h.b16 %v304
  %v1203 = vunpack.c.l.b16 %v305
  %v1204 = vunpack.c.h.b16 %v305
  %v1205 = vunpack.c.l.b16 %v306
  %v1206 = vunpack.c.h.b16 %v306
  %v1207 = vunpack.c.l.b16 %v307
  %v1208 = vunpack.c.h.b16 %v307
  %v1209 = vunpack.c.l.b16 %v308
  %v1210 = vunpack.c.h.b16 %v308
  %v1211 = vunpack.c.l.b16 %v309
  %v1212 = vunpack.c.h.b16 %v309
  %v1213 = vunpack.c.l.b16 %v310
  %v1214 = vunpack.c.h.b16 %v310
  %v1215 = vunpack.c.l.b16 %v311
  %v1216 = vunpack.c.h.b16 %v311
  %v1217 = vunpack.c.l.b16 %v312
  %v1218 = vunpack.c.h.b16 %v312
  %v1219 = vpack.c.b16 %v647, %v643
  %v1220 = vpack.c.b16 %v648, %v644
  %v1221 = vpack.c.b16 %v649, %v645
  %v1222 = vpack.c.b16 %v650, %v646
  %v1223 = vpack.c.b16 %v655, %v651
  %v1224 = vpack.c.b16 %v656, %v652
  %v1225 = vpack.c.b16 %v657, %v653
  %v1226 = vpack.c.b16 %v658, %v654
  %v1227 = vpack.c.b16 %v663, %v659
  %v1228 = vpack.c.b16 %v664, %v660
  %v1229 = vpack.c.b16 %v665, %v661
  %v1230 = vpack.c.b16 %v666, %v662
  %v1231 = vpack.c.b16 %v671, %v667
  %v1232 = vpack.c.b16 %v672, %v668
  %v1233 = vpack.c.b16 %v673, %v669
  %v1234 = vpack.c.b16 %v674, %v670
  %v1235 = vpack.c.b16 %v679, %v675
  %v1236 = vpack.c.b16 %v680, %v676
  %v1237 = vpack.c.b16 %v681, %v677
  %v1238 = vpack.c.b16 %v682, %v678
  %v1239 = vpack.c.b16 %v687, %v683
  %v1240 = vpack.c.b16 %v688, %v684
  %v1241 = vpack.c.b16 %v689, %v685
  %v1242 = vpack.c.b16 %v690, %v686
  %v1243 = vpack.c.b16 %v695, %v691
  %v1244 = vpack.c.b16 %v696, %v692
  %v1245 = vpack.c.b16 %v697, %v693
  %v1246 = vpack.c.b16 %v698, %v694
  %v1247 = vpack.c.b16 %v703, %v699
  %v1248 = vpack.c.b16 %v704, %v700
  %v1249 = vpack.c.b16 %v705, %v701
  %v1250 = vpack.c.b16 %v706, %v702
  %v1251 = vpack.c.b16 %v711, %v707
  %v1252 = vpack.c.b16 %v712, %v708
  %v1253 = vpack.c.b16 %v713, %v709
  %v1254 = vpack.c.b16 %v714, %v710
  %v1255 = vpack.c.b16 %v719, %v715
  %v1256 = vpack.c.b16 %v720, %v716
  %v1257 = vpack.c.b16 %v721, %v717
  %v1258 = vpack.c.b16 %v722, %v718
  %v1259 = vpack.c.b16 %v727, %v723
  %v1260 = vpack.c.b16 %v728, %v724
  %v1261 = vpack.c.b16 %v729, %v725
  %v1262 = vpack.c.b16 %v730, %v726
  %v1263 = vpack.c.b16 %v735, %v731
  %v1264 = vpack.c.b16 %v736, %v732
  %v1265 = vpack.c.b16 %v737, %v733
  %v1266 = vpack.c.b16 %v738, %v734
  %v1267 = vpack.c.b16 %v743, %v739
  %v1268 = vpack.c.b16 %v744, %v740
  %v1269 = vpack.c.b16 %v745, %v741
  %v1270 = vpack.c.b16 %v746, %v742
  %v1271 = vpack.c.b16 %v751, %v747
  %v1272 = vpack.c.b16 %v752, %v748
  %v1273 = vpack.c.b16 %v753, %v749
  %v1274 = vpack.c.b16 %v754, %v750
  %v1275 = vpack.c.b16 %v759, %v755
  %v1276 = vpack.c.b16 %v760, %v756
  %v1277 = vpack.c.b16 %v761, %v757
  %v1278 = vpack.c.b16 %v762, %v758
  %v1279 = vpack.c.b16 %v767, %v763
  %v1280 = vpack.c.b16 %v768, %v764
  %v1281 = vpack.c.b16 %v769, %v765
  %v1282 = vpack.c.b16 %v770, %v766
  %v1283 = vpack.c.b16 %v775, %v771
  %v1284 = vpack.c.b16 %v776, %v772
  %v1285 = vpack.c.b16 %v777, %v773
  %v1286 = vpack.c.b16 %v778, %v774
  %v1287 = vpack.c.b16 %v783, %v779
  %v1288 = vpack.c.b16 %v784, %v780
  %v1289 = vpack.c.b16 %v785, %v781
  %v1290 = vpack.c.b16 %v786, %v782
  %v1291 = vpack.c.b16 %v791, %v787
  %v1292 = vpack.c.b16 %v792, %v788
  %v1293 = vpack.c.b16 %v793, %v789
  %v1294 = vpack.c.b16 %v794, %v790
  %v1295 = vpack.c.b16 %v799, %v795
  %v1296 = vpack.c.b16 %v800, %v796
  %v1297 = vpack.c.b16 %v801, %v797
  %v1298 = vpack.c.b16 %v802, %v798
  %v1299 = vpack.c.b16 %v807, %v803
  %v1300 = vpack.c.b16 %v808, %v804
  %v1301 = vpack.c.b16 %v809, %v805
  %v1302 = vpack.c.b16 %v810, %v806
  %v1303 = vpack.c.b16 %v815, %v811
  %v1304 = vpack.c.b16 %v816, %v812
  %v1305 = vpack.c.b16 %v817, %v813
  %v1306 = vpack.c.b16 %v818, %v814
  %v1307 = vpack.c.b16 %v823, %v819
  %v1308 = vpack.c.b16 %v824, %v820
  %v1309 = vpack.c.b16 %v825, %v821
  %v1310 = vpack.c.b16 %v826, %v822
  %v1311 = vpack.c.b16 %v831, %v827
  %v1312 = vpack.c.b16 %v832, %v828
  %v1313 = vpack.c.b16 %v833, %v829
  %v1314 = vpack.c.b16 %v834, %v830
  %v1315 = vpack.c.b16 %v839, %v835
  %v1316 = vpack.c.b16 %v840, %v836
  %v1317 = vpack.c.b16 %v841, %v837
  %v1318 = vpack.c.b16 %v842, %v838
  %v1319 = vpack.c.b16 %v847, %v843
  %v1320 = vpack.c.b16 %v848, %v844
  %v1321 = vpack.c.b16 %v849, %v845
  %v1322 = vpack.c.b16 %v850, %v846
  %v1323 = vpack.c.b16 %v855, %v851
  %v1324 = vpack.c.b16 %v856, %v852
  %v1325 = vpack.c.b16 %v857, %v853
  %v1326 = vpack.c.b16 %v858, %v854
  %v1327 = vpack.c.b16 %v863, %v859
  %v1328 = vpack.c.b16 %v864, %v860
  %v1329 = vpack.c.b16 %v865, %v861
  %v1330 = vpack.c.b16 %v866, %v862
  %v1331 = vpack.c.b16 %v871, %v867
  %v1332 = vpack.c.b16 %v872, %v868
  %v1333 = vpack.c.b16 %v873, %v869
  %v1334 = vpack.c.b16 %v874, %v870
  %v1335 = vpack.c.b16 %v879, %v875
  %v1336 = vpack.c.b16 %v880, %v876
  %v1337 = vpack.c.b16 %v881, %v877
  %v1338 = vpack.c.b16 %v882, %v878
  %v1339 = vpack.c.b16 %v887, %v883
  %v1340 = vpack.c.b16 %v888, %v884
  %v1341 = vpack.c.b16 %v889, %v885
  %v1342 = vpack.c.b16 %v890, %v886
  %v1343 = vpack.c.b16 %v895, %v891
  %v1344 = vpack.c.b16 %v896, %v892
  %v1345 = vpack.c.b16 %v897, %v893
  %v1346 = vpack.c.b16 %v898, %v894
  %v1347 = vpack.c.b16 %v903, %v899
  %v1348 = vpack.c.b16 %v904, %v900
  %v1349 = vpack.c.b16 %v905, %v901
  %v1350 = vpack.c.b16 %v906, %v902
  %v1351 = vpack.c.b16 %v911, %v907
  %v1352 = vpack.c.b16 %v912, %v908
  %v1353 = vpack.c.b16 %v913, %v909
  %v1354 = vpack.c.b16 %v914, %v910
  %v1355 = vpack.c.b16 %v919, %v915
  %v1356 = vpack.c.b16 %v920, %v916
  %v1357 = vpack.c.b16 %v921, %v917
  %v1358 = vpack.c.b16 %v922, %v918
  %v1359 = vpack.c.b16 %v927, %v923
  %v1360 = vpack.c.b16 %v928, %v924
  %v1361 = vpack.c.b16 %v929, %v925
  %v1362 = vpack.c.b16 %v930, %v926
  %v1363 = vpack.c.b16 %v935, %v931
  %v1364 = vpack.c.b16 %v936, %v932
  %v1365 = vpack.c.b16 %v937, %v933
  %v1366 = vpack.c.b16 %v938, %v934
  %v1367 = vpack.c.b16 %v943, %v939
  %v1368 = vpack.c.b16 %v944, %v940
  %v1369 = vpack.c.b16 %v945, %v941
  %v1370 = vpack.c.b16 %v946, %v942
  %v1371 = vpack.c.b16 %v951, %v947
  %v1372 = vpack.c.b16 %v952, %v948
  %v1373 = vpack.c.b16 %v953, %v949
  %v1374 = vpack.c.b16 %v954, %v950
  %v1375 = vpack.c.b16 %v959, %v955
  %v1376 = vpack.c.b16 %v960, %v956
  %v1377 = vpack.c.b16 %v961, %v957
  %v1378 = vpack.c.b16 %v962, %v958
  %v1379 = vpack.c.b16 %v967, %v963
  %v1380 = vpack.c.b16 %v968, %v964
  %v1381 = vpack.c.b16 %v969, %v965
  %v1382 = vpack.c.b16 %v970, %v966
  %v1383 = vpack.c.b16 %v975, %v971
  %v1384 = vpack.c.b16 %v976, %v972
  %v1385 = vpack.c.b16 %v977, %v973
  %v1386 = vpack.c.b16 %v978, %v974
  %v1387 = vpack.c.b16 %v983, %v979
  %v1388 = vpack.c.b16 %v984, %v980
  %v1389 = vpack.c.b16 %v985, %v981
  %v1390 = vpack.c.b16 %v986, %v982
  %v1391 = vpack.c.b16 %v991, %v987
  %v1392 = vpack.c.b16 %v992, %v988
  %v1393 = vpack.c.b16 %v993, %v989
  %v1394 = vpack.c.b16 %v994, %v990
  %v1395 = vpack.c.b16 %v999, %v995
  %v1396 = vpack.c.b16 %v1000, %v996
  %v1397 = vpack.c.b16 %v1001, %v997
  %v1398 = vpack.c.b16 %v1002, %v998
  %v1399 = vpack.c.b16 %v1007, %v1003
  %v1400 = vpack.c.b16 %v1008, %v1004
  %v1401 = vpack.c.b16 %v1009, %v1005
  %v1402 = vpack.c.b16 %v1010, %v1006
  %v1403 = vpack.c.b16 %v1015, %v1011
  %v1404 = vpack.c.b16 %v1016, %v1012
  %v1405 = vpack.c.b16 %v1017, %v1013
  %v1406 = vpack.c.b16 %v1018, %v1014
  %v1407 = vpack.c.b16 %v1023, %v1019
  %v1408 = vpack.c.b16 %v1024, %v1020
  %v1409 = vpack.c.b16 %v1025, %v1021
  %v1410 = vpack.c.b16 %v1026, %v1022
  %v1411 = vpack.c.b16 %v1031, %v1027
  %v1412 = vpack.c.b16 %v1032, %v1028
  %v1413 = vpack.c.b16 %v1033, %v1029
  %v1414 = vpack.c.b16 %v1034, %v1030
  %v1415 = vpack.c.b16 %v1039, %v1035
  %v1416 = vpack.c.b16 %v1040, %v1036
  %v1417 = vpack.c.b16 %v1041, %v1037
  %v1418 = vpack.c.b16 %v1042, %v1038
  %v1419 = vpack.c.b16 %v1047, %v1043
  %v1420 = vpack.c.b16 %v1048, %v1044
  %v1421 = vpack.c.b16 %v1049, %v1045
  %v1422 = vpack.c.b16 %v1050, %v1046
  %v1423 = vpack.c.b16 %v1055, %v1051
  %v1424 = vpack.c.b16 %v1056, %v1052
  %v1425 = vpack.c.b16 %v1057, %v1053
  %v1426 = vpack.c.b16 %v1058, %v1054
  %v1427 = vpack.c.b16 %v1063, %v1059
  %v1428 = vpack.c.b16 %v1064, %v1060
  %v1429 = vpack.c.b16 %v1065, %v1061
  %v1430 = vpack.c.b16 %v1066, %v1062
  %v1431 = vpack.c.b16 %v1071, %v1067
  %v1432 = vpack.c.b16 %v1072, %v1068
  %v1433 = vpack.c.b16 %v1073, %v1069
  %v1434 = vpack.c.b16 %v1074, %v1070
  %v1435 = vpack.c.b16 %v1079, %v1075
  %v1436 = vpack.c.b16 %v1080, %v1076
  %v1437 = vpack.c.b16 %v1081, %v1077
  %v1438 = vpack.c.b16 %v1082, %v1078
  %v1439 = vpack.c.b16 %v1087, %v1083
  %v1440 = vpack.c.b16 %v1088, %v1084
  %v1441 = vpack.c.b16 %v1089, %v1085
  %v1442 = vpack.c.b16 %v1090, %v1086
  %v1443 = vpack.c.b16 %v1095, %v1091
  %v1444 = vpack.c.b16 %v1096, %v1092
  %v1445 = vpack.c.b16 %v1097, %v1093
  %v1446 = vpack.c.b16 %v1098, %v1094
  %v1447 = vpack.c.b16 %v1103, %v1099
  %v1448 = vpack.c.b16 %v1104, %v1100
  %v1449 = vpack.c.b16 %v1105, %v1101
  %v1450 = vpack.c.b16 %v1106, %v1102
  %v1451 = vpack.c.b16 %v1111, %v1107
  %v1452 = vpack.c.b16 %v1112, %v1108
  %v1453 = vpack.c.b16 %v1113, %v1109
  %v1454 = vpack.c.b16 %v1114, %v1110
  %v1455 = vpack.c.b16 %v1119, %v1115
  %v1456 = vpack.c.b16 %v1120, %v1116
  %v1457 = vpack.c.b16 %v1121, %v1117
  %v1458 = vpack.c.b16 %v1122, %v1118
  %v1459 = vpack.c.b16 %v1127, %v1123
  %v1460 = vpack.c.b16 %v1128, %v1124
  %v1461 = vpack.c.b16 %v1129, %v1125
  %v1462 = vpack.c.b16 %v1130, %v1126
  %v1463 = vpack.c.b16 %v1135, %v1131
  %v1464 = vpack.c.b16 %v1136, %v1132
  %v1465 = vpack.c.b16 %v1137, %v1133
  %v1466 = vpack.c.b16 %v1138, %v1134
  %v1467 = vpack.c.b16 %v1143, %v1139
  %v1468 = vpack.c.b16 %v1144, %v1140
  %v1469 = vpack.c.b16 %v1145, %v1141
  %v1470 = vpack.c.b16 %v1146, %v1142
  %v1471 = vpack.c.b16 %v1151, %v1147
  %v1472 = vpack.c.b16 %v1152, %v1148
  %v1473 = vpack.c.b16 %v1153, %v1149
  %v1474 = vpack.c.b16 %v1154, %v1150
  %v1475 = vpack.c.b16 %v1159, %v1155
  %v1476 = vpack.c.b16 %v1160, %v1156
  %v1477 = vpack.c.b16 %v1161, %v1157
  %v1478 = vpack.c.b16 %v1162, %v1158
  %v1479 = vpack.c.b16 %v1167, %v1163
  %v1480 = vpack.c.b16 %v1168, %v1164
  %v1481 = vpack.c.b16 %v1169, %v1165
  %v1482 = vpack.c.b16 %v1170, %v1166
  %v1483 = vpack.c.b16 %v1175, %v1171
  %v1484 = vpack.c.b16 %v1176, %v1172
  %v1485 = vpack.c.b16 %v1177, %v1173
  %v1486 = vpack.c.b16 %v1178, %v1174
  %v1487 = vpack.c.b16 %v1183, %v1179
  %v1488 = vpack.c.b16 %v1184, %v1180
  %v1489 = vpack.c.b16 %v1185, %v1181
  %v1490 = vpack.c.b16 %v1186, %v1182
  %v1491 = vpack.c.b16 %v1191, %v1187
  %v1492 = vpack.c.b16 %v1192, %v1188
  %v1493 = vpack.c.b16 %v1193, %v1189
  %v1494 = vpack.c.b16 %v1194, %v1190
  %v1495 = vpack.c.b16 %v1199, %v1195
  %v1496 = vpack.c.b16 %v1200, %v1196
  %v1497 = vpack.c.b16 %v1201, %v1197
  %v1498 = vpack.c.b16 %v1202, %v1198
  %v1499 = vpack.c.b16 %v1207, %v1203
  %v1500 = vpack.c.b16 %v1208, %v1204
  %v1501 = vpack.c.b16 %v1209, %v1205
  %v1502 = vpack.c.b16 %v1210, %v1206
  %v1503 = vpack.c.b16 %v1215, %v1211
  %v1504 = vpack.c.b16 %v1216, %v1212
  %v1505 = vpack.c.b16 %v1217, %v1213
  %v1506 = vpack.c.b16 %v1218, %v1214
  %1795 = vmatpush.bf16.msra.mxu0 %v1247
  %1796 = vmatpush.bf16.msra.mxu0 %v1243
  %1797 = vmatpush.bf16.msra.mxu0 %v1239
  %1798 = vmatpush.bf16.msra.mxu0 %v1235
  %1799 = vmatpush.bf16.msra.mxu0 %v1231
  %1800 = vmatpush.bf16.msra.mxu0 %v1227
  %1801 = vmatpush.bf16.msra.mxu0 %v1223
  %1802 = vmatpush.bf16.msra.mxu0 %v1219
  %1803 = vmatmul.bf16.gmra.mxu0 %v337
  %v1804 = vpop.f32.mrf.mxu0
  %v1805 = vadd.f32 %v315, %v1804
  %v1806 = vpop.f32.mrf.mxu0
  %1807 = vdwg.mxu0
  %1808 = vmatpush.bf16.msra.mxu0 %v1279
  %1809 = vmatpush.bf16.msra.mxu0 %v1275
  %1810 = vmatpush.bf16.msra.mxu0 %v1271
  %1811 = vmatpush.bf16.msra.mxu0 %v1267
  %1812 = vmatpush.bf16.msra.mxu0 %v1263
  %1813 = vmatpush.bf16.msra.mxu0 %v1259
  %1814 = vmatpush.bf16.msra.mxu0 %v1255
  %1815 = vmatpush.bf16.msra.mxu0 %v1251
  %1816 = vmatmul.bf16.gmra.mxu0 %v338
  %v1817 = vpop.f32.mrf.mxu0
  %v1818 = vadd.f32 %v1805, %v1817
  %v1819 = vpop.f32.mrf.mxu0
  %1820 = vdwg.mxu0
  %1821 = vmatpush.bf16.msra.mxu0 %v1311
  %1822 = vmatpush.bf16.msra.mxu0 %v1307
  %1823 = vmatpush.bf16.msra.mxu0 %v1303
  %1824 = vmatpush.bf16.msra.mxu0 %v1299
  %1825 = vmatpush.bf16.msra.mxu0 %v1295
  %1826 = vmatpush.bf16.msra.mxu0 %v1291
  %1827 = vmatpush.bf16.msra.mxu0 %v1287
  %1828 = vmatpush.bf16.msra.mxu0 %v1283
  %1829 = vmatmul.bf16.gmra.mxu0 %v339
  %v1830 = vpop.f32.mrf.mxu0
  %v1831 = vadd.f32 %v1818, %v1830
  %v1832 = vpop.f32.mrf.mxu0
  %1833 = vdwg.mxu0
  %1834 = vmatpush.bf16.msra.mxu0 %v1343
  %1835 = vmatpush.bf16.msra.mxu0 %v1339
  %1836 = vmatpush.bf16.msra.mxu0 %v1335
  %1837 = vmatpush.bf16.msra.mxu0 %v1331
  %1838 = vmatpush.bf16.msra.mxu0 %v1327
  %1839 = vmatpush.bf16.msra.mxu0 %v1323
  %1840 = vmatpush.bf16.msra.mxu0 %v1319
  %1841 = vmatpush.bf16.msra.mxu0 %v1315
  %1842 = vmatmul.bf16.gmra.mxu0 %v340
  %v1843 = vpop.f32.mrf.mxu0
  %v1844 = vadd.f32 %v1831, %v1843
  %v1845 = vpop.f32.mrf.mxu0
  %1846 = vdwg.mxu0
  %1847 = vmatpush.bf16.msra.mxu0 %v1375
  %1848 = vmatpush.bf16.msra.mxu0 %v1371
  %1849 = vmatpush.bf16.msra.mxu0 %v1367
  %1850 = vmatpush.bf16.msra.mxu0 %v1363
  %1851 = vmatpush.bf16.msra.mxu0 %v1359
  %1852 = vmatpush.bf16.msra.mxu0 %v1355
  %1853 = vmatpush.bf16.msra.mxu0 %v1351
  %1854 = vmatpush.bf16.msra.mxu0 %v1347
  %1855 = vmatmul.bf16.gmra.mxu0 %v341
  %v1856 = vpop.f32.mrf.mxu0
  %v1857 = vadd.f32 %v1844, %v1856
  %v1858 = vpop.f32.mrf.mxu0
  %1859 = vdwg.mxu0
  %1860 = vmatpush.bf16.msra.mxu0 %v1407
  %1861 = vmatpush.bf16.msra.mxu0 %v1403
  %1862 = vmatpush.bf16.msra.mxu0 %v1399
  %1863 = vmatpush.bf16.msra.mxu0 %v1395
  %1864 = vmatpush.bf16.msra.mxu0 %v1391
  %1865 = vmatpush.bf16.msra.mxu0 %v1387
  %1866 = vmatpush.bf16.msra.mxu0 %v1383
  %1867 = vmatpush.bf16.msra.mxu0 %v1379
  %1868 = vmatmul.bf16.gmra.mxu0 %v342
  %v1869 = vpop.f32.mrf.mxu0
  %v1870 = vadd.f32 %v1857, %v1869
  %v1871 = vpop.f32.mrf.mxu0
  %1872 = vdwg.mxu0
  %1873 = vmatpush.bf16.msra.mxu0 %v1439
  %1874 = vmatpush.bf16.msra.mxu0 %v1435
  %1875 = vmatpush.bf16.msra.mxu0 %v1431
  %1876 = vmatpush.bf16.msra.mxu0 %v1427
  %1877 = vmatpush.bf16.msra.mxu0 %v1423
  %1878 = vmatpush.bf16.msra.mxu0 %v1419
  %1879 = vmatpush.bf16.msra.mxu0 %v1415
  %1880 = vmatpush.bf16.msra.mxu0 %v1411
  %1881 = vmatmul.bf16.gmra.mxu0 %v343
  %v1882 = vpop.f32.mrf.mxu0
  %v1883 = vadd.f32 %v1870, %v1882
  %v1884 = vpop.f32.mrf.mxu0
  %1885 = vdwg.mxu0
  %1886 = vmatpush.bf16.msra.mxu0 %v1471
  %1887 = vmatpush.bf16.msra.mxu0 %v1467
  %1888 = vmatpush.bf16.msra.mxu0 %v1463
  %1889 = vmatpush.bf16.msra.mxu0 %v1459
  %1890 = vmatpush.bf16.msra.mxu0 %v1455
  %1891 = vmatpush.bf16.msra.mxu0 %v1451
  %1892 = vmatpush.bf16.msra.mxu0 %v1447
  %1893 = vmatpush.bf16.msra.mxu0 %v1443
  %1894 = vmatmul.bf16.gmra.mxu0 %v344
  %v1895 = vpop.f32.mrf.mxu0
  %v1896 = vadd.f32 %v1883, %v1895
  %v1897 = vpop.f32.mrf.mxu0
  %1898 = vdwg.mxu0
  %1899 = vmatpush.bf16.msra.mxu0 %v1503
  %1900 = vmatpush.bf16.msra.mxu0 %v1499
  %1901 = vmatpush.bf16.msra.mxu0 %v1495
  %1902 = vmatpush.bf16.msra.mxu0 %v1491
  %1903 = vmatpush.bf16.msra.mxu0 %v1487
  %1904 = vmatpush.bf16.msra.mxu0 %v1483
  %1905 = vmatpush.bf16.msra.mxu0 %v1479
  %1906 = vmatpush.bf16.msra.mxu0 %v1475
  %1907 = vmatmul.bf16.gmra.mxu0 %v345
  %v1908 = vpop.f32.mrf.mxu0
  %v1909 = vadd.f32 %v1896, %v1908
  %v1910 = vpop.f32.mrf.mxu0
  %1911 = vdwg.mxu0
  %1912 = vmatpush.bf16.msra.mxu0 %v1248
  %1913 = vmatpush.bf16.msra.mxu0 %v1244
  %1914 = vmatpush.bf16.msra.mxu0 %v1240
  %1915 = vmatpush.bf16.msra.mxu0 %v1236
  %1916 = vmatpush.bf16.msra.mxu0 %v1232
  %1917 = vmatpush.bf16.msra.mxu0 %v1228
  %1918 = vmatpush.bf16.msra.mxu0 %v1224
  %1919 = vmatpush.bf16.msra.mxu0 %v1220
  %1920 = vmatmul.bf16.gmra.mxu0 %v337
  %v1921 = vpop.f32.mrf.mxu0
  %v1922 = vadd.f32 %v316, %v1921
  %v1923 = vpop.f32.mrf.mxu0
  %1924 = vdwg.mxu0
  %1925 = vmatpush.bf16.msra.mxu0 %v1280
  %1926 = vmatpush.bf16.msra.mxu0 %v1276
  %1927 = vmatpush.bf16.msra.mxu0 %v1272
  %1928 = vmatpush.bf16.msra.mxu0 %v1268
  %1929 = vmatpush.bf16.msra.mxu0 %v1264
  %1930 = vmatpush.bf16.msra.mxu0 %v1260
  %1931 = vmatpush.bf16.msra.mxu0 %v1256
  %1932 = vmatpush.bf16.msra.mxu0 %v1252
  %1933 = vmatmul.bf16.gmra.mxu0 %v338
  %v1934 = vpop.f32.mrf.mxu0
  %v1935 = vadd.f32 %v1922, %v1934
  %v1936 = vpop.f32.mrf.mxu0
  %1937 = vdwg.mxu0
  %1938 = vmatpush.bf16.msra.mxu0 %v1312
  %1939 = vmatpush.bf16.msra.mxu0 %v1308
  %1940 = vmatpush.bf16.msra.mxu0 %v1304
  %1941 = vmatpush.bf16.msra.mxu0 %v1300
  %1942 = vmatpush.bf16.msra.mxu0 %v1296
  %1943 = vmatpush.bf16.msra.mxu0 %v1292
  %1944 = vmatpush.bf16.msra.mxu0 %v1288
  %1945 = vmatpush.bf16.msra.mxu0 %v1284
  %1946 = vmatmul.bf16.gmra.mxu0 %v339
  %v1947 = vpop.f32.mrf.mxu0
  %v1948 = vadd.f32 %v1935, %v1947
  %v1949 = vpop.f32.mrf.mxu0
  %1950 = vdwg.mxu0
  %1951 = vmatpush.bf16.msra.mxu0 %v1344
  %1952 = vmatpush.bf16.msra.mxu0 %v1340
  %1953 = vmatpush.bf16.msra.mxu0 %v1336
  %1954 = vmatpush.bf16.msra.mxu0 %v1332
  %1955 = vmatpush.bf16.msra.mxu0 %v1328
  %1956 = vmatpush.bf16.msra.mxu0 %v1324
  %1957 = vmatpush.bf16.msra.mxu0 %v1320
  %1958 = vmatpush.bf16.msra.mxu0 %v1316
  %1959 = vmatmul.bf16.gmra.mxu0 %v340
  %v1960 = vpop.f32.mrf.mxu0
  %v1961 = vadd.f32 %v1948, %v1960
  %v1962 = vpop.f32.mrf.mxu0
  %1963 = vdwg.mxu0
  %1964 = vmatpush.bf16.msra.mxu0 %v1376
  %1965 = vmatpush.bf16.msra.mxu0 %v1372
  %1966 = vmatpush.bf16.msra.mxu0 %v1368
  %1967 = vmatpush.bf16.msra.mxu0 %v1364
  %1968 = vmatpush.bf16.msra.mxu0 %v1360
  %1969 = vmatpush.bf16.msra.mxu0 %v1356
  %1970 = vmatpush.bf16.msra.mxu0 %v1352
  %1971 = vmatpush.bf16.msra.mxu0 %v1348
  %1972 = vmatmul.bf16.gmra.mxu0 %v341
  %v1973 = vpop.f32.mrf.mxu0
  %v1974 = vadd.f32 %v1961, %v1973
  %v1975 = vpop.f32.mrf.mxu0
  %1976 = vdwg.mxu0
  %1977 = vmatpush.bf16.msra.mxu0 %v1408
  %1978 = vmatpush.bf16.msra.mxu0 %v1404
  %1979 = vmatpush.bf16.msra.mxu0 %v1400
  %1980 = vmatpush.bf16.msra.mxu0 %v1396
  %1981 = vmatpush.bf16.msra.mxu0 %v1392
  %1982 = vmatpush.bf16.msra.mxu0 %v1388
  %1983 = vmatpush.bf16.msra.mxu0 %v1384
  %1984 = vmatpush.bf16.msra.mxu0 %v1380
  %1985 = vmatmul.bf16.gmra.mxu0 %v342
  %v1986 = vpop.f32.mrf.mxu0
  %v1987 = vadd.f32 %v1974, %v1986
  %v1988 = vpop.f32.mrf.mxu0
  %1989 = vdwg.mxu0
  %1990 = vmatpush.bf16.msra.mxu0 %v1440
  %1991 = vmatpush.bf16.msra.mxu0 %v1436
  %1992 = vmatpush.bf16.msra.mxu0 %v1432
  %1993 = vmatpush.bf16.msra.mxu0 %v1428
  %1994 = vmatpush.bf16.msra.mxu0 %v1424
  %1995 = vmatpush.bf16.msra.mxu0 %v1420
  %1996 = vmatpush.bf16.msra.mxu0 %v1416
  %1997 = vmatpush.bf16.msra.mxu0 %v1412
  %1998 = vmatmul.bf16.gmra.mxu0 %v343
  %v1999 = vpop.f32.mrf.mxu0
  %v2000 = vadd.f32 %v1987, %v1999
  %v2001 = vpop.f32.mrf.mxu0
  %2002 = vdwg.mxu0
  %2003 = vmatpush.bf16.msra.mxu0 %v1472
  %2004 = vmatpush.bf16.msra.mxu0 %v1468
  %2005 = vmatpush.bf16.msra.mxu0 %v1464
  %2006 = vmatpush.bf16.msra.mxu0 %v1460
  %2007 = vmatpush.bf16.msra.mxu0 %v1456
  %2008 = vmatpush.bf16.msra.mxu0 %v1452
  %2009 = vmatpush.bf16.msra.mxu0 %v1448
  %2010 = vmatpush.bf16.msra.mxu0 %v1444
  %2011 = vmatmul.bf16.gmra.mxu0 %v344
  %v2012 = vpop.f32.mrf.mxu0
  %v2013 = vadd.f32 %v2000, %v2012
  %v2014 = vpop.f32.mrf.mxu0
  %2015 = vdwg.mxu0
  %2016 = vmatpush.bf16.msra.mxu0 %v1504
  %2017 = vmatpush.bf16.msra.mxu0 %v1500
  %2018 = vmatpush.bf16.msra.mxu0 %v1496
  %2019 = vmatpush.bf16.msra.mxu0 %v1492
  %2020 = vmatpush.bf16.msra.mxu0 %v1488
  %2021 = vmatpush.bf16.msra.mxu0 %v1484
  %2022 = vmatpush.bf16.msra.mxu0 %v1480
  %2023 = vmatpush.bf16.msra.mxu0 %v1476
  %2024 = vmatmul.bf16.gmra.mxu0 %v345
  %v2025 = vpop.f32.mrf.mxu0
  %v2026 = vadd.f32 %v2013, %v2025
  %v2027 = vpop.f32.mrf.mxu0
  %2028 = vdwg.mxu0
  %2029 = vmatpush.bf16.msra.mxu0 %v1249
  %2030 = vmatpush.bf16.msra.mxu0 %v1245
  %2031 = vmatpush.bf16.msra.mxu0 %v1241
  %2032 = vmatpush.bf16.msra.mxu0 %v1237
  %2033 = vmatpush.bf16.msra.mxu0 %v1233
  %2034 = vmatpush.bf16.msra.mxu0 %v1229
  %2035 = vmatpush.bf16.msra.mxu0 %v1225
  %2036 = vmatpush.bf16.msra.mxu0 %v1221
  %2037 = vmatmul.bf16.gmra.mxu0 %v337
  %v2038 = vpop.f32.mrf.mxu0
  %v2039 = vadd.f32 %v317, %v2038
  %v2040 = vpop.f32.mrf.mxu0
  %2041 = vdwg.mxu0
  %2042 = vmatpush.bf16.msra.mxu0 %v1281
  %2043 = vmatpush.bf16.msra.mxu0 %v1277
  %2044 = vmatpush.bf16.msra.mxu0 %v1273
  %2045 = vmatpush.bf16.msra.mxu0 %v1269
  %2046 = vmatpush.bf16.msra.mxu0 %v1265
  %2047 = vmatpush.bf16.msra.mxu0 %v1261
  %2048 = vmatpush.bf16.msra.mxu0 %v1257
  %2049 = vmatpush.bf16.msra.mxu0 %v1253
  %2050 = vmatmul.bf16.gmra.mxu0 %v338
  %v2051 = vpop.f32.mrf.mxu0
  %v2052 = vadd.f32 %v2039, %v2051
  %v2053 = vpop.f32.mrf.mxu0
  %2054 = vdwg.mxu0
  %2055 = vmatpush.bf16.msra.mxu0 %v1313
  %2056 = vmatpush.bf16.msra.mxu0 %v1309
  %2057 = vmatpush.bf16.msra.mxu0 %v1305
  %2058 = vmatpush.bf16.msra.mxu0 %v1301
  %2059 = vmatpush.bf16.msra.mxu0 %v1297
  %2060 = vmatpush.bf16.msra.mxu0 %v1293
  %2061 = vmatpush.bf16.msra.mxu0 %v1289
  %2062 = vmatpush.bf16.msra.mxu0 %v1285
  %2063 = vmatmul.bf16.gmra.mxu0 %v339
  %v2064 = vpop.f32.mrf.mxu0
  %v2065 = vadd.f32 %v2052, %v2064
  %v2066 = vpop.f32.mrf.mxu0
  %2067 = vdwg.mxu0
  %2068 = vmatpush.bf16.msra.mxu0 %v1345
  %2069 = vmatpush.bf16.msra.mxu0 %v1341
  %2070 = vmatpush.bf16.msra.mxu0 %v1337
  %2071 = vmatpush.bf16.msra.mxu0 %v1333
  %2072 = vmatpush.bf16.msra.mxu0 %v1329
  %2073 = vmatpush.bf16.msra.mxu0 %v1325
  %2074 = vmatpush.bf16.msra.mxu0 %v1321
  %2075 = vmatpush.bf16.msra.mxu0 %v1317
  %2076 = vmatmul.bf16.gmra.mxu0 %v340
  %v2077 = vpop.f32.mrf.mxu0
  %v2078 = vadd.f32 %v2065, %v2077
  %v2079 = vpop.f32.mrf.mxu0
  %2080 = vdwg.mxu0
  %2081 = vmatpush.bf16.msra.mxu0 %v1377
  %2082 = vmatpush.bf16.msra.mxu0 %v1373
  %2083 = vmatpush.bf16.msra.mxu0 %v1369
  %2084 = vmatpush.bf16.msra.mxu0 %v1365
  %2085 = vmatpush.bf16.msra.mxu0 %v1361
  %2086 = vmatpush.bf16.msra.mxu0 %v1357
  %2087 = vmatpush.bf16.msra.mxu0 %v1353
  %2088 = vmatpush.bf16.msra.mxu0 %v1349
  %2089 = vmatmul.bf16.gmra.mxu0 %v341
  %v2090 = vpop.f32.mrf.mxu0
  %v2091 = vadd.f32 %v2078, %v2090
  %v2092 = vpop.f32.mrf.mxu0
  %2093 = vdwg.mxu0
  %2094 = vmatpush.bf16.msra.mxu0 %v1409
  %2095 = vmatpush.bf16.msra.mxu0 %v1405
  %2096 = vmatpush.bf16.msra.mxu0 %v1401
  %2097 = vmatpush.bf16.msra.mxu0 %v1397
  %2098 = vmatpush.bf16.msra.mxu0 %v1393
  %2099 = vmatpush.bf16.msra.mxu0 %v1389
  %2100 = vmatpush.bf16.msra.mxu0 %v1385
  %2101 = vmatpush.bf16.msra.mxu0 %v1381
  %2102 = vmatmul.bf16.gmra.mxu0 %v342
  %v2103 = vpop.f32.mrf.mxu0
  %v2104 = vadd.f32 %v2091, %v2103
  %v2105 = vpop.f32.mrf.mxu0
  %2106 = vdwg.mxu0
  %2107 = vmatpush.bf16.msra.mxu0 %v1441
  %2108 = vmatpush.bf16.msra.mxu0 %v1437
  %2109 = vmatpush.bf16.msra.mxu0 %v1433
  %2110 = vmatpush.bf16.msra.mxu0 %v1429
  %2111 = vmatpush.bf16.msra.mxu0 %v1425
  %2112 = vmatpush.bf16.msra.mxu0 %v1421
  %2113 = vmatpush.bf16.msra.mxu0 %v1417
  %2114 = vmatpush.bf16.msra.mxu0 %v1413
  %2115 = vmatmul.bf16.gmra.mxu0 %v343
  %v2116 = vpop.f32.mrf.mxu0
  %v2117 = vadd.f32 %v2104, %v2116
  %v2118 = vpop.f32.mrf.mxu0
  %2119 = vdwg.mxu0
  %2120 = vmatpush.bf16.msra.mxu0 %v1473
  %2121 = vmatpush.bf16.msra.mxu0 %v1469
  %2122 = vmatpush.bf16.msra.mxu0 %v1465
  %2123 = vmatpush.bf16.msra.mxu0 %v1461
  %2124 = vmatpush.bf16.msra.mxu0 %v1457
  %2125 = vmatpush.bf16.msra.mxu0 %v1453
  %2126 = vmatpush.bf16.msra.mxu0 %v1449
  %2127 = vmatpush.bf16.msra.mxu0 %v1445
  %2128 = vmatmul.bf16.gmra.mxu0 %v344
  %v2129 = vpop.f32.mrf.mxu0
  %v2130 = vadd.f32 %v2117, %v2129
  %v2131 = vpop.f32.mrf.mxu0
  %2132 = vdwg.mxu0
  %2133 = vmatpush.bf16.msra.mxu0 %v1505
  %2134 = vmatpush.bf16.msra.mxu0 %v1501
  %2135 = vmatpush.bf16.msra.mxu0 %v1497
  %2136 = vmatpush.bf16.msra.mxu0 %v1493
  %2137 = vmatpush.bf16.msra.mxu0 %v1489
  %2138 = vmatpush.bf16.msra.mxu0 %v1485
  %2139 = vmatpush.bf16.msra.mxu0 %v1481
  %2140 = vmatpush.bf16.msra.mxu0 %v1477
  %2141 = vmatmul.bf16.gmra.mxu0 %v345
  %v2142 = vpop.f32.mrf.mxu0
  %v2143 = vadd.f32 %v2130, %v2142
  %v2144 = vpop.f32.mrf.mxu0
  %2145 = vdwg.mxu0
  %2146 = vmatpush.bf16.msra.mxu0 %v1250
  %2147 = vmatpush.bf16.msra.mxu0 %v1246
  %2148 = vmatpush.bf16.msra.mxu0 %v1242
  %2149 = vmatpush.bf16.msra.mxu0 %v1238
  %2150 = vmatpush.bf16.msra.mxu0 %v1234
  %2151 = vmatpush.bf16.msra.mxu0 %v1230
  %2152 = vmatpush.bf16.msra.mxu0 %v1226
  %2153 = vmatpush.bf16.msra.mxu0 %v1222
  %2154 = vmatmul.bf16.gmra.mxu0 %v337
  %v2155 = vpop.f32.mrf.mxu0
  %v2156 = vadd.f32 %v318, %v2155
  %v2157 = vpop.f32.mrf.mxu0
  %2158 = vdwg.mxu0
  %2159 = vmatpush.bf16.msra.mxu0 %v1282
  %2160 = vmatpush.bf16.msra.mxu0 %v1278
  %2161 = vmatpush.bf16.msra.mxu0 %v1274
  %2162 = vmatpush.bf16.msra.mxu0 %v1270
  %2163 = vmatpush.bf16.msra.mxu0 %v1266
  %2164 = vmatpush.bf16.msra.mxu0 %v1262
  %2165 = vmatpush.bf16.msra.mxu0 %v1258
  %2166 = vmatpush.bf16.msra.mxu0 %v1254
  %2167 = vmatmul.bf16.gmra.mxu0 %v338
  %v2168 = vpop.f32.mrf.mxu0
  %v2169 = vadd.f32 %v2156, %v2168
  %v2170 = vpop.f32.mrf.mxu0
  %2171 = vdwg.mxu0
  %2172 = vmatpush.bf16.msra.mxu0 %v1314
  %2173 = vmatpush.bf16.msra.mxu0 %v1310
  %2174 = vmatpush.bf16.msra.mxu0 %v1306
  %2175 = vmatpush.bf16.msra.mxu0 %v1302
  %2176 = vmatpush.bf16.msra.mxu0 %v1298
  %2177 = vmatpush.bf16.msra.mxu0 %v1294
  %2178 = vmatpush.bf16.msra.mxu0 %v1290
  %2179 = vmatpush.bf16.msra.mxu0 %v1286
  %2180 = vmatmul.bf16.gmra.mxu0 %v339
  %v2181 = vpop.f32.mrf.mxu0
  %v2182 = vadd.f32 %v2169, %v2181
  %v2183 = vpop.f32.mrf.mxu0
  %2184 = vdwg.mxu0
  %2185 = vmatpush.bf16.msra.mxu0 %v1346
  %2186 = vmatpush.bf16.msra.mxu0 %v1342
  %2187 = vmatpush.bf16.msra.mxu0 %v1338
  %2188 = vmatpush.bf16.msra.mxu0 %v1334
  %2189 = vmatpush.bf16.msra.mxu0 %v1330
  %2190 = vmatpush.bf16.msra.mxu0 %v1326
  %2191 = vmatpush.bf16.msra.mxu0 %v1322
  %2192 = vmatpush.bf16.msra.mxu0 %v1318
  %2193 = vmatmul.bf16.gmra.mxu0 %v340
  %v2194 = vpop.f32.mrf.mxu0
  %v2195 = vadd.f32 %v2182, %v2194
  %v2196 = vpop.f32.mrf.mxu0
  %2197 = vdwg.mxu0
  %2198 = vmatpush.bf16.msra.mxu0 %v1378
  %2199 = vmatpush.bf16.msra.mxu0 %v1374
  %2200 = vmatpush.bf16.msra.mxu0 %v1370
  %2201 = vmatpush.bf16.msra.mxu0 %v1366
  %2202 = vmatpush.bf16.msra.mxu0 %v1362
  %2203 = vmatpush.bf16.msra.mxu0 %v1358
  %2204 = vmatpush.bf16.msra.mxu0 %v1354
  %2205 = vmatpush.bf16.msra.mxu0 %v1350
  %2206 = vmatmul.bf16.gmra.mxu0 %v341
  %v2207 = vpop.f32.mrf.mxu0
  %v2208 = vadd.f32 %v2195, %v2207
  %v2209 = vpop.f32.mrf.mxu0
  %2210 = vdwg.mxu0
  %2211 = vmatpush.bf16.msra.mxu0 %v1410
  %2212 = vmatpush.bf16.msra.mxu0 %v1406
  %2213 = vmatpush.bf16.msra.mxu0 %v1402
  %2214 = vmatpush.bf16.msra.mxu0 %v1398
  %2215 = vmatpush.bf16.msra.mxu0 %v1394
  %2216 = vmatpush.bf16.msra.mxu0 %v1390
  %2217 = vmatpush.bf16.msra.mxu0 %v1386
  %2218 = vmatpush.bf16.msra.mxu0 %v1382
  %2219 = vmatmul.bf16.gmra.mxu0 %v342
  %v2220 = vpop.f32.mrf.mxu0
  %v2221 = vadd.f32 %v2208, %v2220
  %v2222 = vpop.f32.mrf.mxu0
  %2223 = vdwg.mxu0
  %2224 = vmatpush.bf16.msra.mxu0 %v1442
  %2225 = vmatpush.bf16.msra.mxu0 %v1438
  %2226 = vmatpush.bf16.msra.mxu0 %v1434
  %2227 = vmatpush.bf16.msra.mxu0 %v1430
  %2228 = vmatpush.bf16.msra.mxu0 %v1426
  %2229 = vmatpush.bf16.msra.mxu0 %v1422
  %2230 = vmatpush.bf16.msra.mxu0 %v1418
  %2231 = vmatpush.bf16.msra.mxu0 %v1414
  %2232 = vmatmul.bf16.gmra.mxu0 %v343
  %v2233 = vpop.f32.mrf.mxu0
  %v2234 = vadd.f32 %v2221, %v2233
  %v2235 = vpop.f32.mrf.mxu0
  %2236 = vdwg.mxu0
  %2237 = vmatpush.bf16.msra.mxu0 %v1474
  %2238 = vmatpush.bf16.msra.mxu0 %v1470
  %2239 = vmatpush.bf16.msra.mxu0 %v1466
  %2240 = vmatpush.bf16.msra.mxu0 %v1462
  %2241 = vmatpush.bf16.msra.mxu0 %v1458
  %2242 = vmatpush.bf16.msra.mxu0 %v1454
  %2243 = vmatpush.bf16.msra.mxu0 %v1450
  %2244 = vmatpush.bf16.msra.mxu0 %v1446
  %2245 = vmatmul.bf16.gmra.mxu0 %v344
  %v2246 = vpop.f32.mrf.mxu0
  %v2247 = vadd.f32 %v2234, %v2246
  %v2248 = vpop.f32.mrf.mxu0
  %2249 = vdwg.mxu0
  %2250 = vmatpush.bf16.msra.mxu0 %v1506
  %2251 = vmatpush.bf16.msra.mxu0 %v1502
  %2252 = vmatpush.bf16.msra.mxu0 %v1498
  %2253 = vmatpush.bf16.msra.mxu0 %v1494
  %2254 = vmatpush.bf16.msra.mxu0 %v1490
  %2255 = vmatpush.bf16.msra.mxu0 %v1486
  %2256 = vmatpush.bf16.msra.mxu0 %v1482
  %2257 = vmatpush.bf16.msra.mxu0 %v1478
  %2258 = vmatmul.bf16.gmra.mxu0 %v345
  %v2259 = vpop.f32.mrf.mxu0
  %v2260 = vadd.f32 %v2247, %v2259
  %v2261 = vpop.f32.mrf.mxu0
  %2262 = vdwg.mxu0
  %v2263 = vrot.slane %v1909, 4
  %v2264 = vadd.f32 %v1909, %v2263
  %v2265 = vrot.slane %v2264, 2
  %v2266 = vadd.f32 %v2264, %v2265
  %v2267 = vrot.slane %v2266, 1
  %v2268 = vadd.f32 %v2266, %v2267
  %v2269 = vrot.slane %v2026, 4
  %v2270 = vadd.f32 %v2026, %v2269
  %v2271 = vrot.slane %v2270, 2
  %v2272 = vadd.f32 %v2270, %v2271
  %v2273 = vrot.slane %v2272, 1
  %v2274 = vadd.f32 %v2272, %v2273
  %v2275 = vrot.slane %v2143, 4
  %v2276 = vadd.f32 %v2143, %v2275
  %v2277 = vrot.slane %v2276, 2
  %v2278 = vadd.f32 %v2276, %v2277
  %v2279 = vrot.slane %v2278, 1
  %v2280 = vadd.f32 %v2278, %v2279
  %v2281 = vrot.slane %v2260, 4
  %v2282 = vadd.f32 %v2260, %v2281
  %v2283 = vrot.slane %v2282, 2
  %v2284 = vadd.f32 %v2282, %v2283
  %v2285 = vrot.slane %v2284, 1
  %v2286 = vadd.f32 %v2284, %v2285
  %v2287 = vmul.f32 %v1909, %v1909
  %v2288 = vmul.f32 %v2026, %v2026
  %v2289 = vmul.f32 %v2143, %v2143
  %v2290 = vmul.f32 %v2260, %v2260
  %v2291 = vrot.slane %v2287, 4
  %v2292 = vadd.f32 %v2287, %v2291
  %v2293 = vrot.slane %v2292, 2
  %v2294 = vadd.f32 %v2292, %v2293
  %v2295 = vrot.slane %v2294, 1
  %v2296 = vadd.f32 %v2294, %v2295
  %v2297 = vrot.slane %v2288, 4
  %v2298 = vadd.f32 %v2288, %v2297
  %v2299 = vrot.slane %v2298, 2
  %v2300 = vadd.f32 %v2298, %v2299
  %v2301 = vrot.slane %v2300, 1
  %v2302 = vadd.f32 %v2300, %v2301
  %v2303 = vrot.slane %v2289, 4
  %v2304 = vadd.f32 %v2289, %v2303
  %v2305 = vrot.slane %v2304, 2
  %v2306 = vadd.f32 %v2304, %v2305
  %v2307 = vrot.slane %v2306, 1
  %v2308 = vadd.f32 %v2306, %v2307
  %v2309 = vrot.slane %v2290, 4
  %v2310 = vadd.f32 %v2290, %v2309
  %v2311 = vrot.slane %v2310, 2
  %v2312 = vadd.f32 %v2310, %v2311
  %v2313 = vrot.slane %v2312, 1
  %v2314 = vadd.f32 %v2312, %v2313
  %v2315 = vadd.f32 %v2268, %v2274
  %v2316 = vadd.f32 %v2315, %v2280
  %v2317 = vadd.f32 %v2316, %v2286
  %v2318 = vadd.f32 %v2296, %v2302
  %v2319 = vadd.f32 %v2318, %v2308
  %v2320 = vadd.f32 %v2319, %v2314
  %v2321 = vrcp.pop 32.0
  %v2322 = vmul.f32 32.0, %v2321
  %v2323 = vsub.f32 1.0, %v2322
  %v2324 = vmul.f32 %v2321, %v2323
  %v2325 = vadd.f32 %v2321, %v2324
  %vm2326 = vweird.f32 %v2321
  %v2327 = vsel %vm2326, %v2321, %v2325
  %v2328 = vmul.f32 %v2317, %v2327
  %v2329 = vmul.f32 %v2320, %v2327
  %v2330 = vmul.f32 %v2328, %v2328
  %v2331 = vsub.f32 %v2329, %v2330
  %v2332 = vmax.f32 %v2331, 0.0
  %v2333 = vld [vmem:[%s3] sm:$0x1]
  %v2334 = vadd.f32 %v2332, 1e-05
  %v2335 = vrsqrt.pop %v2334
  %v2336 = vmul.f32 %v2335, %v2334
  %v2337 = vmul.f32 %v2336, %v2335
  %v2338 = vmul.f32 0.5, %v2337
  %v2339 = vsub.f32 1.5, %v2338
  %v2340 = vmul.f32 %v2335, %v2339
  %vm2341 = vweird.f32 %v2334
  %vm2342 = vweird.f32 %v2335
  %vm2343 = vmor %vm2341, %vm2342
  %v2344 = vsel %vm2343, %v2335, %v2340
  %v2345 = vmul.f32 %v2333, %v2344
  %v2346 = vld [vmem:[%s4] sm:$0x1]
  %v2347 = vmul.f32 %v2328, %v2345
  %v2348 = vsub.f32 %v2346, %v2347
  %v2350 = vperm.slane %v2345, 0
  %v2352 = vmul.f32 %v1909, %v2350
  %v2354 = vperm.slane %v2348, 0
  %v2356 = vadd.f32 %v2352, %v2354
  %v2357 = vmax.f32 %v2356, 0.0
  %v2358 = vpack.c.bf16 %v2357, %v2357
  %2359 = vst [vmem:[%s5] sm:$0xf] %v2358
  %v2360 = vmul.f32 %v2026, %v2350
  %v2361 = vadd.f32 %v2360, %v2354
  %v2362 = vmax.f32 %v2361, 0.0
  %v2363 = vpack.c.bf16 %v2362, %v2362
  %2364 = vst [vmem:[%s5 + $0x4] sm:$0xf] %v2363
  %v2365 = vmul.f32 %v2143, %v2350
  %v2366 = vadd.f32 %v2365, %v2354
  %v2367 = vmax.f32 %v2366, 0.0
  %v2368 = vpack.c.bf16 %v2367, %v2367
  %2369 = vst [vmem:[%s5 + $0x8] sm:$0xf] %v2368
  %v2370 = vmul.f32 %v2260, %v2350
  %v2371 = vadd.f32 %v2370, %v2354
  %v2372 = vmax.f32 %v2371, 0.0
  %v2373 = vpack.c.bf16 %v2372, %v2372
  %2374 = vst [vmem:[%s5 + $0xc] sm:$0xf] %v2373
  // Predicated region
  $region22: #{wae_forward.12} parent=0 // pred_check
    _
  $region23: #{wae_forward.12} parent=0 // pred_check_branch
    %2376 = sbr.rel (0) target = $region25
  $region24: #{wae_forward.12} parent=0 // pred_region
    _
  $region25: #{wae_forward.12} parent=0 // pred_fallthru
    _
  // Predicated region
  $region26: #{wae_forward.12} parent=0 // pred_check
    _
  $region27: #{wae_forward.12} parent=0 // pred_check_branch
    %2378 = sbr.rel (0) target = $region29
  $region28: #{wae_forward.12} parent=0 // pred_region
    _
  $region29: #{wae_forward.12} parent=0 // pred_fallthru
    _

// kernel: wae_forward.13
$region0: #{wae_forward.13}
  #allocation0 [shape = 'u32[]', space=smem, size = 0x4, offset = 0x4, fixed_abs, tag = 'smem constant byte address 0x4 - core index']
  #allocation1 [shape = 'u32[72,128]{1,0:T(1,128)}', space=vmem, size = 0x9000, scoped, tag = 'internal scratch']
  %s0 = inlined_call_operand.vmem [shape: bf16[32,640], index: 0, kind: input, shape index: {}]
  %s1 = inlined_call_operand.vmem [shape: bf16[640,512], index: 1, kind: input, shape index: {}]
  %s2 = inlined_call_operand.vmem [shape: f32[1,512], index: 2, kind: input, shape index: {}]
  %s3 = inlined_call_operand.vmem [shape: f32[1,128], index: 3, kind: input, shape index: {}]
  %s4 = inlined_call_operand.vmem [shape: f32[1,128], index: 4, kind: input, shape index: {}]
  %s5 = inlined_call_operand.vmem [shape: bf16[32,512], index: 5, kind: output, shape index: {}]
  %s6 = sld [smem:[#allocation0]]
  $region30: #{wae_forward.13} parent=0
    _
  %s8 = ssub.s32 1, %s6
  %s9 = scalar_select 0, %s8, %s6
  // Predicated region
  $region2: #{wae_forward.13} parent=0 // pred_check
    _
  $region3: #{wae_forward.13} parent=0 // pred_check_branch
    %11 = sbr.rel (0) target = $region5
  $region4: #{wae_forward.13} parent=0 // pred_region
    _
  $region5: #{wae_forward.13} parent=0 // pred_fallthru
    _
  // Predicated region
  $region6: #{wae_forward.13} parent=0 // pred_check
    _
  $region7: #{wae_forward.13} parent=0 // pred_check_branch
    %13 = sbr.rel (0) target = $region9
  $region8: #{wae_forward.13} parent=0 // pred_region
    _
  $region9: #{wae_forward.13} parent=0 // pred_fallthru
    _
  // Predicated region
  $region10: #{wae_forward.13} parent=0 // pred_check
    _
  $region11: #{wae_forward.13} parent=0 // pred_check_branch
    %15 = sbr.rel (0) target = $region13
  $region12: #{wae_forward.13} parent=0 // pred_region
    _
  $region13: #{wae_forward.13} parent=0 // pred_fallthru
    _
  // Predicated region
  $region14: #{wae_forward.13} parent=0 // pred_check
    _
  $region15: #{wae_forward.13} parent=0 // pred_check_branch
    %17 = sbr.rel (0) target = $region17
  $region16: #{wae_forward.13} parent=0 // pred_region
    _
  $region17: #{wae_forward.13} parent=0 // pred_fallthru
    _
  // Predicated region
  $region18: #{wae_forward.13} parent=0 // pred_check
    _
  $region19: #{wae_forward.13} parent=0 // pred_check_branch
    %19 = sbr.rel (0) target = $region21
  $region20: #{wae_forward.13} parent=0 // pred_region
    _
  $region21: #{wae_forward.13} parent=0 // pred_fallthru
    _
  %v20 = vld [vmem:[%s0] sm:$0xff]
  %v21 = vld [vmem:[%s0 + $0x8] sm:$0xff]
  %v22 = vld [vmem:[%s0 + $0x10] sm:$0xf]
  %v23 = vld [vmem:[%s0 + $0x14] sm:$0xff]
  %v24 = vld [vmem:[%s0 + $0x1c] sm:$0xff]
  %v25 = vld [vmem:[%s0 + $0x24] sm:$0xf]
  %v26 = vld [vmem:[%s0 + $0x28] sm:$0xff]
  %v27 = vld [vmem:[%s0 + $0x30] sm:$0xff]
  %v28 = vld [vmem:[%s0 + $0x38] sm:$0xf]
  %v29 = vld [vmem:[%s0 + $0x3c] sm:$0xff]
  %v30 = vld [vmem:[%s0 + $0x44] sm:$0xff]
  %v31 = vld [vmem:[%s0 + $0x4c] sm:$0xf]
  %v32 = vld [vmem:[%s1] sm:$0xff]
  %v33 = vld [vmem:[%s1 + $0x8] sm:$0xff]
  %v34 = vld [vmem:[%s1 + $0x10] sm:$0xff]
  %v35 = vld [vmem:[%s1 + $0x18] sm:$0xff]
  %v36 = vld [vmem:[%s1 + $0x20] sm:$0xff]
  %v37 = vld [vmem:[%s1 + $0x28] sm:$0xff]
  %v38 = vld [vmem:[%s1 + $0x30] sm:$0xff]
  %v39 = vld [vmem:[%s1 + $0x38] sm:$0xff]
  %v40 = vld [vmem:[%s1 + $0x40] sm:$0xff]
  %v41 = vld [vmem:[%s1 + $0x48] sm:$0xff]
  %v42 = vld [vmem:[%s1 + $0x50] sm:$0xff]
  %v43 = vld [vmem:[%s1 + $0x58] sm:$0xff]
  %v44 = vld [vmem:[%s1 + $0x60] sm:$0xff]
  %v45 = vld [vmem:[%s1 + $0x68] sm:$0xff]
  %v46 = vld [vmem:[%s1 + $0x70] sm:$0xff]
  %v47 = vld [vmem:[%s1 + $0x78] sm:$0xff]
  %v48 = vld [vmem:[%s1 + $0x80] sm:$0xff]
  %v49 = vld [vmem:[%s1 + $0x88] sm:$0xff]
  %v50 = vld [vmem:[%s1 + $0x90] sm:$0xff]
  %v51 = vld [vmem:[%s1 + $0x98] sm:$0xff]
  %v52 = vld [vmem:[%s1 + $0xa0] sm:$0xff]
  %v53 = vld [vmem:[%s1 + $0xa8] sm:$0xff]
  %v54 = vld [vmem:[%s1 + $0xb0] sm:$0xff]
  %v55 = vld [vmem:[%s1 + $0xb8] sm:$0xff]
  %v56 = vld [vmem:[%s1 + $0xc0] sm:$0xff]
  %v57 = vld [vmem:[%s1 + $0xc8] sm:$0xff]
  %v58 = vld [vmem:[%s1 + $0xd0] sm:$0xff]
  %v59 = vld [vmem:[%s1 + $0xd8] sm:$0xff]
  %v60 = vld [vmem:[%s1 + $0xe0] sm:$0xff]
  %v61 = vld [vmem:[%s1 + $0xe8] sm:$0xff]
  %v62 = vld [vmem:[%s1 + $0xf0] sm:$0xff]
  %v63 = vld [vmem:[%s1 + $0xf8] sm:$0xff]
  %v64 = vld [vmem:[%s1 + $0x100] sm:$0xff]
  %v65 = vld [vmem:[%s1 + $0x108] sm:$0xff]
  %v66 = vld [vmem:[%s1 + $0x110] sm:$0xff]
  %v67 = vld [vmem:[%s1 + $0x118] sm:$0xff]
  %v68 = vld [vmem:[%s1 + $0x120] sm:$0xff]
  %v69 = vld [vmem:[%s1 + $0x128] sm:$0xff]
  %v70 = vld [vmem:[%s1 + $0x130] sm:$0xff]
  %v71 = vld [vmem:[%s1 + $0x138] sm:$0xff]
  %v72 = vld [vmem:[%s1 + $0x140] sm:$0xff]
  %v73 = vld [vmem:[%s1 + $0x148] sm:$0xff]
  %v74 = vld [vmem:[%s1 + $0x150] sm:$0xff]
  %v75 = vld [vmem:[%s1 + $0x158] sm:$0xff]
  %v76 = vld [vmem:[%s1 + $0x160] sm:$0xff]
  %v77 = vld [vmem:[%s1 + $0x168] sm:$0xff]
  %v78 = vld [vmem:[%s1 + $0x170] sm:$0xff]
  %v79 = vld [vmem:[%s1 + $0x178] sm:$0xff]
  %v80 = vld [vmem:[%s1 + $0x180] sm:$0xff]
  %v81 = vld [vmem:[%s1 + $0x188] sm:$0xff]
  %v82 = vld [vmem:[%s1 + $0x190] sm:$0xff]
  %v83 = vld [vmem:[%s1 + $0x198] sm:$0xff]
  %v84 = vld [vmem:[%s1 + $0x1a0] sm:$0xff]
  %v85 = vld [vmem:[%s1 + $0x1a8] sm:$0xff]
  %v86 = vld [vmem:[%s1 + $0x1b0] sm:$0xff]
  %v87 = vld [vmem:[%s1 + $0x1b8] sm:$0xff]
  %v88 = vld [vmem:[%s1 + $0x1c0] sm:$0xff]
  %v89 = vld [vmem:[%s1 + $0x1c8] sm:$0xff]
  %v90 = vld [vmem:[%s1 + $0x1d0] sm:$0xff]
  %v91 = vld [vmem:[%s1 + $0x1d8] sm:$0xff]
  %v92 = vld [vmem:[%s1 + $0x1e0] sm:$0xff]
  %v93 = vld [vmem:[%s1 + $0x1e8] sm:$0xff]
  %v94 = vld [vmem:[%s1 + $0x1f0] sm:$0xff]
  %v95 = vld [vmem:[%s1 + $0x1f8] sm:$0xff]
  %v96 = vld [vmem:[%s1 + $0x200] sm:$0xff]
  %v97 = vld [vmem:[%s1 + $0x208] sm:$0xff]
  %v98 = vld [vmem:[%s1 + $0x210] sm:$0xff]
  %v99 = vld [vmem:[%s1 + $0x218] sm:$0xff]
  %v100 = vld [vmem:[%s1 + $0x220] sm:$0xff]
  %v101 = vld [vmem:[%s1 + $0x228] sm:$0xff]
  %v102 = vld [vmem:[%s1 + $0x230] sm:$0xff]
  %v103 = vld [vmem:[%s1 + $0x238] sm:$0xff]
  %v104 = vld [vmem:[%s1 + $0x240] sm:$0xff]
  %v105 = vld [vmem:[%s1 + $0x248] sm:$0xff]
  %v106 = vld [vmem:[%s1 + $0x250] sm:$0xff]
  %v107 = vld [vmem:[%s1 + $0x258] sm:$0xff]
  %v108 = vld [vmem:[%s1 + $0x260] sm:$0xff]
  %v109 = vld [vmem:[%s1 + $0x268] sm:$0xff]
  %v110 = vld [vmem:[%s1 + $0x270] sm:$0xff]
  %v111 = vld [vmem:[%s1 + $0x278] sm:$0xff]
  %v112 = vld [vmem:[%s1 + $0x280] sm:$0xff]
  %v113 = vld [vmem:[%s1 + $0x288] sm:$0xff]
  %v114 = vld [vmem:[%s1 + $0x290] sm:$0xff]
  %v115 = vld [vmem:[%s1 + $0x298] sm:$0xff]
  %v116 = vld [vmem:[%s1 + $0x2a0] sm:$0xff]
  %v117 = vld [vmem:[%s1 + $0x2a8] sm:$0xff]
  %v118 = vld [vmem:[%s1 + $0x2b0] sm:$0xff]
  %v119 = vld [vmem:[%s1 + $0x2b8] sm:$0xff]
  %v120 = vld [vmem:[%s1 + $0x2c0] sm:$0xff]
  %v121 = vld [vmem:[%s1 + $0x2c8] sm:$0xff]
  %v122 = vld [vmem:[%s1 + $0x2d0] sm:$0xff]
  %v123 = vld [vmem:[%s1 + $0x2d8] sm:$0xff]
  %v124 = vld [vmem:[%s1 + $0x2e0] sm:$0xff]
  %v125 = vld [vmem:[%s1 + $0x2e8] sm:$0xff]
  %v126 = vld [vmem:[%s1 + $0x2f0] sm:$0xff]
  %v127 = vld [vmem:[%s1 + $0x2f8] sm:$0xff]
  %v128 = vld [vmem:[%s1 + $0x300] sm:$0xff]
  %v129 = vld [vmem:[%s1 + $0x308] sm:$0xff]
  %v130 = vld [vmem:[%s1 + $0x310] sm:$0xff]
  %v131 = vld [vmem:[%s1 + $0x318] sm:$0xff]
  %v132 = vld [vmem:[%s1 + $0x320] sm:$0xff]
  %v133 = vld [vmem:[%s1 + $0x328] sm:$0xff]
  %v134 = vld [vmem:[%s1 + $0x330] sm:$0xff]
  %v135 = vld [vmem:[%s1 + $0x338] sm:$0xff]
  %v136 = vld [vmem:[%s1 + $0x340] sm:$0xff]
  %v137 = vld [vmem:[%s1 + $0x348] sm:$0xff]
  %v138 = vld [vmem:[%s1 + $0x350] sm:$0xff]
  %v139 = vld [vmem:[%s1 + $0x358] sm:$0xff]
  %v140 = vld [vmem:[%s1 + $0x360] sm:$0xff]
  %v141 = vld [vmem:[%s1 + $0x368] sm:$0xff]
  %v142 = vld [vmem:[%s1 + $0x370] sm:$0xff]
  %v143 = vld [vmem:[%s1 + $0x378] sm:$0xff]
  %v144 = vld [vmem:[%s1 + $0x380] sm:$0xff]
  %v145 = vld [vmem:[%s1 + $0x388] sm:$0xff]
  %v146 = vld [vmem:[%s1 + $0x390] sm:$0xff]
  %v147 = vld [vmem:[%s1 + $0x398] sm:$0xff]
  %v148 = vld [vmem:[%s1 + $0x3a0] sm:$0xff]
  %v149 = vld [vmem:[%s1 + $0x3a8] sm:$0xff]
  %v150 = vld [vmem:[%s1 + $0x3b0] sm:$0xff]
  %v151 = vld [vmem:[%s1 + $0x3b8] sm:$0xff]
  %v152 = vld [vmem:[%s1 + $0x3c0] sm:$0xff]
  %v153 = vld [vmem:[%s1 + $0x3c8] sm:$0xff]
  %v154 = vld [vmem:[%s1 + $0x3d0] sm:$0xff]
  %v155 = vld [vmem:[%s1 + $0x3d8] sm:$0xff]
  %v156 = vld [vmem:[%s1 + $0x3e0] sm:$0xff]
  %v157 = vld [vmem:[%s1 + $0x3e8] sm:$0xff]
  %v158 = vld [vmem:[%s1 + $0x3f0] sm:$0xff]
  %v159 = vld [vmem:[%s1 + $0x3f8] sm:$0xff]
  %v160 = vld [vmem:[%s1 + $0x400] sm:$0xff]
  %v161 = vld [vmem:[%s1 + $0x408] sm:$0xff]
  %v162 = vld [vmem:[%s1 + $0x410] sm:$0xff]
  %v163 = vld [vmem:[%s1 + $0x418] sm:$0xff]
  %v164 = vld [vmem:[%s1 + $0x420] sm:$0xff]
  %v165 = vld [vmem:[%s1 + $0x428] sm:$0xff]
  %v166 = vld [vmem:[%s1 + $0x430] sm:$0xff]
  %v167 = vld [vmem:[%s1 + $0x438] sm:$0xff]
  %v168 = vld [vmem:[%s1 + $0x440] sm:$0xff]
  %v169 = vld [vmem:[%s1 + $0x448] sm:$0xff]
  %v170 = vld [vmem:[%s1 + $0x450] sm:$0xff]
  %v171 = vld [vmem:[%s1 + $0x458] sm:$0xff]
  %v172 = vld [vmem:[%s1 + $0x460] sm:$0xff]
  %v173 = vld [vmem:[%s1 + $0x468] sm:$0xff]
  %v174 = vld [vmem:[%s1 + $0x470] sm:$0xff]
  %v175 = vld [vmem:[%s1 + $0x478] sm:$0xff]
  %v176 = vld [vmem:[%s1 + $0x480] sm:$0xff]
  %v177 = vld [vmem:[%s1 + $0x488] sm:$0xff]
  %v178 = vld [vmem:[%s1 + $0x490] sm:$0xff]
  %v179 = vld [vmem:[%s1 + $0x498] sm:$0xff]
  %v180 = vld [vmem:[%s1 + $0x4a0] sm:$0xff]
  %v181 = vld [vmem:[%s1 + $0x4a8] sm:$0xff]
  %v182 = vld [vmem:[%s1 + $0x4b0] sm:$0xff]
  %v183 = vld [vmem:[%s1 + $0x4b8] sm:$0xff]
  %v184 = vld [vmem:[%s1 + $0x4c0] sm:$0xff]
  %v185 = vld [vmem:[%s1 + $0x4c8] sm:$0xff]
  %v186 = vld [vmem:[%s1 + $0x4d0] sm:$0xff]
  %v187 = vld [vmem:[%s1 + $0x4d8] sm:$0xff]
  %v188 = vld [vmem:[%s1 + $0x4e0] sm:$0xff]
  %v189 = vld [vmem:[%s1 + $0x4e8] sm:$0xff]
  %v190 = vld [vmem:[%s1 + $0x4f0] sm:$0xff]
  %v191 = vld [vmem:[%s1 + $0x4f8] sm:$0xff]
  %v192 = vld [vmem:[%s2] sm:$0xf]
  %v194 = vperm.slane %v192, 0
  %v195 = vperm.slane %v192, 1
  %v196 = vperm.slane %v192, 2
  %v197 = vperm.slane %v192, 3
  %v214 = vunpack.c.l.b16 %v20
  %v215 = vunpack.c.h.b16 %v20
  %v216 = vunpack.c.l.b16 %v21
  %v217 = vunpack.c.h.b16 %v21
  %v218 = vunpack.c.l.b16 %v22
  %v219 = vunpack.c.l.b16 %v23
  %v220 = vunpack.c.h.b16 %v23
  %v221 = vunpack.c.l.b16 %v24
  %v222 = vunpack.c.h.b16 %v24
  %v223 = vunpack.c.l.b16 %v25
  %v224 = vunpack.c.l.b16 %v26
  %v225 = vunpack.c.h.b16 %v26
  %v226 = vunpack.c.l.b16 %v27
  %v227 = vunpack.c.h.b16 %v27
  %v228 = vunpack.c.l.b16 %v28
  %v229 = vunpack.c.l.b16 %v29
  %v230 = vunpack.c.h.b16 %v29
  %v231 = vunpack.c.l.b16 %v30
  %v232 = vunpack.c.h.b16 %v30
  %v233 = vunpack.c.l.b16 %v31
  %v234 = vpack.c.b16 %v219, %v214
  %v235 = vpack.c.b16 %v220, %v215
  %v236 = vpack.c.b16 %v221, %v216
  %v237 = vpack.c.b16 %v222, %v217
  %v238 = vpack.c.b16 %v223, %v218
  %v239 = vpack.c.b16 %v229, %v224
  %v240 = vpack.c.b16 %v230, %v225
  %v241 = vpack.c.b16 %v231, %v226
  %v242 = vpack.c.b16 %v232, %v227
  %v243 = vpack.c.b16 %v233, %v228
  %v414 = vunpack.c.l.b16 %v32
  %v415 = vunpack.c.h.b16 %v32
  %v416 = vunpack.c.l.b16 %v33
  %v417 = vunpack.c.h.b16 %v33
  %v418 = vunpack.c.l.b16 %v34
  %v419 = vunpack.c.h.b16 %v34
  %v420 = vunpack.c.l.b16 %v35
  %v421 = vunpack.c.h.b16 %v35
  %v422 = vunpack.c.l.b16 %v36
  %v423 = vunpack.c.h.b16 %v36
  %v424 = vunpack.c.l.b16 %v37
  %v425 = vunpack.c.h.b16 %v37
  %v426 = vunpack.c.l.b16 %v38
  %v427 = vunpack.c.h.b16 %v38
  %v428 = vunpack.c.l.b16 %v39
  %v429 = vunpack.c.h.b16 %v39
  %v430 = vunpack.c.l.b16 %v40
  %v431 = vunpack.c.h.b16 %v40
  %v432 = vunpack.c.l.b16 %v41
  %v433 = vunpack.c.h.b16 %v41
  %v434 = vunpack.c.l.b16 %v42
  %v435 = vunpack.c.h.b16 %v42
  %v436 = vunpack.c.l.b16 %v43
  %v437 = vunpack.c.h.b16 %v43
  %v438 = vunpack.c.l.b16 %v44
  %v439 = vunpack.c.h.b16 %v44
  %v440 = vunpack.c.l.b16 %v45
  %v441 = vunpack.c.h.b16 %v45
  %v442 = vunpack.c.l.b16 %v46
  %v443 = vunpack.c.h.b16 %v46
  %v444 = vunpack.c.l.b16 %v47
  %v445 = vunpack.c.h.b16 %v47
  %v446 = vunpack.c.l.b16 %v48
  %v447 = vunpack.c.h.b16 %v48
  %v448 = vunpack.c.l.b16 %v49
  %v449 = vunpack.c.h.b16 %v49
  %v450 = vunpack.c.l.b16 %v50
  %v451 = vunpack.c.h.b16 %v50
  %v452 = vunpack.c.l.b16 %v51
  %v453 = vunpack.c.h.b16 %v51
  %v454 = vunpack.c.l.b16 %v52
  %v455 = vunpack.c.h.b16 %v52
  %v456 = vunpack.c.l.b16 %v53
  %v457 = vunpack.c.h.b16 %v53
  %v458 = vunpack.c.l.b16 %v54
  %v459 = vunpack.c.h.b16 %v54
  %v460 = vunpack.c.l.b16 %v55
  %v461 = vunpack.c.h.b16 %v55
  %v462 = vunpack.c.l.b16 %v56
  %v463 = vunpack.c.h.b16 %v56
  %v464 = vunpack.c.l.b16 %v57
  %v465 = vunpack.c.h.b16 %v57
  %v466 = vunpack.c.l.b16 %v58
  %v467 = vunpack.c.h.b16 %v58
  %v468 = vunpack.c.l.b16 %v59
  %v469 = vunpack.c.h.b16 %v59
  %v470 = vunpack.c.l.b16 %v60
  %v471 = vunpack.c.h.b16 %v60
  %v472 = vunpack.c.l.b16 %v61
  %v473 = vunpack.c.h.b16 %v61
  %v474 = vunpack.c.l.b16 %v62
  %v475 = vunpack.c.h.b16 %v62
  %v476 = vunpack.c.l.b16 %v63
  %v477 = vunpack.c.h.b16 %v63
  %v478 = vunpack.c.l.b16 %v64
  %v479 = vunpack.c.h.b16 %v64
  %v480 = vunpack.c.l.b16 %v65
  %v481 = vunpack.c.h.b16 %v65
  %v482 = vunpack.c.l.b16 %v66
  %v483 = vunpack.c.h.b16 %v66
  %v484 = vunpack.c.l.b16 %v67
  %v485 = vunpack.c.h.b16 %v67
  %v486 = vunpack.c.l.b16 %v68
  %v487 = vunpack.c.h.b16 %v68
  %v488 = vunpack.c.l.b16 %v69
  %v489 = vunpack.c.h.b16 %v69
  %v490 = vunpack.c.l.b16 %v70
  %v491 = vunpack.c.h.b16 %v70
  %v492 = vunpack.c.l.b16 %v71
  %v493 = vunpack.c.h.b16 %v71
  %v494 = vunpack.c.l.b16 %v72
  %v495 = vunpack.c.h.b16 %v72
  %v496 = vunpack.c.l.b16 %v73
  %v497 = vunpack.c.h.b16 %v73
  %v498 = vunpack.c.l.b16 %v74
  %v499 = vunpack.c.h.b16 %v74
  %v500 = vunpack.c.l.b16 %v75
  %v501 = vunpack.c.h.b16 %v75
  %v502 = vunpack.c.l.b16 %v76
  %v503 = vunpack.c.h.b16 %v76
  %v504 = vunpack.c.l.b16 %v77
  %v505 = vunpack.c.h.b16 %v77
  %v506 = vunpack.c.l.b16 %v78
  %v507 = vunpack.c.h.b16 %v78
  %v508 = vunpack.c.l.b16 %v79
  %v509 = vunpack.c.h.b16 %v79
  %v510 = vunpack.c.l.b16 %v80
  %v511 = vunpack.c.h.b16 %v80
  %v512 = vunpack.c.l.b16 %v81
  %v513 = vunpack.c.h.b16 %v81
  %v514 = vunpack.c.l.b16 %v82
  %v515 = vunpack.c.h.b16 %v82
  %v516 = vunpack.c.l.b16 %v83
  %v517 = vunpack.c.h.b16 %v83
  %v518 = vunpack.c.l.b16 %v84
  %v519 = vunpack.c.h.b16 %v84
  %v520 = vunpack.c.l.b16 %v85
  %v521 = vunpack.c.h.b16 %v85
  %v522 = vunpack.c.l.b16 %v86
  %v523 = vunpack.c.h.b16 %v86
  %v524 = vunpack.c.l.b16 %v87
  %v525 = vunpack.c.h.b16 %v87
  %v526 = vunpack.c.l.b16 %v88
  %v527 = vunpack.c.h.b16 %v88
  %v528 = vunpack.c.l.b16 %v89
  %v529 = vunpack.c.h.b16 %v89
  %v530 = vunpack.c.l.b16 %v90
  %v531 = vunpack.c.h.b16 %v90
  %v532 = vunpack.c.l.b16 %v91
  %v533 = vunpack.c.h.b16 %v91
  %v534 = vunpack.c.l.b16 %v92
  %v535 = vunpack.c.h.b16 %v92
  %v536 = vunpack.c.l.b16 %v93
  %v537 = vunpack.c.h.b16 %v93
  %v538 = vunpack.c.l.b16 %v94
  %v539 = vunpack.c.h.b16 %v94
  %v540 = vunpack.c.l.b16 %v95
  %v541 = vunpack.c.h.b16 %v95
  %v542 = vunpack.c.l.b16 %v96
  %v543 = vunpack.c.h.b16 %v96
  %v544 = vunpack.c.l.b16 %v97
  %v545 = vunpack.c.h.b16 %v97
  %v546 = vunpack.c.l.b16 %v98
  %v547 = vunpack.c.h.b16 %v98
  %v548 = vunpack.c.l.b16 %v99
  %v549 = vunpack.c.h.b16 %v99
  %v550 = vunpack.c.l.b16 %v100
  %v551 = vunpack.c.h.b16 %v100
  %v552 = vunpack.c.l.b16 %v101
  %v553 = vunpack.c.h.b16 %v101
  %v554 = vunpack.c.l.b16 %v102
  %v555 = vunpack.c.h.b16 %v102
  %v556 = vunpack.c.l.b16 %v103
  %v557 = vunpack.c.h.b16 %v103
  %v558 = vunpack.c.l.b16 %v104
  %v559 = vunpack.c.h.b16 %v104
  %v560 = vunpack.c.l.b16 %v105
  %v561 = vunpack.c.h.b16 %v105
  %v562 = vunpack.c.l.b16 %v106
  %v563 = vunpack.c.h.b16 %v106
  %v564 = vunpack.c.l.b16 %v107
  %v565 = vunpack.c.h.b16 %v107
  %v566 = vunpack.c.l.b16 %v108
  %v567 = vunpack.c.h.b16 %v108
  %v568 = vunpack.c.l.b16 %v109
  %v569 = vunpack.c.h.b16 %v109
  %v570 = vunpack.c.l.b16 %v110
  %v571 = vunpack.c.h.b16 %v110
  %v572 = vunpack.c.l.b16 %v111
  %v573 = vunpack.c.h.b16 %v111
  %v574 = vunpack.c.l.b16 %v112
  %v575 = vunpack.c.h.b16 %v112
  %v576 = vunpack.c.l.b16 %v113
  %v577 = vunpack.c.h.b16 %v113
  %v578 = vunpack.c.l.b16 %v114
  %v579 = vunpack.c.h.b16 %v114
  %v580 = vunpack.c.l.b16 %v115
  %v581 = vunpack.c.h.b16 %v115
  %v582 = vunpack.c.l.b16 %v116
  %v583 = vunpack.c.h.b16 %v116
  %v584 = vunpack.c.l.b16 %v117
  %v585 = vunpack.c.h.b16 %v117
  %v586 = vunpack.c.l.b16 %v118
  %v587 = vunpack.c.h.b16 %v118
  %v588 = vunpack.c.l.b16 %v119
  %v589 = vunpack.c.h.b16 %v119
  %v590 = vunpack.c.l.b16 %v120
  %v591 = vunpack.c.h.b16 %v120
  %v592 = vunpack.c.l.b16 %v121
  %v593 = vunpack.c.h.b16 %v121
  %v594 = vunpack.c.l.b16 %v122
  %v595 = vunpack.c.h.b16 %v122
  %v596 = vunpack.c.l.b16 %v123
  %v597 = vunpack.c.h.b16 %v123
  %v598 = vunpack.c.l.b16 %v124
  %v599 = vunpack.c.h.b16 %v124
  %v600 = vunpack.c.l.b16 %v125
  %v601 = vunpack.c.h.b16 %v125
  %v602 = vunpack.c.l.b16 %v126
  %v603 = vunpack.c.h.b16 %v126
  %v604 = vunpack.c.l.b16 %v127
  %v605 = vunpack.c.h.b16 %v127
  %v606 = vunpack.c.l.b16 %v128
  %v607 = vunpack.c.h.b16 %v128
  %v608 = vunpack.c.l.b16 %v129
  %v609 = vunpack.c.h.b16 %v129
  %v610 = vunpack.c.l.b16 %v130
  %v611 = vunpack.c.h.b16 %v130
  %v612 = vunpack.c.l.b16 %v131
  %v613 = vunpack.c.h.b16 %v131
  %v614 = vunpack.c.l.b16 %v132
  %v615 = vunpack.c.h.b16 %v132
  %v616 = vunpack.c.l.b16 %v133
  %v617 = vunpack.c.h.b16 %v133
  %v618 = vunpack.c.l.b16 %v134
  %v619 = vunpack.c.h.b16 %v134
  %v620 = vunpack.c.l.b16 %v135
  %v621 = vunpack.c.h.b16 %v135
  %v622 = vunpack.c.l.b16 %v136
  %v623 = vunpack.c.h.b16 %v136
  %v624 = vunpack.c.l.b16 %v137
  %v625 = vunpack.c.h.b16 %v137
  %v626 = vunpack.c.l.b16 %v138
  %v627 = vunpack.c.h.b16 %v138
  %v628 = vunpack.c.l.b16 %v139
  %v629 = vunpack.c.h.b16 %v139
  %v630 = vunpack.c.l.b16 %v140
  %v631 = vunpack.c.h.b16 %v140
  %v632 = vunpack.c.l.b16 %v141
  %v633 = vunpack.c.h.b16 %v141
  %v634 = vunpack.c.l.b16 %v142
  %v635 = vunpack.c.h.b16 %v142
  %v636 = vunpack.c.l.b16 %v143
  %v637 = vunpack.c.h.b16 %v143
  %v638 = vunpack.c.l.b16 %v144
  %v639 = vunpack.c.h.b16 %v144
  %v640 = vunpack.c.l.b16 %v145
  %v641 = vunpack.c.h.b16 %v145
  %v642 = vunpack.c.l.b16 %v146
  %v643 = vunpack.c.h.b16 %v146
  %v644 = vunpack.c.l.b16 %v147
  %v645 = vunpack.c.h.b16 %v147
  %v646 = vunpack.c.l.b16 %v148
  %v647 = vunpack.c.h.b16 %v148
  %v648 = vunpack.c.l.b16 %v149
  %v649 = vunpack.c.h.b16 %v149
  %v650 = vunpack.c.l.b16 %v150
  %v651 = vunpack.c.h.b16 %v150
  %v652 = vunpack.c.l.b16 %v151
  %v653 = vunpack.c.h.b16 %v151
  %v654 = vunpack.c.l.b16 %v152
  %v655 = vunpack.c.h.b16 %v152
  %v656 = vunpack.c.l.b16 %v153
  %v657 = vunpack.c.h.b16 %v153
  %v658 = vunpack.c.l.b16 %v154
  %v659 = vunpack.c.h.b16 %v154
  %v660 = vunpack.c.l.b16 %v155
  %v661 = vunpack.c.h.b16 %v155
  %v662 = vunpack.c.l.b16 %v156
  %v663 = vunpack.c.h.b16 %v156
  %v664 = vunpack.c.l.b16 %v157
  %v665 = vunpack.c.h.b16 %v157
  %v666 = vunpack.c.l.b16 %v158
  %v667 = vunpack.c.h.b16 %v158
  %v668 = vunpack.c.l.b16 %v159
  %v669 = vunpack.c.h.b16 %v159
  %v670 = vunpack.c.l.b16 %v160
  %v671 = vunpack.c.h.b16 %v160
  %v672 = vunpack.c.l.b16 %v161
  %v673 = vunpack.c.h.b16 %v161
  %v674 = vunpack.c.l.b16 %v162
  %v675 = vunpack.c.h.b16 %v162
  %v676 = vunpack.c.l.b16 %v163
  %v677 = vunpack.c.h.b16 %v163
  %v678 = vunpack.c.l.b16 %v164
  %v679 = vunpack.c.h.b16 %v164
  %v680 = vunpack.c.l.b16 %v165
  %v681 = vunpack.c.h.b16 %v165
  %v682 = vunpack.c.l.b16 %v166
  %v683 = vunpack.c.h.b16 %v166
  %v684 = vunpack.c.l.b16 %v167
  %v685 = vunpack.c.h.b16 %v167
  %v686 = vunpack.c.l.b16 %v168
  %v687 = vunpack.c.h.b16 %v168
  %v688 = vunpack.c.l.b16 %v169
  %v689 = vunpack.c.h.b16 %v169
  %v690 = vunpack.c.l.b16 %v170
  %v691 = vunpack.c.h.b16 %v170
  %v692 = vunpack.c.l.b16 %v171
  %v693 = vunpack.c.h.b16 %v171
  %v694 = vunpack.c.l.b16 %v172
  %v695 = vunpack.c.h.b16 %v172
  %v696 = vunpack.c.l.b16 %v173
  %v697 = vunpack.c.h.b16 %v173
  %v698 = vunpack.c.l.b16 %v174
  %v699 = vunpack.c.h.b16 %v174
  %v700 = vunpack.c.l.b16 %v175
  %v701 = vunpack.c.h.b16 %v175
  %v702 = vunpack.c.l.b16 %v176
  %v703 = vunpack.c.h.b16 %v176
  %v704 = vunpack.c.l.b16 %v177
  %v705 = vunpack.c.h.b16 %v177
  %v706 = vunpack.c.l.b16 %v178
  %v707 = vunpack.c.h.b16 %v178
  %v708 = vunpack.c.l.b16 %v179
  %v709 = vunpack.c.h.b16 %v179
  %v710 = vunpack.c.l.b16 %v180
  %v711 = vunpack.c.h.b16 %v180
  %v712 = vunpack.c.l.b16 %v181
  %v713 = vunpack.c.h.b16 %v181
  %v714 = vunpack.c.l.b16 %v182
  %v715 = vunpack.c.h.b16 %v182
  %v716 = vunpack.c.l.b16 %v183
  %v717 = vunpack.c.h.b16 %v183
  %v718 = vunpack.c.l.b16 %v184
  %v719 = vunpack.c.h.b16 %v184
  %v720 = vunpack.c.l.b16 %v185
  %v721 = vunpack.c.h.b16 %v185
  %v722 = vunpack.c.l.b16 %v186
  %v723 = vunpack.c.h.b16 %v186
  %v724 = vunpack.c.l.b16 %v187
  %v725 = vunpack.c.h.b16 %v187
  %v726 = vunpack.c.l.b16 %v188
  %v727 = vunpack.c.h.b16 %v188
  %v728 = vunpack.c.l.b16 %v189
  %v729 = vunpack.c.h.b16 %v189
  %v730 = vunpack.c.l.b16 %v190
  %v731 = vunpack.c.h.b16 %v190
  %v732 = vunpack.c.l.b16 %v191
  %v733 = vunpack.c.h.b16 %v191
  %v734 = vpack.c.b16 %v418, %v414
  %v735 = vpack.c.b16 %v419, %v415
  %v736 = vpack.c.b16 %v420, %v416
  %v737 = vpack.c.b16 %v421, %v417
  %v738 = vpack.c.b16 %v426, %v422
  %v739 = vpack.c.b16 %v427, %v423
  %v740 = vpack.c.b16 %v428, %v424
  %v741 = vpack.c.b16 %v429, %v425
  %v742 = vpack.c.b16 %v434, %v430
  %v743 = vpack.c.b16 %v435, %v431
  %v744 = vpack.c.b16 %v436, %v432
  %v745 = vpack.c.b16 %v437, %v433
  %v746 = vpack.c.b16 %v442, %v438
  %v747 = vpack.c.b16 %v443, %v439
  %v748 = vpack.c.b16 %v444, %v440
  %v749 = vpack.c.b16 %v445, %v441
  %v750 = vpack.c.b16 %v450, %v446
  %v751 = vpack.c.b16 %v451, %v447
  %v752 = vpack.c.b16 %v452, %v448
  %v753 = vpack.c.b16 %v453, %v449
  %v754 = vpack.c.b16 %v458, %v454
  %v755 = vpack.c.b16 %v459, %v455
  %v756 = vpack.c.b16 %v460, %v456
  %v757 = vpack.c.b16 %v461, %v457
  %v758 = vpack.c.b16 %v466, %v462
  %v759 = vpack.c.b16 %v467, %v463
  %v760 = vpack.c.b16 %v468, %v464
  %v761 = vpack.c.b16 %v469, %v465
  %v762 = vpack.c.b16 %v474, %v470
  %v763 = vpack.c.b16 %v475, %v471
  %v764 = vpack.c.b16 %v476, %v472
  %v765 = vpack.c.b16 %v477, %v473
  %v766 = vpack.c.b16 %v482, %v478
  %v767 = vpack.c.b16 %v483, %v479
  %v768 = vpack.c.b16 %v484, %v480
  %v769 = vpack.c.b16 %v485, %v481
  %v770 = vpack.c.b16 %v490, %v486
  %v771 = vpack.c.b16 %v491, %v487
  %v772 = vpack.c.b16 %v492, %v488
  %v773 = vpack.c.b16 %v493, %v489
  %v774 = vpack.c.b16 %v498, %v494
  %v775 = vpack.c.b16 %v499, %v495
  %v776 = vpack.c.b16 %v500, %v496
  %v777 = vpack.c.b16 %v501, %v497
  %v778 = vpack.c.b16 %v506, %v502
  %v779 = vpack.c.b16 %v507, %v503
  %v780 = vpack.c.b16 %v508, %v504
  %v781 = vpack.c.b16 %v509, %v505
  %v782 = vpack.c.b16 %v514, %v510
  %v783 = vpack.c.b16 %v515, %v511
  %v784 = vpack.c.b16 %v516, %v512
  %v785 = vpack.c.b16 %v517, %v513
  %v786 = vpack.c.b16 %v522, %v518
  %v787 = vpack.c.b16 %v523, %v519
  %v788 = vpack.c.b16 %v524, %v520
  %v789 = vpack.c.b16 %v525, %v521
  %v790 = vpack.c.b16 %v530, %v526
  %v791 = vpack.c.b16 %v531, %v527
  %v792 = vpack.c.b16 %v532, %v528
  %v793 = vpack.c.b16 %v533, %v529
  %v794 = vpack.c.b16 %v538, %v534
  %v795 = vpack.c.b16 %v539, %v535
  %v796 = vpack.c.b16 %v540, %v536
  %v797 = vpack.c.b16 %v541, %v537
  %v798 = vpack.c.b16 %v546, %v542
  %v799 = vpack.c.b16 %v547, %v543
  %v800 = vpack.c.b16 %v548, %v544
  %v801 = vpack.c.b16 %v549, %v545
  %v802 = vpack.c.b16 %v554, %v550
  %v803 = vpack.c.b16 %v555, %v551
  %v804 = vpack.c.b16 %v556, %v552
  %v805 = vpack.c.b16 %v557, %v553
  %v806 = vpack.c.b16 %v562, %v558
  %v807 = vpack.c.b16 %v563, %v559
  %v808 = vpack.c.b16 %v564, %v560
  %v809 = vpack.c.b16 %v565, %v561
  %v810 = vpack.c.b16 %v570, %v566
  %v811 = vpack.c.b16 %v571, %v567
  %v812 = vpack.c.b16 %v572, %v568
  %v813 = vpack.c.b16 %v573, %v569
  %v814 = vpack.c.b16 %v578, %v574
  %v815 = vpack.c.b16 %v579, %v575
  %v816 = vpack.c.b16 %v580, %v576
  %v817 = vpack.c.b16 %v581, %v577
  %v818 = vpack.c.b16 %v586, %v582
  %v819 = vpack.c.b16 %v587, %v583
  %v820 = vpack.c.b16 %v588, %v584
  %v821 = vpack.c.b16 %v589, %v585
  %v822 = vpack.c.b16 %v594, %v590
  %v823 = vpack.c.b16 %v595, %v591
  %v824 = vpack.c.b16 %v596, %v592
  %v825 = vpack.c.b16 %v597, %v593
  %v826 = vpack.c.b16 %v602, %v598
  %v827 = vpack.c.b16 %v603, %v599
  %v828 = vpack.c.b16 %v604, %v600
  %v829 = vpack.c.b16 %v605, %v601
  %v830 = vpack.c.b16 %v610, %v606
  %v831 = vpack.c.b16 %v611, %v607
  %v832 = vpack.c.b16 %v612, %v608
  %v833 = vpack.c.b16 %v613, %v609
  %v834 = vpack.c.b16 %v618, %v614
  %v835 = vpack.c.b16 %v619, %v615
  %v836 = vpack.c.b16 %v620, %v616
  %v837 = vpack.c.b16 %v621, %v617
  %v838 = vpack.c.b16 %v626, %v622
  %v839 = vpack.c.b16 %v627, %v623
  %v840 = vpack.c.b16 %v628, %v624
  %v841 = vpack.c.b16 %v629, %v625
  %v842 = vpack.c.b16 %v634, %v630
  %v843 = vpack.c.b16 %v635, %v631
  %v844 = vpack.c.b16 %v636, %v632
  %v845 = vpack.c.b16 %v637, %v633
  %v846 = vpack.c.b16 %v642, %v638
  %v847 = vpack.c.b16 %v643, %v639
  %v848 = vpack.c.b16 %v644, %v640
  %v849 = vpack.c.b16 %v645, %v641
  %v850 = vpack.c.b16 %v650, %v646
  %v851 = vpack.c.b16 %v651, %v647
  %v852 = vpack.c.b16 %v652, %v648
  %v853 = vpack.c.b16 %v653, %v649
  %v854 = vpack.c.b16 %v658, %v654
  %v855 = vpack.c.b16 %v659, %v655
  %v856 = vpack.c.b16 %v660, %v656
  %v857 = vpack.c.b16 %v661, %v657
  %v858 = vpack.c.b16 %v666, %v662
  %v859 = vpack.c.b16 %v667, %v663
  %v860 = vpack.c.b16 %v668, %v664
  %v861 = vpack.c.b16 %v669, %v665
  %v862 = vpack.c.b16 %v674, %v670
  %v863 = vpack.c.b16 %v675, %v671
  %v864 = vpack.c.b16 %v676, %v672
  %v865 = vpack.c.b16 %v677, %v673
  %v866 = vpack.c.b16 %v682, %v678
  %v867 = vpack.c.b16 %v683, %v679
  %v868 = vpack.c.b16 %v684, %v680
  %v869 = vpack.c.b16 %v685, %v681
  %v870 = vpack.c.b16 %v690, %v686
  %v871 = vpack.c.b16 %v691, %v687
  %v872 = vpack.c.b16 %v692, %v688
  %v873 = vpack.c.b16 %v693, %v689
  %v874 = vpack.c.b16 %v698, %v694
  %v875 = vpack.c.b16 %v699, %v695
  %v876 = vpack.c.b16 %v700, %v696
  %v877 = vpack.c.b16 %v701, %v697
  %v878 = vpack.c.b16 %v706, %v702
  %v879 = vpack.c.b16 %v707, %v703
  %v880 = vpack.c.b16 %v708, %v704
  %v881 = vpack.c.b16 %v709, %v705
  %v882 = vpack.c.b16 %v714, %v710
  %v883 = vpack.c.b16 %v715, %v711
  %v884 = vpack.c.b16 %v716, %v712
  %v885 = vpack.c.b16 %v717, %v713
  %v886 = vpack.c.b16 %v722, %v718
  %v887 = vpack.c.b16 %v723, %v719
  %v888 = vpack.c.b16 %v724, %v720
  %v889 = vpack.c.b16 %v725, %v721
  %v890 = vpack.c.b16 %v730, %v726
  %v891 = vpack.c.b16 %v731, %v727
  %v892 = vpack.c.b16 %v732, %v728
  %v893 = vpack.c.b16 %v733, %v729
  %1054 = vmatpush.bf16.msra.mxu0 %v762
  %1055 = vmatpush.bf16.msra.mxu0 %v758
  %1056 = vmatpush.bf16.msra.mxu0 %v754
  %1057 = vmatpush.bf16.msra.mxu0 %v750
  %1058 = vmatpush.bf16.msra.mxu0 %v746
  %1059 = vmatpush.bf16.msra.mxu0 %v742
  %1060 = vmatpush.bf16.msra.mxu0 %v738
  %1061 = vmatpush.bf16.msra.mxu0 %v734
  %1062 = vmatmul.bf16.gmra.mxu0 %v234
  %v1063 = vpop.f32.mrf.mxu0
  %v1064 = vadd.f32 %v194, %v1063
  %v1065 = vpop.f32.mrf.mxu0
  %v1066 = vadd.f32 %v194, %v1065
  %1067 = vmatmul.bf16.gmra.mxu0 %v239
  %v1068 = vpop.f32.mrf.mxu0
  %v1069 = vadd.f32 %v194, %v1068
  %v1070 = vpop.f32.mrf.mxu0
  %v1071 = vadd.f32 %v194, %v1070
  %1072 = vdwg.mxu0
  %1073 = vmatpush.bf16.msra.mxu0 %v794
  %1074 = vmatpush.bf16.msra.mxu0 %v790
  %1075 = vmatpush.bf16.msra.mxu0 %v786
  %1076 = vmatpush.bf16.msra.mxu0 %v782
  %1077 = vmatpush.bf16.msra.mxu0 %v778
  %1078 = vmatpush.bf16.msra.mxu0 %v774
  %1079 = vmatpush.bf16.msra.mxu0 %v770
  %1080 = vmatpush.bf16.msra.mxu0 %v766
  %1081 = vmatmul.bf16.gmra.mxu0 %v235
  %v1082 = vpop.f32.mrf.mxu0
  %v1083 = vadd.f32 %v1064, %v1082
  %v1084 = vpop.f32.mrf.mxu0
  %v1085 = vadd.f32 %v1066, %v1084
  %1086 = vmatmul.bf16.gmra.mxu0 %v240
  %v1087 = vpop.f32.mrf.mxu0
  %v1088 = vadd.f32 %v1069, %v1087
  %v1089 = vpop.f32.mrf.mxu0
  %v1090 = vadd.f32 %v1071, %v1089
  %1091 = vdwg.mxu0
  %1092 = vmatpush.bf16.msra.mxu0 %v826
  %1093 = vmatpush.bf16.msra.mxu0 %v822
  %1094 = vmatpush.bf16.msra.mxu0 %v818
  %1095 = vmatpush.bf16.msra.mxu0 %v814
  %1096 = vmatpush.bf16.msra.mxu0 %v810
  %1097 = vmatpush.bf16.msra.mxu0 %v806
  %1098 = vmatpush.bf16.msra.mxu0 %v802
  %1099 = vmatpush.bf16.msra.mxu0 %v798
  %1100 = vmatmul.bf16.gmra.mxu0 %v236
  %v1101 = vpop.f32.mrf.mxu0
  %v1102 = vadd.f32 %v1083, %v1101
  %v1103 = vpop.f32.mrf.mxu0
  %v1104 = vadd.f32 %v1085, %v1103
  %1105 = vmatmul.bf16.gmra.mxu0 %v241
  %v1106 = vpop.f32.mrf.mxu0
  %v1107 = vadd.f32 %v1088, %v1106
  %v1108 = vpop.f32.mrf.mxu0
  %v1109 = vadd.f32 %v1090, %v1108
  %1110 = vdwg.mxu0
  %1111 = vmatpush.bf16.msra.mxu0 %v858
  %1112 = vmatpush.bf16.msra.mxu0 %v854
  %1113 = vmatpush.bf16.msra.mxu0 %v850
  %1114 = vmatpush.bf16.msra.mxu0 %v846
  %1115 = vmatpush.bf16.msra.mxu0 %v842
  %1116 = vmatpush.bf16.msra.mxu0 %v838
  %1117 = vmatpush.bf16.msra.mxu0 %v834
  %1118 = vmatpush.bf16.msra.mxu0 %v830
  %1119 = vmatmul.bf16.gmra.mxu0 %v237
  %v1120 = vpop.f32.mrf.mxu0
  %v1121 = vadd.f32 %v1102, %v1120
  %v1122 = vpop.f32.mrf.mxu0
  %v1123 = vadd.f32 %v1104, %v1122
  %1124 = vmatmul.bf16.gmra.mxu0 %v242
  %v1125 = vpop.f32.mrf.mxu0
  %v1126 = vadd.f32 %v1107, %v1125
  %v1127 = vpop.f32.mrf.mxu0
  %v1128 = vadd.f32 %v1109, %v1127
  %1129 = vdwg.mxu0
  %1130 = vmatpush.bf16.msra.mxu0 %v890
  %1131 = vmatpush.bf16.msra.mxu0 %v886
  %1132 = vmatpush.bf16.msra.mxu0 %v882
  %1133 = vmatpush.bf16.msra.mxu0 %v878
  %1134 = vmatpush.bf16.msra.mxu0 %v874
  %1135 = vmatpush.bf16.msra.mxu0 %v870
  %1136 = vmatpush.bf16.msra.mxu0 %v866
  %1137 = vmatpush.bf16.msra.mxu0 %v862
  %1138 = vmatmul.bf16.gmra.mxu0 %v238
  %v1139 = vpop.f32.mrf.mxu0
  %v1140 = vadd.f32 %v1121, %v1139
  %v1141 = vpop.f32.mrf.mxu0
  %v1142 = vadd.f32 %v1123, %v1141
  %1143 = vmatmul.bf16.gmra.mxu0 %v243
  %v1144 = vpop.f32.mrf.mxu0
  %v1145 = vadd.f32 %v1126, %v1144
  %v1146 = vpop.f32.mrf.mxu0
  %v1147 = vadd.f32 %v1128, %v1146
  %1148 = vdwg.mxu0
  %1149 = vmatpush.bf16.msra.mxu0 %v763
  %1150 = vmatpush.bf16.msra.mxu0 %v759
  %1151 = vmatpush.bf16.msra.mxu0 %v755
  %1152 = vmatpush.bf16.msra.mxu0 %v751
  %1153 = vmatpush.bf16.msra.mxu0 %v747
  %1154 = vmatpush.bf16.msra.mxu0 %v743
  %1155 = vmatpush.bf16.msra.mxu0 %v739
  %1156 = vmatpush.bf16.msra.mxu0 %v735
  %1157 = vmatmul.bf16.gmra.mxu0 %v234
  %v1158 = vpop.f32.mrf.mxu0
  %v1159 = vadd.f32 %v195, %v1158
  %v1160 = vpop.f32.mrf.mxu0
  %v1161 = vadd.f32 %v195, %v1160
  %1162 = vmatmul.bf16.gmra.mxu0 %v239
  %v1163 = vpop.f32.mrf.mxu0
  %v1164 = vadd.f32 %v195, %v1163
  %v1165 = vpop.f32.mrf.mxu0
  %v1166 = vadd.f32 %v195, %v1165
  %1167 = vdwg.mxu0
  %1168 = vmatpush.bf16.msra.mxu0 %v795
  %1169 = vmatpush.bf16.msra.mxu0 %v791
  %1170 = vmatpush.bf16.msra.mxu0 %v787
  %1171 = vmatpush.bf16.msra.mxu0 %v783
  %1172 = vmatpush.bf16.msra.mxu0 %v779
  %1173 = vmatpush.bf16.msra.mxu0 %v775
  %1174 = vmatpush.bf16.msra.mxu0 %v771
  %1175 = vmatpush.bf16.msra.mxu0 %v767
  %1176 = vmatmul.bf16.gmra.mxu0 %v235
  %v1177 = vpop.f32.mrf.mxu0
  %v1178 = vadd.f32 %v1159, %v1177
  %v1179 = vpop.f32.mrf.mxu0
  %v1180 = vadd.f32 %v1161, %v1179
  %1181 = vmatmul.bf16.gmra.mxu0 %v240
  %v1182 = vpop.f32.mrf.mxu0
  %v1183 = vadd.f32 %v1164, %v1182
  %v1184 = vpop.f32.mrf.mxu0
  %v1185 = vadd.f32 %v1166, %v1184
  %1186 = vdwg.mxu0
  %1187 = vmatpush.bf16.msra.mxu0 %v827
  %1188 = vmatpush.bf16.msra.mxu0 %v823
  %1189 = vmatpush.bf16.msra.mxu0 %v819
  %1190 = vmatpush.bf16.msra.mxu0 %v815
  %1191 = vmatpush.bf16.msra.mxu0 %v811
  %1192 = vmatpush.bf16.msra.mxu0 %v807
  %1193 = vmatpush.bf16.msra.mxu0 %v803
  %1194 = vmatpush.bf16.msra.mxu0 %v799
  %1195 = vmatmul.bf16.gmra.mxu0 %v236
  %v1196 = vpop.f32.mrf.mxu0
  %v1197 = vadd.f32 %v1178, %v1196
  %v1198 = vpop.f32.mrf.mxu0
  %v1199 = vadd.f32 %v1180, %v1198
  %1200 = vmatmul.bf16.gmra.mxu0 %v241
  %v1201 = vpop.f32.mrf.mxu0
  %v1202 = vadd.f32 %v1183, %v1201
  %v1203 = vpop.f32.mrf.mxu0
  %v1204 = vadd.f32 %v1185, %v1203
  %1205 = vdwg.mxu0
  %1206 = vmatpush.bf16.msra.mxu0 %v859
  %1207 = vmatpush.bf16.msra.mxu0 %v855
  %1208 = vmatpush.bf16.msra.mxu0 %v851
  %1209 = vmatpush.bf16.msra.mxu0 %v847
  %1210 = vmatpush.bf16.msra.mxu0 %v843
  %1211 = vmatpush.bf16.msra.mxu0 %v839
  %1212 = vmatpush.bf16.msra.mxu0 %v835
  %1213 = vmatpush.bf16.msra.mxu0 %v831
  %1214 = vmatmul.bf16.gmra.mxu0 %v237
  %v1215 = vpop.f32.mrf.mxu0
  %v1216 = vadd.f32 %v1197, %v1215
  %v1217 = vpop.f32.mrf.mxu0
  %v1218 = vadd.f32 %v1199, %v1217
  %1219 = vmatmul.bf16.gmra.mxu0 %v242
  %v1220 = vpop.f32.mrf.mxu0
  %v1221 = vadd.f32 %v1202, %v1220
  %v1222 = vpop.f32.mrf.mxu0
  %v1223 = vadd.f32 %v1204, %v1222
  %1224 = vdwg.mxu0
  %1225 = vmatpush.bf16.msra.mxu0 %v891
  %1226 = vmatpush.bf16.msra.mxu0 %v887
  %1227 = vmatpush.bf16.msra.mxu0 %v883
  %1228 = vmatpush.bf16.msra.mxu0 %v879
  %1229 = vmatpush.bf16.msra.mxu0 %v875
  %1230 = vmatpush.bf16.msra.mxu0 %v871
  %1231 = vmatpush.bf16.msra.mxu0 %v867
  %1232 = vmatpush.bf16.msra.mxu0 %v863
  %1233 = vmatmul.bf16.gmra.mxu0 %v238
  %v1234 = vpop.f32.mrf.mxu0
  %v1235 = vadd.f32 %v1216, %v1234
  %v1236 = vpop.f32.mrf.mxu0
  %v1237 = vadd.f32 %v1218, %v1236
  %1238 = vmatmul.bf16.gmra.mxu0 %v243
  %v1239 = vpop.f32.mrf.mxu0
  %v1240 = vadd.f32 %v1221, %v1239
  %v1241 = vpop.f32.mrf.mxu0
  %v1242 = vadd.f32 %v1223, %v1241
  %1243 = vdwg.mxu0
  %1244 = vmatpush.bf16.msra.mxu0 %v764
  %1245 = vmatpush.bf16.msra.mxu0 %v760
  %1246 = vmatpush.bf16.msra.mxu0 %v756
  %1247 = vmatpush.bf16.msra.mxu0 %v752
  %1248 = vmatpush.bf16.msra.mxu0 %v748
  %1249 = vmatpush.bf16.msra.mxu0 %v744
  %1250 = vmatpush.bf16.msra.mxu0 %v740
  %1251 = vmatpush.bf16.msra.mxu0 %v736
  %1252 = vmatmul.bf16.gmra.mxu0 %v234
  %v1253 = vpop.f32.mrf.mxu0
  %v1254 = vadd.f32 %v196, %v1253
  %v1255 = vpop.f32.mrf.mxu0
  %v1256 = vadd.f32 %v196, %v1255
  %1257 = vmatmul.bf16.gmra.mxu0 %v239
  %v1258 = vpop.f32.mrf.mxu0
  %v1259 = vadd.f32 %v196, %v1258
  %v1260 = vpop.f32.mrf.mxu0
  %v1261 = vadd.f32 %v196, %v1260
  %1262 = vdwg.mxu0
  %1263 = vmatpush.bf16.msra.mxu0 %v796
  %1264 = vmatpush.bf16.msra.mxu0 %v792
  %1265 = vmatpush.bf16.msra.mxu0 %v788
  %1266 = vmatpush.bf16.msra.mxu0 %v784
  %1267 = vmatpush.bf16.msra.mxu0 %v780
  %1268 = vmatpush.bf16.msra.mxu0 %v776
  %1269 = vmatpush.bf16.msra.mxu0 %v772
  %1270 = vmatpush.bf16.msra.mxu0 %v768
  %1271 = vmatmul.bf16.gmra.mxu0 %v235
  %v1272 = vpop.f32.mrf.mxu0
  %v1273 = vadd.f32 %v1254, %v1272
  %v1274 = vpop.f32.mrf.mxu0
  %v1275 = vadd.f32 %v1256, %v1274
  %1276 = vmatmul.bf16.gmra.mxu0 %v240
  %v1277 = vpop.f32.mrf.mxu0
  %v1278 = vadd.f32 %v1259, %v1277
  %v1279 = vpop.f32.mrf.mxu0
  %v1280 = vadd.f32 %v1261, %v1279
  %1281 = vdwg.mxu0
  %1282 = vmatpush.bf16.msra.mxu0 %v828
  %1283 = vmatpush.bf16.msra.mxu0 %v824
  %1284 = vmatpush.bf16.msra.mxu0 %v820
  %1285 = vmatpush.bf16.msra.mxu0 %v816
  %1286 = vmatpush.bf16.msra.mxu0 %v812
  %1287 = vmatpush.bf16.msra.mxu0 %v808
  %1288 = vmatpush.bf16.msra.mxu0 %v804
  %1289 = vmatpush.bf16.msra.mxu0 %v800
  %1290 = vmatmul.bf16.gmra.mxu0 %v236
  %v1291 = vpop.f32.mrf.mxu0
  %v1292 = vadd.f32 %v1273, %v1291
  %v1293 = vpop.f32.mrf.mxu0
  %v1294 = vadd.f32 %v1275, %v1293
  %1295 = vmatmul.bf16.gmra.mxu0 %v241
  %v1296 = vpop.f32.mrf.mxu0
  %v1297 = vadd.f32 %v1278, %v1296
  %v1298 = vpop.f32.mrf.mxu0
  %v1299 = vadd.f32 %v1280, %v1298
  %1300 = vdwg.mxu0
  %1301 = vmatpush.bf16.msra.mxu0 %v860
  %1302 = vmatpush.bf16.msra.mxu0 %v856
  %1303 = vmatpush.bf16.msra.mxu0 %v852
  %1304 = vmatpush.bf16.msra.mxu0 %v848
  %1305 = vmatpush.bf16.msra.mxu0 %v844
  %1306 = vmatpush.bf16.msra.mxu0 %v840
  %1307 = vmatpush.bf16.msra.mxu0 %v836
  %1308 = vmatpush.bf16.msra.mxu0 %v832
  %1309 = vmatmul.bf16.gmra.mxu0 %v237
  %v1310 = vpop.f32.mrf.mxu0
  %v1311 = vadd.f32 %v1292, %v1310
  %v1312 = vpop.f32.mrf.mxu0
  %v1313 = vadd.f32 %v1294, %v1312
  %1314 = vmatmul.bf16.gmra.mxu0 %v242
  %v1315 = vpop.f32.mrf.mxu0
  %v1316 = vadd.f32 %v1297, %v1315
  %v1317 = vpop.f32.mrf.mxu0
  %v1318 = vadd.f32 %v1299, %v1317
  %1319 = vdwg.mxu0
  %1320 = vmatpush.bf16.msra.mxu0 %v892
  %1321 = vmatpush.bf16.msra.mxu0 %v888
  %1322 = vmatpush.bf16.msra.mxu0 %v884
  %1323 = vmatpush.bf16.msra.mxu0 %v880
  %1324 = vmatpush.bf16.msra.mxu0 %v876
  %1325 = vmatpush.bf16.msra.mxu0 %v872
  %1326 = vmatpush.bf16.msra.mxu0 %v868
  %1327 = vmatpush.bf16.msra.mxu0 %v864
  %1328 = vmatmul.bf16.gmra.mxu0 %v238
  %v1329 = vpop.f32.mrf.mxu0
  %v1330 = vadd.f32 %v1311, %v1329
  %v1331 = vpop.f32.mrf.mxu0
  %v1332 = vadd.f32 %v1313, %v1331
  %1333 = vmatmul.bf16.gmra.mxu0 %v243
  %v1334 = vpop.f32.mrf.mxu0
  %v1335 = vadd.f32 %v1316, %v1334
  %v1336 = vpop.f32.mrf.mxu0
  %v1337 = vadd.f32 %v1318, %v1336
  %1338 = vdwg.mxu0
  %1339 = vmatpush.bf16.msra.mxu0 %v765
  %1340 = vmatpush.bf16.msra.mxu0 %v761
  %1341 = vmatpush.bf16.msra.mxu0 %v757
  %1342 = vmatpush.bf16.msra.mxu0 %v753
  %1343 = vmatpush.bf16.msra.mxu0 %v749
  %1344 = vmatpush.bf16.msra.mxu0 %v745
  %1345 = vmatpush.bf16.msra.mxu0 %v741
  %1346 = vmatpush.bf16.msra.mxu0 %v737
  %1347 = vmatmul.bf16.gmra.mxu0 %v234
  %v1348 = vpop.f32.mrf.mxu0
  %v1349 = vadd.f32 %v197, %v1348
  %v1350 = vpop.f32.mrf.mxu0
  %v1351 = vadd.f32 %v197, %v1350
  %1352 = vmatmul.bf16.gmra.mxu0 %v239
  %v1353 = vpop.f32.mrf.mxu0
  %v1354 = vadd.f32 %v197, %v1353
  %v1355 = vpop.f32.mrf.mxu0
  %v1356 = vadd.f32 %v197, %v1355
  %1357 = vdwg.mxu0
  %1358 = vmatpush.bf16.msra.mxu0 %v797
  %1359 = vmatpush.bf16.msra.mxu0 %v793
  %1360 = vmatpush.bf16.msra.mxu0 %v789
  %1361 = vmatpush.bf16.msra.mxu0 %v785
  %1362 = vmatpush.bf16.msra.mxu0 %v781
  %1363 = vmatpush.bf16.msra.mxu0 %v777
  %1364 = vmatpush.bf16.msra.mxu0 %v773
  %1365 = vmatpush.bf16.msra.mxu0 %v769
  %1366 = vmatmul.bf16.gmra.mxu0 %v235
  %v1367 = vpop.f32.mrf.mxu0
  %v1368 = vadd.f32 %v1349, %v1367
  %v1369 = vpop.f32.mrf.mxu0
  %v1370 = vadd.f32 %v1351, %v1369
  %1371 = vmatmul.bf16.gmra.mxu0 %v240
  %v1372 = vpop.f32.mrf.mxu0
  %v1373 = vadd.f32 %v1354, %v1372
  %v1374 = vpop.f32.mrf.mxu0
  %v1375 = vadd.f32 %v1356, %v1374
  %1376 = vdwg.mxu0
  %1377 = vmatpush.bf16.msra.mxu0 %v829
  %1378 = vmatpush.bf16.msra.mxu0 %v825
  %1379 = vmatpush.bf16.msra.mxu0 %v821
  %1380 = vmatpush.bf16.msra.mxu0 %v817
  %1381 = vmatpush.bf16.msra.mxu0 %v813
  %1382 = vmatpush.bf16.msra.mxu0 %v809
  %1383 = vmatpush.bf16.msra.mxu0 %v805
  %1384 = vmatpush.bf16.msra.mxu0 %v801
  %1385 = vmatmul.bf16.gmra.mxu0 %v236
  %v1386 = vpop.f32.mrf.mxu0
  %v1387 = vadd.f32 %v1368, %v1386
  %v1388 = vpop.f32.mrf.mxu0
  %v1389 = vadd.f32 %v1370, %v1388
  %1390 = vmatmul.bf16.gmra.mxu0 %v241
  %v1391 = vpop.f32.mrf.mxu0
  %v1392 = vadd.f32 %v1373, %v1391
  %v1393 = vpop.f32.mrf.mxu0
  %v1394 = vadd.f32 %v1375, %v1393
  %1395 = vdwg.mxu0
  %1396 = vmatpush.bf16.msra.mxu0 %v861
  %1397 = vmatpush.bf16.msra.mxu0 %v857
  %1398 = vmatpush.bf16.msra.mxu0 %v853
  %1399 = vmatpush.bf16.msra.mxu0 %v849
  %1400 = vmatpush.bf16.msra.mxu0 %v845
  %1401 = vmatpush.bf16.msra.mxu0 %v841
  %1402 = vmatpush.bf16.msra.mxu0 %v837
  %1403 = vmatpush.bf16.msra.mxu0 %v833
  %1404 = vmatmul.bf16.gmra.mxu0 %v237
  %v1405 = vpop.f32.mrf.mxu0
  %v1406 = vadd.f32 %v1387, %v1405
  %v1407 = vpop.f32.mrf.mxu0
  %v1408 = vadd.f32 %v1389, %v1407
  %1409 = vmatmul.bf16.gmra.mxu0 %v242
  %v1410 = vpop.f32.mrf.mxu0
  %v1411 = vadd.f32 %v1392, %v1410
  %v1412 = vpop.f32.mrf.mxu0
  %v1413 = vadd.f32 %v1394, %v1412
  %1414 = vdwg.mxu0
  %1415 = vmatpush.bf16.msra.mxu0 %v893
  %1416 = vmatpush.bf16.msra.mxu0 %v889
  %1417 = vmatpush.bf16.msra.mxu0 %v885
  %1418 = vmatpush.bf16.msra.mxu0 %v881
  %1419 = vmatpush.bf16.msra.mxu0 %v877
  %1420 = vmatpush.bf16.msra.mxu0 %v873
  %1421 = vmatpush.bf16.msra.mxu0 %v869
  %1422 = vmatpush.bf16.msra.mxu0 %v865
  %1423 = vmatmul.bf16.gmra.mxu0 %v238
  %v1424 = vpop.f32.mrf.mxu0
  %v1425 = vadd.f32 %v1406, %v1424
  %v1426 = vpop.f32.mrf.mxu0
  %v1427 = vadd.f32 %v1408, %v1426
  %1428 = vmatmul.bf16.gmra.mxu0 %v243
  %v1429 = vpop.f32.mrf.mxu0
  %v1430 = vadd.f32 %v1411, %v1429
  %v1431 = vpop.f32.mrf.mxu0
  %v1432 = vadd.f32 %v1413, %v1431
  %1433 = vdwg.mxu0
  %v1434 = vadd.f32 %v1140, %v1142
  %v1435 = vadd.f32 %v1434, %v1145
  %v1436 = vadd.f32 %v1435, %v1147
  %v1437 = vrot.slane %v1436, 4
  %v1438 = vadd.f32 %v1436, %v1437
  %v1439 = vrot.slane %v1438, 2
  %v1440 = vadd.f32 %v1438, %v1439
  %v1441 = vrot.slane %v1440, 1
  %v1442 = vadd.f32 %v1440, %v1441
  %v1443 = vadd.f32 %v1235, %v1237
  %v1444 = vadd.f32 %v1443, %v1240
  %v1445 = vadd.f32 %v1444, %v1242
  %v1446 = vrot.slane %v1445, 4
  %v1447 = vadd.f32 %v1445, %v1446
  %v1448 = vrot.slane %v1447, 2
  %v1449 = vadd.f32 %v1447, %v1448
  %v1450 = vrot.slane %v1449, 1
  %v1451 = vadd.f32 %v1449, %v1450
  %v1452 = vadd.f32 %v1330, %v1332
  %v1453 = vadd.f32 %v1452, %v1335
  %v1454 = vadd.f32 %v1453, %v1337
  %v1455 = vrot.slane %v1454, 4
  %v1456 = vadd.f32 %v1454, %v1455
  %v1457 = vrot.slane %v1456, 2
  %v1458 = vadd.f32 %v1456, %v1457
  %v1459 = vrot.slane %v1458, 1
  %v1460 = vadd.f32 %v1458, %v1459
  %v1461 = vadd.f32 %v1425, %v1427
  %v1462 = vadd.f32 %v1461, %v1430
  %v1463 = vadd.f32 %v1462, %v1432
  %v1464 = vrot.slane %v1463, 4
  %v1465 = vadd.f32 %v1463, %v1464
  %v1466 = vrot.slane %v1465, 2
  %v1467 = vadd.f32 %v1465, %v1466
  %v1468 = vrot.slane %v1467, 1
  %v1469 = vadd.f32 %v1467, %v1468
  %v1470 = vmul.f32 %v1140, %v1140
  %v1471 = vmul.f32 %v1235, %v1235
  %v1472 = vmul.f32 %v1330, %v1330
  %v1473 = vmul.f32 %v1425, %v1425
  %v1474 = vmul.f32 %v1142, %v1142
  %v1475 = vmul.f32 %v1237, %v1237
  %v1476 = vmul.f32 %v1332, %v1332
  %v1477 = vmul.f32 %v1427, %v1427
  %v1478 = vmul.f32 %v1145, %v1145
  %v1479 = vmul.f32 %v1240, %v1240
  %v1480 = vmul.f32 %v1335, %v1335
  %v1481 = vmul.f32 %v1430, %v1430
  %v1482 = vmul.f32 %v1147, %v1147
  %v1483 = vmul.f32 %v1242, %v1242
  %v1484 = vmul.f32 %v1337, %v1337
  %v1485 = vmul.f32 %v1432, %v1432
  %v1486 = vadd.f32 %v1470, %v1474
  %v1487 = vadd.f32 %v1486, %v1478
  %v1488 = vadd.f32 %v1487, %v1482
  %v1489 = vrot.slane %v1488, 4
  %v1490 = vadd.f32 %v1488, %v1489
  %v1491 = vrot.slane %v1490, 2
  %v1492 = vadd.f32 %v1490, %v1491
  %v1493 = vrot.slane %v1492, 1
  %v1494 = vadd.f32 %v1492, %v1493
  %v1495 = vadd.f32 %v1471, %v1475
  %v1496 = vadd.f32 %v1495, %v1479
  %v1497 = vadd.f32 %v1496, %v1483
  %v1498 = vrot.slane %v1497, 4
  %v1499 = vadd.f32 %v1497, %v1498
  %v1500 = vrot.slane %v1499, 2
  %v1501 = vadd.f32 %v1499, %v1500
  %v1502 = vrot.slane %v1501, 1
  %v1503 = vadd.f32 %v1501, %v1502
  %v1504 = vadd.f32 %v1472, %v1476
  %v1505 = vadd.f32 %v1504, %v1480
  %v1506 = vadd.f32 %v1505, %v1484
  %v1507 = vrot.slane %v1506, 4
  %v1508 = vadd.f32 %v1506, %v1507
  %v1509 = vrot.slane %v1508, 2
  %v1510 = vadd.f32 %v1508, %v1509
  %v1511 = vrot.slane %v1510, 1
  %v1512 = vadd.f32 %v1510, %v1511
  %v1513 = vadd.f32 %v1473, %v1477
  %v1514 = vadd.f32 %v1513, %v1481
  %v1515 = vadd.f32 %v1514, %v1485
  %v1516 = vrot.slane %v1515, 4
  %v1517 = vadd.f32 %v1515, %v1516
  %v1518 = vrot.slane %v1517, 2
  %v1519 = vadd.f32 %v1517, %v1518
  %v1520 = vrot.slane %v1519, 1
  %v1521 = vadd.f32 %v1519, %v1520
  %v1522 = vadd.f32 %v1442, %v1451
  %v1523 = vadd.f32 %v1522, %v1460
  %v1524 = vadd.f32 %v1523, %v1469
  %v1525 = vadd.f32 %v1494, %v1503
  %v1526 = vadd.f32 %v1525, %v1512
  %v1527 = vadd.f32 %v1526, %v1521
  %v1528 = vrcp.pop 128.0
  %v1529 = vmul.f32 128.0, %v1528
  %v1530 = vsub.f32 1.0, %v1529
  %v1531 = vmul.f32 %v1528, %v1530
  %v1532 = vadd.f32 %v1528, %v1531
  %vm1533 = vweird.f32 %v1528
  %v1534 = vsel %vm1533, %v1528, %v1532
  %v1535 = vmul.f32 %v1524, %v1534
  %v1536 = vmul.f32 %v1527, %v1534
  %v1537 = vmul.f32 %v1535, %v1535
  %v1538 = vsub.f32 %v1536, %v1537
  %v1539 = vmax.f32 %v1538, 0.0
  %v1540 = vld [vmem:[%s3] sm:$0x1]
  %v1541 = vadd.f32 %v1539, 1e-05
  %v1542 = vrsqrt.pop %v1541
  %v1543 = vmul.f32 %v1542, %v1541
  %v1544 = vmul.f32 %v1543, %v1542
  %v1545 = vmul.f32 0.5, %v1544
  %v1546 = vsub.f32 1.5, %v1545
  %v1547 = vmul.f32 %v1542, %v1546
  %vm1548 = vweird.f32 %v1541
  %vm1549 = vweird.f32 %v1542
  %vm1550 = vmor %vm1548, %vm1549
  %v1551 = vsel %vm1550, %v1542, %v1547
  %v1552 = vmul.f32 %v1540, %v1551
  %v1553 = vld [vmem:[%s4] sm:$0x1]
  %v1554 = vmul.f32 %v1535, %v1552
  %v1555 = vsub.f32 %v1553, %v1554
  %v1557 = vperm.slane %v1552, 0
  %v1559 = vmul.f32 %v1140, %v1557
  %v1560 = vmul.f32 %v1142, %v1557
  %v1561 = vmul.f32 %v1145, %v1557
  %v1562 = vmul.f32 %v1147, %v1557
  %v1564 = vperm.slane %v1555, 0
  %v1566 = vadd.f32 %v1559, %v1564
  %v1567 = vadd.f32 %v1560, %v1564
  %v1568 = vadd.f32 %v1561, %v1564
  %v1569 = vadd.f32 %v1562, %v1564
  %v1570 = vmax.f32 %v1566, 0.0
  %v1571 = vmax.f32 %v1567, 0.0
  %v1572 = vmax.f32 %v1568, 0.0
  %v1573 = vmax.f32 %v1569, 0.0
  %v1574 = vpack.c.bf16 %v1570, %v1570
  %v1575 = vpack.c.bf16 %v1571, %v1571
  %v1576 = vpack.c.bf16 %v1572, %v1572
  %v1577 = vpack.c.bf16 %v1573, %v1573
  %1578 = vst [vmem:[%s5] sm:$0xf] %v1574
  %1579 = vst [vmem:[%s5 + $0x10] sm:$0xf] %v1575
  %1580 = vst [vmem:[%s5 + $0x20] sm:$0xf] %v1576
  %1581 = vst [vmem:[%s5 + $0x30] sm:$0xf] %v1577
  %v1582 = vmul.f32 %v1235, %v1557
  %v1583 = vmul.f32 %v1237, %v1557
  %v1584 = vmul.f32 %v1240, %v1557
  %v1585 = vmul.f32 %v1242, %v1557
  %v1586 = vadd.f32 %v1582, %v1564
  %v1587 = vadd.f32 %v1583, %v1564
  %v1588 = vadd.f32 %v1584, %v1564
  %v1589 = vadd.f32 %v1585, %v1564
  %v1590 = vmax.f32 %v1586, 0.0
  %v1591 = vmax.f32 %v1587, 0.0
  %v1592 = vmax.f32 %v1588, 0.0
  %v1593 = vmax.f32 %v1589, 0.0
  %v1594 = vpack.c.bf16 %v1590, %v1590
  %v1595 = vpack.c.bf16 %v1591, %v1591
  %v1596 = vpack.c.bf16 %v1592, %v1592
  %v1597 = vpack.c.bf16 %v1593, %v1593
  %1598 = vst [vmem:[%s5 + $0x4] sm:$0xf] %v1594
  %1599 = vst [vmem:[%s5 + $0x14] sm:$0xf] %v1595
  %1600 = vst [vmem:[%s5 + $0x24] sm:$0xf] %v1596
  %1601 = vst [vmem:[%s5 + $0x34] sm:$0xf] %v1597
  %v1602 = vmul.f32 %v1330, %v1557
  %v1603 = vmul.f32 %v1332, %v1557
  %v1604 = vmul.f32 %v1335, %v1557
  %v1605 = vmul.f32 %v1337, %v1557
  %v1606 = vadd.f32 %v1602, %v1564
  %v1607 = vadd.f32 %v1603, %v1564
  %v1608 = vadd.f32 %v1604, %v1564
  %v1609 = vadd.f32 %v1605, %v1564
  %v1610 = vmax.f32 %v1606, 0.0
  %v1611 = vmax.f32 %v1607, 0.0
  %v1612 = vmax.f32 %v1608, 0.0
  %v1613 = vmax.f32 %v1609, 0.0
  %v1614 = vpack.c.bf16 %v1610, %v1610
  %v1615 = vpack.c.bf16 %v1611, %v1611
  %v1616 = vpack.c.bf16 %v1612, %v1612
  %v1617 = vpack.c.bf16 %v1613, %v1613
  %1618 = vst [vmem:[%s5 + $0x8] sm:$0xf] %v1614
  %1619 = vst [vmem:[%s5 + $0x18] sm:$0xf] %v1615
  %1620 = vst [vmem:[%s5 + $0x28] sm:$0xf] %v1616
  %1621 = vst [vmem:[%s5 + $0x38] sm:$0xf] %v1617
  %v1622 = vmul.f32 %v1425, %v1557
  %v1623 = vmul.f32 %v1427, %v1557
  %v1624 = vmul.f32 %v1430, %v1557
  %v1625 = vmul.f32 %v1432, %v1557
  %v1626 = vadd.f32 %v1622, %v1564
  %v1627 = vadd.f32 %v1623, %v1564
  %v1628 = vadd.f32 %v1624, %v1564
  %v1629 = vadd.f32 %v1625, %v1564
  %v1630 = vmax.f32 %v1626, 0.0
  %v1631 = vmax.f32 %v1627, 0.0
  %v1632 = vmax.f32 %v1628, 0.0
  %v1633 = vmax.f32 %v1629, 0.0
  %v1634 = vpack.c.bf16 %v1630, %v1630
  %v1635 = vpack.c.bf16 %v1631, %v1631
  %v1636 = vpack.c.bf16 %v1632, %v1632
  %v1637 = vpack.c.bf16 %v1633, %v1633
  %1638 = vst [vmem:[%s5 + $0xc] sm:$0xf] %v1634
  %1639 = vst [vmem:[%s5 + $0x1c] sm:$0xf] %v1635
  %1640 = vst [vmem:[%s5 + $0x2c] sm:$0xf] %v1636
  %1641 = vst [vmem:[%s5 + $0x3c] sm:$0xf] %v1637
  // Predicated region
  $region22: #{wae_forward.13} parent=0 // pred_check
    _
  $region23: #{wae_forward.13} parent=0 // pred_check_branch
    %1643 = sbr.rel (0) target = $region25
  $region24: #{wae_forward.13} parent=0 // pred_region
    _
  $region25: #{wae_forward.13} parent=0 // pred_fallthru
    _
  // Predicated region
  $region26: #{wae_forward.13} parent=0 // pred_check
    _
  $region27: #{wae_forward.13} parent=0 // pred_check_branch
    %1645 = sbr.rel (0) target = $region29
  $region28: #{wae_forward.13} parent=0 // pred_region
    _
  $region29: #{wae_forward.13} parent=0 // pred_fallthru
    _

// kernel: wae_forward.14
$region0: #{wae_forward.14}
  #allocation0 [shape = 'u32[]', space=smem, size = 0x4, offset = 0x4, fixed_abs, tag = 'smem constant byte address 0x4 - core index']
  #allocation1 [shape = 'u32[72,128]{1,0:T(1,128)}', space=vmem, size = 0x9000, scoped, tag = 'internal scratch']
  %s0 = inlined_call_operand.vmem [shape: bf16[128,384], index: 0, kind: input, shape index: {}]
  %s1 = inlined_call_operand.vmem [shape: bf16[384,512], index: 1, kind: input, shape index: {}]
  %s2 = inlined_call_operand.vmem [shape: f32[1,512], index: 2, kind: input, shape index: {}]
  %s3 = inlined_call_operand.vmem [shape: bf16[128,512], index: 3, kind: output, shape index: {}]
  %s4 = sld [smem:[#allocation0]]
  $region45: #{wae_forward.14} parent=0
    _
  %s6 = ssub.s32 1, %s4
  %s7 = scalar_select 0, %s6, %s4
  loop: start=0, step=1, limit=4
  $region2: #{wae_forward.14} parent=0 // loop_pre_header
    _
  $region3: #{wae_forward.14} parent=0 // loop_header
    %s9 = sphi 0, %s13
    %p10 = scmp.ge.s32.totalorder %s9, 4
    %s19 = sphi 0, %s21
    %s22 = sphi 0, %s19
    %s23 = sphi 0, %s22
    %s39 = sphi 0, %s23
    %s43 = sphi 0, %s43
    %s45 = sphi 0, %s43
    %s46 = sphi 0, %s45
    %s60 = sphi 0, %s46
    %s64 = sphi 0, %s64
    %s66 = sphi 0, %s64
    %s67 = sphi 0, %s66
    %s81 = sphi 0, %s67
    %s87 = sphi 0, %s89
    %s90 = sphi 0, %s87
    %s91 = sphi 0, %s90
    %s107 = sphi 0, %s91
  $region4: #{wae_forward.14} parent=0 // loop_header_branch
    %12 = sbr.rel (%p10) target = $region8
  $region5: #{wae_forward.14} parent=0 // loop_body
    %s14 = ssub.s32 %s9, 1
    %s15 = ssub.s32 %s9, 2
    %s16 = sadd.s32 %s9, 1
    %s17 = ssub.s32 %s9, %s16
    %p18 = scmp.eq.s32.totalorder %s17, 0
    %s20 = sadd.s32 %s19, 1
    %s21 = scalar_select %p18, %s19, %s20
    %p24 = pneg %p18
    %p25 = scmp.eq.s32.totalorder %s9, 1
    %p26 = por %p24, %p25
    %p27 = scmp.ne.s32.totalorder %s19, %s22
    %p28 = scmp.eq.s32.totalorder %s9, 0
    %p29 = por %p27, %p28
    %p30 = scmp.ne.s32.totalorder %s19, %s22
    %p31 = scmp.eq.s32.totalorder %s14, 1
    %p32 = por %p30, %p31
    %p33 = scmp.ne.s32.totalorder %s22, %s23
    %p34 = scmp.eq.s32.totalorder %s14, 0
    %p35 = por %p33, %p34
    %p36 = scmp.ne.s32.totalorder %s22, %s23
    %p37 = scmp.eq.s32.totalorder %s15, 1
    %p38 = por %p36, %p37
    %p40 = scmp.ne.s32.totalorder %s23, %s39
    %p41 = scmp.eq.s32.totalorder %s15, 0
    %p42 = por %p40, %p41
    %s44 = sadd.s32 %s43, 1
    %p47 = scmp.eq.s32.totalorder %s9, 1
    %p48 = scmp.ne.s32.totalorder %s43, %s45
    %p49 = scmp.eq.s32.totalorder %s9, 0
    %p50 = por %p48, %p49
    %p51 = scmp.ne.s32.totalorder %s43, %s45
    %p52 = scmp.eq.s32.totalorder %s14, 1
    %p53 = por %p51, %p52
    %p54 = scmp.ne.s32.totalorder %s45, %s46
    %p55 = scmp.eq.s32.totalorder %s14, 0
    %p56 = por %p54, %p55
    %p57 = scmp.ne.s32.totalorder %s45, %s46
    %p58 = scmp.eq.s32.totalorder %s15, 1
    %p59 = por %p57, %p58
    %p61 = scmp.ne.s32.totalorder %s46, %s60
    %p62 = scmp.eq.s32.totalorder %s15, 0
    %p63 = por %p61, %p62
    %s65 = sadd.s32 %s64, 1
    %p68 = scmp.eq.s32.totalorder %s9, 1
    %p69 = scmp.ne.s32.totalorder %s64, %s66
    %p70 = scmp.eq.s32.totalorder %s9, 0
    %p71 = por %p69, %p70
    %p72 = scmp.ne.s32.totalorder %s64, %s66
    %p73 = scmp.eq.s32.totalorder %s14, 1
    %p74 = por %p72, %p73
    %p75 = scmp.ne.s32.totalorder %s66, %s67
    %p76 = scmp.eq.s32.totalorder %s14, 0
    %p77 = por %p75, %p76
    %p78 = scmp.ne.s32.totalorder %s66, %s67
    %p79 = scmp.eq.s32.totalorder %s15, 1
    %p80 = por %p78, %p79
    %p82 = scmp.ne.s32.totalorder %s67, %s81
    %p83 = scmp.eq.s32.totalorder %s15, 0
    %p84 = por %p82, %p83
    %s85 = ssub.s32 %s9, %s16
    %p86 = scmp.eq.s32.totalorder %s85, 0
    %s88 = sadd.s32 %s87, 1
    %s89 = scalar_select %p86, %s87, %s88
    %p92 = pneg %p86
    %p93 = scmp.eq.s32.totalorder %s9, 1
    %p94 = por %p92, %p93
    %p95 = scmp.ne.s32.totalorder %s87, %s90
    %p96 = scmp.eq.s32.totalorder %s9, 0
    %p97 = por %p95, %p96
    %p98 = scmp.ne.s32.totalorder %s87, %s90
    %p99 = scmp.eq.s32.totalorder %s14, 1
    %p100 = por %p98, %p99
    %p101 = scmp.ne.s32.totalorder %s90, %s91
    %p102 = scmp.eq.s32.totalorder %s14, 0
    %p103 = por %p101, %p102
    %p104 = scmp.ne.s32.totalorder %s90, %s91
    %p105 = scmp.eq.s32.totalorder %s15, 1
    %p106 = por %p104, %p105
    %p108 = scmp.ne.s32.totalorder %s91, %s107
    %p109 = scmp.eq.s32.totalorder %s15, 0
    %p110 = por %p108, %p109
    %p111 = scmp.le.s32.totalorder 1, %s9
    %p112 = scmp.lt.s32.totalorder %s9, 3
    %p113 = pnand %p111, %p112
    %p114 = pneg %p113
    // Predicated region
    $region9: #{wae_forward.14} parent=5 // pred_check
      _
    $region10: #{wae_forward.14} parent=5 // pred_check_branch
      %116 = sbr.rel (%p113) target = $region12
    $region11: #{wae_forward.14} parent=5 // pred_region
      %s117 = ssub.s32 %s9, 1
      // Predicated region
      $region13: #{wae_forward.14} parent=11 // pred_check
        %p118 = pneg %p56
      $region14: #{wae_forward.14} parent=11 // pred_check_branch
        %120 = sbr.rel (%p118) target = $region16
      $region15: #{wae_forward.14} parent=11 // pred_region
        _
      $region16: #{wae_forward.14} parent=11 // pred_fallthru
        _
      // Predicated region
      $region17: #{wae_forward.14} parent=11 // pred_check
        %p121 = pneg %p77
      $region18: #{wae_forward.14} parent=11 // pred_check_branch
        %123 = sbr.rel (%p121) target = $region20
      $region19: #{wae_forward.14} parent=11 // pred_region
        _
      $region20: #{wae_forward.14} parent=11 // pred_fallthru
        _
    $region12: #{wae_forward.14} parent=5 // pred_fallthru
      _
    %p124 = scmp.lt.s32.totalorder %s9, 2
    // Predicated region
    $region21: #{wae_forward.14} parent=5 // pred_check
      %p125 = pneg %p124
    $region22: #{wae_forward.14} parent=5 // pred_check_branch
      %127 = sbr.rel (%p125) target = $region24
    $region23: #{wae_forward.14} parent=5 // pred_region
      // Predicated region
      $region25: #{wae_forward.14} parent=23 // pred_check
        %p128 = pneg %p29
      $region26: #{wae_forward.14} parent=23 // pred_check_branch
        %130 = sbr.rel (%p128) target = $region28
      $region27: #{wae_forward.14} parent=23 // pred_region
        %s131 = smul.u32 8, %s9
        %p132 = scmp.lt.s32.totalorder %s131, 15
        %s133 = scalar_select %p132, %s131, 15
        %s134 = smul.addr %s133, 3
        %s135 = smul.addr %s134, 4
        %s136 = scalar_lea.vmem %s0, %s135
        %s137 = smul.u32 8, %s9
      $region28: #{wae_forward.14} parent=23 // pred_fallthru
        _
    $region24: #{wae_forward.14} parent=5 // pred_fallthru
      _
    %p138 = scmp.le.s32.totalorder 1, %s9
    %p139 = scmp.lt.s32.totalorder %s9, 3
    %p140 = pnand %p138, %p139
    %p141 = pneg %p140
    // Predicated region
    $region29: #{wae_forward.14} parent=5 // pred_check
      _
    $region30: #{wae_forward.14} parent=5 // pred_check_branch
      %143 = sbr.rel (%p140) target = $region32
    $region31: #{wae_forward.14} parent=5 // pred_region
      %s144 = ssub.s32 %s9, 1
      %s145 = smul.u32 8, %s14
      %p146 = scmp.lt.s32.totalorder %s145, 15
      %s147 = scalar_select %p146, %s145, 15
      %s148 = smul.addr %s147, 3
      %s149 = smul.addr %s148, 4
      %s150 = scalar_lea.vmem %s0, %s149
      %p151 = pneg %p35
      %p152 = pneg %p32
      %p153 = pneg %p56
      %p154 = pneg %p53
      %p155 = pneg %p77
      %p156 = pneg %p74
      %p157 = pneg %p103
      %p158 = pneg %p100
      %s159 = smul.u32 8, %s14
      %p160 = scmp.lt.s32.totalorder %s159, 15
      %s161 = scalar_select %p160, %s159, 15
      %s162 = smul.addr %s161, 4
      %s163 = smul.addr %s162, 4
      %s164 = scalar_lea.vmem %s3, %s163
      %s165 = smul.u32 8, %s14
      %p166 = scmp.lt.s32.totalorder %s165, 15
      %s167 = scalar_select %p166, %s165, 15
      %s168 = smul.addr %s167, 3
      %s169 = smul.addr %s168, 4
      %s170 = scalar_lea.vmem %s0, %s169
      %s171 = smul.u32 8, %s14
      %s172 = smul.u32 8, %s14
      %p173 = scmp.lt.s32.totalorder %s172, 15
      %s174 = scalar_select %p173, %s172, 15
      %s175 = smul.addr %s174, 4
      %s176 = smul.addr %s175, 4
      %s177 = scalar_lea.vmem %s3, %s176
      %s178 = smul.u32 8, %s14
      %v179 = vld [vmem:[%s170] sm:$0xff]
      %v180 = vld [vmem:[%s170 + $0x8] sm:$0xf]
      %v181 = vld [vmem:[%s170 + $0xc] sm:$0xff]
      %v182 = vld [vmem:[%s170 + $0x14] sm:$0xf]
      %v183 = vld [vmem:[%s170 + $0x18] sm:$0xff]
      %v184 = vld [vmem:[%s170 + $0x20] sm:$0xf]
      %v185 = vld [vmem:[%s170 + $0x24] sm:$0xff]
      %v186 = vld [vmem:[%s170 + $0x2c] sm:$0xf]
      %v187 = vld [vmem:[%s170 + $0x30] sm:$0xff]
      %v188 = vld [vmem:[%s170 + $0x38] sm:$0xf]
      %v189 = vld [vmem:[%s170 + $0x3c] sm:$0xff]
      %v190 = vld [vmem:[%s170 + $0x44] sm:$0xf]
      %v191 = vld [vmem:[%s170 + $0x48] sm:$0xff]
      %v192 = vld [vmem:[%s170 + $0x50] sm:$0xf]
      %v193 = vld [vmem:[%s170 + $0x54] sm:$0xff]
      %v194 = vld [vmem:[%s170 + $0x5c] sm:$0xf]
      %v195 = vld [vmem:[%s1] sm:$0xff]
      %v196 = vld [vmem:[%s1 + $0x8] sm:$0xff]
      %v197 = vld [vmem:[%s1 + $0x10] sm:$0xff]
      %v198 = vld [vmem:[%s1 + $0x18] sm:$0xff]
      %v199 = vld [vmem:[%s1 + $0x20] sm:$0xff]
      %v200 = vld [vmem:[%s1 + $0x28] sm:$0xff]
      %v201 = vld [vmem:[%s1 + $0x30] sm:$0xff]
      %v202 = vld [vmem:[%s1 + $0x38] sm:$0xff]
      %v203 = vld [vmem:[%s1 + $0x40] sm:$0xff]
      %v204 = vld [vmem:[%s1 + $0x48] sm:$0xff]
      %v205 = vld [vmem:[%s1 + $0x50] sm:$0xff]
      %v206 = vld [vmem:[%s1 + $0x58] sm:$0xff]
      %v207 = vld [vmem:[%s1 + $0x60] sm:$0xff]
      %v208 = vld [vmem:[%s1 + $0x68] sm:$0xff]
      %v209 = vld [vmem:[%s1 + $0x70] sm:$0xff]
      %v210 = vld [vmem:[%s1 + $0x78] sm:$0xff]
      %v211 = vld [vmem:[%s1 + $0x80] sm:$0xff]
      %v212 = vld [vmem:[%s1 + $0x88] sm:$0xff]
      %v213 = vld [vmem:[%s1 + $0x90] sm:$0xff]
      %v214 = vld [vmem:[%s1 + $0x98] sm:$0xff]
      %v215 = vld [vmem:[%s1 + $0xa0] sm:$0xff]
      %v216 = vld [vmem:[%s1 + $0xa8] sm:$0xff]
      %v217 = vld [vmem:[%s1 + $0xb0] sm:$0xff]
      %v218 = vld [vmem:[%s1 + $0xb8] sm:$0xff]
      %v219 = vld [vmem:[%s1 + $0xc0] sm:$0xff]
      %v220 = vld [vmem:[%s1 + $0xc8] sm:$0xff]
      %v221 = vld [vmem:[%s1 + $0xd0] sm:$0xff]
      %v222 = vld [vmem:[%s1 + $0xd8] sm:$0xff]
      %v223 = vld [vmem:[%s1 + $0xe0] sm:$0xff]
      %v224 = vld [vmem:[%s1 + $0xe8] sm:$0xff]
      %v225 = vld [vmem:[%s1 + $0xf0] sm:$0xff]
      %v226 = vld [vmem:[%s1 + $0xf8] sm:$0xff]
      %v227 = vld [vmem:[%s1 + $0x100] sm:$0xff]
      %v228 = vld [vmem:[%s1 + $0x108] sm:$0xff]
      %v229 = vld [vmem:[%s1 + $0x110] sm:$0xff]
      %v230 = vld [vmem:[%s1 + $0x118] sm:$0xff]
      %v231 = vld [vmem:[%s1 + $0x120] sm:$0xff]
      %v232 = vld [vmem:[%s1 + $0x128] sm:$0xff]
      %v233 = vld [vmem:[%s1 + $0x130] sm:$0xff]
      %v234 = vld [vmem:[%s1 + $0x138] sm:$0xff]
      %v235 = vld [vmem:[%s1 + $0x140] sm:$0xff]
      %v236 = vld [vmem:[%s1 + $0x148] sm:$0xff]
      %v237 = vld [vmem:[%s1 + $0x150] sm:$0xff]
      %v238 = vld [vmem:[%s1 + $0x158] sm:$0xff]
      %v239 = vld [vmem:[%s1 + $0x160] sm:$0xff]
      %v240 = vld [vmem:[%s1 + $0x168] sm:$0xff]
      %v241 = vld [vmem:[%s1 + $0x170] sm:$0xff]
      %v242 = vld [vmem:[%s1 + $0x178] sm:$0xff]
      %v243 = vld [vmem:[%s1 + $0x180] sm:$0xff]
      %v244 = vld [vmem:[%s1 + $0x188] sm:$0xff]
      %v245 = vld [vmem:[%s1 + $0x190] sm:$0xff]
      %v246 = vld [vmem:[%s1 + $0x198] sm:$0xff]
      %v247 = vld [vmem:[%s1 + $0x1a0] sm:$0xff]
      %v248 = vld [vmem:[%s1 + $0x1a8] sm:$0xff]
      %v249 = vld [vmem:[%s1 + $0x1b0] sm:$0xff]
      %v250 = vld [vmem:[%s1 + $0x1b8] sm:$0xff]
      %v251 = vld [vmem:[%s1 + $0x1c0] sm:$0xff]
      %v252 = vld [vmem:[%s1 + $0x1c8] sm:$0xff]
      %v253 = vld [vmem:[%s1 + $0x1d0] sm:$0xff]
      %v254 = vld [vmem:[%s1 + $0x1d8] sm:$0xff]
      %v255 = vld [vmem:[%s1 + $0x1e0] sm:$0xff]
      %v256 = vld [vmem:[%s1 + $0x1e8] sm:$0xff]
      %v257 = vld [vmem:[%s1 + $0x1f0] sm:$0xff]
      %v258 = vld [vmem:[%s1 + $0x1f8] sm:$0xff]
      %v259 = vld [vmem:[%s1 + $0x200] sm:$0xff]
      %v260 = vld [vmem:[%s1 + $0x208] sm:$0xff]
      %v261 = vld [vmem:[%s1 + $0x210] sm:$0xff]
      %v262 = vld [vmem:[%s1 + $0x218] sm:$0xff]
      %v263 = vld [vmem:[%s1 + $0x220] sm:$0xff]
      %v264 = vld [vmem:[%s1 + $0x228] sm:$0xff]
      %v265 = vld [vmem:[%s1 + $0x230] sm:$0xff]
      %v266 = vld [vmem:[%s1 + $0x238] sm:$0xff]
      %v267 = vld [vmem:[%s1 + $0x240] sm:$0xff]
      %v268 = vld [vmem:[%s1 + $0x248] sm:$0xff]
      %v269 = vld [vmem:[%s1 + $0x250] sm:$0xff]
      %v270 = vld [vmem:[%s1 + $0x258] sm:$0xff]
      %v271 = vld [vmem:[%s1 + $0x260] sm:$0xff]
      %v272 = vld [vmem:[%s1 + $0x268] sm:$0xff]
      %v273 = vld [vmem:[%s1 + $0x270] sm:$0xff]
      %v274 = vld [vmem:[%s1 + $0x278] sm:$0xff]
      %v275 = vld [vmem:[%s1 + $0x280] sm:$0xff]
      %v276 = vld [vmem:[%s1 + $0x288] sm:$0xff]
      %v277 = vld [vmem:[%s1 + $0x290] sm:$0xff]
      %v278 = vld [vmem:[%s1 + $0x298] sm:$0xff]
      %v279 = vld [vmem:[%s1 + $0x2a0] sm:$0xff]
      %v280 = vld [vmem:[%s1 + $0x2a8] sm:$0xff]
      %v281 = vld [vmem:[%s1 + $0x2b0] sm:$0xff]
      %v282 = vld [vmem:[%s1 + $0x2b8] sm:$0xff]
      %v283 = vld [vmem:[%s1 + $0x2c0] sm:$0xff]
      %v284 = vld [vmem:[%s1 + $0x2c8] sm:$0xff]
      %v285 = vld [vmem:[%s1 + $0x2d0] sm:$0xff]
      %v286 = vld [vmem:[%s1 + $0x2d8] sm:$0xff]
      %v287 = vld [vmem:[%s1 + $0x2e0] sm:$0xff]
      %v288 = vld [vmem:[%s1 + $0x2e8] sm:$0xff]
      %v289 = vld [vmem:[%s1 + $0x2f0] sm:$0xff]
      %v290 = vld [vmem:[%s1 + $0x2f8] sm:$0xff]
      %v291 = vld [vmem:[%s2] sm:$0xf]
      %v293 = vperm.slane %v291, 0
      %v294 = vperm.slane %v291, 1
      %v295 = vperm.slane %v291, 2
      %v296 = vperm.slane %v291, 3
      %v317 = vunpack.c.l.b16 %v179
      %v318 = vunpack.c.h.b16 %v179
      %v319 = vunpack.c.l.b16 %v180
      %v320 = vunpack.c.l.b16 %v181
      %v321 = vunpack.c.h.b16 %v181
      %v322 = vunpack.c.l.b16 %v182
      %v323 = vunpack.c.l.b16 %v183
      %v324 = vunpack.c.h.b16 %v183
      %v325 = vunpack.c.l.b16 %v184
      %v326 = vunpack.c.l.b16 %v185
      %v327 = vunpack.c.h.b16 %v185
      %v328 = vunpack.c.l.b16 %v186
      %v329 = vunpack.c.l.b16 %v187
      %v330 = vunpack.c.h.b16 %v187
      %v331 = vunpack.c.l.b16 %v188
      %v332 = vunpack.c.l.b16 %v189
      %v333 = vunpack.c.h.b16 %v189
      %v334 = vunpack.c.l.b16 %v190
      %v335 = vunpack.c.l.b16 %v191
      %v336 = vunpack.c.h.b16 %v191
      %v337 = vunpack.c.l.b16 %v192
      %v338 = vunpack.c.l.b16 %v193
      %v339 = vunpack.c.h.b16 %v193
      %v340 = vunpack.c.l.b16 %v194
      %v341 = vpack.c.b16 %v320, %v317
      %v342 = vpack.c.b16 %v321, %v318
      %v343 = vpack.c.b16 %v322, %v319
      %v344 = vpack.c.b16 %v326, %v323
      %v345 = vpack.c.b16 %v327, %v324
      %v346 = vpack.c.b16 %v328, %v325
      %v347 = vpack.c.b16 %v332, %v329
      %v348 = vpack.c.b16 %v333, %v330
      %v349 = vpack.c.b16 %v334, %v331
      %v350 = vpack.c.b16 %v338, %v335
      %v351 = vpack.c.b16 %v339, %v336
      %v352 = vpack.c.b16 %v340, %v337
      %v461 = vunpack.c.l.b16 %v195
      %v462 = vunpack.c.h.b16 %v195
      %v463 = vunpack.c.l.b16 %v196
      %v464 = vunpack.c.h.b16 %v196
      %v465 = vunpack.c.l.b16 %v197
      %v466 = vunpack.c.h.b16 %v197
      %v467 = vunpack.c.l.b16 %v198
      %v468 = vunpack.c.h.b16 %v198
      %v469 = vunpack.c.l.b16 %v199
      %v470 = vunpack.c.h.b16 %v199
      %v471 = vunpack.c.l.b16 %v200
      %v472 = vunpack.c.h.b16 %v200
      %v473 = vunpack.c.l.b16 %v201
      %v474 = vunpack.c.h.b16 %v201
      %v475 = vunpack.c.l.b16 %v202
      %v476 = vunpack.c.h.b16 %v202
      %v477 = vunpack.c.l.b16 %v203
      %v478 = vunpack.c.h.b16 %v203
      %v479 = vunpack.c.l.b16 %v204
      %v480 = vunpack.c.h.b16 %v204
      %v481 = vunpack.c.l.b16 %v205
      %v482 = vunpack.c.h.b16 %v205
      %v483 = vunpack.c.l.b16 %v206
      %v484 = vunpack.c.h.b16 %v206
      %v485 = vunpack.c.l.b16 %v207
      %v486 = vunpack.c.h.b16 %v207
      %v487 = vunpack.c.l.b16 %v208
      %v488 = vunpack.c.h.b16 %v208
      %v489 = vunpack.c.l.b16 %v209
      %v490 = vunpack.c.h.b16 %v209
      %v491 = vunpack.c.l.b16 %v210
      %v492 = vunpack.c.h.b16 %v210
      %v493 = vunpack.c.l.b16 %v211
      %v494 = vunpack.c.h.b16 %v211
      %v495 = vunpack.c.l.b16 %v212
      %v496 = vunpack.c.h.b16 %v212
      %v497 = vunpack.c.l.b16 %v213
      %v498 = vunpack.c.h.b16 %v213
      %v499 = vunpack.c.l.b16 %v214
      %v500 = vunpack.c.h.b16 %v214
      %v501 = vunpack.c.l.b16 %v215
      %v502 = vunpack.c.h.b16 %v215
      %v503 = vunpack.c.l.b16 %v216
      %v504 = vunpack.c.h.b16 %v216
      %v505 = vunpack.c.l.b16 %v217
      %v506 = vunpack.c.h.b16 %v217
      %v507 = vunpack.c.l.b16 %v218
      %v508 = vunpack.c.h.b16 %v218
      %v509 = vunpack.c.l.b16 %v219
      %v510 = vunpack.c.h.b16 %v219
      %v511 = vunpack.c.l.b16 %v220
      %v512 = vunpack.c.h.b16 %v220
      %v513 = vunpack.c.l.b16 %v221
      %v514 = vunpack.c.h.b16 %v221
      %v515 = vunpack.c.l.b16 %v222
      %v516 = vunpack.c.h.b16 %v222
      %v517 = vunpack.c.l.b16 %v223
      %v518 = vunpack.c.h.b16 %v223
      %v519 = vunpack.c.l.b16 %v224
      %v520 = vunpack.c.h.b16 %v224
      %v521 = vunpack.c.l.b16 %v225
      %v522 = vunpack.c.h.b16 %v225
      %v523 = vunpack.c.l.b16 %v226
      %v524 = vunpack.c.h.b16 %v226
      %v525 = vunpack.c.l.b16 %v227
      %v526 = vunpack.c.h.b16 %v227
      %v527 = vunpack.c.l.b16 %v228
      %v528 = vunpack.c.h.b16 %v228
      %v529 = vunpack.c.l.b16 %v229
      %v530 = vunpack.c.h.b16 %v229
      %v531 = vunpack.c.l.b16 %v230
      %v532 = vunpack.c.h.b16 %v230
      %v533 = vunpack.c.l.b16 %v231
      %v534 = vunpack.c.h.b16 %v231
      %v535 = vunpack.c.l.b16 %v232
      %v536 = vunpack.c.h.b16 %v232
      %v537 = vunpack.c.l.b16 %v233
      %v538 = vunpack.c.h.b16 %v233
      %v539 = vunpack.c.l.b16 %v234
      %v540 = vunpack.c.h.b16 %v234
      %v541 = vunpack.c.l.b16 %v235
      %v542 = vunpack.c.h.b16 %v235
      %v543 = vunpack.c.l.b16 %v236
      %v544 = vunpack.c.h.b16 %v236
      %v545 = vunpack.c.l.b16 %v237
      %v546 = vunpack.c.h.b16 %v237
      %v547 = vunpack.c.l.b16 %v238
      %v548 = vunpack.c.h.b16 %v238
      %v549 = vunpack.c.l.b16 %v239
      %v550 = vunpack.c.h.b16 %v239
      %v551 = vunpack.c.l.b16 %v240
      %v552 = vunpack.c.h.b16 %v240
      %v553 = vunpack.c.l.b16 %v241
      %v554 = vunpack.c.h.b16 %v241
      %v555 = vunpack.c.l.b16 %v242
      %v556 = vunpack.c.h.b16 %v242
      %v557 = vunpack.c.l.b16 %v243
      %v558 = vunpack.c.h.b16 %v243
      %v559 = vunpack.c.l.b16 %v244
      %v560 = vunpack.c.h.b16 %v244
      %v561 = vunpack.c.l.b16 %v245
      %v562 = vunpack.c.h.b16 %v245
      %v563 = vunpack.c.l.b16 %v246
      %v564 = vunpack.c.h.b16 %v246
      %v565 = vunpack.c.l.b16 %v247
      %v566 = vunpack.c.h.b16 %v247
      %v567 = vunpack.c.l.b16 %v248
      %v568 = vunpack.c.h.b16 %v248
      %v569 = vunpack.c.l.b16 %v249
      %v570 = vunpack.c.h.b16 %v249
      %v571 = vunpack.c.l.b16 %v250
      %v572 = vunpack.c.h.b16 %v250
      %v573 = vunpack.c.l.b16 %v251
      %v574 = vunpack.c.h.b16 %v251
      %v575 = vunpack.c.l.b16 %v252
      %v576 = vunpack.c.h.b16 %v252
      %v577 = vunpack.c.l.b16 %v253
      %v578 = vunpack.c.h.b16 %v253
      %v579 = vunpack.c.l.b16 %v254
      %v580 = vunpack.c.h.b16 %v254
      %v581 = vunpack.c.l.b16 %v255
      %v582 = vunpack.c.h.b16 %v255
      %v583 = vunpack.c.l.b16 %v256
      %v584 = vunpack.c.h.b16 %v256
      %v585 = vunpack.c.l.b16 %v257
      %v586 = vunpack.c.h.b16 %v257
      %v587 = vunpack.c.l.b16 %v258
      %v588 = vunpack.c.h.b16 %v258
      %v589 = vunpack.c.l.b16 %v259
      %v590 = vunpack.c.h.b16 %v259
      %v591 = vunpack.c.l.b16 %v260
      %v592 = vunpack.c.h.b16 %v260
      %v593 = vunpack.c.l.b16 %v261
      %v594 = vunpack.c.h.b16 %v261
      %v595 = vunpack.c.l.b16 %v262
      %v596 = vunpack.c.h.b16 %v262
      %v597 = vunpack.c.l.b16 %v263
      %v598 = vunpack.c.h.b16 %v263
      %v599 = vunpack.c.l.b16 %v264
      %v600 = vunpack.c.h.b16 %v264
      %v601 = vunpack.c.l.b16 %v265
      %v602 = vunpack.c.h.b16 %v265
      %v603 = vunpack.c.l.b16 %v266
      %v604 = vunpack.c.h.b16 %v266
      %v605 = vunpack.c.l.b16 %v267
      %v606 = vunpack.c.h.b16 %v267
      %v607 = vunpack.c.l.b16 %v268
      %v608 = vunpack.c.h.b16 %v268
      %v609 = vunpack.c.l.b16 %v269
      %v610 = vunpack.c.h.b16 %v269
      %v611 = vunpack.c.l.b16 %v270
      %v612 = vunpack.c.h.b16 %v270
      %v613 = vunpack.c.l.b16 %v271
      %v614 = vunpack.c.h.b16 %v271
      %v615 = vunpack.c.l.b16 %v272
      %v616 = vunpack.c.h.b16 %v272
      %v617 = vunpack.c.l.b16 %v273
      %v618 = vunpack.c.h.b16 %v273
      %v619 = vunpack.c.l.b16 %v274
      %v620 = vunpack.c.h.b16 %v274
      %v621 = vunpack.c.l.b16 %v275
      %v622 = vunpack.c.h.b16 %v275
      %v623 = vunpack.c.l.b16 %v276
      %v624 = vunpack.c.h.b16 %v276
      %v625 = vunpack.c.l.b16 %v277
      %v626 = vunpack.c.h.b16 %v277
      %v627 = vunpack.c.l.b16 %v278
      %v628 = vunpack.c.h.b16 %v278
      %v629 = vunpack.c.l.b16 %v279
      %v630 = vunpack.c.h.b16 %v279
      %v631 = vunpack.c.l.b16 %v280
      %v632 = vunpack.c.h.b16 %v280
      %v633 = vunpack.c.l.b16 %v281
      %v634 = vunpack.c.h.b16 %v281
      %v635 = vunpack.c.l.b16 %v282
      %v636 = vunpack.c.h.b16 %v282
      %v637 = vunpack.c.l.b16 %v283
      %v638 = vunpack.c.h.b16 %v283
      %v639 = vunpack.c.l.b16 %v284
      %v640 = vunpack.c.h.b16 %v284
      %v641 = vunpack.c.l.b16 %v285
      %v642 = vunpack.c.h.b16 %v285
      %v643 = vunpack.c.l.b16 %v286
      %v644 = vunpack.c.h.b16 %v286
      %v645 = vunpack.c.l.b16 %v287
      %v646 = vunpack.c.h.b16 %v287
      %v647 = vunpack.c.l.b16 %v288
      %v648 = vunpack.c.h.b16 %v288
      %v649 = vunpack.c.l.b16 %v289
      %v650 = vunpack.c.h.b16 %v289
      %v651 = vunpack.c.l.b16 %v290
      %v652 = vunpack.c.h.b16 %v290
      %v653 = vpack.c.b16 %v465, %v461
      %v654 = vpack.c.b16 %v466, %v462
      %v655 = vpack.c.b16 %v467, %v463
      %v656 = vpack.c.b16 %v468, %v464
      %v657 = vpack.c.b16 %v473, %v469
      %v658 = vpack.c.b16 %v474, %v470
      %v659 = vpack.c.b16 %v475, %v471
      %v660 = vpack.c.b16 %v476, %v472
      %v661 = vpack.c.b16 %v481, %v477
      %v662 = vpack.c.b16 %v482, %v478
      %v663 = vpack.c.b16 %v483, %v479
      %v664 = vpack.c.b16 %v484, %v480
      %v665 = vpack.c.b16 %v489, %v485
      %v666 = vpack.c.b16 %v490, %v486
      %v667 = vpack.c.b16 %v491, %v487
      %v668 = vpack.c.b16 %v492, %v488
      %v669 = vpack.c.b16 %v497, %v493
      %v670 = vpack.c.b16 %v498, %v494
      %v671 = vpack.c.b16 %v499, %v495
      %v672 = vpack.c.b16 %v500, %v496
      %v673 = vpack.c.b16 %v505, %v501
      %v674 = vpack.c.b16 %v506, %v502
      %v675 = vpack.c.b16 %v507, %v503
      %v676 = vpack.c.b16 %v508, %v504
      %v677 = vpack.c.b16 %v513, %v509
      %v678 = vpack.c.b16 %v514, %v510
      %v679 = vpack.c.b16 %v515, %v511
      %v680 = vpack.c.b16 %v516, %v512
      %v681 = vpack.c.b16 %v521, %v517
      %v682 = vpack.c.b16 %v522, %v518
      %v683 = vpack.c.b16 %v523, %v519
      %v684 = vpack.c.b16 %v524, %v520
      %v685 = vpack.c.b16 %v529, %v525
      %v686 = vpack.c.b16 %v530, %v526
      %v687 = vpack.c.b16 %v531, %v527
      %v688 = vpack.c.b16 %v532, %v528
      %v689 = vpack.c.b16 %v537, %v533
      %v690 = vpack.c.b16 %v538, %v534
      %v691 = vpack.c.b16 %v539, %v535
      %v692 = vpack.c.b16 %v540, %v536
      %v693 = vpack.c.b16 %v545, %v541
      %v694 = vpack.c.b16 %v546, %v542
      %v695 = vpack.c.b16 %v547, %v543
      %v696 = vpack.c.b16 %v548, %v544
      %v697 = vpack.c.b16 %v553, %v549
      %v698 = vpack.c.b16 %v554, %v550
      %v699 = vpack.c.b16 %v555, %v551
      %v700 = vpack.c.b16 %v556, %v552
      %v701 = vpack.c.b16 %v561, %v557
      %v702 = vpack.c.b16 %v562, %v558
      %v703 = vpack.c.b16 %v563, %v559
      %v704 = vpack.c.b16 %v564, %v560
      %v705 = vpack.c.b16 %v569, %v565
      %v706 = vpack.c.b16 %v570, %v566
      %v707 = vpack.c.b16 %v571, %v567
      %v708 = vpack.c.b16 %v572, %v568
      %v709 = vpack.c.b16 %v577, %v573
      %v710 = vpack.c.b16 %v578, %v574
      %v711 = vpack.c.b16 %v579, %v575
      %v712 = vpack.c.b16 %v580, %v576
      %v713 = vpack.c.b16 %v585, %v581
      %v714 = vpack.c.b16 %v586, %v582
      %v715 = vpack.c.b16 %v587, %v583
      %v716 = vpack.c.b16 %v588, %v584
      %v717 = vpack.c.b16 %v593, %v589
      %v718 = vpack.c.b16 %v594, %v590
      %v719 = vpack.c.b16 %v595, %v591
      %v720 = vpack.c.b16 %v596, %v592
      %v721 = vpack.c.b16 %v601, %v597
      %v722 = vpack.c.b16 %v602, %v598
      %v723 = vpack.c.b16 %v603, %v599
      %v724 = vpack.c.b16 %v604, %v600
      %v725 = vpack.c.b16 %v609, %v605
      %v726 = vpack.c.b16 %v610, %v606
      %v727 = vpack.c.b16 %v611, %v607
      %v728 = vpack.c.b16 %v612, %v608
      %v729 = vpack.c.b16 %v617, %v613
      %v730 = vpack.c.b16 %v618, %v614
      %v731 = vpack.c.b16 %v619, %v615
      %v732 = vpack.c.b16 %v620, %v616
      %v733 = vpack.c.b16 %v625, %v621
      %v734 = vpack.c.b16 %v626, %v622
      %v735 = vpack.c.b16 %v627, %v623
      %v736 = vpack.c.b16 %v628, %v624
      %v737 = vpack.c.b16 %v633, %v629
      %v738 = vpack.c.b16 %v634, %v630
      %v739 = vpack.c.b16 %v635, %v631
      %v740 = vpack.c.b16 %v636, %v632
      %v741 = vpack.c.b16 %v641, %v637
      %v742 = vpack.c.b16 %v642, %v638
      %v743 = vpack.c.b16 %v643, %v639
      %v744 = vpack.c.b16 %v644, %v640
      %v745 = vpack.c.b16 %v649, %v645
      %v746 = vpack.c.b16 %v650, %v646
      %v747 = vpack.c.b16 %v651, %v647
      %v748 = vpack.c.b16 %v652, %v648
      %845 = vmatpush.bf16.msra.mxu0 %v681
      %846 = vmatpush.bf16.msra.mxu0 %v677
      %847 = vmatpush.bf16.msra.mxu0 %v673
      %848 = vmatpush.bf16.msra.mxu0 %v669
      %849 = vmatpush.bf16.msra.mxu0 %v665
      %850 = vmatpush.bf16.msra.mxu0 %v661
      %851 = vmatpush.bf16.msra.mxu0 %v657
      %852 = vmatpush.bf16.msra.mxu0 %v653
      %853 = vmatmul.bf16.gmra.mxu0 %v341
      %v854 = vpop.f32.mrf.mxu0
      %v855 = vadd.f32 %v293, %v854
      %v856 = vpop.f32.mrf.mxu0
      %v857 = vadd.f32 %v293, %v856
      %858 = vmatmul.bf16.gmra.mxu0 %v344
      %v859 = vpop.f32.mrf.mxu0
      %v860 = vadd.f32 %v293, %v859
      %v861 = vpop.f32.mrf.mxu0
      %v862 = vadd.f32 %v293, %v861
      %863 = vmatmul.bf16.gmra.mxu0 %v347
      %v864 = vpop.f32.mrf.mxu0
      %v865 = vadd.f32 %v293, %v864
      %v866 = vpop.f32.mrf.mxu0
      %v867 = vadd.f32 %v293, %v866
      %868 = vmatmul.bf16.gmra.mxu0 %v350
      %v869 = vpop.f32.mrf.mxu0
      %v870 = vadd.f32 %v293, %v869
      %v871 = vpop.f32.mrf.mxu0
      %v872 = vadd.f32 %v293, %v871
      %873 = vdwg.mxu0
      %874 = vmatpush.bf16.msra.mxu0 %v713
      %875 = vmatpush.bf16.msra.mxu0 %v709
      %876 = vmatpush.bf16.msra.mxu0 %v705
      %877 = vmatpush.bf16.msra.mxu0 %v701
      %878 = vmatpush.bf16.msra.mxu0 %v697
      %879 = vmatpush.bf16.msra.mxu0 %v693
      %880 = vmatpush.bf16.msra.mxu0 %v689
      %881 = vmatpush.bf16.msra.mxu0 %v685
      %882 = vmatmul.bf16.gmra.mxu0 %v342
      %v883 = vpop.f32.mrf.mxu0
      %v884 = vadd.f32 %v855, %v883
      %v885 = vpop.f32.mrf.mxu0
      %v886 = vadd.f32 %v857, %v885
      %887 = vmatmul.bf16.gmra.mxu0 %v345
      %v888 = vpop.f32.mrf.mxu0
      %v889 = vadd.f32 %v860, %v888
      %v890 = vpop.f32.mrf.mxu0
      %v891 = vadd.f32 %v862, %v890
      %892 = vmatmul.bf16.gmra.mxu0 %v348
      %v893 = vpop.f32.mrf.mxu0
      %v894 = vadd.f32 %v865, %v893
      %v895 = vpop.f32.mrf.mxu0
      %v896 = vadd.f32 %v867, %v895
      %897 = vmatmul.bf16.gmra.mxu0 %v351
      %v898 = vpop.f32.mrf.mxu0
      %v899 = vadd.f32 %v870, %v898
      %v900 = vpop.f32.mrf.mxu0
      %v901 = vadd.f32 %v872, %v900
      %902 = vdwg.mxu0
      %903 = vmatpush.bf16.msra.mxu0 %v745
      %904 = vmatpush.bf16.msra.mxu0 %v741
      %905 = vmatpush.bf16.msra.mxu0 %v737
      %906 = vmatpush.bf16.msra.mxu0 %v733
      %907 = vmatpush.bf16.msra.mxu0 %v729
      %908 = vmatpush.bf16.msra.mxu0 %v725
      %909 = vmatpush.bf16.msra.mxu0 %v721
      %910 = vmatpush.bf16.msra.mxu0 %v717
      %911 = vmatmul.bf16.gmra.mxu0 %v343
      %v912 = vpop.f32.mrf.mxu0
      %v913 = vadd.f32 %v884, %v912
      %v914 = vpop.f32.mrf.mxu0
      %v915 = vadd.f32 %v886, %v914
      %916 = vmatmul.bf16.gmra.mxu0 %v346
      %v917 = vpop.f32.mrf.mxu0
      %v918 = vadd.f32 %v889, %v917
      %v919 = vpop.f32.mrf.mxu0
      %v920 = vadd.f32 %v891, %v919
      %921 = vmatmul.bf16.gmra.mxu0 %v349
      %v922 = vpop.f32.mrf.mxu0
      %v923 = vadd.f32 %v894, %v922
      %v924 = vpop.f32.mrf.mxu0
      %v925 = vadd.f32 %v896, %v924
      %926 = vmatmul.bf16.gmra.mxu0 %v352
      %v927 = vpop.f32.mrf.mxu0
      %v928 = vadd.f32 %v899, %v927
      %v929 = vpop.f32.mrf.mxu0
      %v930 = vadd.f32 %v901, %v929
      %931 = vdwg.mxu0
      %932 = vmatpush.bf16.msra.mxu0 %v682
      %933 = vmatpush.bf16.msra.mxu0 %v678
      %934 = vmatpush.bf16.msra.mxu0 %v674
      %935 = vmatpush.bf16.msra.mxu0 %v670
      %936 = vmatpush.bf16.msra.mxu0 %v666
      %937 = vmatpush.bf16.msra.mxu0 %v662
      %938 = vmatpush.bf16.msra.mxu0 %v658
      %939 = vmatpush.bf16.msra.mxu0 %v654
      %940 = vmatmul.bf16.gmra.mxu0 %v341
      %v941 = vpop.f32.mrf.mxu0
      %v942 = vadd.f32 %v294, %v941
      %v943 = vpop.f32.mrf.mxu0
      %v944 = vadd.f32 %v294, %v943
      %945 = vmatmul.bf16.gmra.mxu0 %v344
      %v946 = vpop.f32.mrf.mxu0
      %v947 = vadd.f32 %v294, %v946
      %v948 = vpop.f32.mrf.mxu0
      %v949 = vadd.f32 %v294, %v948
      %950 = vmatmul.bf16.gmra.mxu0 %v347
      %v951 = vpop.f32.mrf.mxu0
      %v952 = vadd.f32 %v294, %v951
      %v953 = vpop.f32.mrf.mxu0
      %v954 = vadd.f32 %v294, %v953
      %955 = vmatmul.bf16.gmra.mxu0 %v350
      %v956 = vpop.f32.mrf.mxu0
      %v957 = vadd.f32 %v294, %v956
      %v958 = vpop.f32.mrf.mxu0
      %v959 = vadd.f32 %v294, %v958
      %960 = vdwg.mxu0
      %961 = vmatpush.bf16.msra.mxu0 %v714
      %962 = vmatpush.bf16.msra.mxu0 %v710
      %963 = vmatpush.bf16.msra.mxu0 %v706
      %964 = vmatpush.bf16.msra.mxu0 %v702
      %965 = vmatpush.bf16.msra.mxu0 %v698
      %966 = vmatpush.bf16.msra.mxu0 %v694
      %967 = vmatpush.bf16.msra.mxu0 %v690
      %968 = vmatpush.bf16.msra.mxu0 %v686
      %969 = vmatmul.bf16.gmra.mxu0 %v342
      %v970 = vpop.f32.mrf.mxu0
      %v971 = vadd.f32 %v942, %v970
      %v972 = vpop.f32.mrf.mxu0
      %v973 = vadd.f32 %v944, %v972
      %974 = vmatmul.bf16.gmra.mxu0 %v345
      %v975 = vpop.f32.mrf.mxu0
      %v976 = vadd.f32 %v947, %v975
      %v977 = vpop.f32.mrf.mxu0
      %v978 = vadd.f32 %v949, %v977
      %979 = vmatmul.bf16.gmra.mxu0 %v348
      %v980 = vpop.f32.mrf.mxu0
      %v981 = vadd.f32 %v952, %v980
      %v982 = vpop.f32.mrf.mxu0
      %v983 = vadd.f32 %v954, %v982
      %984 = vmatmul.bf16.gmra.mxu0 %v351
      %v985 = vpop.f32.mrf.mxu0
      %v986 = vadd.f32 %v957, %v985
      %v987 = vpop.f32.mrf.mxu0
      %v988 = vadd.f32 %v959, %v987
      %989 = vdwg.mxu0
      %990 = vmatpush.bf16.msra.mxu0 %v746
      %991 = vmatpush.bf16.msra.mxu0 %v742
      %992 = vmatpush.bf16.msra.mxu0 %v738
      %993 = vmatpush.bf16.msra.mxu0 %v734
      %994 = vmatpush.bf16.msra.mxu0 %v730
      %995 = vmatpush.bf16.msra.mxu0 %v726
      %996 = vmatpush.bf16.msra.mxu0 %v722
      %997 = vmatpush.bf16.msra.mxu0 %v718
      %998 = vmatmul.bf16.gmra.mxu0 %v343
      %v999 = vpop.f32.mrf.mxu0
      %v1000 = vadd.f32 %v971, %v999
      %v1001 = vpop.f32.mrf.mxu0
      %v1002 = vadd.f32 %v973, %v1001
      %1003 = vmatmul.bf16.gmra.mxu0 %v346
      %v1004 = vpop.f32.mrf.mxu0
      %v1005 = vadd.f32 %v976, %v1004
      %v1006 = vpop.f32.mrf.mxu0
      %v1007 = vadd.f32 %v978, %v1006
      %1008 = vmatmul.bf16.gmra.mxu0 %v349
      %v1009 = vpop.f32.mrf.mxu0
      %v1010 = vadd.f32 %v981, %v1009
      %v1011 = vpop.f32.mrf.mxu0
      %v1012 = vadd.f32 %v983, %v1011
      %1013 = vmatmul.bf16.gmra.mxu0 %v352
      %v1014 = vpop.f32.mrf.mxu0
      %v1015 = vadd.f32 %v986, %v1014
      %v1016 = vpop.f32.mrf.mxu0
      %v1017 = vadd.f32 %v988, %v1016
      %1018 = vdwg.mxu0
      %1019 = vmatpush.bf16.msra.mxu0 %v683
      %1020 = vmatpush.bf16.msra.mxu0 %v679
      %1021 = vmatpush.bf16.msra.mxu0 %v675
      %1022 = vmatpush.bf16.msra.mxu0 %v671
      %1023 = vmatpush.bf16.msra.mxu0 %v667
      %1024 = vmatpush.bf16.msra.mxu0 %v663
      %1025 = vmatpush.bf16.msra.mxu0 %v659
      %1026 = vmatpush.bf16.msra.mxu0 %v655
      %1027 = vmatmul.bf16.gmra.mxu0 %v341
      %v1028 = vpop.f32.mrf.mxu0
      %v1029 = vadd.f32 %v295, %v1028
      %v1030 = vpop.f32.mrf.mxu0
      %v1031 = vadd.f32 %v295, %v1030
      %1032 = vmatmul.bf16.gmra.mxu0 %v344
      %v1033 = vpop.f32.mrf.mxu0
      %v1034 = vadd.f32 %v295, %v1033
      %v1035 = vpop.f32.mrf.mxu0
      %v1036 = vadd.f32 %v295, %v1035
      %1037 = vmatmul.bf16.gmra.mxu0 %v347
      %v1038 = vpop.f32.mrf.mxu0
      %v1039 = vadd.f32 %v295, %v1038
      %v1040 = vpop.f32.mrf.mxu0
      %v1041 = vadd.f32 %v295, %v1040
      %1042 = vmatmul.bf16.gmra.mxu0 %v350
      %v1043 = vpop.f32.mrf.mxu0
      %v1044 = vadd.f32 %v295, %v1043
      %v1045 = vpop.f32.mrf.mxu0
      %v1046 = vadd.f32 %v295, %v1045
      %1047 = vdwg.mxu0
      %1048 = vmatpush.bf16.msra.mxu0 %v715
      %1049 = vmatpush.bf16.msra.mxu0 %v711
      %1050 = vmatpush.bf16.msra.mxu0 %v707
      %1051 = vmatpush.bf16.msra.mxu0 %v703
      %1052 = vmatpush.bf16.msra.mxu0 %v699
      %1053 = vmatpush.bf16.msra.mxu0 %v695
      %1054 = vmatpush.bf16.msra.mxu0 %v691
      %1055 = vmatpush.bf16.msra.mxu0 %v687
      %1056 = vmatmul.bf16.gmra.mxu0 %v342
      %v1057 = vpop.f32.mrf.mxu0
      %v1058 = vadd.f32 %v1029, %v1057
      %v1059 = vpop.f32.mrf.mxu0
      %v1060 = vadd.f32 %v1031, %v1059
      %1061 = vmatmul.bf16.gmra.mxu0 %v345
      %v1062 = vpop.f32.mrf.mxu0
      %v1063 = vadd.f32 %v1034, %v1062
      %v1064 = vpop.f32.mrf.mxu0
      %v1065 = vadd.f32 %v1036, %v1064
      %1066 = vmatmul.bf16.gmra.mxu0 %v348
      %v1067 = vpop.f32.mrf.mxu0
      %v1068 = vadd.f32 %v1039, %v1067
      %v1069 = vpop.f32.mrf.mxu0
      %v1070 = vadd.f32 %v1041, %v1069
      %1071 = vmatmul.bf16.gmra.mxu0 %v351
      %v1072 = vpop.f32.mrf.mxu0
      %v1073 = vadd.f32 %v1044, %v1072
      %v1074 = vpop.f32.mrf.mxu0
      %v1075 = vadd.f32 %v1046, %v1074
      %1076 = vdwg.mxu0
      %1077 = vmatpush.bf16.msra.mxu0 %v747
      %1078 = vmatpush.bf16.msra.mxu0 %v743
      %1079 = vmatpush.bf16.msra.mxu0 %v739
      %1080 = vmatpush.bf16.msra.mxu0 %v735
      %1081 = vmatpush.bf16.msra.mxu0 %v731
      %1082 = vmatpush.bf16.msra.mxu0 %v727
      %1083 = vmatpush.bf16.msra.mxu0 %v723
      %1084 = vmatpush.bf16.msra.mxu0 %v719
      %1085 = vmatmul.bf16.gmra.mxu0 %v343
      %v1086 = vpop.f32.mrf.mxu0
      %v1087 = vadd.f32 %v1058, %v1086
      %v1088 = vpop.f32.mrf.mxu0
      %v1089 = vadd.f32 %v1060, %v1088
      %1090 = vmatmul.bf16.gmra.mxu0 %v346
      %v1091 = vpop.f32.mrf.mxu0
      %v1092 = vadd.f32 %v1063, %v1091
      %v1093 = vpop.f32.mrf.mxu0
      %v1094 = vadd.f32 %v1065, %v1093
      %1095 = vmatmul.bf16.gmra.mxu0 %v349
      %v1096 = vpop.f32.mrf.mxu0
      %v1097 = vadd.f32 %v1068, %v1096
      %v1098 = vpop.f32.mrf.mxu0
      %v1099 = vadd.f32 %v1070, %v1098
      %1100 = vmatmul.bf16.gmra.mxu0 %v352
      %v1101 = vpop.f32.mrf.mxu0
      %v1102 = vadd.f32 %v1073, %v1101
      %v1103 = vpop.f32.mrf.mxu0
      %v1104 = vadd.f32 %v1075, %v1103
      %1105 = vdwg.mxu0
      %1106 = vmatpush.bf16.msra.mxu0 %v684
      %1107 = vmatpush.bf16.msra.mxu0 %v680
      %1108 = vmatpush.bf16.msra.mxu0 %v676
      %1109 = vmatpush.bf16.msra.mxu0 %v672
      %1110 = vmatpush.bf16.msra.mxu0 %v668
      %1111 = vmatpush.bf16.msra.mxu0 %v664
      %1112 = vmatpush.bf16.msra.mxu0 %v660
      %1113 = vmatpush.bf16.msra.mxu0 %v656
      %1114 = vmatmul.bf16.gmra.mxu0 %v341
      %v1115 = vpop.f32.mrf.mxu0
      %v1116 = vadd.f32 %v296, %v1115
      %v1117 = vpop.f32.mrf.mxu0
      %v1118 = vadd.f32 %v296, %v1117
      %1119 = vmatmul.bf16.gmra.mxu0 %v344
      %v1120 = vpop.f32.mrf.mxu0
      %v1121 = vadd.f32 %v296, %v1120
      %v1122 = vpop.f32.mrf.mxu0
      %v1123 = vadd.f32 %v296, %v1122
      %1124 = vmatmul.bf16.gmra.mxu0 %v347
      %v1125 = vpop.f32.mrf.mxu0
      %v1126 = vadd.f32 %v296, %v1125
      %v1127 = vpop.f32.mrf.mxu0
      %v1128 = vadd.f32 %v296, %v1127
      %1129 = vmatmul.bf16.gmra.mxu0 %v350
      %v1130 = vpop.f32.mrf.mxu0
      %v1131 = vadd.f32 %v296, %v1130
      %v1132 = vpop.f32.mrf.mxu0
      %v1133 = vadd.f32 %v296, %v1132
      %1134 = vdwg.mxu0
      %1135 = vmatpush.bf16.msra.mxu0 %v716
      %1136 = vmatpush.bf16.msra.mxu0 %v712
      %1137 = vmatpush.bf16.msra.mxu0 %v708
      %1138 = vmatpush.bf16.msra.mxu0 %v704
      %1139 = vmatpush.bf16.msra.mxu0 %v700
      %1140 = vmatpush.bf16.msra.mxu0 %v696
      %1141 = vmatpush.bf16.msra.mxu0 %v692
      %1142 = vmatpush.bf16.msra.mxu0 %v688
      %1143 = vmatmul.bf16.gmra.mxu0 %v342
      %v1144 = vpop.f32.mrf.mxu0
      %v1145 = vadd.f32 %v1116, %v1144
      %v1146 = vpop.f32.mrf.mxu0
      %v1147 = vadd.f32 %v1118, %v1146
      %1148 = vmatmul.bf16.gmra.mxu0 %v345
      %v1149 = vpop.f32.mrf.mxu0
      %v1150 = vadd.f32 %v1121, %v1149
      %v1151 = vpop.f32.mrf.mxu0
      %v1152 = vadd.f32 %v1123, %v1151
      %1153 = vmatmul.bf16.gmra.mxu0 %v348
      %v1154 = vpop.f32.mrf.mxu0
      %v1155 = vadd.f32 %v1126, %v1154
      %v1156 = vpop.f32.mrf.mxu0
      %v1157 = vadd.f32 %v1128, %v1156
      %1158 = vmatmul.bf16.gmra.mxu0 %v351
      %v1159 = vpop.f32.mrf.mxu0
      %v1160 = vadd.f32 %v1131, %v1159
      %v1161 = vpop.f32.mrf.mxu0
      %v1162 = vadd.f32 %v1133, %v1161
      %1163 = vdwg.mxu0
      %1164 = vmatpush.bf16.msra.mxu0 %v748
      %1165 = vmatpush.bf16.msra.mxu0 %v744
      %1166 = vmatpush.bf16.msra.mxu0 %v740
      %1167 = vmatpush.bf16.msra.mxu0 %v736
      %1168 = vmatpush.bf16.msra.mxu0 %v732
      %1169 = vmatpush.bf16.msra.mxu0 %v728
      %1170 = vmatpush.bf16.msra.mxu0 %v724
      %1171 = vmatpush.bf16.msra.mxu0 %v720
      %1172 = vmatmul.bf16.gmra.mxu0 %v343
      %v1173 = vpop.f32.mrf.mxu0
      %v1174 = vadd.f32 %v1145, %v1173
      %v1175 = vpop.f32.mrf.mxu0
      %v1176 = vadd.f32 %v1147, %v1175
      %1177 = vmatmul.bf16.gmra.mxu0 %v346
      %v1178 = vpop.f32.mrf.mxu0
      %v1179 = vadd.f32 %v1150, %v1178
      %v1180 = vpop.f32.mrf.mxu0
      %v1181 = vadd.f32 %v1152, %v1180
      %1182 = vmatmul.bf16.gmra.mxu0 %v349
      %v1183 = vpop.f32.mrf.mxu0
      %v1184 = vadd.f32 %v1155, %v1183
      %v1185 = vpop.f32.mrf.mxu0
      %v1186 = vadd.f32 %v1157, %v1185
      %1187 = vmatmul.bf16.gmra.mxu0 %v352
      %v1188 = vpop.f32.mrf.mxu0
      %v1189 = vadd.f32 %v1160, %v1188
      %v1190 = vpop.f32.mrf.mxu0
      %v1191 = vadd.f32 %v1162, %v1190
      %1192 = vdwg.mxu0
      %v1193 = vmax.f32 %v913, 0.0
      %v1194 = vmax.f32 %v1000, 0.0
      %v1195 = vmax.f32 %v1087, 0.0
      %v1196 = vmax.f32 %v1174, 0.0
      %v1197 = vmax.f32 %v915, 0.0
      %v1198 = vmax.f32 %v1002, 0.0
      %v1199 = vmax.f32 %v1089, 0.0
      %v1200 = vmax.f32 %v1176, 0.0
      %v1201 = vmax.f32 %v918, 0.0
      %v1202 = vmax.f32 %v1005, 0.0
      %v1203 = vmax.f32 %v1092, 0.0
      %v1204 = vmax.f32 %v1179, 0.0
      %v1205 = vmax.f32 %v920, 0.0
      %v1206 = vmax.f32 %v1007, 0.0
      %v1207 = vmax.f32 %v1094, 0.0
      %v1208 = vmax.f32 %v1181, 0.0
      %v1209 = vmax.f32 %v923, 0.0
      %v1210 = vmax.f32 %v1010, 0.0
      %v1211 = vmax.f32 %v1097, 0.0
      %v1212 = vmax.f32 %v1184, 0.0
      %v1213 = vmax.f32 %v925, 0.0
      %v1214 = vmax.f32 %v1012, 0.0
      %v1215 = vmax.f32 %v1099, 0.0
      %v1216 = vmax.f32 %v1186, 0.0
      %v1217 = vmax.f32 %v928, 0.0
      %v1218 = vmax.f32 %v1015, 0.0
      %v1219 = vmax.f32 %v1102, 0.0
      %v1220 = vmax.f32 %v1189, 0.0
      %v1221 = vmax.f32 %v930, 0.0
      %v1222 = vmax.f32 %v1017, 0.0
      %v1223 = vmax.f32 %v1104, 0.0
      %v1224 = vmax.f32 %v1191, 0.0
      %v1225 = vpack.c.bf16 %v1194, %v1193
      %v1226 = vpack.c.bf16 %v1196, %v1195
      %v1227 = vpack.c.bf16 %v1198, %v1197
      %v1228 = vpack.c.bf16 %v1200, %v1199
      %v1229 = vpack.c.bf16 %v1202, %v1201
      %v1230 = vpack.c.bf16 %v1204, %v1203
      %v1231 = vpack.c.bf16 %v1206, %v1205
      %v1232 = vpack.c.bf16 %v1208, %v1207
      %v1233 = vpack.c.bf16 %v1210, %v1209
      %v1234 = vpack.c.bf16 %v1212, %v1211
      %v1235 = vpack.c.bf16 %v1214, %v1213
      %v1236 = vpack.c.bf16 %v1216, %v1215
      %v1237 = vpack.c.bf16 %v1218, %v1217
      %v1238 = vpack.c.bf16 %v1220, %v1219
      %v1239 = vpack.c.bf16 %v1222, %v1221
      %v1240 = vpack.c.bf16 %v1224, %v1223
      %1241 = vst [vmem:[%s177] sm:$0xff] %v1225
      %1242 = vst [vmem:[%s177 + $0x8] sm:$0xff] %v1226
      %1243 = vst [vmem:[%s177 + $0x10] sm:$0xff] %v1227
      %1244 = vst [vmem:[%s177 + $0x18] sm:$0xff] %v1228
      %1245 = vst [vmem:[%s177 + $0x20] sm:$0xff] %v1229
      %1246 = vst [vmem:[%s177 + $0x28] sm:$0xff] %v1230
      %1247 = vst [vmem:[%s177 + $0x30] sm:$0xff] %v1231
      %1248 = vst [vmem:[%s177 + $0x38] sm:$0xff] %v1232
      %1249 = vst [vmem:[%s177 + $0x40] sm:$0xff] %v1233
      %1250 = vst [vmem:[%s177 + $0x48] sm:$0xff] %v1234
      %1251 = vst [vmem:[%s177 + $0x50] sm:$0xff] %v1235
      %1252 = vst [vmem:[%s177 + $0x58] sm:$0xff] %v1236
      %1253 = vst [vmem:[%s177 + $0x60] sm:$0xff] %v1237
      %1254 = vst [vmem:[%s177 + $0x68] sm:$0xff] %v1238
      %1255 = vst [vmem:[%s177 + $0x70] sm:$0xff] %v1239
      %1256 = vst [vmem:[%s177 + $0x78] sm:$0xff] %v1240
      %s1257 = smul.u32 8, %s14
      %p1258 = scmp.lt.s32.totalorder %s1257, 15
      %s1259 = scalar_select %p1258, %s1257, 15
      %s1260 = smul.addr %s1259, 4
      %s1261 = smul.addr %s1260, 4
      %s1262 = scalar_lea.vmem %s3, %s1261
      // Predicated region
      $region33: #{wae_forward.14} parent=31 // pred_check
        %p1263 = pneg %p100
      $region34: #{wae_forward.14} parent=31 // pred_check_branch
        %1265 = sbr.rel (%p1263) target = $region36
      $region35: #{wae_forward.14} parent=31 // pred_region
        %s1266 = smul.u32 8, %s14
      $region36: #{wae_forward.14} parent=31 // pred_fallthru
        _
    $region32: #{wae_forward.14} parent=5 // pred_fallthru
      _
    %p1267 = scmp.le.s32.totalorder 2, %s9
    // Predicated region
    $region37: #{wae_forward.14} parent=5 // pred_check
      %p1268 = pneg %p1267
    $region38: #{wae_forward.14} parent=5 // pred_check_branch
      %1270 = sbr.rel (%p1268) target = $region40
    $region39: #{wae_forward.14} parent=5 // pred_region
      %s1271 = ssub.s32 %s9, 2
      // Predicated region
      $region41: #{wae_forward.14} parent=39 // pred_check
        %p1272 = pneg %p106
      $region42: #{wae_forward.14} parent=39 // pred_check_branch
        %1274 = sbr.rel (%p1272) target = $region44
      $region43: #{wae_forward.14} parent=39 // pred_region
        %s1275 = smul.u32 8, %s15
        %p1276 = scmp.lt.s32.totalorder %s1275, 15
        %s1277 = scalar_select %p1276, %s1275, 15
        %s1278 = smul.addr %s1277, 4
        %s1279 = smul.addr %s1278, 4
        %s1280 = scalar_lea.vmem %s3, %s1279
      $region44: #{wae_forward.14} parent=39 // pred_fallthru
        _
    $region40: #{wae_forward.14} parent=5 // pred_fallthru
      _
  $region6: #{wae_forward.14} parent=0 // loop_footer
    %s13 = sadd.s32 1, %s9
  $region7: #{wae_forward.14} parent=0 // loop_footer_branch
    %8 = sbr.rel target = $region3
  $region8: #{wae_forward.14} parent=0 // loop_exit
    _

// kernel: wae_forward.15
$region0: #{wae_forward.15}
  #allocation0 [shape = 'u32[]', space=smem, size = 0x4, offset = 0x4, fixed_abs, tag = 'smem constant byte address 0x4 - core index']
  #allocation1 [shape = 'u32[72,128]{1,0:T(1,128)}', space=vmem, size = 0x9000, scoped, tag = 'internal scratch']
  %s0 = inlined_call_operand.vmem [shape: bf16[512,256], index: 0, kind: input, shape index: {}]
  %s1 = inlined_call_operand.vmem [shape: bf16[256,512], index: 1, kind: input, shape index: {}]
  %s2 = inlined_call_operand.vmem [shape: f32[1,512], index: 2, kind: input, shape index: {}]
  %s3 = inlined_call_operand.vmem [shape: f32[512,512], index: 3, kind: output, shape index: {}]
  %s4 = sld [smem:[#allocation0]]
  $region45: #{wae_forward.15} parent=0
    _
  %s6 = ssub.s32 1, %s4
  %s7 = scalar_select 0, %s6, %s4
  loop: start=0, step=1, limit=4
  $region2: #{wae_forward.15} parent=0 // loop_pre_header
    _
  $region3: #{wae_forward.15} parent=0 // loop_header
    %s9 = sphi 0, %s13
    %p10 = scmp.ge.s32.totalorder %s9, 4
    %s19 = sphi 0, %s21
    %s22 = sphi 0, %s19
    %s23 = sphi 0, %s22
    %s39 = sphi 0, %s23
    %s43 = sphi 0, %s43
    %s45 = sphi 0, %s43
    %s46 = sphi 0, %s45
    %s60 = sphi 0, %s46
    %s64 = sphi 0, %s64
    %s66 = sphi 0, %s64
    %s67 = sphi 0, %s66
    %s81 = sphi 0, %s67
    %s87 = sphi 0, %s89
    %s90 = sphi 0, %s87
    %s91 = sphi 0, %s90
    %s107 = sphi 0, %s91
  $region4: #{wae_forward.15} parent=0 // loop_header_branch
    %12 = sbr.rel (%p10) target = $region8
  $region5: #{wae_forward.15} parent=0 // loop_body
    %s14 = ssub.s32 %s9, 1
    %s15 = ssub.s32 %s9, 2
    %s16 = sadd.s32 %s9, 1
    %s17 = ssub.s32 %s9, %s16
    %p18 = scmp.eq.s32.totalorder %s17, 0
    %s20 = sadd.s32 %s19, 1
    %s21 = scalar_select %p18, %s19, %s20
    %p24 = pneg %p18
    %p25 = scmp.eq.s32.totalorder %s9, 1
    %p26 = por %p24, %p25
    %p27 = scmp.ne.s32.totalorder %s19, %s22
    %p28 = scmp.eq.s32.totalorder %s9, 0
    %p29 = por %p27, %p28
    %p30 = scmp.ne.s32.totalorder %s19, %s22
    %p31 = scmp.eq.s32.totalorder %s14, 1
    %p32 = por %p30, %p31
    %p33 = scmp.ne.s32.totalorder %s22, %s23
    %p34 = scmp.eq.s32.totalorder %s14, 0
    %p35 = por %p33, %p34
    %p36 = scmp.ne.s32.totalorder %s22, %s23
    %p37 = scmp.eq.s32.totalorder %s15, 1
    %p38 = por %p36, %p37
    %p40 = scmp.ne.s32.totalorder %s23, %s39
    %p41 = scmp.eq.s32.totalorder %s15, 0
    %p42 = por %p40, %p41
    %s44 = sadd.s32 %s43, 1
    %p47 = scmp.eq.s32.totalorder %s9, 1
    %p48 = scmp.ne.s32.totalorder %s43, %s45
    %p49 = scmp.eq.s32.totalorder %s9, 0
    %p50 = por %p48, %p49
    %p51 = scmp.ne.s32.totalorder %s43, %s45
    %p52 = scmp.eq.s32.totalorder %s14, 1
    %p53 = por %p51, %p52
    %p54 = scmp.ne.s32.totalorder %s45, %s46
    %p55 = scmp.eq.s32.totalorder %s14, 0
    %p56 = por %p54, %p55
    %p57 = scmp.ne.s32.totalorder %s45, %s46
    %p58 = scmp.eq.s32.totalorder %s15, 1
    %p59 = por %p57, %p58
    %p61 = scmp.ne.s32.totalorder %s46, %s60
    %p62 = scmp.eq.s32.totalorder %s15, 0
    %p63 = por %p61, %p62
    %s65 = sadd.s32 %s64, 1
    %p68 = scmp.eq.s32.totalorder %s9, 1
    %p69 = scmp.ne.s32.totalorder %s64, %s66
    %p70 = scmp.eq.s32.totalorder %s9, 0
    %p71 = por %p69, %p70
    %p72 = scmp.ne.s32.totalorder %s64, %s66
    %p73 = scmp.eq.s32.totalorder %s14, 1
    %p74 = por %p72, %p73
    %p75 = scmp.ne.s32.totalorder %s66, %s67
    %p76 = scmp.eq.s32.totalorder %s14, 0
    %p77 = por %p75, %p76
    %p78 = scmp.ne.s32.totalorder %s66, %s67
    %p79 = scmp.eq.s32.totalorder %s15, 1
    %p80 = por %p78, %p79
    %p82 = scmp.ne.s32.totalorder %s67, %s81
    %p83 = scmp.eq.s32.totalorder %s15, 0
    %p84 = por %p82, %p83
    %s85 = ssub.s32 %s9, %s16
    %p86 = scmp.eq.s32.totalorder %s85, 0
    %s88 = sadd.s32 %s87, 1
    %s89 = scalar_select %p86, %s87, %s88
    %p92 = pneg %p86
    %p93 = scmp.eq.s32.totalorder %s9, 1
    %p94 = por %p92, %p93
    %p95 = scmp.ne.s32.totalorder %s87, %s90
    %p96 = scmp.eq.s32.totalorder %s9, 0
    %p97 = por %p95, %p96
    %p98 = scmp.ne.s32.totalorder %s87, %s90
    %p99 = scmp.eq.s32.totalorder %s14, 1
    %p100 = por %p98, %p99
    %p101 = scmp.ne.s32.totalorder %s90, %s91
    %p102 = scmp.eq.s32.totalorder %s14, 0
    %p103 = por %p101, %p102
    %p104 = scmp.ne.s32.totalorder %s90, %s91
    %p105 = scmp.eq.s32.totalorder %s15, 1
    %p106 = por %p104, %p105
    %p108 = scmp.ne.s32.totalorder %s91, %s107
    %p109 = scmp.eq.s32.totalorder %s15, 0
    %p110 = por %p108, %p109
    %p111 = scmp.le.s32.totalorder 1, %s9
    %p112 = scmp.lt.s32.totalorder %s9, 3
    %p113 = pnand %p111, %p112
    %p114 = pneg %p113
    // Predicated region
    $region9: #{wae_forward.15} parent=5 // pred_check
      _
    $region10: #{wae_forward.15} parent=5 // pred_check_branch
      %116 = sbr.rel (%p113) target = $region12
    $region11: #{wae_forward.15} parent=5 // pred_region
      %s117 = ssub.s32 %s9, 1
      // Predicated region
      $region13: #{wae_forward.15} parent=11 // pred_check
        %p118 = pneg %p56
      $region14: #{wae_forward.15} parent=11 // pred_check_branch
        %120 = sbr.rel (%p118) target = $region16
      $region15: #{wae_forward.15} parent=11 // pred_region
        _
      $region16: #{wae_forward.15} parent=11 // pred_fallthru
        _
      // Predicated region
      $region17: #{wae_forward.15} parent=11 // pred_check
        %p121 = pneg %p77
      $region18: #{wae_forward.15} parent=11 // pred_check_branch
        %123 = sbr.rel (%p121) target = $region20
      $region19: #{wae_forward.15} parent=11 // pred_region
        _
      $region20: #{wae_forward.15} parent=11 // pred_fallthru
        _
    $region12: #{wae_forward.15} parent=5 // pred_fallthru
      _
    %p124 = scmp.lt.s32.totalorder %s9, 2
    // Predicated region
    $region21: #{wae_forward.15} parent=5 // pred_check
      %p125 = pneg %p124
    $region22: #{wae_forward.15} parent=5 // pred_check_branch
      %127 = sbr.rel (%p125) target = $region24
    $region23: #{wae_forward.15} parent=5 // pred_region
      // Predicated region
      $region25: #{wae_forward.15} parent=23 // pred_check
        %p128 = pneg %p29
      $region26: #{wae_forward.15} parent=23 // pred_check_branch
        %130 = sbr.rel (%p128) target = $region28
      $region27: #{wae_forward.15} parent=23 // pred_region
        %s131 = smul.u32 32, %s9
        %p132 = scmp.lt.s32.totalorder %s131, 63
        %s133 = scalar_select %p132, %s131, 63
        %s134 = smul.addr %s133, 2
        %s135 = smul.addr %s134, 4
        %s136 = scalar_lea.vmem %s0, %s135
        %s137 = smul.u32 32, %s9
      $region28: #{wae_forward.15} parent=23 // pred_fallthru
        _
    $region24: #{wae_forward.15} parent=5 // pred_fallthru
      _
    %p138 = scmp.le.s32.totalorder 1, %s9
    %p139 = scmp.lt.s32.totalorder %s9, 3
    %p140 = pnand %p138, %p139
    %p141 = pneg %p140
    // Predicated region
    $region29: #{wae_forward.15} parent=5 // pred_check
      _
    $region30: #{wae_forward.15} parent=5 // pred_check_branch
      %143 = sbr.rel (%p140) target = $region32
    $region31: #{wae_forward.15} parent=5 // pred_region
      %s144 = ssub.s32 %s9, 1
      %s145 = smul.u32 32, %s14
      %p146 = scmp.lt.s32.totalorder %s145, 63
      %s147 = scalar_select %p146, %s145, 63
      %s148 = smul.addr %s147, 2
      %s149 = smul.addr %s148, 4
      %s150 = scalar_lea.vmem %s0, %s149
      %p151 = pneg %p35
      %p152 = pneg %p32
      %p153 = pneg %p56
      %p154 = pneg %p53
      %p155 = pneg %p77
      %p156 = pneg %p74
      %p157 = pneg %p103
      %p158 = pneg %p100
      %s159 = smul.u32 32, %s14
      %p160 = scmp.lt.s32.totalorder %s159, 63
      %s161 = scalar_select %p160, %s159, 63
      %s162 = smul.addr %s161, 4
      %s163 = smul.addr %s162, 8
      %s164 = scalar_lea.vmem %s3, %s163
      %s165 = smul.u32 32, %s14
      %p166 = scmp.lt.s32.totalorder %s165, 63
      %s167 = scalar_select %p166, %s165, 63
      %s168 = smul.addr %s167, 2
      %s169 = smul.addr %s168, 4
      %s170 = scalar_lea.vmem %s0, %s169
      %s171 = smul.u32 32, %s14
      %s172 = smul.u32 32, %s14
      %p173 = scmp.lt.s32.totalorder %s172, 63
      %s174 = scalar_select %p173, %s172, 63
      %s175 = smul.addr %s174, 4
      %s176 = smul.addr %s175, 8
      %s177 = scalar_lea.vmem %s3, %s176
      %s178 = smul.u32 32, %s14
      %v179 = vld [vmem:[%s170] sm:$0xff]
      %v180 = vld [vmem:[%s170 + $0x8] sm:$0xff]
      %v181 = vld [vmem:[%s170 + $0x10] sm:$0xff]
      %v182 = vld [vmem:[%s170 + $0x18] sm:$0xff]
      %v183 = vld [vmem:[%s170 + $0x20] sm:$0xff]
      %v184 = vld [vmem:[%s170 + $0x28] sm:$0xff]
      %v185 = vld [vmem:[%s170 + $0x30] sm:$0xff]
      %v186 = vld [vmem:[%s170 + $0x38] sm:$0xff]
      %v187 = vld [vmem:[%s170 + $0x40] sm:$0xff]
      %v188 = vld [vmem:[%s170 + $0x48] sm:$0xff]
      %v189 = vld [vmem:[%s170 + $0x50] sm:$0xff]
      %v190 = vld [vmem:[%s170 + $0x58] sm:$0xff]
      %v191 = vld [vmem:[%s170 + $0x60] sm:$0xff]
      %v192 = vld [vmem:[%s170 + $0x68] sm:$0xff]
      %v193 = vld [vmem:[%s170 + $0x70] sm:$0xff]
      %v194 = vld [vmem:[%s170 + $0x78] sm:$0xff]
      %v195 = vld [vmem:[%s170 + $0x80] sm:$0xff]
      %v196 = vld [vmem:[%s170 + $0x88] sm:$0xff]
      %v197 = vld [vmem:[%s170 + $0x90] sm:$0xff]
      %v198 = vld [vmem:[%s170 + $0x98] sm:$0xff]
      %v199 = vld [vmem:[%s170 + $0xa0] sm:$0xff]
      %v200 = vld [vmem:[%s170 + $0xa8] sm:$0xff]
      %v201 = vld [vmem:[%s170 + $0xb0] sm:$0xff]
      %v202 = vld [vmem:[%s170 + $0xb8] sm:$0xff]
      %v203 = vld [vmem:[%s170 + $0xc0] sm:$0xff]
      %v204 = vld [vmem:[%s170 + $0xc8] sm:$0xff]
      %v205 = vld [vmem:[%s170 + $0xd0] sm:$0xff]
      %v206 = vld [vmem:[%s170 + $0xd8] sm:$0xff]
      %v207 = vld [vmem:[%s170 + $0xe0] sm:$0xff]
      %v208 = vld [vmem:[%s170 + $0xe8] sm:$0xff]
      %v209 = vld [vmem:[%s170 + $0xf0] sm:$0xff]
      %v210 = vld [vmem:[%s170 + $0xf8] sm:$0xff]
      %v211 = vld [vmem:[%s1] sm:$0xff]
      %v212 = vld [vmem:[%s1 + $0x8] sm:$0xff]
      %v213 = vld [vmem:[%s1 + $0x10] sm:$0xff]
      %v214 = vld [vmem:[%s1 + $0x18] sm:$0xff]
      %v215 = vld [vmem:[%s1 + $0x20] sm:$0xff]
      %v216 = vld [vmem:[%s1 + $0x28] sm:$0xff]
      %v217 = vld [vmem:[%s1 + $0x30] sm:$0xff]
      %v218 = vld [vmem:[%s1 + $0x38] sm:$0xff]
      %v219 = vld [vmem:[%s1 + $0x40] sm:$0xff]
      %v220 = vld [vmem:[%s1 + $0x48] sm:$0xff]
      %v221 = vld [vmem:[%s1 + $0x50] sm:$0xff]
      %v222 = vld [vmem:[%s1 + $0x58] sm:$0xff]
      %v223 = vld [vmem:[%s1 + $0x60] sm:$0xff]
      %v224 = vld [vmem:[%s1 + $0x68] sm:$0xff]
      %v225 = vld [vmem:[%s1 + $0x70] sm:$0xff]
      %v226 = vld [vmem:[%s1 + $0x78] sm:$0xff]
      %v227 = vld [vmem:[%s1 + $0x80] sm:$0xff]
      %v228 = vld [vmem:[%s1 + $0x88] sm:$0xff]
      %v229 = vld [vmem:[%s1 + $0x90] sm:$0xff]
      %v230 = vld [vmem:[%s1 + $0x98] sm:$0xff]
      %v231 = vld [vmem:[%s1 + $0xa0] sm:$0xff]
      %v232 = vld [vmem:[%s1 + $0xa8] sm:$0xff]
      %v233 = vld [vmem:[%s1 + $0xb0] sm:$0xff]
      %v234 = vld [vmem:[%s1 + $0xb8] sm:$0xff]
      %v235 = vld [vmem:[%s1 + $0xc0] sm:$0xff]
      %v236 = vld [vmem:[%s1 + $0xc8] sm:$0xff]
      %v237 = vld [vmem:[%s1 + $0xd0] sm:$0xff]
      %v238 = vld [vmem:[%s1 + $0xd8] sm:$0xff]
      %v239 = vld [vmem:[%s1 + $0xe0] sm:$0xff]
      %v240 = vld [vmem:[%s1 + $0xe8] sm:$0xff]
      %v241 = vld [vmem:[%s1 + $0xf0] sm:$0xff]
      %v242 = vld [vmem:[%s1 + $0xf8] sm:$0xff]
      %v243 = vld [vmem:[%s1 + $0x100] sm:$0xff]
      %v244 = vld [vmem:[%s1 + $0x108] sm:$0xff]
      %v245 = vld [vmem:[%s1 + $0x110] sm:$0xff]
      %v246 = vld [vmem:[%s1 + $0x118] sm:$0xff]
      %v247 = vld [vmem:[%s1 + $0x120] sm:$0xff]
      %v248 = vld [vmem:[%s1 + $0x128] sm:$0xff]
      %v249 = vld [vmem:[%s1 + $0x130] sm:$0xff]
      %v250 = vld [vmem:[%s1 + $0x138] sm:$0xff]
      %v251 = vld [vmem:[%s1 + $0x140] sm:$0xff]
      %v252 = vld [vmem:[%s1 + $0x148] sm:$0xff]
      %v253 = vld [vmem:[%s1 + $0x150] sm:$0xff]
      %v254 = vld [vmem:[%s1 + $0x158] sm:$0xff]
      %v255 = vld [vmem:[%s1 + $0x160] sm:$0xff]
      %v256 = vld [vmem:[%s1 + $0x168] sm:$0xff]
      %v257 = vld [vmem:[%s1 + $0x170] sm:$0xff]
      %v258 = vld [vmem:[%s1 + $0x178] sm:$0xff]
      %v259 = vld [vmem:[%s1 + $0x180] sm:$0xff]
      %v260 = vld [vmem:[%s1 + $0x188] sm:$0xff]
      %v261 = vld [vmem:[%s1 + $0x190] sm:$0xff]
      %v262 = vld [vmem:[%s1 + $0x198] sm:$0xff]
      %v263 = vld [vmem:[%s1 + $0x1a0] sm:$0xff]
      %v264 = vld [vmem:[%s1 + $0x1a8] sm:$0xff]
      %v265 = vld [vmem:[%s1 + $0x1b0] sm:$0xff]
      %v266 = vld [vmem:[%s1 + $0x1b8] sm:$0xff]
      %v267 = vld [vmem:[%s1 + $0x1c0] sm:$0xff]
      %v268 = vld [vmem:[%s1 + $0x1c8] sm:$0xff]
      %v269 = vld [vmem:[%s1 + $0x1d0] sm:$0xff]
      %v270 = vld [vmem:[%s1 + $0x1d8] sm:$0xff]
      %v271 = vld [vmem:[%s1 + $0x1e0] sm:$0xff]
      %v272 = vld [vmem:[%s1 + $0x1e8] sm:$0xff]
      %v273 = vld [vmem:[%s1 + $0x1f0] sm:$0xff]
      %v274 = vld [vmem:[%s1 + $0x1f8] sm:$0xff]
      %v275 = vld [vmem:[%s2] sm:$0xf]
      %v277 = vperm.slane %v275, 0
      %v278 = vperm.slane %v275, 1
      %v279 = vperm.slane %v275, 2
      %v280 = vperm.slane %v275, 3
      %v317 = vunpack.c.l.b16 %v179
      %v318 = vunpack.c.h.b16 %v179
      %v319 = vunpack.c.l.b16 %v180
      %v320 = vunpack.c.h.b16 %v180
      %v321 = vunpack.c.l.b16 %v181
      %v322 = vunpack.c.h.b16 %v181
      %v323 = vunpack.c.l.b16 %v182
      %v324 = vunpack.c.h.b16 %v182
      %v325 = vunpack.c.l.b16 %v183
      %v326 = vunpack.c.h.b16 %v183
      %v327 = vunpack.c.l.b16 %v184
      %v328 = vunpack.c.h.b16 %v184
      %v329 = vunpack.c.l.b16 %v185
      %v330 = vunpack.c.h.b16 %v185
      %v331 = vunpack.c.l.b16 %v186
      %v332 = vunpack.c.h.b16 %v186
      %v333 = vunpack.c.l.b16 %v187
      %v334 = vunpack.c.h.b16 %v187
      %v335 = vunpack.c.l.b16 %v188
      %v336 = vunpack.c.h.b16 %v188
      %v337 = vunpack.c.l.b16 %v189
      %v338 = vunpack.c.h.b16 %v189
      %v339 = vunpack.c.l.b16 %v190
      %v340 = vunpack.c.h.b16 %v190
      %v341 = vunpack.c.l.b16 %v191
      %v342 = vunpack.c.h.b16 %v191
      %v343 = vunpack.c.l.b16 %v192
      %v344 = vunpack.c.h.b16 %v192
      %v345 = vunpack.c.l.b16 %v193
      %v346 = vunpack.c.h.b16 %v193
      %v347 = vunpack.c.l.b16 %v194
      %v348 = vunpack.c.h.b16 %v194
      %v349 = vunpack.c.l.b16 %v195
      %v350 = vunpack.c.h.b16 %v195
      %v351 = vunpack.c.l.b16 %v196
      %v352 = vunpack.c.h.b16 %v196
      %v353 = vunpack.c.l.b16 %v197
      %v354 = vunpack.c.h.b16 %v197
      %v355 = vunpack.c.l.b16 %v198
      %v356 = vunpack.c.h.b16 %v198
      %v357 = vunpack.c.l.b16 %v199
      %v358 = vunpack.c.h.b16 %v199
      %v359 = vunpack.c.l.b16 %v200
      %v360 = vunpack.c.h.b16 %v200
      %v361 = vunpack.c.l.b16 %v201
      %v362 = vunpack.c.h.b16 %v201
      %v363 = vunpack.c.l.b16 %v202
      %v364 = vunpack.c.h.b16 %v202
      %v365 = vunpack.c.l.b16 %v203
      %v366 = vunpack.c.h.b16 %v203
      %v367 = vunpack.c.l.b16 %v204
      %v368 = vunpack.c.h.b16 %v204
      %v369 = vunpack.c.l.b16 %v205
      %v370 = vunpack.c.h.b16 %v205
      %v371 = vunpack.c.l.b16 %v206
      %v372 = vunpack.c.h.b16 %v206
      %v373 = vunpack.c.l.b16 %v207
      %v374 = vunpack.c.h.b16 %v207
      %v375 = vunpack.c.l.b16 %v208
      %v376 = vunpack.c.h.b16 %v208
      %v377 = vunpack.c.l.b16 %v209
      %v378 = vunpack.c.h.b16 %v209
      %v379 = vunpack.c.l.b16 %v210
      %v380 = vunpack.c.h.b16 %v210
      %v381 = vpack.c.b16 %v319, %v317
      %v382 = vpack.c.b16 %v320, %v318
      %v383 = vpack.c.b16 %v323, %v321
      %v384 = vpack.c.b16 %v324, %v322
      %v385 = vpack.c.b16 %v327, %v325
      %v386 = vpack.c.b16 %v328, %v326
      %v387 = vpack.c.b16 %v331, %v329
      %v388 = vpack.c.b16 %v332, %v330
      %v389 = vpack.c.b16 %v335, %v333
      %v390 = vpack.c.b16 %v336, %v334
      %v391 = vpack.c.b16 %v339, %v337
      %v392 = vpack.c.b16 %v340, %v338
      %v393 = vpack.c.b16 %v343, %v341
      %v394 = vpack.c.b16 %v344, %v342
      %v395 = vpack.c.b16 %v347, %v345
      %v396 = vpack.c.b16 %v348, %v346
      %v397 = vpack.c.b16 %v351, %v349
      %v398 = vpack.c.b16 %v352, %v350
      %v399 = vpack.c.b16 %v355, %v353
      %v400 = vpack.c.b16 %v356, %v354
      %v401 = vpack.c.b16 %v359, %v357
      %v402 = vpack.c.b16 %v360, %v358
      %v403 = vpack.c.b16 %v363, %v361
      %v404 = vpack.c.b16 %v364, %v362
      %v405 = vpack.c.b16 %v367, %v365
      %v406 = vpack.c.b16 %v368, %v366
      %v407 = vpack.c.b16 %v371, %v369
      %v408 = vpack.c.b16 %v372, %v370
      %v409 = vpack.c.b16 %v375, %v373
      %v410 = vpack.c.b16 %v376, %v374
      %v411 = vpack.c.b16 %v379, %v377
      %v412 = vpack.c.b16 %v380, %v378
      %v509 = vunpack.c.l.b16 %v211
      %v510 = vunpack.c.h.b16 %v211
      %v511 = vunpack.c.l.b16 %v212
      %v512 = vunpack.c.h.b16 %v212
      %v513 = vunpack.c.l.b16 %v213
      %v514 = vunpack.c.h.b16 %v213
      %v515 = vunpack.c.l.b16 %v214
      %v516 = vunpack.c.h.b16 %v214
      %v517 = vunpack.c.l.b16 %v215
      %v518 = vunpack.c.h.b16 %v215
      %v519 = vunpack.c.l.b16 %v216
      %v520 = vunpack.c.h.b16 %v216
      %v521 = vunpack.c.l.b16 %v217
      %v522 = vunpack.c.h.b16 %v217
      %v523 = vunpack.c.l.b16 %v218
      %v524 = vunpack.c.h.b16 %v218
      %v525 = vunpack.c.l.b16 %v219
      %v526 = vunpack.c.h.b16 %v219
      %v527 = vunpack.c.l.b16 %v220
      %v528 = vunpack.c.h.b16 %v220
      %v529 = vunpack.c.l.b16 %v221
      %v530 = vunpack.c.h.b16 %v221
      %v531 = vunpack.c.l.b16 %v222
      %v532 = vunpack.c.h.b16 %v222
      %v533 = vunpack.c.l.b16 %v223
      %v534 = vunpack.c.h.b16 %v223
      %v535 = vunpack.c.l.b16 %v224
      %v536 = vunpack.c.h.b16 %v224
      %v537 = vunpack.c.l.b16 %v225
      %v538 = vunpack.c.h.b16 %v225
      %v539 = vunpack.c.l.b16 %v226
      %v540 = vunpack.c.h.b16 %v226
      %v541 = vunpack.c.l.b16 %v227
      %v542 = vunpack.c.h.b16 %v227
      %v543 = vunpack.c.l.b16 %v228
      %v544 = vunpack.c.h.b16 %v228
      %v545 = vunpack.c.l.b16 %v229
      %v546 = vunpack.c.h.b16 %v229
      %v547 = vunpack.c.l.b16 %v230
      %v548 = vunpack.c.h.b16 %v230
      %v549 = vunpack.c.l.b16 %v231
      %v550 = vunpack.c.h.b16 %v231
      %v551 = vunpack.c.l.b16 %v232
      %v552 = vunpack.c.h.b16 %v232
      %v553 = vunpack.c.l.b16 %v233
      %v554 = vunpack.c.h.b16 %v233
      %v555 = vunpack.c.l.b16 %v234
      %v556 = vunpack.c.h.b16 %v234
      %v557 = vunpack.c.l.b16 %v235
      %v558 = vunpack.c.h.b16 %v235
      %v559 = vunpack.c.l.b16 %v236
      %v560 = vunpack.c.h.b16 %v236
      %v561 = vunpack.c.l.b16 %v237
      %v562 = vunpack.c.h.b16 %v237
      %v563 = vunpack.c.l.b16 %v238
      %v564 = vunpack.c.h.b16 %v238
      %v565 = vunpack.c.l.b16 %v239
      %v566 = vunpack.c.h.b16 %v239
      %v567 = vunpack.c.l.b16 %v240
      %v568 = vunpack.c.h.b16 %v240
      %v569 = vunpack.c.l.b16 %v241
      %v570 = vunpack.c.h.b16 %v241
      %v571 = vunpack.c.l.b16 %v242
      %v572 = vunpack.c.h.b16 %v242
      %v573 = vunpack.c.l.b16 %v243
      %v574 = vunpack.c.h.b16 %v243
      %v575 = vunpack.c.l.b16 %v244
      %v576 = vunpack.c.h.b16 %v244
      %v577 = vunpack.c.l.b16 %v245
      %v578 = vunpack.c.h.b16 %v245
      %v579 = vunpack.c.l.b16 %v246
      %v580 = vunpack.c.h.b16 %v246
      %v581 = vunpack.c.l.b16 %v247
      %v582 = vunpack.c.h.b16 %v247
      %v583 = vunpack.c.l.b16 %v248
      %v584 = vunpack.c.h.b16 %v248
      %v585 = vunpack.c.l.b16 %v249
      %v586 = vunpack.c.h.b16 %v249
      %v587 = vunpack.c.l.b16 %v250
      %v588 = vunpack.c.h.b16 %v250
      %v589 = vunpack.c.l.b16 %v251
      %v590 = vunpack.c.h.b16 %v251
      %v591 = vunpack.c.l.b16 %v252
      %v592 = vunpack.c.h.b16 %v252
      %v593 = vunpack.c.l.b16 %v253
      %v594 = vunpack.c.h.b16 %v253
      %v595 = vunpack.c.l.b16 %v254
      %v596 = vunpack.c.h.b16 %v254
      %v597 = vunpack.c.l.b16 %v255
      %v598 = vunpack.c.h.b16 %v255
      %v599 = vunpack.c.l.b16 %v256
      %v600 = vunpack.c.h.b16 %v256
      %v601 = vunpack.c.l.b16 %v257
      %v602 = vunpack.c.h.b16 %v257
      %v603 = vunpack.c.l.b16 %v258
      %v604 = vunpack.c.h.b16 %v258
      %v605 = vunpack.c.l.b16 %v259
      %v606 = vunpack.c.h.b16 %v259
      %v607 = vunpack.c.l.b16 %v260
      %v608 = vunpack.c.h.b16 %v260
      %v609 = vunpack.c.l.b16 %v261
      %v610 = vunpack.c.h.b16 %v261
      %v611 = vunpack.c.l.b16 %v262
      %v612 = vunpack.c.h.b16 %v262
      %v613 = vunpack.c.l.b16 %v263
      %v614 = vunpack.c.h.b16 %v263
      %v615 = vunpack.c.l.b16 %v264
      %v616 = vunpack.c.h.b16 %v264
      %v617 = vunpack.c.l.b16 %v265
      %v618 = vunpack.c.h.b16 %v265
      %v619 = vunpack.c.l.b16 %v266
      %v620 = vunpack.c.h.b16 %v266
      %v621 = vunpack.c.l.b16 %v267
      %v622 = vunpack.c.h.b16 %v267
      %v623 = vunpack.c.l.b16 %v268
      %v624 = vunpack.c.h.b16 %v268
      %v625 = vunpack.c.l.b16 %v269
      %v626 = vunpack.c.h.b16 %v269
      %v627 = vunpack.c.l.b16 %v270
      %v628 = vunpack.c.h.b16 %v270
      %v629 = vunpack.c.l.b16 %v271
      %v630 = vunpack.c.h.b16 %v271
      %v631 = vunpack.c.l.b16 %v272
      %v632 = vunpack.c.h.b16 %v272
      %v633 = vunpack.c.l.b16 %v273
      %v634 = vunpack.c.h.b16 %v273
      %v635 = vunpack.c.l.b16 %v274
      %v636 = vunpack.c.h.b16 %v274
      %v637 = vpack.c.b16 %v513, %v509
      %v638 = vpack.c.b16 %v514, %v510
      %v639 = vpack.c.b16 %v515, %v511
      %v640 = vpack.c.b16 %v516, %v512
      %v641 = vpack.c.b16 %v521, %v517
      %v642 = vpack.c.b16 %v522, %v518
      %v643 = vpack.c.b16 %v523, %v519
      %v644 = vpack.c.b16 %v524, %v520
      %v645 = vpack.c.b16 %v529, %v525
      %v646 = vpack.c.b16 %v530, %v526
      %v647 = vpack.c.b16 %v531, %v527
      %v648 = vpack.c.b16 %v532, %v528
      %v649 = vpack.c.b16 %v537, %v533
      %v650 = vpack.c.b16 %v538, %v534
      %v651 = vpack.c.b16 %v539, %v535
      %v652 = vpack.c.b16 %v540, %v536
      %v653 = vpack.c.b16 %v545, %v541
      %v654 = vpack.c.b16 %v546, %v542
      %v655 = vpack.c.b16 %v547, %v543
      %v656 = vpack.c.b16 %v548, %v544
      %v657 = vpack.c.b16 %v553, %v549
      %v658 = vpack.c.b16 %v554, %v550
      %v659 = vpack.c.b16 %v555, %v551
      %v660 = vpack.c.b16 %v556, %v552
      %v661 = vpack.c.b16 %v561, %v557
      %v662 = vpack.c.b16 %v562, %v558
      %v663 = vpack.c.b16 %v563, %v559
      %v664 = vpack.c.b16 %v564, %v560
      %v665 = vpack.c.b16 %v569, %v565
      %v666 = vpack.c.b16 %v570, %v566
      %v667 = vpack.c.b16 %v571, %v567
      %v668 = vpack.c.b16 %v572, %v568
      %v669 = vpack.c.b16 %v577, %v573
      %v670 = vpack.c.b16 %v578, %v574
      %v671 = vpack.c.b16 %v579, %v575
      %v672 = vpack.c.b16 %v580, %v576
      %v673 = vpack.c.b16 %v585, %v581
      %v674 = vpack.c.b16 %v586, %v582
      %v675 = vpack.c.b16 %v587, %v583
      %v676 = vpack.c.b16 %v588, %v584
      %v677 = vpack.c.b16 %v593, %v589
      %v678 = vpack.c.b16 %v594, %v590
      %v679 = vpack.c.b16 %v595, %v591
      %v680 = vpack.c.b16 %v596, %v592
      %v681 = vpack.c.b16 %v601, %v597
      %v682 = vpack.c.b16 %v602, %v598
      %v683 = vpack.c.b16 %v603, %v599
      %v684 = vpack.c.b16 %v604, %v600
      %v685 = vpack.c.b16 %v609, %v605
      %v686 = vpack.c.b16 %v610, %v606
      %v687 = vpack.c.b16 %v611, %v607
      %v688 = vpack.c.b16 %v612, %v608
      %v689 = vpack.c.b16 %v617, %v613
      %v690 = vpack.c.b16 %v618, %v614
      %v691 = vpack.c.b16 %v619, %v615
      %v692 = vpack.c.b16 %v620, %v616
      %v693 = vpack.c.b16 %v625, %v621
      %v694 = vpack.c.b16 %v626, %v622
      %v695 = vpack.c.b16 %v627, %v623
      %v696 = vpack.c.b16 %v628, %v624
      %v697 = vpack.c.b16 %v633, %v629
      %v698 = vpack.c.b16 %v634, %v630
      %v699 = vpack.c.b16 %v635, %v631
      %v700 = vpack.c.b16 %v636, %v632
      %765 = vmatpush.bf16.msra.mxu0 %v665
      %766 = vmatpush.bf16.msra.mxu0 %v661
      %767 = vmatpush.bf16.msra.mxu0 %v657
      %768 = vmatpush.bf16.msra.mxu0 %v653
      %769 = vmatpush.bf16.msra.mxu0 %v649
      %770 = vmatpush.bf16.msra.mxu0 %v645
      %771 = vmatpush.bf16.msra.mxu0 %v641
      %772 = vmatpush.bf16.msra.mxu0 %v637
      %773 = vmatmul.bf16.gmra.mxu0 %v381
      %v774 = vpop.f32.mrf.mxu0
      %v775 = vadd.f32 %v277, %v774
      %v776 = vpop.f32.mrf.mxu0
      %v777 = vadd.f32 %v277, %v776
      %778 = vmatmul.bf16.gmra.mxu0 %v383
      %v779 = vpop.f32.mrf.mxu0
      %v780 = vadd.f32 %v277, %v779
      %v781 = vpop.f32.mrf.mxu0
      %v782 = vadd.f32 %v277, %v781
      %783 = vmatmul.bf16.gmra.mxu0 %v385
      %v784 = vpop.f32.mrf.mxu0
      %v785 = vadd.f32 %v277, %v784
      %v786 = vpop.f32.mrf.mxu0
      %v787 = vadd.f32 %v277, %v786
      %788 = vmatmul.bf16.gmra.mxu0 %v387
      %v789 = vpop.f32.mrf.mxu0
      %v790 = vadd.f32 %v277, %v789
      %v791 = vpop.f32.mrf.mxu0
      %v792 = vadd.f32 %v277, %v791
      %793 = vmatmul.bf16.gmra.mxu0 %v389
      %v794 = vpop.f32.mrf.mxu0
      %v795 = vadd.f32 %v277, %v794
      %v796 = vpop.f32.mrf.mxu0
      %v797 = vadd.f32 %v277, %v796
      %798 = vmatmul.bf16.gmra.mxu0 %v391
      %v799 = vpop.f32.mrf.mxu0
      %v800 = vadd.f32 %v277, %v799
      %v801 = vpop.f32.mrf.mxu0
      %v802 = vadd.f32 %v277, %v801
      %803 = vmatmul.bf16.gmra.mxu0 %v393
      %v804 = vpop.f32.mrf.mxu0
      %v805 = vadd.f32 %v277, %v804
      %v806 = vpop.f32.mrf.mxu0
      %v807 = vadd.f32 %v277, %v806
      %808 = vmatmul.bf16.gmra.mxu0 %v395
      %v809 = vpop.f32.mrf.mxu0
      %v810 = vadd.f32 %v277, %v809
      %v811 = vpop.f32.mrf.mxu0
      %v812 = vadd.f32 %v277, %v811
      %813 = vmatmul.bf16.gmra.mxu0 %v397
      %v814 = vpop.f32.mrf.mxu0
      %v815 = vadd.f32 %v277, %v814
      %v816 = vpop.f32.mrf.mxu0
      %v817 = vadd.f32 %v277, %v816
      %818 = vmatmul.bf16.gmra.mxu0 %v399
      %v819 = vpop.f32.mrf.mxu0
      %v820 = vadd.f32 %v277, %v819
      %v821 = vpop.f32.mrf.mxu0
      %v822 = vadd.f32 %v277, %v821
      %823 = vmatmul.bf16.gmra.mxu0 %v401
      %v824 = vpop.f32.mrf.mxu0
      %v825 = vadd.f32 %v277, %v824
      %v826 = vpop.f32.mrf.mxu0
      %v827 = vadd.f32 %v277, %v826
      %828 = vmatmul.bf16.gmra.mxu0 %v403
      %v829 = vpop.f32.mrf.mxu0
      %v830 = vadd.f32 %v277, %v829
      %v831 = vpop.f32.mrf.mxu0
      %v832 = vadd.f32 %v277, %v831
      %833 = vmatmul.bf16.gmra.mxu0 %v405
      %v834 = vpop.f32.mrf.mxu0
      %v835 = vadd.f32 %v277, %v834
      %v836 = vpop.f32.mrf.mxu0
      %v837 = vadd.f32 %v277, %v836
      %838 = vmatmul.bf16.gmra.mxu0 %v407
      %v839 = vpop.f32.mrf.mxu0
      %v840 = vadd.f32 %v277, %v839
      %v841 = vpop.f32.mrf.mxu0
      %v842 = vadd.f32 %v277, %v841
      %843 = vmatmul.bf16.gmra.mxu0 %v409
      %v844 = vpop.f32.mrf.mxu0
      %v845 = vadd.f32 %v277, %v844
      %v846 = vpop.f32.mrf.mxu0
      %v847 = vadd.f32 %v277, %v846
      %848 = vmatmul.bf16.gmra.mxu0 %v411
      %v849 = vpop.f32.mrf.mxu0
      %v850 = vadd.f32 %v277, %v849
      %v851 = vpop.f32.mrf.mxu0
      %v852 = vadd.f32 %v277, %v851
      %853 = vdwg.mxu0
      %854 = vmatpush.bf16.msra.mxu0 %v697
      %855 = vmatpush.bf16.msra.mxu0 %v693
      %856 = vmatpush.bf16.msra.mxu0 %v689
      %857 = vmatpush.bf16.msra.mxu0 %v685
      %858 = vmatpush.bf16.msra.mxu0 %v681
      %859 = vmatpush.bf16.msra.mxu0 %v677
      %860 = vmatpush.bf16.msra.mxu0 %v673
      %861 = vmatpush.bf16.msra.mxu0 %v669
      %862 = vmatmul.bf16.gmra.mxu0 %v382
      %v863 = vpop.f32.mrf.mxu0
      %v864 = vadd.f32 %v775, %v863
      %v865 = vpop.f32.mrf.mxu0
      %v866 = vadd.f32 %v777, %v865
      %867 = vmatmul.bf16.gmra.mxu0 %v384
      %v868 = vpop.f32.mrf.mxu0
      %v869 = vadd.f32 %v780, %v868
      %v870 = vpop.f32.mrf.mxu0
      %v871 = vadd.f32 %v782, %v870
      %872 = vmatmul.bf16.gmra.mxu0 %v386
      %v873 = vpop.f32.mrf.mxu0
      %v874 = vadd.f32 %v785, %v873
      %v875 = vpop.f32.mrf.mxu0
      %v876 = vadd.f32 %v787, %v875
      %877 = vmatmul.bf16.gmra.mxu0 %v388
      %v878 = vpop.f32.mrf.mxu0
      %v879 = vadd.f32 %v790, %v878
      %v880 = vpop.f32.mrf.mxu0
      %v881 = vadd.f32 %v792, %v880
      %882 = vmatmul.bf16.gmra.mxu0 %v390
      %v883 = vpop.f32.mrf.mxu0
      %v884 = vadd.f32 %v795, %v883
      %v885 = vpop.f32.mrf.mxu0
      %v886 = vadd.f32 %v797, %v885
      %887 = vmatmul.bf16.gmra.mxu0 %v392
      %v888 = vpop.f32.mrf.mxu0
      %v889 = vadd.f32 %v800, %v888
      %v890 = vpop.f32.mrf.mxu0
      %v891 = vadd.f32 %v802, %v890
      %892 = vmatmul.bf16.gmra.mxu0 %v394
      %v893 = vpop.f32.mrf.mxu0
      %v894 = vadd.f32 %v805, %v893
      %v895 = vpop.f32.mrf.mxu0
      %v896 = vadd.f32 %v807, %v895
      %897 = vmatmul.bf16.gmra.mxu0 %v396
      %v898 = vpop.f32.mrf.mxu0
      %v899 = vadd.f32 %v810, %v898
      %v900 = vpop.f32.mrf.mxu0
      %v901 = vadd.f32 %v812, %v900
      %902 = vmatmul.bf16.gmra.mxu0 %v398
      %v903 = vpop.f32.mrf.mxu0
      %v904 = vadd.f32 %v815, %v903
      %v905 = vpop.f32.mrf.mxu0
      %v906 = vadd.f32 %v817, %v905
      %907 = vmatmul.bf16.gmra.mxu0 %v400
      %v908 = vpop.f32.mrf.mxu0
      %v909 = vadd.f32 %v820, %v908
      %v910 = vpop.f32.mrf.mxu0
      %v911 = vadd.f32 %v822, %v910
      %912 = vmatmul.bf16.gmra.mxu0 %v402
      %v913 = vpop.f32.mrf.mxu0
      %v914 = vadd.f32 %v825, %v913
      %v915 = vpop.f32.mrf.mxu0
      %v916 = vadd.f32 %v827, %v915
      %917 = vmatmul.bf16.gmra.mxu0 %v404
      %v918 = vpop.f32.mrf.mxu0
      %v919 = vadd.f32 %v830, %v918
      %v920 = vpop.f32.mrf.mxu0
      %v921 = vadd.f32 %v832, %v920
      %922 = vmatmul.bf16.gmra.mxu0 %v406
      %v923 = vpop.f32.mrf.mxu0
      %v924 = vadd.f32 %v835, %v923
      %v925 = vpop.f32.mrf.mxu0
      %v926 = vadd.f32 %v837, %v925
      %927 = vmatmul.bf16.gmra.mxu0 %v408
      %v928 = vpop.f32.mrf.mxu0
      %v929 = vadd.f32 %v840, %v928
      %v930 = vpop.f32.mrf.mxu0
      %v931 = vadd.f32 %v842, %v930
      %932 = vmatmul.bf16.gmra.mxu0 %v410
      %v933 = vpop.f32.mrf.mxu0
      %v934 = vadd.f32 %v845, %v933
      %v935 = vpop.f32.mrf.mxu0
      %v936 = vadd.f32 %v847, %v935
      %937 = vmatmul.bf16.gmra.mxu0 %v412
      %v938 = vpop.f32.mrf.mxu0
      %v939 = vadd.f32 %v850, %v938
      %v940 = vpop.f32.mrf.mxu0
      %v941 = vadd.f32 %v852, %v940
      %942 = vdwg.mxu0
      %943 = vmatpush.bf16.msra.mxu0 %v666
      %944 = vmatpush.bf16.msra.mxu0 %v662
      %945 = vmatpush.bf16.msra.mxu0 %v658
      %946 = vmatpush.bf16.msra.mxu0 %v654
      %947 = vmatpush.bf16.msra.mxu0 %v650
      %948 = vmatpush.bf16.msra.mxu0 %v646
      %949 = vmatpush.bf16.msra.mxu0 %v642
      %950 = vmatpush.bf16.msra.mxu0 %v638
      %951 = vmatmul.bf16.gmra.mxu0 %v381
      %v952 = vpop.f32.mrf.mxu0
      %v953 = vadd.f32 %v278, %v952
      %v954 = vpop.f32.mrf.mxu0
      %v955 = vadd.f32 %v278, %v954
      %956 = vmatmul.bf16.gmra.mxu0 %v383
      %v957 = vpop.f32.mrf.mxu0
      %v958 = vadd.f32 %v278, %v957
      %v959 = vpop.f32.mrf.mxu0
      %v960 = vadd.f32 %v278, %v959
      %961 = vmatmul.bf16.gmra.mxu0 %v385
      %v962 = vpop.f32.mrf.mxu0
      %v963 = vadd.f32 %v278, %v962
      %v964 = vpop.f32.mrf.mxu0
      %v965 = vadd.f32 %v278, %v964
      %966 = vmatmul.bf16.gmra.mxu0 %v387
      %v967 = vpop.f32.mrf.mxu0
      %v968 = vadd.f32 %v278, %v967
      %v969 = vpop.f32.mrf.mxu0
      %v970 = vadd.f32 %v278, %v969
      %971 = vmatmul.bf16.gmra.mxu0 %v389
      %v972 = vpop.f32.mrf.mxu0
      %v973 = vadd.f32 %v278, %v972
      %v974 = vpop.f32.mrf.mxu0
      %v975 = vadd.f32 %v278, %v974
      %976 = vmatmul.bf16.gmra.mxu0 %v391
      %v977 = vpop.f32.mrf.mxu0
      %v978 = vadd.f32 %v278, %v977
      %v979 = vpop.f32.mrf.mxu0
      %v980 = vadd.f32 %v278, %v979
      %981 = vmatmul.bf16.gmra.mxu0 %v393
      %v982 = vpop.f32.mrf.mxu0
      %v983 = vadd.f32 %v278, %v982
      %v984 = vpop.f32.mrf.mxu0
      %v985 = vadd.f32 %v278, %v984
      %986 = vmatmul.bf16.gmra.mxu0 %v395
      %v987 = vpop.f32.mrf.mxu0
      %v988 = vadd.f32 %v278, %v987
      %v989 = vpop.f32.mrf.mxu0
      %v990 = vadd.f32 %v278, %v989
      %991 = vmatmul.bf16.gmra.mxu0 %v397
      %v992 = vpop.f32.mrf.mxu0
      %v993 = vadd.f32 %v278, %v992
      %v994 = vpop.f32.mrf.mxu0
      %v995 = vadd.f32 %v278, %v994
      %996 = vmatmul.bf16.gmra.mxu0 %v399
      %v997 = vpop.f32.mrf.mxu0
      %v998 = vadd.f32 %v278, %v997
      %v999 = vpop.f32.mrf.mxu0
      %v1000 = vadd.f32 %v278, %v999
      %1001 = vmatmul.bf16.gmra.mxu0 %v401
      %v1002 = vpop.f32.mrf.mxu0
      %v1003 = vadd.f32 %v278, %v1002
      %v1004 = vpop.f32.mrf.mxu0
      %v1005 = vadd.f32 %v278, %v1004
      %1006 = vmatmul.bf16.gmra.mxu0 %v403
      %v1007 = vpop.f32.mrf.mxu0
      %v1008 = vadd.f32 %v278, %v1007
      %v1009 = vpop.f32.mrf.mxu0
      %v1010 = vadd.f32 %v278, %v1009
      %1011 = vmatmul.bf16.gmra.mxu0 %v405
      %v1012 = vpop.f32.mrf.mxu0
      %v1013 = vadd.f32 %v278, %v1012
      %v1014 = vpop.f32.mrf.mxu0
      %v1015 = vadd.f32 %v278, %v1014
      %1016 = vmatmul.bf16.gmra.mxu0 %v407
      %v1017 = vpop.f32.mrf.mxu0
      %v1018 = vadd.f32 %v278, %v1017
      %v1019 = vpop.f32.mrf.mxu0
      %v1020 = vadd.f32 %v278, %v1019
      %1021 = vmatmul.bf16.gmra.mxu0 %v409
      %v1022 = vpop.f32.mrf.mxu0
      %v1023 = vadd.f32 %v278, %v1022
      %v1024 = vpop.f32.mrf.mxu0
      %v1025 = vadd.f32 %v278, %v1024
      %1026 = vmatmul.bf16.gmra.mxu0 %v411
      %v1027 = vpop.f32.mrf.mxu0
      %v1028 = vadd.f32 %v278, %v1027
      %v1029 = vpop.f32.mrf.mxu0
      %v1030 = vadd.f32 %v278, %v1029
      %1031 = vdwg.mxu0
      %1032 = vmatpush.bf16.msra.mxu0 %v698
      %1033 = vmatpush.bf16.msra.mxu0 %v694
      %1034 = vmatpush.bf16.msra.mxu0 %v690
      %1035 = vmatpush.bf16.msra.mxu0 %v686
      %1036 = vmatpush.bf16.msra.mxu0 %v682
      %1037 = vmatpush.bf16.msra.mxu0 %v678
      %1038 = vmatpush.bf16.msra.mxu0 %v674
      %1039 = vmatpush.bf16.msra.mxu0 %v670
      %1040 = vmatmul.bf16.gmra.mxu0 %v382
      %v1041 = vpop.f32.mrf.mxu0
      %v1042 = vadd.f32 %v953, %v1041
      %v1043 = vpop.f32.mrf.mxu0
      %v1044 = vadd.f32 %v955, %v1043
      %1045 = vmatmul.bf16.gmra.mxu0 %v384
      %v1046 = vpop.f32.mrf.mxu0
      %v1047 = vadd.f32 %v958, %v1046
      %v1048 = vpop.f32.mrf.mxu0
      %v1049 = vadd.f32 %v960, %v1048
      %1050 = vmatmul.bf16.gmra.mxu0 %v386
      %v1051 = vpop.f32.mrf.mxu0
      %v1052 = vadd.f32 %v963, %v1051
      %v1053 = vpop.f32.mrf.mxu0
      %v1054 = vadd.f32 %v965, %v1053
      %1055 = vmatmul.bf16.gmra.mxu0 %v388
      %v1056 = vpop.f32.mrf.mxu0
      %v1057 = vadd.f32 %v968, %v1056
      %v1058 = vpop.f32.mrf.mxu0
      %v1059 = vadd.f32 %v970, %v1058
      %1060 = vmatmul.bf16.gmra.mxu0 %v390
      %v1061 = vpop.f32.mrf.mxu0
      %v1062 = vadd.f32 %v973, %v1061
      %v1063 = vpop.f32.mrf.mxu0
      %v1064 = vadd.f32 %v975, %v1063
      %1065 = vmatmul.bf16.gmra.mxu0 %v392
      %v1066 = vpop.f32.mrf.mxu0
      %v1067 = vadd.f32 %v978, %v1066
      %v1068 = vpop.f32.mrf.mxu0
      %v1069 = vadd.f32 %v980, %v1068
      %1070 = vmatmul.bf16.gmra.mxu0 %v394
      %v1071 = vpop.f32.mrf.mxu0
      %v1072 = vadd.f32 %v983, %v1071
      %v1073 = vpop.f32.mrf.mxu0
      %v1074 = vadd.f32 %v985, %v1073
      %1075 = vmatmul.bf16.gmra.mxu0 %v396
      %v1076 = vpop.f32.mrf.mxu0
      %v1077 = vadd.f32 %v988, %v1076
      %v1078 = vpop.f32.mrf.mxu0
      %v1079 = vadd.f32 %v990, %v1078
      %1080 = vmatmul.bf16.gmra.mxu0 %v398
      %v1081 = vpop.f32.mrf.mxu0
      %v1082 = vadd.f32 %v993, %v1081
      %v1083 = vpop.f32.mrf.mxu0
      %v1084 = vadd.f32 %v995, %v1083
      %1085 = vmatmul.bf16.gmra.mxu0 %v400
      %v1086 = vpop.f32.mrf.mxu0
      %v1087 = vadd.f32 %v998, %v1086
      %v1088 = vpop.f32.mrf.mxu0
      %v1089 = vadd.f32 %v1000, %v1088
      %1090 = vmatmul.bf16.gmra.mxu0 %v402
      %v1091 = vpop.f32.mrf.mxu0
      %v1092 = vadd.f32 %v1003, %v1091
      %v1093 = vpop.f32.mrf.mxu0
      %v1094 = vadd.f32 %v1005, %v1093
      %1095 = vmatmul.bf16.gmra.mxu0 %v404
      %v1096 = vpop.f32.mrf.mxu0
      %v1097 = vadd.f32 %v1008, %v1096
      %v1098 = vpop.f32.mrf.mxu0
      %v1099 = vadd.f32 %v1010, %v1098
      %1100 = vmatmul.bf16.gmra.mxu0 %v406
      %v1101 = vpop.f32.mrf.mxu0
      %v1102 = vadd.f32 %v1013, %v1101
      %v1103 = vpop.f32.mrf.mxu0
      %v1104 = vadd.f32 %v1015, %v1103
      %1105 = vmatmul.bf16.gmra.mxu0 %v408
      %v1106 = vpop.f32.mrf.mxu0
      %v1107 = vadd.f32 %v1018, %v1106
      %v1108 = vpop.f32.mrf.mxu0
      %v1109 = vadd.f32 %v1020, %v1108
      %1110 = vmatmul.bf16.gmra.mxu0 %v410
      %v1111 = vpop.f32.mrf.mxu0
      %v1112 = vadd.f32 %v1023, %v1111
      %v1113 = vpop.f32.mrf.mxu0
      %v1114 = vadd.f32 %v1025, %v1113
      %1115 = vmatmul.bf16.gmra.mxu0 %v412
      %v1116 = vpop.f32.mrf.mxu0
      %v1117 = vadd.f32 %v1028, %v1116
      %v1118 = vpop.f32.mrf.mxu0
      %v1119 = vadd.f32 %v1030, %v1118
      %1120 = vdwg.mxu0
      %1121 = vmatpush.bf16.msra.mxu0 %v667
      %1122 = vmatpush.bf16.msra.mxu0 %v663
      %1123 = vmatpush.bf16.msra.mxu0 %v659
      %1124 = vmatpush.bf16.msra.mxu0 %v655
      %1125 = vmatpush.bf16.msra.mxu0 %v651
      %1126 = vmatpush.bf16.msra.mxu0 %v647
      %1127 = vmatpush.bf16.msra.mxu0 %v643
      %1128 = vmatpush.bf16.msra.mxu0 %v639
      %1129 = vmatmul.bf16.gmra.mxu0 %v381
      %v1130 = vpop.f32.mrf.mxu0
      %v1131 = vadd.f32 %v279, %v1130
      %v1132 = vpop.f32.mrf.mxu0
      %v1133 = vadd.f32 %v279, %v1132
      %1134 = vmatmul.bf16.gmra.mxu0 %v383
      %v1135 = vpop.f32.mrf.mxu0
      %v1136 = vadd.f32 %v279, %v1135
      %v1137 = vpop.f32.mrf.mxu0
      %v1138 = vadd.f32 %v279, %v1137
      %1139 = vmatmul.bf16.gmra.mxu0 %v385
      %v1140 = vpop.f32.mrf.mxu0
      %v1141 = vadd.f32 %v279, %v1140
      %v1142 = vpop.f32.mrf.mxu0
      %v1143 = vadd.f32 %v279, %v1142
      %1144 = vmatmul.bf16.gmra.mxu0 %v387
      %v1145 = vpop.f32.mrf.mxu0
      %v1146 = vadd.f32 %v279, %v1145
      %v1147 = vpop.f32.mrf.mxu0
      %v1148 = vadd.f32 %v279, %v1147
      %1149 = vmatmul.bf16.gmra.mxu0 %v389
      %v1150 = vpop.f32.mrf.mxu0
      %v1151 = vadd.f32 %v279, %v1150
      %v1152 = vpop.f32.mrf.mxu0
      %v1153 = vadd.f32 %v279, %v1152
      %1154 = vmatmul.bf16.gmra.mxu0 %v391
      %v1155 = vpop.f32.mrf.mxu0
      %v1156 = vadd.f32 %v279, %v1155
      %v1157 = vpop.f32.mrf.mxu0
      %v1158 = vadd.f32 %v279, %v1157
      %1159 = vmatmul.bf16.gmra.mxu0 %v393
      %v1160 = vpop.f32.mrf.mxu0
      %v1161 = vadd.f32 %v279, %v1160
      %v1162 = vpop.f32.mrf.mxu0
      %v1163 = vadd.f32 %v279, %v1162
      %1164 = vmatmul.bf16.gmra.mxu0 %v395
      %v1165 = vpop.f32.mrf.mxu0
      %v1166 = vadd.f32 %v279, %v1165
      %v1167 = vpop.f32.mrf.mxu0
      %v1168 = vadd.f32 %v279, %v1167
      %1169 = vmatmul.bf16.gmra.mxu0 %v397
      %v1170 = vpop.f32.mrf.mxu0
      %v1171 = vadd.f32 %v279, %v1170
      %v1172 = vpop.f32.mrf.mxu0
      %v1173 = vadd.f32 %v279, %v1172
      %1174 = vmatmul.bf16.gmra.mxu0 %v399
      %v1175 = vpop.f32.mrf.mxu0
      %v1176 = vadd.f32 %v279, %v1175
      %v1177 = vpop.f32.mrf.mxu0
      %v1178 = vadd.f32 %v279, %v1177
      %1179 = vmatmul.bf16.gmra.mxu0 %v401
      %v1180 = vpop.f32.mrf.mxu0
      %v1181 = vadd.f32 %v279, %v1180
      %v1182 = vpop.f32.mrf.mxu0
      %v1183 = vadd.f32 %v279, %v1182
      %1184 = vmatmul.bf16.gmra.mxu0 %v403
      %v1185 = vpop.f32.mrf.mxu0
      %v1186 = vadd.f32 %v279, %v1185
      %v1187 = vpop.f32.mrf.mxu0
      %v1188 = vadd.f32 %v279, %v1187
      %1189 = vmatmul.bf16.gmra.mxu0 %v405
      %v1190 = vpop.f32.mrf.mxu0
      %v1191 = vadd.f32 %v279, %v1190
      %v1192 = vpop.f32.mrf.mxu0
      %v1193 = vadd.f32 %v279, %v1192
      %1194 = vmatmul.bf16.gmra.mxu0 %v407
      %v1195 = vpop.f32.mrf.mxu0
      %v1196 = vadd.f32 %v279, %v1195
      %v1197 = vpop.f32.mrf.mxu0
      %v1198 = vadd.f32 %v279, %v1197
      %1199 = vmatmul.bf16.gmra.mxu0 %v409
      %v1200 = vpop.f32.mrf.mxu0
      %v1201 = vadd.f32 %v279, %v1200
      %v1202 = vpop.f32.mrf.mxu0
      %v1203 = vadd.f32 %v279, %v1202
      %1204 = vmatmul.bf16.gmra.mxu0 %v411
      %v1205 = vpop.f32.mrf.mxu0
      %v1206 = vadd.f32 %v279, %v1205
      %v1207 = vpop.f32.mrf.mxu0
      %v1208 = vadd.f32 %v279, %v1207
      %1209 = vdwg.mxu0
      %1210 = vmatpush.bf16.msra.mxu0 %v699
      %1211 = vmatpush.bf16.msra.mxu0 %v695
      %1212 = vmatpush.bf16.msra.mxu0 %v691
      %1213 = vmatpush.bf16.msra.mxu0 %v687
      %1214 = vmatpush.bf16.msra.mxu0 %v683
      %1215 = vmatpush.bf16.msra.mxu0 %v679
      %1216 = vmatpush.bf16.msra.mxu0 %v675
      %1217 = vmatpush.bf16.msra.mxu0 %v671
      %1218 = vmatmul.bf16.gmra.mxu0 %v382
      %v1219 = vpop.f32.mrf.mxu0
      %v1220 = vadd.f32 %v1131, %v1219
      %v1221 = vpop.f32.mrf.mxu0
      %v1222 = vadd.f32 %v1133, %v1221
      %1223 = vmatmul.bf16.gmra.mxu0 %v384
      %v1224 = vpop.f32.mrf.mxu0
      %v1225 = vadd.f32 %v1136, %v1224
      %v1226 = vpop.f32.mrf.mxu0
      %v1227 = vadd.f32 %v1138, %v1226
      %1228 = vmatmul.bf16.gmra.mxu0 %v386
      %v1229 = vpop.f32.mrf.mxu0
      %v1230 = vadd.f32 %v1141, %v1229
      %v1231 = vpop.f32.mrf.mxu0
      %v1232 = vadd.f32 %v1143, %v1231
      %1233 = vmatmul.bf16.gmra.mxu0 %v388
      %v1234 = vpop.f32.mrf.mxu0
      %v1235 = vadd.f32 %v1146, %v1234
      %v1236 = vpop.f32.mrf.mxu0
      %v1237 = vadd.f32 %v1148, %v1236
      %1238 = vmatmul.bf16.gmra.mxu0 %v390
      %v1239 = vpop.f32.mrf.mxu0
      %v1240 = vadd.f32 %v1151, %v1239
      %v1241 = vpop.f32.mrf.mxu0
      %v1242 = vadd.f32 %v1153, %v1241
      %1243 = vmatmul.bf16.gmra.mxu0 %v392
      %v1244 = vpop.f32.mrf.mxu0
      %v1245 = vadd.f32 %v1156, %v1244
      %v1246 = vpop.f32.mrf.mxu0
      %v1247 = vadd.f32 %v1158, %v1246
      %1248 = vmatmul.bf16.gmra.mxu0 %v394
      %v1249 = vpop.f32.mrf.mxu0
      %v1250 = vadd.f32 %v1161, %v1249
      %v1251 = vpop.f32.mrf.mxu0
      %v1252 = vadd.f32 %v1163, %v1251
      %1253 = vmatmul.bf16.gmra.mxu0 %v396
      %v1254 = vpop.f32.mrf.mxu0
      %v1255 = vadd.f32 %v1166, %v1254
      %v1256 = vpop.f32.mrf.mxu0
      %v1257 = vadd.f32 %v1168, %v1256
      %1258 = vmatmul.bf16.gmra.mxu0 %v398
      %v1259 = vpop.f32.mrf.mxu0
      %v1260 = vadd.f32 %v1171, %v1259
      %v1261 = vpop.f32.mrf.mxu0
      %v1262 = vadd.f32 %v1173, %v1261
      %1263 = vmatmul.bf16.gmra.mxu0 %v400
      %v1264 = vpop.f32.mrf.mxu0
      %v1265 = vadd.f32 %v1176, %v1264
      %v1266 = vpop.f32.mrf.mxu0
      %v1267 = vadd.f32 %v1178, %v1266
      %1268 = vmatmul.bf16.gmra.mxu0 %v402
      %v1269 = vpop.f32.mrf.mxu0
      %v1270 = vadd.f32 %v1181, %v1269
      %v1271 = vpop.f32.mrf.mxu0
      %v1272 = vadd.f32 %v1183, %v1271
      %1273 = vmatmul.bf16.gmra.mxu0 %v404
      %v1274 = vpop.f32.mrf.mxu0
      %v1275 = vadd.f32 %v1186, %v1274
      %v1276 = vpop.f32.mrf.mxu0
      %v1277 = vadd.f32 %v1188, %v1276
      %1278 = vmatmul.bf16.gmra.mxu0 %v406
      %v1279 = vpop.f32.mrf.mxu0
      %v1280 = vadd.f32 %v1191, %v1279
      %v1281 = vpop.f32.mrf.mxu0
      %v1282 = vadd.f32 %v1193, %v1281
      %1283 = vmatmul.bf16.gmra.mxu0 %v408
      %v1284 = vpop.f32.mrf.mxu0
      %v1285 = vadd.f32 %v1196, %v1284
      %v1286 = vpop.f32.mrf.mxu0
      %v1287 = vadd.f32 %v1198, %v1286
      %1288 = vmatmul.bf16.gmra.mxu0 %v410
      %v1289 = vpop.f32.mrf.mxu0
      %v1290 = vadd.f32 %v1201, %v1289
      %v1291 = vpop.f32.mrf.mxu0
      %v1292 = vadd.f32 %v1203, %v1291
      %1293 = vmatmul.bf16.gmra.mxu0 %v412
      %v1294 = vpop.f32.mrf.mxu0
      %v1295 = vadd.f32 %v1206, %v1294
      %v1296 = vpop.f32.mrf.mxu0
      %v1297 = vadd.f32 %v1208, %v1296
      %1298 = vdwg.mxu0
      %1299 = vmatpush.bf16.msra.mxu0 %v668
      %1300 = vmatpush.bf16.msra.mxu0 %v664
      %1301 = vmatpush.bf16.msra.mxu0 %v660
      %1302 = vmatpush.bf16.msra.mxu0 %v656
      %1303 = vmatpush.bf16.msra.mxu0 %v652
      %1304 = vmatpush.bf16.msra.mxu0 %v648
      %1305 = vmatpush.bf16.msra.mxu0 %v644
      %1306 = vmatpush.bf16.msra.mxu0 %v640
      %1307 = vmatmul.bf16.gmra.mxu0 %v381
      %v1308 = vpop.f32.mrf.mxu0
      %v1309 = vadd.f32 %v280, %v1308
      %v1310 = vpop.f32.mrf.mxu0
      %v1311 = vadd.f32 %v280, %v1310
      %1312 = vmatmul.bf16.gmra.mxu0 %v383
      %v1313 = vpop.f32.mrf.mxu0
      %v1314 = vadd.f32 %v280, %v1313
      %v1315 = vpop.f32.mrf.mxu0
      %v1316 = vadd.f32 %v280, %v1315
      %1317 = vmatmul.bf16.gmra.mxu0 %v385
      %v1318 = vpop.f32.mrf.mxu0
      %v1319 = vadd.f32 %v280, %v1318
      %v1320 = vpop.f32.mrf.mxu0
      %v1321 = vadd.f32 %v280, %v1320
      %1322 = vmatmul.bf16.gmra.mxu0 %v387
      %v1323 = vpop.f32.mrf.mxu0
      %v1324 = vadd.f32 %v280, %v1323
      %v1325 = vpop.f32.mrf.mxu0
      %v1326 = vadd.f32 %v280, %v1325
      %1327 = vmatmul.bf16.gmra.mxu0 %v389
      %v1328 = vpop.f32.mrf.mxu0
      %v1329 = vadd.f32 %v280, %v1328
      %v1330 = vpop.f32.mrf.mxu0
      %v1331 = vadd.f32 %v280, %v1330
      %1332 = vmatmul.bf16.gmra.mxu0 %v391
      %v1333 = vpop.f32.mrf.mxu0
      %v1334 = vadd.f32 %v280, %v1333
      %v1335 = vpop.f32.mrf.mxu0
      %v1336 = vadd.f32 %v280, %v1335
      %1337 = vmatmul.bf16.gmra.mxu0 %v393
      %v1338 = vpop.f32.mrf.mxu0
      %v1339 = vadd.f32 %v280, %v1338
      %v1340 = vpop.f32.mrf.mxu0
      %v1341 = vadd.f32 %v280, %v1340
      %1342 = vmatmul.bf16.gmra.mxu0 %v395
      %v1343 = vpop.f32.mrf.mxu0
      %v1344 = vadd.f32 %v280, %v1343
      %v1345 = vpop.f32.mrf.mxu0
      %v1346 = vadd.f32 %v280, %v1345
      %1347 = vmatmul.bf16.gmra.mxu0 %v397
      %v1348 = vpop.f32.mrf.mxu0
      %v1349 = vadd.f32 %v280, %v1348
      %v1350 = vpop.f32.mrf.mxu0
      %v1351 = vadd.f32 %v280, %v1350
      %1352 = vmatmul.bf16.gmra.mxu0 %v399
      %v1353 = vpop.f32.mrf.mxu0
      %v1354 = vadd.f32 %v280, %v1353
      %v1355 = vpop.f32.mrf.mxu0
      %v1356 = vadd.f32 %v280, %v1355
      %1357 = vmatmul.bf16.gmra.mxu0 %v401
      %v1358 = vpop.f32.mrf.mxu0
      %v1359 = vadd.f32 %v280, %v1358
      %v1360 = vpop.f32.mrf.mxu0
      %v1361 = vadd.f32 %v280, %v1360
      %1362 = vmatmul.bf16.gmra.mxu0 %v403
      %v1363 = vpop.f32.mrf.mxu0
      %v1364 = vadd.f32 %v280, %v1363
      %v1365 = vpop.f32.mrf.mxu0
      %v1366 = vadd.f32 %v280, %v1365
      %1367 = vmatmul.bf16.gmra.mxu0 %v405
      %v1368 = vpop.f32.mrf.mxu0
      %v1369 = vadd.f32 %v280, %v1368
      %v1370 = vpop.f32.mrf.mxu0
      %v1371 = vadd.f32 %v280, %v1370
      %1372 = vmatmul.bf16.gmra.mxu0 %v407
      %v1373 = vpop.f32.mrf.mxu0
      %v1374 = vadd.f32 %v280, %v1373
      %v1375 = vpop.f32.mrf.mxu0
      %v1376 = vadd.f32 %v280, %v1375
      %1377 = vmatmul.bf16.gmra.mxu0 %v409
      %v1378 = vpop.f32.mrf.mxu0
      %v1379 = vadd.f32 %v280, %v1378
      %v1380 = vpop.f32.mrf.mxu0
      %v1381 = vadd.f32 %v280, %v1380
      %1382 = vmatmul.bf16.gmra.mxu0 %v411
      %v1383 = vpop.f32.mrf.mxu0
      %v1384 = vadd.f32 %v280, %v1383
      %v1385 = vpop.f32.mrf.mxu0
      %v1386 = vadd.f32 %v280, %v1385
      %1387 = vdwg.mxu0
      %1388 = vmatpush.bf16.msra.mxu0 %v700
      %1389 = vmatpush.bf16.msra.mxu0 %v696
      %1390 = vmatpush.bf16.msra.mxu0 %v692
      %1391 = vmatpush.bf16.msra.mxu0 %v688
      %1392 = vmatpush.bf16.msra.mxu0 %v684
      %1393 = vmatpush.bf16.msra.mxu0 %v680
      %1394 = vmatpush.bf16.msra.mxu0 %v676
      %1395 = vmatpush.bf16.msra.mxu0 %v672
      %1396 = vmatmul.bf16.gmra.mxu0 %v382
      %v1397 = vpop.f32.mrf.mxu0
      %v1398 = vadd.f32 %v1309, %v1397
      %v1399 = vpop.f32.mrf.mxu0
      %v1400 = vadd.f32 %v1311, %v1399
      %1401 = vmatmul.bf16.gmra.mxu0 %v384
      %v1402 = vpop.f32.mrf.mxu0
      %v1403 = vadd.f32 %v1314, %v1402
      %v1404 = vpop.f32.mrf.mxu0
      %v1405 = vadd.f32 %v1316, %v1404
      %1406 = vmatmul.bf16.gmra.mxu0 %v386
      %v1407 = vpop.f32.mrf.mxu0
      %v1408 = vadd.f32 %v1319, %v1407
      %v1409 = vpop.f32.mrf.mxu0
      %v1410 = vadd.f32 %v1321, %v1409
      %1411 = vmatmul.bf16.gmra.mxu0 %v388
      %v1412 = vpop.f32.mrf.mxu0
      %v1413 = vadd.f32 %v1324, %v1412
      %v1414 = vpop.f32.mrf.mxu0
      %v1415 = vadd.f32 %v1326, %v1414
      %1416 = vmatmul.bf16.gmra.mxu0 %v390
      %v1417 = vpop.f32.mrf.mxu0
      %v1418 = vadd.f32 %v1329, %v1417
      %v1419 = vpop.f32.mrf.mxu0
      %v1420 = vadd.f32 %v1331, %v1419
      %1421 = vmatmul.bf16.gmra.mxu0 %v392
      %v1422 = vpop.f32.mrf.mxu0
      %v1423 = vadd.f32 %v1334, %v1422
      %v1424 = vpop.f32.mrf.mxu0
      %v1425 = vadd.f32 %v1336, %v1424
      %1426 = vmatmul.bf16.gmra.mxu0 %v394
      %v1427 = vpop.f32.mrf.mxu0
      %v1428 = vadd.f32 %v1339, %v1427
      %v1429 = vpop.f32.mrf.mxu0
      %v1430 = vadd.f32 %v1341, %v1429
      %1431 = vmatmul.bf16.gmra.mxu0 %v396
      %v1432 = vpop.f32.mrf.mxu0
      %v1433 = vadd.f32 %v1344, %v1432
      %v1434 = vpop.f32.mrf.mxu0
      %v1435 = vadd.f32 %v1346, %v1434
      %1436 = vmatmul.bf16.gmra.mxu0 %v398
      %v1437 = vpop.f32.mrf.mxu0
      %v1438 = vadd.f32 %v1349, %v1437
      %v1439 = vpop.f32.mrf.mxu0
      %v1440 = vadd.f32 %v1351, %v1439
      %1441 = vmatmul.bf16.gmra.mxu0 %v400
      %v1442 = vpop.f32.mrf.mxu0
      %v1443 = vadd.f32 %v1354, %v1442
      %v1444 = vpop.f32.mrf.mxu0
      %v1445 = vadd.f32 %v1356, %v1444
      %1446 = vmatmul.bf16.gmra.mxu0 %v402
      %v1447 = vpop.f32.mrf.mxu0
      %v1448 = vadd.f32 %v1359, %v1447
      %v1449 = vpop.f32.mrf.mxu0
      %v1450 = vadd.f32 %v1361, %v1449
      %1451 = vmatmul.bf16.gmra.mxu0 %v404
      %v1452 = vpop.f32.mrf.mxu0
      %v1453 = vadd.f32 %v1364, %v1452
      %v1454 = vpop.f32.mrf.mxu0
      %v1455 = vadd.f32 %v1366, %v1454
      %1456 = vmatmul.bf16.gmra.mxu0 %v406
      %v1457 = vpop.f32.mrf.mxu0
      %v1458 = vadd.f32 %v1369, %v1457
      %v1459 = vpop.f32.mrf.mxu0
      %v1460 = vadd.f32 %v1371, %v1459
      %1461 = vmatmul.bf16.gmra.mxu0 %v408
      %v1462 = vpop.f32.mrf.mxu0
      %v1463 = vadd.f32 %v1374, %v1462
      %v1464 = vpop.f32.mrf.mxu0
      %v1465 = vadd.f32 %v1376, %v1464
      %1466 = vmatmul.bf16.gmra.mxu0 %v410
      %v1467 = vpop.f32.mrf.mxu0
      %v1468 = vadd.f32 %v1379, %v1467
      %v1469 = vpop.f32.mrf.mxu0
      %v1470 = vadd.f32 %v1381, %v1469
      %1471 = vmatmul.bf16.gmra.mxu0 %v412
      %v1472 = vpop.f32.mrf.mxu0
      %v1473 = vadd.f32 %v1384, %v1472
      %v1474 = vpop.f32.mrf.mxu0
      %v1475 = vadd.f32 %v1386, %v1474
      %1476 = vdwg.mxu0
      %1477 = vst [vmem:[%s177] sm:$0xff] %v864
      %1478 = vst [vmem:[%s177 + $0x8] sm:$0xff] %v1042
      %1479 = vst [vmem:[%s177 + $0x10] sm:$0xff] %v1220
      %1480 = vst [vmem:[%s177 + $0x18] sm:$0xff] %v1398
      %1481 = vst [vmem:[%s177 + $0x20] sm:$0xff] %v866
      %1482 = vst [vmem:[%s177 + $0x28] sm:$0xff] %v1044
      %1483 = vst [vmem:[%s177 + $0x30] sm:$0xff] %v1222
      %1484 = vst [vmem:[%s177 + $0x38] sm:$0xff] %v1400
      %1485 = vst [vmem:[%s177 + $0x40] sm:$0xff] %v869
      %1486 = vst [vmem:[%s177 + $0x48] sm:$0xff] %v1047
      %1487 = vst [vmem:[%s177 + $0x50] sm:$0xff] %v1225
      %1488 = vst [vmem:[%s177 + $0x58] sm:$0xff] %v1403
      %1489 = vst [vmem:[%s177 + $0x60] sm:$0xff] %v871
      %1490 = vst [vmem:[%s177 + $0x68] sm:$0xff] %v1049
      %1491 = vst [vmem:[%s177 + $0x70] sm:$0xff] %v1227
      %1492 = vst [vmem:[%s177 + $0x78] sm:$0xff] %v1405
      %1493 = vst [vmem:[%s177 + $0x80] sm:$0xff] %v874
      %1494 = vst [vmem:[%s177 + $0x88] sm:$0xff] %v1052
      %1495 = vst [vmem:[%s177 + $0x90] sm:$0xff] %v1230
      %1496 = vst [vmem:[%s177 + $0x98] sm:$0xff] %v1408
      %1497 = vst [vmem:[%s177 + $0xa0] sm:$0xff] %v876
      %1498 = vst [vmem:[%s177 + $0xa8] sm:$0xff] %v1054
      %1499 = vst [vmem:[%s177 + $0xb0] sm:$0xff] %v1232
      %1500 = vst [vmem:[%s177 + $0xb8] sm:$0xff] %v1410
      %1501 = vst [vmem:[%s177 + $0xc0] sm:$0xff] %v879
      %1502 = vst [vmem:[%s177 + $0xc8] sm:$0xff] %v1057
      %1503 = vst [vmem:[%s177 + $0xd0] sm:$0xff] %v1235
      %1504 = vst [vmem:[%s177 + $0xd8] sm:$0xff] %v1413
      %1505 = vst [vmem:[%s177 + $0xe0] sm:$0xff] %v881
      %1506 = vst [vmem:[%s177 + $0xe8] sm:$0xff] %v1059
      %1507 = vst [vmem:[%s177 + $0xf0] sm:$0xff] %v1237
      %1508 = vst [vmem:[%s177 + $0xf8] sm:$0xff] %v1415
      %1509 = vst [vmem:[%s177 + $0x100] sm:$0xff] %v884
      %1510 = vst [vmem:[%s177 + $0x108] sm:$0xff] %v1062
      %1511 = vst [vmem:[%s177 + $0x110] sm:$0xff] %v1240
      %1512 = vst [vmem:[%s177 + $0x118] sm:$0xff] %v1418
      %1513 = vst [vmem:[%s177 + $0x120] sm:$0xff] %v886
      %1514 = vst [vmem:[%s177 + $0x128] sm:$0xff] %v1064
      %1515 = vst [vmem:[%s177 + $0x130] sm:$0xff] %v1242
      %1516 = vst [vmem:[%s177 + $0x138] sm:$0xff] %v1420
      %1517 = vst [vmem:[%s177 + $0x140] sm:$0xff] %v889
      %1518 = vst [vmem:[%s177 + $0x148] sm:$0xff] %v1067
      %1519 = vst [vmem:[%s177 + $0x150] sm:$0xff] %v1245
      %1520 = vst [vmem:[%s177 + $0x158] sm:$0xff] %v1423
      %1521 = vst [vmem:[%s177 + $0x160] sm:$0xff] %v891
      %1522 = vst [vmem:[%s177 + $0x168] sm:$0xff] %v1069
      %1523 = vst [vmem:[%s177 + $0x170] sm:$0xff] %v1247
      %1524 = vst [vmem:[%s177 + $0x178] sm:$0xff] %v1425
      %1525 = vst [vmem:[%s177 + $0x180] sm:$0xff] %v894
      %1526 = vst [vmem:[%s177 + $0x188] sm:$0xff] %v1072
      %1527 = vst [vmem:[%s177 + $0x190] sm:$0xff] %v1250
      %1528 = vst [vmem:[%s177 + $0x198] sm:$0xff] %v1428
      %1529 = vst [vmem:[%s177 + $0x1a0] sm:$0xff] %v896
      %1530 = vst [vmem:[%s177 + $0x1a8] sm:$0xff] %v1074
      %1531 = vst [vmem:[%s177 + $0x1b0] sm:$0xff] %v1252
      %1532 = vst [vmem:[%s177 + $0x1b8] sm:$0xff] %v1430
      %1533 = vst [vmem:[%s177 + $0x1c0] sm:$0xff] %v899
      %1534 = vst [vmem:[%s177 + $0x1c8] sm:$0xff] %v1077
      %1535 = vst [vmem:[%s177 + $0x1d0] sm:$0xff] %v1255
      %1536 = vst [vmem:[%s177 + $0x1d8] sm:$0xff] %v1433
      %1537 = vst [vmem:[%s177 + $0x1e0] sm:$0xff] %v901
      %1538 = vst [vmem:[%s177 + $0x1e8] sm:$0xff] %v1079
      %1539 = vst [vmem:[%s177 + $0x1f0] sm:$0xff] %v1257
      %1540 = vst [vmem:[%s177 + $0x1f8] sm:$0xff] %v1435
      %1541 = vst [vmem:[%s177 + $0x200] sm:$0xff] %v904
      %1542 = vst [vmem:[%s177 + $0x208] sm:$0xff] %v1082
      %1543 = vst [vmem:[%s177 + $0x210] sm:$0xff] %v1260
      %1544 = vst [vmem:[%s177 + $0x218] sm:$0xff] %v1438
      %1545 = vst [vmem:[%s177 + $0x220] sm:$0xff] %v906
      %1546 = vst [vmem:[%s177 + $0x228] sm:$0xff] %v1084
      %1547 = vst [vmem:[%s177 + $0x230] sm:$0xff] %v1262
      %1548 = vst [vmem:[%s177 + $0x238] sm:$0xff] %v1440
      %1549 = vst [vmem:[%s177 + $0x240] sm:$0xff] %v909
      %1550 = vst [vmem:[%s177 + $0x248] sm:$0xff] %v1087
      %1551 = vst [vmem:[%s177 + $0x250] sm:$0xff] %v1265
      %1552 = vst [vmem:[%s177 + $0x258] sm:$0xff] %v1443
      %1553 = vst [vmem:[%s177 + $0x260] sm:$0xff] %v911
      %1554 = vst [vmem:[%s177 + $0x268] sm:$0xff] %v1089
      %1555 = vst [vmem:[%s177 + $0x270] sm:$0xff] %v1267
      %1556 = vst [vmem:[%s177 + $0x278] sm:$0xff] %v1445
      %1557 = vst [vmem:[%s177 + $0x280] sm:$0xff] %v914
      %1558 = vst [vmem:[%s177 + $0x288] sm:$0xff] %v1092
      %1559 = vst [vmem:[%s177 + $0x290] sm:$0xff] %v1270
      %1560 = vst [vmem:[%s177 + $0x298] sm:$0xff] %v1448
      %1561 = vst [vmem:[%s177 + $0x2a0] sm:$0xff] %v916
      %1562 = vst [vmem:[%s177 + $0x2a8] sm:$0xff] %v1094
      %1563 = vst [vmem:[%s177 + $0x2b0] sm:$0xff] %v1272
      %1564 = vst [vmem:[%s177 + $0x2b8] sm:$0xff] %v1450
      %1565 = vst [vmem:[%s177 + $0x2c0] sm:$0xff] %v919
      %1566 = vst [vmem:[%s177 + $0x2c8] sm:$0xff] %v1097
      %1567 = vst [vmem:[%s177 + $0x2d0] sm:$0xff] %v1275
      %1568 = vst [vmem:[%s177 + $0x2d8] sm:$0xff] %v1453
      %1569 = vst [vmem:[%s177 + $0x2e0] sm:$0xff] %v921
      %1570 = vst [vmem:[%s177 + $0x2e8] sm:$0xff] %v1099
      %1571 = vst [vmem:[%s177 + $0x2f0] sm:$0xff] %v1277
      %1572 = vst [vmem:[%s177 + $0x2f8] sm:$0xff] %v1455
      %1573 = vst [vmem:[%s177 + $0x300] sm:$0xff] %v924
      %1574 = vst [vmem:[%s177 + $0x308] sm:$0xff] %v1102
      %1575 = vst [vmem:[%s177 + $0x310] sm:$0xff] %v1280
      %1576 = vst [vmem:[%s177 + $0x318] sm:$0xff] %v1458
      %1577 = vst [vmem:[%s177 + $0x320] sm:$0xff] %v926
      %1578 = vst [vmem:[%s177 + $0x328] sm:$0xff] %v1104
      %1579 = vst [vmem:[%s177 + $0x330] sm:$0xff] %v1282
      %1580 = vst [vmem:[%s177 + $0x338] sm:$0xff] %v1460
      %1581 = vst [vmem:[%s177 + $0x340] sm:$0xff] %v929
      %1582 = vst [vmem:[%s177 + $0x348] sm:$0xff] %v1107
      %1583 = vst [vmem:[%s177 + $0x350] sm:$0xff] %v1285
      %1584 = vst [vmem:[%s177 + $0x358] sm:$0xff] %v1463
      %1585 = vst [vmem:[%s177 + $0x360] sm:$0xff] %v931
      %1586 = vst [vmem:[%s177 + $0x368] sm:$0xff] %v1109
      %1587 = vst [vmem:[%s177 + $0x370] sm:$0xff] %v1287
      %1588 = vst [vmem:[%s177 + $0x378] sm:$0xff] %v1465
      %1589 = vst [vmem:[%s177 + $0x380] sm:$0xff] %v934
      %1590 = vst [vmem:[%s177 + $0x388] sm:$0xff] %v1112
      %1591 = vst [vmem:[%s177 + $0x390] sm:$0xff] %v1290
      %1592 = vst [vmem:[%s177 + $0x398] sm:$0xff] %v1468
      %1593 = vst [vmem:[%s177 + $0x3a0] sm:$0xff] %v936
      %1594 = vst [vmem:[%s177 + $0x3a8] sm:$0xff] %v1114
      %1595 = vst [vmem:[%s177 + $0x3b0] sm:$0xff] %v1292
      %1596 = vst [vmem:[%s177 + $0x3b8] sm:$0xff] %v1470
      %1597 = vst [vmem:[%s177 + $0x3c0] sm:$0xff] %v939
      %1598 = vst [vmem:[%s177 + $0x3c8] sm:$0xff] %v1117
      %1599 = vst [vmem:[%s177 + $0x3d0] sm:$0xff] %v1295
      %1600 = vst [vmem:[%s177 + $0x3d8] sm:$0xff] %v1473
      %1601 = vst [vmem:[%s177 + $0x3e0] sm:$0xff] %v941
      %1602 = vst [vmem:[%s177 + $0x3e8] sm:$0xff] %v1119
      %1603 = vst [vmem:[%s177 + $0x3f0] sm:$0xff] %v1297
      %1604 = vst [vmem:[%s177 + $0x3f8] sm:$0xff] %v1475
      %s1605 = smul.u32 32, %s14
      %p1606 = scmp.lt.s32.totalorder %s1605, 63
      %s1607 = scalar_select %p1606, %s1605, 63
      %s1608 = smul.addr %s1607, 4
      %s1609 = smul.addr %s1608, 8
      %s1610 = scalar_lea.vmem %s3, %s1609
      // Predicated region
      $region33: #{wae_forward.15} parent=31 // pred_check
        %p1611 = pneg %p100
      $region34: #{wae_forward.15} parent=31 // pred_check_branch
        %1613 = sbr.rel (%p1611) target = $region36
      $region35: #{wae_forward.15} parent=31 // pred_region
        %s1614 = smul.u32 32, %s14
      $region36: #{wae_forward.15} parent=31 // pred_fallthru
        _
    $region32: #{wae_forward.15} parent=5 // pred_fallthru
      _
    %p1615 = scmp.le.s32.totalorder 2, %s9
    // Predicated region
    $region37: #{wae_forward.15} parent=5 // pred_check
      %p1616 = pneg %p1615
    $region38: #{wae_forward.15} parent=5 // pred_check_branch
      %1618 = sbr.rel (%p1616) target = $region40
    $region39: #{wae_forward.15} parent=5 // pred_region
      %s1619 = ssub.s32 %s9, 2
      // Predicated region
      $region41: #{wae_forward.15} parent=39 // pred_check
        %p1620 = pneg %p106
      $region42: #{wae_forward.15} parent=39 // pred_check_branch
        %1622 = sbr.rel (%p1620) target = $region44
      $region43: #{wae_forward.15} parent=39 // pred_region
        %s1623 = smul.u32 32, %s15
        %p1624 = scmp.lt.s32.totalorder %s1623, 63
        %s1625 = scalar_select %p1624, %s1623, 63
        %s1626 = smul.addr %s1625, 4
        %s1627 = smul.addr %s1626, 8
        %s1628 = scalar_lea.vmem %s3, %s1627
      $region44: #{wae_forward.15} parent=39 // pred_fallthru
        _
    $region40: #{wae_forward.15} parent=5 // pred_fallthru
      _
  $region6: #{wae_forward.15} parent=0 // loop_footer
    %s13 = sadd.s32 1, %s9
  $region7: #{wae_forward.15} parent=0 // loop_footer_branch
    %8 = sbr.rel target = $region3
  $region8: #{wae_forward.15} parent=0 // loop_exit
    _

</llo_original>
